<compile_context>
chip_gen: v5e
topology: v5e:2x2
jax: 0.10.0
libtpu: 0.0.40
codegen_flags: <defaults>
</compile_context>

<pallas_src>
import functools

import jax
import jax.numpy as jnp
from jax.experimental import pallas as pl
from jax.experimental.pallas import tpu as pltpu

LANE = 128


def _round_up(x, m):
    return (x + m - 1) // m * m


def cnn_kernel(ids_ref, lpos_ref, ew_ref, w1_ref, w2_ref, out_ref, *,
               batch_block, seq_len, out_size, n_taps):
    rows = ids_ref.shape[0]                    # batch_block * seq_len
    Vp = ew_ref.shape[0]
    Cp = w1_ref.shape[0]
    K = n_taps
    pad = K // 2
    hi = jax.lax.Precision.HIGHEST

    # --- fused embed + Conv1d: ONE one-hot of the centre ids, ONE MXU matmul
    #     against the folded (embedding x conv taps [+ bias/ones-carrier]) table.
    ids = ids_ref[...]                                              # (rows, 1) i32
    v_iota = jax.lax.broadcasted_iota(jnp.int32, (1, Vp), 1)        # (1, Vp)
    onehot = (ids == v_iota).astype(jnp.float32)                    # (rows, Vp)
    taps = jnp.dot(onehot, ew_ref[...],
                   preferred_element_type=jnp.float32,
                   precision=hi)                                    # (rows, K*Cp)

    # --- combine taps with sublane rolls + boundary masks (== zero padding).
    #     Conv bias + ones-carrier live only in the centre tap, which every
    #     output position selects exactly once.
    l_pos = lpos_ref[...]                                           # (rows, 1) i32
    conv = taps[:, pad * Cp:(pad + 1) * Cp]                         # centre tap
    for k in range(K):                                              # static, K == 3
        d = k - pad
        if d == 0:
            continue
        # row r receives tap k's output of row r + d (roll toward higher rows by -d)
        piece = pltpu.roll(taps[:, k * Cp:(k + 1) * Cp],
                           shift=(-d) % rows, axis=0)
        if d < 0:
            valid = l_pos >= -d                                     # no left neighbour at l < -d
        else:
            valid = l_pos < seq_len - d                             # no right neighbour at l >= L-d
        conv = conv + piece * valid.astype(jnp.float32)
    conv = jnp.maximum(conv, 0.0)                                   # ReLU (Dropout == id)

    # --- MaxPoolOvertime per batch tile: sublane-aligned VPU max tree + one
    #     8-deep reduce.  conv[:, C] == 1 carrier survives the max exactly.
    c3 = conv.reshape(batch_block, seq_len, Cp)
    cur = seq_len
    while cur > 8 and cur % 2 == 0 and (cur // 2) % 8 == 0:
        half = cur // 2
        c3 = jnp.maximum(c3[:, :half, :], c3[:, half:, :])
        cur = half
    pooled = jnp.max(c3, axis=1)                                    # (TB, Cp)

    # --- MLP (fc biases folded into w1/w2 via the carrier lane) -> Softmax ---
    h = jnp.maximum(jnp.dot(pooled, w1_ref[...],
                            preferred_element_type=jnp.float32,
                            precision=hi), 0.0)
    logits = jnp.dot(h, w2_ref[...],
                     preferred_element_type=jnp.float32, precision=hi)

    # mask padded output lanes so softmax only covers the real `out_size` classes
    lane = jax.lax.broadcasted_iota(jnp.int32, (1, logits.shape[1]), 1)
    logits = jnp.where(lane < out_size, logits, -1e30)
    m = jnp.max(logits, axis=1, keepdims=True)
    e = jnp.exp(logits - m)
    # Exact divide (pl.reciprocal(approx=True) is cheaper on the EUP but would
    # loosen the tight f32 match against the reference).
    out_ref[...] = (e / jnp.sum(e, axis=1, keepdims=True)).astype(out_ref.dtype)


def prepare_cnn_params(params):
    """One-time (hoisted) fold of the torch weights into Pallas-friendly tables."""
    hi = jax.lax.Precision.HIGHEST
    emb = params["embedding"].astype(jnp.float32)        # (V, E)
    conv_w = params["conv_w"].astype(jnp.float32)        # torch layout (C, E, K)
    conv_b = params["conv_b"].astype(jnp.float32)
    fc1_w = params["fc1_w"].astype(jnp.float32)          # (H, C)
    fc1_b = params["fc1_b"].astype(jnp.float32)
    fc2_w = params["fc2_w"].astype(jnp.float32)          # (O, H)
    fc2_b = params["fc2_b"].astype(jnp.float32)

    V, E = emb.shape
    C, _, K = conv_w.shape
    H = fc1_w.shape[0]
    O = fc2_w.shape[0]

    Vp = _round_up(V + 1, LANE)   # +1: zero sentinel row used for batch padding
    Cp = _round_up(C + 1, LANE)   # +1: ones/bias carrier lane at column C
    Hp = _round_up(H + 1, LANE)   # +1: carrier lane at column H
    Op = _round_up(O, LANE)

    # Folded gather+conv table: ew[v, k*Cp + c] = emb[v, :] . W_k[:, c]
    emb_ext = jnp.zeros((Vp, E), jnp.float32).at[:V].set(emb)
    ewk = jnp.einsum("ve,cek->vkc", emb_ext, conv_w, precision=hi)   # (Vp, K, C)
    ew = jnp.zeros((Vp, K, Cp), jnp.float32).at[:, :, :C].set(ewk)
    mid = K // 2
    ew = ew.at[:, mid, :C].add(conv_b)   # conv bias: centre tap selected exactly once/row
    ew = ew.at[:, mid, C].set(1.0)       # ones carrier -> pooled[:, C] == 1
    ew = ew.reshape(Vp, K * Cp)

    w1 = jnp.zeros((Cp, Hp), jnp.float32).at[:C, :H].set(fc1_w.T)
    w1 = w1.at[C, :H].set(fc1_b)         # fc1 bias via carrier lane
    w1 = w1.at[C, H].set(1.0)            # propagate carrier -> h[:, H] == 1
    w2 = jnp.zeros((Hp, Op), jnp.float32).at[:H, :O].set(fc2_w.T)
    w2 = w2.at[H, :O].set(fc2_b)         # fc2 bias via carrier lane

    meta = dict(V=V, C=C, H=H, O=O, K=K, Vp=Vp, Cp=Cp, Hp=Hp, Op=Op)
    return dict(ew=ew, w1=w1, w2=w2, meta=meta)


@functools.partial(jax.jit,
                   static_argnames=("sentinel_id", "out_size", "n_taps", "batch_block"))
def cnn_forward(x_ids, ew, w1, w2, *, sentinel_id, out_size, n_taps, batch_block=16):
    """Pallas forward.  x_ids: (N, L) int token ids -> (N, out_size) softmax probs."""
    N, L = x_ids.shape
    TB = batch_block
    assert TB % 8 == 0, "batch_block must be a sublane multiple"
    Vp, KCp = ew.shape
    Cp, Hp = w1.shape
    Op = w2.shape[1]
    K = n_taps

    # Keep the 1-D "parallel" grid even (and >= 2) so both v7x TensorCores get
    # work; rows = TB*L (= 256 here) fills the 256-wide MXU on v6e/v7x.
    Np = _round_up(N, 2 * TB)
    rows = TB * L

    # Only the ids (4 B/token) are shipped to the kernel; batch-pad rows hit the
    # zeroed sentinel row of the folded table.  Token ids must lie in [0, V].
    ids = jnp.pad(x_ids.astype(jnp.int32), ((0, Np - N), (0, 0)),
                  constant_values=sentinel_id)
    ids = ids.reshape(Np * L, 1)
    # Per-row sequence position (identical for every tile) drives the conv
    # boundary masks in-kernel.
    l_pos = jnp.tile(jnp.arange(L, dtype=jnp.int32), TB).reshape(rows, 1)

    kernel = functools.partial(cnn_kernel, batch_block=TB, seq_len=L,
                               out_size=out_size, n_taps=K)

    out = pl.pallas_call(
        kernel,
        out_shape=jax.ShapeDtypeStruct((Np, Op), jnp.float32),
        grid=(Np // TB,),
        in_specs=[
            pl.BlockSpec((rows, 1), lambda b: (b, 0)),     # per-tile token ids
            pl.BlockSpec((rows, 1), lambda b: (0, 0)),     # per-row seq position
            pl.BlockSpec((Vp, KCp), lambda b: (0, 0)),     # VMEM-resident folded table
            pl.BlockSpec((Cp, Hp), lambda b: (0, 0)),
            pl.BlockSpec((Hp, Op), lambda b: (0, 0)),
        ],
        out_specs=pl.BlockSpec((TB, Op), lambda b: (b, 0)),  # lane-dense output slab
        compiler_params=pltpu.CompilerParams(
            dimension_semantics=("parallel",)),               # megacore on v7x
    )(ids, l_pos, ew, w1, w2)

    return out[:N, :out_size]


def cnn_forward_ref(x_ids, params):
    """Pure-JAX reference mirroring the PyTorch module (for verification)."""
    hi = jax.lax.Precision.HIGHEST
    x_emb = jnp.take(params["embedding"], x_ids, axis=0)     # (N, L, E)
    N, L, E = x_emb.shape
    conv_w = params["conv_w"]                                 # (C, E, K)
    C, _, K = conv_w.shape
    pad = K // 2
    x_pad = jnp.pad(x_emb, ((0, 0), (pad, pad), (0, 0)))
    out = jnp.zeros((N, L, C), jnp.float32)
    for k in range(K):
        out = out + jnp.einsum("nle,ce->nlc", x_pad[:, k:k + L, :],
                               conv_w[:, :, k], precision=hi)
    out = out + params["conv_b"][None, None, :]
    out = jnp.maximum(out, 0.0)
    pooled = jnp.max(out, axis=1)                             # (N, C)
    h = jnp.maximum(jnp.dot(pooled, params["fc1_w"].T, precision=hi)
                    + params["fc1_b"], 0.0)
    logits = jnp.dot(h, params["fc2_w"].T, precision=hi) + params["fc2_b"]
    return jax.nn.softmax(logits, axis=1)


if __name__ == "__main__":
    # Small, forward-consistent shapes (vocab, embed, hidden_channel, hidden_dim,
    # out_size, kernel; batch, max_len).
    V, E, C, H, O, K = 50, 32, 32, 32, 7, 3
    N, L = 16, 16

    key = jax.random.PRNGKey(0)
    ks = jax.random.split(key, 8)
    params = {
        "embedding": jax.random.normal(ks[0], (V, E), jnp.float32) * 0.1,
        "conv_w":    jax.random.normal(ks[1], (C, E, K), jnp.float32) * 0.05,
        "conv_b":    jax.random.normal(ks[2], (C,), jnp.float32) * 0.05,
        "fc1_w":     jax.random.normal(ks[3], (H, C), jnp.float32) * 0.05,
        "fc1_b":     jax.random.normal(ks[4], (H,), jnp.float32) * 0.05,
        "fc2_w":     jax.random.normal(ks[5], (O, H), jnp.float32) * 0.05,
        "fc2_b":     jax.random.normal(ks[6], (O,), jnp.float32) * 0.05,
    }
    # Token ids stand in for the string sentences fed to embed().
    # TODO(synk): the original embed() does host-side python-dict string lookups;
    # modeled here as integer token ids (no TPU equivalent for dict lookups).
    x_ids = jax.random.randint(ks[7], (N, L), 0, V)
    assert int(jnp.min(x_ids)) >= 0 and int(jnp.max(x_ids)) < V, "token id out of range"

    prep = prepare_cnn_params(params)          # one-time weight fold (hoisted)
    m = prep["meta"]
    out = cnn_forward(x_ids, prep["ew"], prep["w1"], prep["w2"],
                      sentinel_id=m["V"], out_size=m["O"], n_taps=m["K"],
                      batch_block=16)
    out = jax.block_until_ready(out)
    ref = cnn_forward_ref(x_ids, params)

    assert out.shape == (N, O)
    assert jnp.allclose(jnp.sum(out, axis=1), 1.0, atol=1e-5)
    assert jnp.allclose(out, ref, atol=5e-5, rtol=5e-5), (out, ref)

    print("KERNEL_OK")
</pallas_src>

<mosaic_0001>
module attributes {stable_mosaic.version = 11 : i64} {
  func.func @cnn_kernel(%arg0: i32, %arg1: memref<256x1xi32, #tpu.memory_space<vmem>>, %arg2: memref<256x1xi32, #tpu.memory_space<vmem>>, %arg3: memref<128x384xf32, #tpu.memory_space<vmem>>, %arg4: memref<128x128xf32, #tpu.memory_space<vmem>>, %arg5: memref<128x128xf32, #tpu.memory_space<vmem>>, %arg6: memref<16x128xf32, #tpu.memory_space<vmem>>) attributes {dimension_semantics = [#tpu.dimension_semantics<parallel>], iteration_bounds = array<i64: 2>, scalar_prefetch = 0 : i64, scratch_operands = 0 : i64, tpu.core_type = #tpu.core_type<tc>, window_params = [{transform_indices = @transform_0, window_bounds = array<i64: 256, 1>}, {pipeline_mode = #tpu.pipeline_mode<synchronous>, transform_indices = @transform_1, window_bounds = array<i64: 256, 1>}, {pipeline_mode = #tpu.pipeline_mode<synchronous>, transform_indices = @transform_2, window_bounds = array<i64: 128, 384>}, {pipeline_mode = #tpu.pipeline_mode<synchronous>, transform_indices = @transform_3, window_bounds = array<i64: 128, 128>}, {pipeline_mode = #tpu.pipeline_mode<synchronous>, transform_indices = @transform_4, window_bounds = array<i64: 128, 128>}, {transform_indices = @transform_5, window_bounds = array<i64: 16, 128>}]} {
    %c0 = arith.constant 0 : index
    %c0_0 = arith.constant 0 : index
    %0 = vector.load %arg1[%c0, %c0_0] : memref<256x1xi32, #tpu.memory_space<vmem>>, vector<256x1xi32>
    %1 = tpu.iota {dimensions = array<i32: 1>} : vector<1x128xi32>
    %2 = vector.broadcast %0 : vector<256x1xi32> to vector<256x128xi32>
    %3 = vector.broadcast %1 : vector<1x128xi32> to vector<256x128xi32>
    %4 = arith.cmpi eq, %2, %3 : vector<256x128xi32>
    %5 = arith.extui %4 : vector<256x128xi1> to vector<256x128xi32>
    %6 = arith.sitofp %5 : vector<256x128xi32> to vector<256x128xf32>
    %c0_1 = arith.constant 0 : index
    %c0_2 = arith.constant 0 : index
    %7 = vector.load %arg3[%c0_1, %c0_2] : memref<128x384xf32, #tpu.memory_space<vmem>>, vector<128x384xf32>
    %cst = arith.constant dense<0.000000e+00> : vector<256x384xf32>
    %8 = tpu.matmul %6, %7, %cst {dimension_numbers = #tpu.dot_dimension_numbers<[1], [0], [0], [1], [0, 0, 1, 1], [], []>, precision = #tpu.contract_precision<fp32>} : vector<256x128xf32>, vector<128x384xf32>, vector<256x384xf32> -> vector<256x384xf32>
    %c0_3 = arith.constant 0 : index
    %c0_4 = arith.constant 0 : index
    %9 = vector.load %arg2[%c0_3, %c0_4] : memref<256x1xi32, #tpu.memory_space<vmem>>, vector<256x1xi32>
    %10 = vector.extract_strided_slice %8 {offsets = [0, 128], sizes = [256, 128], strides = [1, 1]} : vector<256x384xf32> to vector<256x128xf32>
    %11 = vector.extract_strided_slice %8 {offsets = [0, 0], sizes = [256, 128], strides = [1, 1]} : vector<256x384xf32> to vector<256x128xf32>
    %c1_i32 = arith.constant 1 : i32
    %12 = tpu.dynamic_rotate %11 by %c1_i32 dim 0 : vector<256x128xf32>, i32 -> vector<256x128xf32>
    %c1_i32_5 = arith.constant 1 : i32
    %13 = vector.broadcast %c1_i32_5 : i32 to vector<256x1xi32>
    %14 = arith.cmpi sge, %9, %13 : vector<256x1xi32>
    %15 = arith.extui %14 : vector<256x1xi1> to vector<256x1xi32>
    %16 = arith.sitofp %15 : vector<256x1xi32> to vector<256x1xf32>
    %17 = vector.broadcast %16 : vector<256x1xf32> to vector<256x128xf32>
    %18 = arith.mulf %12, %17 : vector<256x128xf32>
    %19 = arith.addf %10, %18 : vector<256x128xf32>
    %20 = vector.extract_strided_slice %8 {offsets = [0, 256], sizes = [256, 128], strides = [1, 1]} : vector<256x384xf32> to vector<256x128xf32>
    %c255_i32 = arith.constant 255 : i32
    %21 = tpu.dynamic_rotate %20 by %c255_i32 dim 0 : vector<256x128xf32>, i32 -> vector<256x128xf32>
    %c15_i32 = arith.constant 15 : i32
    %22 = vector.broadcast %c15_i32 : i32 to vector<256x1xi32>
    %23 = arith.cmpi slt, %9, %22 : vector<256x1xi32>
    %24 = arith.extui %23 : vector<256x1xi1> to vector<256x1xi32>
    %25 = arith.sitofp %24 : vector<256x1xi32> to vector<256x1xf32>
    %26 = vector.broadcast %25 : vector<256x1xf32> to vector<256x128xf32>
    %27 = arith.mulf %21, %26 : vector<256x128xf32>
    %28 = arith.addf %19, %27 : vector<256x128xf32>
    %cst_6 = arith.constant 0.000000e+00 : f32
    %29 = vector.broadcast %cst_6 : f32 to vector<256x128xf32>
    %30 = arith.maximumf %28, %29 : vector<256x128xf32>
    %31 = vector.shape_cast %30 : vector<256x128xf32> to vector<16x16x128xf32>
    %32 = vector.extract_strided_slice %31 {offsets = [0, 0, 0], sizes = [16, 8, 128], strides = [1, 1, 1]} : vector<16x16x128xf32> to vector<16x8x128xf32>
    %33 = vector.extract_strided_slice %31 {offsets = [0, 8, 0], sizes = [16, 8, 128], strides = [1, 1, 1]} : vector<16x16x128xf32> to vector<16x8x128xf32>
    %34 = arith.maximumf %32, %33 : vector<16x8x128xf32>
    %cst_7 = arith.constant dense<0xFF800000> : vector<16x128xf32>
    %35 = vector.multi_reduction <maximumf>, %34, %cst_7 [1] : vector<16x8x128xf32> to vector<16x128xf32>
    %c0_8 = arith.constant 0 : index
    %c0_9 = arith.constant 0 : index
    %36 = vector.load %arg4[%c0_8, %c0_9] : memref<128x128xf32, #tpu.memory_space<vmem>>, vector<128x128xf32>
    %cst_10 = arith.constant dense<0.000000e+00> : vector<16x128xf32>
    %37 = tpu.matmul %35, %36, %cst_10 {dimension_numbers = #tpu.dot_dimension_numbers<[1], [0], [0], [1], [0, 0, 1, 1], [], []>, precision = #tpu.contract_precision<fp32>} : vector<16x128xf32>, vector<128x128xf32>, vector<16x128xf32> -> vector<16x128xf32>
    %cst_11 = arith.constant 0.000000e+00 : f32
    %38 = vector.broadcast %cst_11 : f32 to vector<16x128xf32>
    %39 = arith.maximumf %37, %38 : vector<16x128xf32>
    %c0_12 = arith.constant 0 : index
    %c0_13 = arith.constant 0 : index
    %40 = vector.load %arg5[%c0_12, %c0_13] : memref<128x128xf32, #tpu.memory_space<vmem>>, vector<128x128xf32>
    %cst_14 = arith.constant dense<0.000000e+00> : vector<16x128xf32>
    %41 = tpu.matmul %39, %40, %cst_14 {dimension_numbers = #tpu.dot_dimension_numbers<[1], [0], [0], [1], [0, 0, 1, 1], [], []>, precision = #tpu.contract_precision<fp32>} : vector<16x128xf32>, vector<128x128xf32>, vector<16x128xf32> -> vector<16x128xf32>
    %42 = tpu.iota {dimensions = array<i32: 1>} : vector<1x128xi32>
    %c7_i32 = arith.constant 7 : i32
    %43 = vector.broadcast %c7_i32 : i32 to vector<1x128xi32>
    %44 = arith.cmpi slt, %42, %43 : vector<1x128xi32>
    %cst_15 = arith.constant -1.000000e+30 : f32
    %45 = vector.shape_cast %44 : vector<1x128xi1> to vector<1x128xi1>
    %46 = vector.broadcast %45 : vector<1x128xi1> to vector<16x128xi1>
    %47 = vector.broadcast %cst_15 : f32 to vector<16x128xf32>
    %48 = arith.select %46, %41, %47 : vector<16x128xi1>, vector<16x128xf32>
    %cst_16 = arith.constant dense<0xFF800000> : vector<16xf32>
    %49 = vector.multi_reduction <maximumf>, %48, %cst_16 [1] : vector<16x128xf32> to vector<16xf32>
    %50 = vector.shape_cast %49 : vector<16xf32> to vector<16x1xf32>
    %51 = vector.broadcast %50 : vector<16x1xf32> to vector<16x128xf32>
    %52 = arith.subf %48, %51 : vector<16x128xf32>
    %53 = math.exp %52 : vector<16x128xf32>
    %cst_17 = arith.constant dense<0.000000e+00> : vector<16xf32>
    %54 = vector.multi_reduction <add>, %53, %cst_17 [1] : vector<16x128xf32> to vector<16xf32>
    %55 = vector.shape_cast %54 : vector<16xf32> to vector<16x1xf32>
    %56 = vector.broadcast %55 : vector<16x1xf32> to vector<16x128xf32>
    %57 = arith.divf %53, %56 : vector<16x128xf32>
    %c0_18 = arith.constant 0 : index
    %c0_19 = arith.constant 0 : index
    %58 = vector.load %arg6[%c0_18, %c0_19] : memref<16x128xf32, #tpu.memory_space<vmem>>, vector<16x128xf32>
    tpu.vector_store %arg6[%c0_18, %c0_19], %57 {strides = array<i32>} : memref<16x128xf32, #tpu.memory_space<vmem>>, vector<16x128xf32>,
    return
  }
  func.func @transform_0(%arg0: i32) -> (i32, i32) {
    %c0_i32 = arith.constant 0 : i32
    %c0_i32_0 = arith.constant 0 : i32
    return %arg0, %c0_i32 : i32, i32
  }
  func.func @transform_1(%arg0: i32) -> (i32, i32) {
    %c0_i32 = arith.constant 0 : i32
    %c0_i32_0 = arith.constant 0 : i32
    %c0_i32_1 = arith.constant 0 : i32
    return %c0_i32, %c0_i32_0 : i32, i32
  }
  func.func @transform_2(%arg0: i32) -> (i32, i32) {
    %c0_i32 = arith.constant 0 : i32
    %c0_i32_0 = arith.constant 0 : i32
    %c0_i32_1 = arith.constant 0 : i32
    return %c0_i32, %c0_i32_0 : i32, i32
  }
  func.func @transform_3(%arg0: i32) -> (i32, i32) {
    %c0_i32 = arith.constant 0 : i32
    %c0_i32_0 = arith.constant 0 : i32
    %c0_i32_1 = arith.constant 0 : i32
    return %c0_i32, %c0_i32_0 : i32, i32
  }
  func.func @transform_4(%arg0: i32) -> (i32, i32) {
    %c0_i32 = arith.constant 0 : i32
    %c0_i32_0 = arith.constant 0 : i32
    %c0_i32_1 = arith.constant 0 : i32
    return %c0_i32, %c0_i32_0 : i32, i32
  }
  func.func @transform_5(%arg0: i32) -> (i32, i32) {
    %c0_i32 = arith.constant 0 : i32
    %c0_i32_0 = arith.constant 0 : i32
    return %arg0, %c0_i32 : i32, i32
  }
}

</mosaic_0001>

<llo_original>
// kernel: tile.0
$region0: #{tile.0}
  %s0 = inlined_call_operand.vmem [shape: s32[16,16], index: 0, kind: input, shape index: {}]
  %s1 = inlined_call_operand.vmem [shape: s32[256,1], index: 1, kind: output, shape index: {}]
  %v2 = vld [vmem:[%s0] sm:$0xff]
  %vm3 = vcmask 7168
  %4 = vst.msk [vmem:[%s1] ss:$16 sm:$0x3] %vm3, %v2
  %5 = vst.msk [vmem:[%s1] ss:$16 sm:$0xc] %vm3, %v2
  %6 = vst.msk [vmem:[%s1] ss:$16 sm:$0x30] %vm3, %v2
  %7 = vst.msk [vmem:[%s1] ss:$16 sm:$0xc0] %vm3, %v2
  %s8 = scalar_lea.vmem %s0, 8
  %v9 = vld [vmem:[%s8] sm:$0xff]
  %vm10 = vcmask 7168
  %s11 = scalar_lea.vmem %s1, 128
  %12 = vst.msk [vmem:[%s11] ss:$16 sm:$0x3] %vm10, %v9
  %s13 = scalar_lea.vmem %s1, 128
  %14 = vst.msk [vmem:[%s13] ss:$16 sm:$0xc] %vm10, %v9
  %s15 = scalar_lea.vmem %s1, 128
  %16 = vst.msk [vmem:[%s15] ss:$16 sm:$0x30] %vm10, %v9
  %s17 = scalar_lea.vmem %s1, 128
  %18 = vst.msk [vmem:[%s17] ss:$16 sm:$0xc0] %vm10, %v9
  %v19 = vld [vmem:[%s0] sm:$0xff]
  %20 = vrot.lane.b32.xlu0 %v19, 127
  %v21 = vpop.permute.xlu0 %20
  %vm22 = vcmask 7168
  %s23 = scalar_lea.vmem %s1, 1
  %24 = vst.msk [vmem:[%s23] ss:$16 sm:$0x3] %vm22, %v21
  %s25 = scalar_lea.vmem %s1, 1
  %26 = vst.msk [vmem:[%s25] ss:$16 sm:$0xc] %vm22, %v21
  %s27 = scalar_lea.vmem %s1, 1
  %28 = vst.msk [vmem:[%s27] ss:$16 sm:$0x30] %vm22, %v21
  %s29 = scalar_lea.vmem %s1, 1
  %30 = vst.msk [vmem:[%s29] ss:$16 sm:$0xc0] %vm22, %v21
  %s31 = scalar_lea.vmem %s0, 8
  %v32 = vld [vmem:[%s31] sm:$0xff]
  %33 = vrot.lane.b32.xlu0 %v32, 127
  %v34 = vpop.permute.xlu0 %33
  %vm35 = vcmask 7168
  %s36 = scalar_lea.vmem %s1, 129
  %37 = vst.msk [vmem:[%s36] ss:$16 sm:$0x3] %vm35, %v34
  %s38 = scalar_lea.vmem %s1, 129
  %39 = vst.msk [vmem:[%s38] ss:$16 sm:$0xc] %vm35, %v34
  %s40 = scalar_lea.vmem %s1, 129
  %41 = vst.msk [vmem:[%s40] ss:$16 sm:$0x30] %vm35, %v34
  %s42 = scalar_lea.vmem %s1, 129
  %43 = vst.msk [vmem:[%s42] ss:$16 sm:$0xc0] %vm35, %v34
  %v44 = vld [vmem:[%s0] sm:$0xff]
  %45 = vrot.lane.b32.xlu0 %v44, 126
  %v46 = vpop.permute.xlu0 %45
  %vm47 = vcmask 7168
  %s48 = scalar_lea.vmem %s1, 2
  %49 = vst.msk [vmem:[%s48] ss:$16 sm:$0x3] %vm47, %v46
  %s50 = scalar_lea.vmem %s1, 2
  %51 = vst.msk [vmem:[%s50] ss:$16 sm:$0xc] %vm47, %v46
  %s52 = scalar_lea.vmem %s1, 2
  %53 = vst.msk [vmem:[%s52] ss:$16 sm:$0x30] %vm47, %v46
  %s54 = scalar_lea.vmem %s1, 2
  %55 = vst.msk [vmem:[%s54] ss:$16 sm:$0xc0] %vm47, %v46
  %s56 = scalar_lea.vmem %s0, 8
  %v57 = vld [vmem:[%s56] sm:$0xff]
  %58 = vrot.lane.b32.xlu0 %v57, 126
  %v59 = vpop.permute.xlu0 %58
  %vm60 = vcmask 7168
  %s61 = scalar_lea.vmem %s1, 130
  %62 = vst.msk [vmem:[%s61] ss:$16 sm:$0x3] %vm60, %v59
  %s63 = scalar_lea.vmem %s1, 130
  %64 = vst.msk [vmem:[%s63] ss:$16 sm:$0xc] %vm60, %v59
  %s65 = scalar_lea.vmem %s1, 130
  %66 = vst.msk [vmem:[%s65] ss:$16 sm:$0x30] %vm60, %v59
  %s67 = scalar_lea.vmem %s1, 130
  %68 = vst.msk [vmem:[%s67] ss:$16 sm:$0xc0] %vm60, %v59
  %v69 = vld [vmem:[%s0] sm:$0xff]
  %70 = vrot.lane.b32.xlu0 %v69, 125
  %v71 = vpop.permute.xlu0 %70
  %vm72 = vcmask 7168
  %s73 = scalar_lea.vmem %s1, 3
  %74 = vst.msk [vmem:[%s73] ss:$16 sm:$0x3] %vm72, %v71
  %s75 = scalar_lea.vmem %s1, 3
  %76 = vst.msk [vmem:[%s75] ss:$16 sm:$0xc] %vm72, %v71
  %s77 = scalar_lea.vmem %s1, 3
  %78 = vst.msk [vmem:[%s77] ss:$16 sm:$0x30] %vm72, %v71
  %s79 = scalar_lea.vmem %s1, 3
  %80 = vst.msk [vmem:[%s79] ss:$16 sm:$0xc0] %vm72, %v71
  %s81 = scalar_lea.vmem %s0, 8
  %v82 = vld [vmem:[%s81] sm:$0xff]
  %83 = vrot.lane.b32.xlu0 %v82, 125
  %v84 = vpop.permute.xlu0 %83
  %vm85 = vcmask 7168
  %s86 = scalar_lea.vmem %s1, 131
  %87 = vst.msk [vmem:[%s86] ss:$16 sm:$0x3] %vm85, %v84
  %s88 = scalar_lea.vmem %s1, 131
  %89 = vst.msk [vmem:[%s88] ss:$16 sm:$0xc] %vm85, %v84
  %s90 = scalar_lea.vmem %s1, 131
  %91 = vst.msk [vmem:[%s90] ss:$16 sm:$0x30] %vm85, %v84
  %s92 = scalar_lea.vmem %s1, 131
  %93 = vst.msk [vmem:[%s92] ss:$16 sm:$0xc0] %vm85, %v84
  %v94 = vld [vmem:[%s0] sm:$0xff]
  %95 = vrot.lane.b32.xlu0 %v94, 124
  %v96 = vpop.permute.xlu0 %95
  %vm97 = vcmask 7168
  %s98 = scalar_lea.vmem %s1, 4
  %99 = vst.msk [vmem:[%s98] ss:$16 sm:$0x3] %vm97, %v96
  %s100 = scalar_lea.vmem %s1, 4
  %101 = vst.msk [vmem:[%s100] ss:$16 sm:$0xc] %vm97, %v96
  %s102 = scalar_lea.vmem %s1, 4
  %103 = vst.msk [vmem:[%s102] ss:$16 sm:$0x30] %vm97, %v96
  %s104 = scalar_lea.vmem %s1, 4
  %105 = vst.msk [vmem:[%s104] ss:$16 sm:$0xc0] %vm97, %v96
  %s106 = scalar_lea.vmem %s0, 8
  %v107 = vld [vmem:[%s106] sm:$0xff]
  %108 = vrot.lane.b32.xlu0 %v107, 124
  %v109 = vpop.permute.xlu0 %108
  %vm110 = vcmask 7168
  %s111 = scalar_lea.vmem %s1, 132
  %112 = vst.msk [vmem:[%s111] ss:$16 sm:$0x3] %vm110, %v109
  %s113 = scalar_lea.vmem %s1, 132
  %114 = vst.msk [vmem:[%s113] ss:$16 sm:$0xc] %vm110, %v109
  %s115 = scalar_lea.vmem %s1, 132
  %116 = vst.msk [vmem:[%s115] ss:$16 sm:$0x30] %vm110, %v109
  %s117 = scalar_lea.vmem %s1, 132
  %118 = vst.msk [vmem:[%s117] ss:$16 sm:$0xc0] %vm110, %v109
  %v119 = vld [vmem:[%s0] sm:$0xff]
  %120 = vrot.lane.b32.xlu0 %v119, 123
  %v121 = vpop.permute.xlu0 %120
  %vm122 = vcmask 7168
  %s123 = scalar_lea.vmem %s1, 5
  %124 = vst.msk [vmem:[%s123] ss:$16 sm:$0x3] %vm122, %v121
  %s125 = scalar_lea.vmem %s1, 5
  %126 = vst.msk [vmem:[%s125] ss:$16 sm:$0xc] %vm122, %v121
  %s127 = scalar_lea.vmem %s1, 5
  %128 = vst.msk [vmem:[%s127] ss:$16 sm:$0x30] %vm122, %v121
  %s129 = scalar_lea.vmem %s1, 5
  %130 = vst.msk [vmem:[%s129] ss:$16 sm:$0xc0] %vm122, %v121
  %s131 = scalar_lea.vmem %s0, 8
  %v132 = vld [vmem:[%s131] sm:$0xff]
  %133 = vrot.lane.b32.xlu0 %v132, 123
  %v134 = vpop.permute.xlu0 %133
  %vm135 = vcmask 7168
  %s136 = scalar_lea.vmem %s1, 133
  %137 = vst.msk [vmem:[%s136] ss:$16 sm:$0x3] %vm135, %v134
  %s138 = scalar_lea.vmem %s1, 133
  %139 = vst.msk [vmem:[%s138] ss:$16 sm:$0xc] %vm135, %v134
  %s140 = scalar_lea.vmem %s1, 133
  %141 = vst.msk [vmem:[%s140] ss:$16 sm:$0x30] %vm135, %v134
  %s142 = scalar_lea.vmem %s1, 133
  %143 = vst.msk [vmem:[%s142] ss:$16 sm:$0xc0] %vm135, %v134
  %v144 = vld [vmem:[%s0] sm:$0xff]
  %145 = vrot.lane.b32.xlu0 %v144, 122
  %v146 = vpop.permute.xlu0 %145
  %vm147 = vcmask 7168
  %s148 = scalar_lea.vmem %s1, 6
  %149 = vst.msk [vmem:[%s148] ss:$16 sm:$0x3] %vm147, %v146
  %s150 = scalar_lea.vmem %s1, 6
  %151 = vst.msk [vmem:[%s150] ss:$16 sm:$0xc] %vm147, %v146
  %s152 = scalar_lea.vmem %s1, 6
  %153 = vst.msk [vmem:[%s152] ss:$16 sm:$0x30] %vm147, %v146
  %s154 = scalar_lea.vmem %s1, 6
  %155 = vst.msk [vmem:[%s154] ss:$16 sm:$0xc0] %vm147, %v146
  %s156 = scalar_lea.vmem %s0, 8
  %v157 = vld [vmem:[%s156] sm:$0xff]
  %158 = vrot.lane.b32.xlu0 %v157, 122
  %v159 = vpop.permute.xlu0 %158
  %vm160 = vcmask 7168
  %s161 = scalar_lea.vmem %s1, 134
  %162 = vst.msk [vmem:[%s161] ss:$16 sm:$0x3] %vm160, %v159
  %s163 = scalar_lea.vmem %s1, 134
  %164 = vst.msk [vmem:[%s163] ss:$16 sm:$0xc] %vm160, %v159
  %s165 = scalar_lea.vmem %s1, 134
  %166 = vst.msk [vmem:[%s165] ss:$16 sm:$0x30] %vm160, %v159
  %s167 = scalar_lea.vmem %s1, 134
  %168 = vst.msk [vmem:[%s167] ss:$16 sm:$0xc0] %vm160, %v159
  %v169 = vld [vmem:[%s0] sm:$0xff]
  %170 = vrot.lane.b32.xlu0 %v169, 121
  %v171 = vpop.permute.xlu0 %170
  %vm172 = vcmask 7168
  %s173 = scalar_lea.vmem %s1, 7
  %174 = vst.msk [vmem:[%s173] ss:$16 sm:$0x3] %vm172, %v171
  %s175 = scalar_lea.vmem %s1, 7
  %176 = vst.msk [vmem:[%s175] ss:$16 sm:$0xc] %vm172, %v171
  %s177 = scalar_lea.vmem %s1, 7
  %178 = vst.msk [vmem:[%s177] ss:$16 sm:$0x30] %vm172, %v171
  %s179 = scalar_lea.vmem %s1, 7
  %180 = vst.msk [vmem:[%s179] ss:$16 sm:$0xc0] %vm172, %v171
  %s181 = scalar_lea.vmem %s0, 8
  %v182 = vld [vmem:[%s181] sm:$0xff]
  %183 = vrot.lane.b32.xlu0 %v182, 121
  %v184 = vpop.permute.xlu0 %183
  %vm185 = vcmask 7168
  %s186 = scalar_lea.vmem %s1, 135
  %187 = vst.msk [vmem:[%s186] ss:$16 sm:$0x3] %vm185, %v184
  %s188 = scalar_lea.vmem %s1, 135
  %189 = vst.msk [vmem:[%s188] ss:$16 sm:$0xc] %vm185, %v184
  %s190 = scalar_lea.vmem %s1, 135
  %191 = vst.msk [vmem:[%s190] ss:$16 sm:$0x30] %vm185, %v184
  %s192 = scalar_lea.vmem %s1, 135
  %193 = vst.msk [vmem:[%s192] ss:$16 sm:$0xc0] %vm185, %v184
  %v194 = vld [vmem:[%s0] sm:$0xff]
  %195 = vrot.lane.b32.xlu0 %v194, 120
  %v196 = vpop.permute.xlu0 %195
  %vm197 = vcmask 7168
  %s198 = scalar_lea.vmem %s1, 8
  %199 = vst.msk [vmem:[%s198] ss:$16 sm:$0x3] %vm197, %v196
  %s200 = scalar_lea.vmem %s1, 8
  %201 = vst.msk [vmem:[%s200] ss:$16 sm:$0xc] %vm197, %v196
  %s202 = scalar_lea.vmem %s1, 8
  %203 = vst.msk [vmem:[%s202] ss:$16 sm:$0x30] %vm197, %v196
  %s204 = scalar_lea.vmem %s1, 8
  %205 = vst.msk [vmem:[%s204] ss:$16 sm:$0xc0] %vm197, %v196
  %s206 = scalar_lea.vmem %s0, 8
  %v207 = vld [vmem:[%s206] sm:$0xff]
  %208 = vrot.lane.b32.xlu0 %v207, 120
  %v209 = vpop.permute.xlu0 %208
  %vm210 = vcmask 7168
  %s211 = scalar_lea.vmem %s1, 136
  %212 = vst.msk [vmem:[%s211] ss:$16 sm:$0x3] %vm210, %v209
  %s213 = scalar_lea.vmem %s1, 136
  %214 = vst.msk [vmem:[%s213] ss:$16 sm:$0xc] %vm210, %v209
  %s215 = scalar_lea.vmem %s1, 136
  %216 = vst.msk [vmem:[%s215] ss:$16 sm:$0x30] %vm210, %v209
  %s217 = scalar_lea.vmem %s1, 136
  %218 = vst.msk [vmem:[%s217] ss:$16 sm:$0xc0] %vm210, %v209
  %v219 = vld [vmem:[%s0] sm:$0xff]
  %220 = vrot.lane.b32.xlu0 %v219, 119
  %v221 = vpop.permute.xlu0 %220
  %vm222 = vcmask 7168
  %s223 = scalar_lea.vmem %s1, 9
  %224 = vst.msk [vmem:[%s223] ss:$16 sm:$0x3] %vm222, %v221
  %s225 = scalar_lea.vmem %s1, 9
  %226 = vst.msk [vmem:[%s225] ss:$16 sm:$0xc] %vm222, %v221
  %s227 = scalar_lea.vmem %s1, 9
  %228 = vst.msk [vmem:[%s227] ss:$16 sm:$0x30] %vm222, %v221
  %s229 = scalar_lea.vmem %s1, 9
  %230 = vst.msk [vmem:[%s229] ss:$16 sm:$0xc0] %vm222, %v221
  %s231 = scalar_lea.vmem %s0, 8
  %v232 = vld [vmem:[%s231] sm:$0xff]
  %233 = vrot.lane.b32.xlu0 %v232, 119
  %v234 = vpop.permute.xlu0 %233
  %vm235 = vcmask 7168
  %s236 = scalar_lea.vmem %s1, 137
  %237 = vst.msk [vmem:[%s236] ss:$16 sm:$0x3] %vm235, %v234
  %s238 = scalar_lea.vmem %s1, 137
  %239 = vst.msk [vmem:[%s238] ss:$16 sm:$0xc] %vm235, %v234
  %s240 = scalar_lea.vmem %s1, 137
  %241 = vst.msk [vmem:[%s240] ss:$16 sm:$0x30] %vm235, %v234
  %s242 = scalar_lea.vmem %s1, 137
  %243 = vst.msk [vmem:[%s242] ss:$16 sm:$0xc0] %vm235, %v234
  %v244 = vld [vmem:[%s0] sm:$0xff]
  %245 = vrot.lane.b32.xlu0 %v244, 118
  %v246 = vpop.permute.xlu0 %245
  %vm247 = vcmask 7168
  %s248 = scalar_lea.vmem %s1, 10
  %249 = vst.msk [vmem:[%s248] ss:$16 sm:$0x3] %vm247, %v246
  %s250 = scalar_lea.vmem %s1, 10
  %251 = vst.msk [vmem:[%s250] ss:$16 sm:$0xc] %vm247, %v246
  %s252 = scalar_lea.vmem %s1, 10
  %253 = vst.msk [vmem:[%s252] ss:$16 sm:$0x30] %vm247, %v246
  %s254 = scalar_lea.vmem %s1, 10
  %255 = vst.msk [vmem:[%s254] ss:$16 sm:$0xc0] %vm247, %v246
  %s256 = scalar_lea.vmem %s0, 8
  %v257 = vld [vmem:[%s256] sm:$0xff]
  %258 = vrot.lane.b32.xlu0 %v257, 118
  %v259 = vpop.permute.xlu0 %258
  %vm260 = vcmask 7168
  %s261 = scalar_lea.vmem %s1, 138
  %262 = vst.msk [vmem:[%s261] ss:$16 sm:$0x3] %vm260, %v259
  %s263 = scalar_lea.vmem %s1, 138
  %264 = vst.msk [vmem:[%s263] ss:$16 sm:$0xc] %vm260, %v259
  %s265 = scalar_lea.vmem %s1, 138
  %266 = vst.msk [vmem:[%s265] ss:$16 sm:$0x30] %vm260, %v259
  %s267 = scalar_lea.vmem %s1, 138
  %268 = vst.msk [vmem:[%s267] ss:$16 sm:$0xc0] %vm260, %v259
  %v269 = vld [vmem:[%s0] sm:$0xff]
  %270 = vrot.lane.b32.xlu0 %v269, 117
  %v271 = vpop.permute.xlu0 %270
  %vm272 = vcmask 7168
  %s273 = scalar_lea.vmem %s1, 11
  %274 = vst.msk [vmem:[%s273] ss:$16 sm:$0x3] %vm272, %v271
  %s275 = scalar_lea.vmem %s1, 11
  %276 = vst.msk [vmem:[%s275] ss:$16 sm:$0xc] %vm272, %v271
  %s277 = scalar_lea.vmem %s1, 11
  %278 = vst.msk [vmem:[%s277] ss:$16 sm:$0x30] %vm272, %v271
  %s279 = scalar_lea.vmem %s1, 11
  %280 = vst.msk [vmem:[%s279] ss:$16 sm:$0xc0] %vm272, %v271
  %s281 = scalar_lea.vmem %s0, 8
  %v282 = vld [vmem:[%s281] sm:$0xff]
  %283 = vrot.lane.b32.xlu0 %v282, 117
  %v284 = vpop.permute.xlu0 %283
  %vm285 = vcmask 7168
  %s286 = scalar_lea.vmem %s1, 139
  %287 = vst.msk [vmem:[%s286] ss:$16 sm:$0x3] %vm285, %v284
  %s288 = scalar_lea.vmem %s1, 139
  %289 = vst.msk [vmem:[%s288] ss:$16 sm:$0xc] %vm285, %v284
  %s290 = scalar_lea.vmem %s1, 139
  %291 = vst.msk [vmem:[%s290] ss:$16 sm:$0x30] %vm285, %v284
  %s292 = scalar_lea.vmem %s1, 139
  %293 = vst.msk [vmem:[%s292] ss:$16 sm:$0xc0] %vm285, %v284
  %v294 = vld [vmem:[%s0] sm:$0xff]
  %295 = vrot.lane.b32.xlu0 %v294, 116
  %v296 = vpop.permute.xlu0 %295
  %vm297 = vcmask 7168
  %s298 = scalar_lea.vmem %s1, 12
  %299 = vst.msk [vmem:[%s298] ss:$16 sm:$0x3] %vm297, %v296
  %s300 = scalar_lea.vmem %s1, 12
  %301 = vst.msk [vmem:[%s300] ss:$16 sm:$0xc] %vm297, %v296
  %s302 = scalar_lea.vmem %s1, 12
  %303 = vst.msk [vmem:[%s302] ss:$16 sm:$0x30] %vm297, %v296
  %s304 = scalar_lea.vmem %s1, 12
  %305 = vst.msk [vmem:[%s304] ss:$16 sm:$0xc0] %vm297, %v296
  %s306 = scalar_lea.vmem %s0, 8
  %v307 = vld [vmem:[%s306] sm:$0xff]
  %308 = vrot.lane.b32.xlu0 %v307, 116
  %v309 = vpop.permute.xlu0 %308
  %vm310 = vcmask 7168
  %s311 = scalar_lea.vmem %s1, 140
  %312 = vst.msk [vmem:[%s311] ss:$16 sm:$0x3] %vm310, %v309
  %s313 = scalar_lea.vmem %s1, 140
  %314 = vst.msk [vmem:[%s313] ss:$16 sm:$0xc] %vm310, %v309
  %s315 = scalar_lea.vmem %s1, 140
  %316 = vst.msk [vmem:[%s315] ss:$16 sm:$0x30] %vm310, %v309
  %s317 = scalar_lea.vmem %s1, 140
  %318 = vst.msk [vmem:[%s317] ss:$16 sm:$0xc0] %vm310, %v309
  %v319 = vld [vmem:[%s0] sm:$0xff]
  %320 = vrot.lane.b32.xlu0 %v319, 115
  %v321 = vpop.permute.xlu0 %320
  %vm322 = vcmask 7168
  %s323 = scalar_lea.vmem %s1, 13
  %324 = vst.msk [vmem:[%s323] ss:$16 sm:$0x3] %vm322, %v321
  %s325 = scalar_lea.vmem %s1, 13
  %326 = vst.msk [vmem:[%s325] ss:$16 sm:$0xc] %vm322, %v321
  %s327 = scalar_lea.vmem %s1, 13
  %328 = vst.msk [vmem:[%s327] ss:$16 sm:$0x30] %vm322, %v321
  %s329 = scalar_lea.vmem %s1, 13
  %330 = vst.msk [vmem:[%s329] ss:$16 sm:$0xc0] %vm322, %v321
  %s331 = scalar_lea.vmem %s0, 8
  %v332 = vld [vmem:[%s331] sm:$0xff]
  %333 = vrot.lane.b32.xlu0 %v332, 115
  %v334 = vpop.permute.xlu0 %333
  %vm335 = vcmask 7168
  %s336 = scalar_lea.vmem %s1, 141
  %337 = vst.msk [vmem:[%s336] ss:$16 sm:$0x3] %vm335, %v334
  %s338 = scalar_lea.vmem %s1, 141
  %339 = vst.msk [vmem:[%s338] ss:$16 sm:$0xc] %vm335, %v334
  %s340 = scalar_lea.vmem %s1, 141
  %341 = vst.msk [vmem:[%s340] ss:$16 sm:$0x30] %vm335, %v334
  %s342 = scalar_lea.vmem %s1, 141
  %343 = vst.msk [vmem:[%s342] ss:$16 sm:$0xc0] %vm335, %v334
  %v344 = vld [vmem:[%s0] sm:$0xff]
  %345 = vrot.lane.b32.xlu0 %v344, 114
  %v346 = vpop.permute.xlu0 %345
  %vm347 = vcmask 7168
  %s348 = scalar_lea.vmem %s1, 14
  %349 = vst.msk [vmem:[%s348] ss:$16 sm:$0x3] %vm347, %v346
  %s350 = scalar_lea.vmem %s1, 14
  %351 = vst.msk [vmem:[%s350] ss:$16 sm:$0xc] %vm347, %v346
  %s352 = scalar_lea.vmem %s1, 14
  %353 = vst.msk [vmem:[%s352] ss:$16 sm:$0x30] %vm347, %v346
  %s354 = scalar_lea.vmem %s1, 14
  %355 = vst.msk [vmem:[%s354] ss:$16 sm:$0xc0] %vm347, %v346
  %s356 = scalar_lea.vmem %s0, 8
  %v357 = vld [vmem:[%s356] sm:$0xff]
  %358 = vrot.lane.b32.xlu0 %v357, 114
  %v359 = vpop.permute.xlu0 %358
  %vm360 = vcmask 7168
  %s361 = scalar_lea.vmem %s1, 142
  %362 = vst.msk [vmem:[%s361] ss:$16 sm:$0x3] %vm360, %v359
  %s363 = scalar_lea.vmem %s1, 142
  %364 = vst.msk [vmem:[%s363] ss:$16 sm:$0xc] %vm360, %v359
  %s365 = scalar_lea.vmem %s1, 142
  %366 = vst.msk [vmem:[%s365] ss:$16 sm:$0x30] %vm360, %v359
  %s367 = scalar_lea.vmem %s1, 142
  %368 = vst.msk [vmem:[%s367] ss:$16 sm:$0xc0] %vm360, %v359
  %v369 = vld [vmem:[%s0] sm:$0xff]
  %370 = vrot.lane.b32.xlu0 %v369, 113
  %v371 = vpop.permute.xlu0 %370
  %vm372 = vcmask 7168
  %s373 = scalar_lea.vmem %s1, 15
  %374 = vst.msk [vmem:[%s373] ss:$16 sm:$0x3] %vm372, %v371
  %s375 = scalar_lea.vmem %s1, 15
  %376 = vst.msk [vmem:[%s375] ss:$16 sm:$0xc] %vm372, %v371
  %s377 = scalar_lea.vmem %s1, 15
  %378 = vst.msk [vmem:[%s377] ss:$16 sm:$0x30] %vm372, %v371
  %s379 = scalar_lea.vmem %s1, 15
  %380 = vst.msk [vmem:[%s379] ss:$16 sm:$0xc0] %vm372, %v371
  %s381 = scalar_lea.vmem %s0, 8
  %v382 = vld [vmem:[%s381] sm:$0xff]
  %383 = vrot.lane.b32.xlu0 %v382, 113
  %v384 = vpop.permute.xlu0 %383
  %vm385 = vcmask 7168
  %s386 = scalar_lea.vmem %s1, 143
  %387 = vst.msk [vmem:[%s386] ss:$16 sm:$0x3] %vm385, %v384
  %s388 = scalar_lea.vmem %s1, 143
  %389 = vst.msk [vmem:[%s388] ss:$16 sm:$0xc] %vm385, %v384
  %s390 = scalar_lea.vmem %s1, 143
  %391 = vst.msk [vmem:[%s390] ss:$16 sm:$0x30] %vm385, %v384
  %s392 = scalar_lea.vmem %s1, 143
  %393 = vst.msk [vmem:[%s392] ss:$16 sm:$0xc0] %vm385, %v384

// kernel: cnn_forward.1
$region0: #{cnn_forward.1}
  #allocation0 [shape = 'u32[]', space=smem, size = 0x4, offset = 0x4, fixed_abs, tag = 'smem constant byte address 0x4 - core index']
  #allocation1 [shape = 'u32[72,128]{1,0:T(1,128)}', space=vmem, size = 0x9000, scoped, tag = 'internal scratch']
  %s0 = inlined_call_operand.vmem [shape: s32[512,1], index: 0, kind: input, shape index: {}]
  %s1 = inlined_call_operand.vmem [shape: s32[256,1], index: 1, kind: input, shape index: {}]
  %s2 = inlined_call_operand.vmem [shape: f32[128,384], index: 2, kind: input, shape index: {}]
  %s3 = inlined_call_operand.vmem [shape: f32[128,128], index: 3, kind: input, shape index: {}]
  %s4 = inlined_call_operand.vmem [shape: f32[128,128], index: 4, kind: input, shape index: {}]
  %s5 = inlined_call_operand.vmem [shape: f32[32,128], index: 5, kind: output, shape index: {}]
  %s6 = sld [smem:[#allocation0]]
  $region53: #{cnn_forward.1} parent=0
    _
  %s8 = ssub.s32 1, %s6
  %s9 = scalar_select 0, %s8, %s6
  loop: start=0, step=1, limit=4
  $region2: #{cnn_forward.1} parent=0 // loop_pre_header
    _
  $region3: #{cnn_forward.1} parent=0 // loop_header
    %s11 = sphi 0, %s15
    %p12 = scmp.ge.s32.totalorder %s11, 4
    %s21 = sphi 0, %s23
    %s24 = sphi 0, %s21
    %s25 = sphi 0, %s24
    %s41 = sphi 0, %s25
    %s45 = sphi 0, %s45
    %s47 = sphi 0, %s45
    %s48 = sphi 0, %s47
    %s62 = sphi 0, %s48
    %s66 = sphi 0, %s66
    %s68 = sphi 0, %s66
    %s69 = sphi 0, %s68
    %s83 = sphi 0, %s69
    %s87 = sphi 0, %s87
    %s89 = sphi 0, %s87
    %s90 = sphi 0, %s89
    %s104 = sphi 0, %s90
    %s108 = sphi 0, %s108
    %s110 = sphi 0, %s108
    %s111 = sphi 0, %s110
    %s125 = sphi 0, %s111
    %s131 = sphi 0, %s133
    %s134 = sphi 0, %s131
    %s135 = sphi 0, %s134
    %s151 = sphi 0, %s135
  $region4: #{cnn_forward.1} parent=0 // loop_header_branch
    %14 = sbr.rel (%p12) target = $region8
  $region5: #{cnn_forward.1} parent=0 // loop_body
    %s16 = ssub.s32 %s11, 1
    %s17 = ssub.s32 %s11, 2
    %s18 = sadd.s32 %s11, 1
    %s19 = ssub.s32 %s11, %s18
    %p20 = scmp.eq.s32.totalorder %s19, 0
    %s22 = sadd.s32 %s21, 1
    %s23 = scalar_select %p20, %s21, %s22
    %p26 = pneg %p20
    %p27 = scmp.eq.s32.totalorder %s11, 1
    %p28 = por %p26, %p27
    %p29 = scmp.ne.s32.totalorder %s21, %s24
    %p30 = scmp.eq.s32.totalorder %s11, 0
    %p31 = por %p29, %p30
    %p32 = scmp.ne.s32.totalorder %s21, %s24
    %p33 = scmp.eq.s32.totalorder %s16, 1
    %p34 = por %p32, %p33
    %p35 = scmp.ne.s32.totalorder %s24, %s25
    %p36 = scmp.eq.s32.totalorder %s16, 0
    %p37 = por %p35, %p36
    %p38 = scmp.ne.s32.totalorder %s24, %s25
    %p39 = scmp.eq.s32.totalorder %s17, 1
    %p40 = por %p38, %p39
    %p42 = scmp.ne.s32.totalorder %s25, %s41
    %p43 = scmp.eq.s32.totalorder %s17, 0
    %p44 = por %p42, %p43
    %s46 = sadd.s32 %s45, 1
    %p49 = scmp.eq.s32.totalorder %s11, 1
    %p50 = scmp.ne.s32.totalorder %s45, %s47
    %p51 = scmp.eq.s32.totalorder %s11, 0
    %p52 = por %p50, %p51
    %p53 = scmp.ne.s32.totalorder %s45, %s47
    %p54 = scmp.eq.s32.totalorder %s16, 1
    %p55 = por %p53, %p54
    %p56 = scmp.ne.s32.totalorder %s47, %s48
    %p57 = scmp.eq.s32.totalorder %s16, 0
    %p58 = por %p56, %p57
    %p59 = scmp.ne.s32.totalorder %s47, %s48
    %p60 = scmp.eq.s32.totalorder %s17, 1
    %p61 = por %p59, %p60
    %p63 = scmp.ne.s32.totalorder %s48, %s62
    %p64 = scmp.eq.s32.totalorder %s17, 0
    %p65 = por %p63, %p64
    %s67 = sadd.s32 %s66, 1
    %p70 = scmp.eq.s32.totalorder %s11, 1
    %p71 = scmp.ne.s32.totalorder %s66, %s68
    %p72 = scmp.eq.s32.totalorder %s11, 0
    %p73 = por %p71, %p72
    %p74 = scmp.ne.s32.totalorder %s66, %s68
    %p75 = scmp.eq.s32.totalorder %s16, 1
    %p76 = por %p74, %p75
    %p77 = scmp.ne.s32.totalorder %s68, %s69
    %p78 = scmp.eq.s32.totalorder %s16, 0
    %p79 = por %p77, %p78
    %p80 = scmp.ne.s32.totalorder %s68, %s69
    %p81 = scmp.eq.s32.totalorder %s17, 1
    %p82 = por %p80, %p81
    %p84 = scmp.ne.s32.totalorder %s69, %s83
    %p85 = scmp.eq.s32.totalorder %s17, 0
    %p86 = por %p84, %p85
    %s88 = sadd.s32 %s87, 1
    %p91 = scmp.eq.s32.totalorder %s11, 1
    %p92 = scmp.ne.s32.totalorder %s87, %s89
    %p93 = scmp.eq.s32.totalorder %s11, 0
    %p94 = por %p92, %p93
    %p95 = scmp.ne.s32.totalorder %s87, %s89
    %p96 = scmp.eq.s32.totalorder %s16, 1
    %p97 = por %p95, %p96
    %p98 = scmp.ne.s32.totalorder %s89, %s90
    %p99 = scmp.eq.s32.totalorder %s16, 0
    %p100 = por %p98, %p99
    %p101 = scmp.ne.s32.totalorder %s89, %s90
    %p102 = scmp.eq.s32.totalorder %s17, 1
    %p103 = por %p101, %p102
    %p105 = scmp.ne.s32.totalorder %s90, %s104
    %p106 = scmp.eq.s32.totalorder %s17, 0
    %p107 = por %p105, %p106
    %s109 = sadd.s32 %s108, 1
    %p112 = scmp.eq.s32.totalorder %s11, 1
    %p113 = scmp.ne.s32.totalorder %s108, %s110
    %p114 = scmp.eq.s32.totalorder %s11, 0
    %p115 = por %p113, %p114
    %p116 = scmp.ne.s32.totalorder %s108, %s110
    %p117 = scmp.eq.s32.totalorder %s16, 1
    %p118 = por %p116, %p117
    %p119 = scmp.ne.s32.totalorder %s110, %s111
    %p120 = scmp.eq.s32.totalorder %s16, 0
    %p121 = por %p119, %p120
    %p122 = scmp.ne.s32.totalorder %s110, %s111
    %p123 = scmp.eq.s32.totalorder %s17, 1
    %p124 = por %p122, %p123
    %p126 = scmp.ne.s32.totalorder %s111, %s125
    %p127 = scmp.eq.s32.totalorder %s17, 0
    %p128 = por %p126, %p127
    %s129 = ssub.s32 %s11, %s18
    %p130 = scmp.eq.s32.totalorder %s129, 0
    %s132 = sadd.s32 %s131, 1
    %s133 = scalar_select %p130, %s131, %s132
    %p136 = pneg %p130
    %p137 = scmp.eq.s32.totalorder %s11, 1
    %p138 = por %p136, %p137
    %p139 = scmp.ne.s32.totalorder %s131, %s134
    %p140 = scmp.eq.s32.totalorder %s11, 0
    %p141 = por %p139, %p140
    %p142 = scmp.ne.s32.totalorder %s131, %s134
    %p143 = scmp.eq.s32.totalorder %s16, 1
    %p144 = por %p142, %p143
    %p145 = scmp.ne.s32.totalorder %s134, %s135
    %p146 = scmp.eq.s32.totalorder %s16, 0
    %p147 = por %p145, %p146
    %p148 = scmp.ne.s32.totalorder %s134, %s135
    %p149 = scmp.eq.s32.totalorder %s17, 1
    %p150 = por %p148, %p149
    %p152 = scmp.ne.s32.totalorder %s135, %s151
    %p153 = scmp.eq.s32.totalorder %s17, 0
    %p154 = por %p152, %p153
    %p155 = scmp.le.s32.totalorder 1, %s11
    %p156 = scmp.lt.s32.totalorder %s11, 3
    %p157 = pnand %p155, %p156
    %p158 = pneg %p157
    // Predicated region
    $region9: #{cnn_forward.1} parent=5 // pred_check
      _
    $region10: #{cnn_forward.1} parent=5 // pred_check_branch
      %160 = sbr.rel (%p157) target = $region12
    $region11: #{cnn_forward.1} parent=5 // pred_region
      %s161 = ssub.s32 %s11, 1
      // Predicated region
      $region13: #{cnn_forward.1} parent=11 // pred_check
        %p162 = pneg %p58
      $region14: #{cnn_forward.1} parent=11 // pred_check_branch
        %164 = sbr.rel (%p162) target = $region16
      $region15: #{cnn_forward.1} parent=11 // pred_region
        _
      $region16: #{cnn_forward.1} parent=11 // pred_fallthru
        _
      // Predicated region
      $region17: #{cnn_forward.1} parent=11 // pred_check
        %p165 = pneg %p79
      $region18: #{cnn_forward.1} parent=11 // pred_check_branch
        %167 = sbr.rel (%p165) target = $region20
      $region19: #{cnn_forward.1} parent=11 // pred_region
        _
      $region20: #{cnn_forward.1} parent=11 // pred_fallthru
        _
      // Predicated region
      $region21: #{cnn_forward.1} parent=11 // pred_check
        %p168 = pneg %p100
      $region22: #{cnn_forward.1} parent=11 // pred_check_branch
        %170 = sbr.rel (%p168) target = $region24
      $region23: #{cnn_forward.1} parent=11 // pred_region
        _
      $region24: #{cnn_forward.1} parent=11 // pred_fallthru
        _
      // Predicated region
      $region25: #{cnn_forward.1} parent=11 // pred_check
        %p171 = pneg %p121
      $region26: #{cnn_forward.1} parent=11 // pred_check_branch
        %173 = sbr.rel (%p171) target = $region28
      $region27: #{cnn_forward.1} parent=11 // pred_region
        _
      $region28: #{cnn_forward.1} parent=11 // pred_fallthru
        _
    $region12: #{cnn_forward.1} parent=5 // pred_fallthru
      _
    %p174 = scmp.lt.s32.totalorder %s11, 2
    // Predicated region
    $region29: #{cnn_forward.1} parent=5 // pred_check
      %p175 = pneg %p174
    $region30: #{cnn_forward.1} parent=5 // pred_check_branch
      %177 = sbr.rel (%p175) target = $region32
    $region31: #{cnn_forward.1} parent=5 // pred_region
      // Predicated region
      $region33: #{cnn_forward.1} parent=31 // pred_check
        %p178 = pneg %p31
      $region34: #{cnn_forward.1} parent=31 // pred_check_branch
        %180 = sbr.rel (%p178) target = $region36
      $region35: #{cnn_forward.1} parent=31 // pred_region
        %s181 = smul.u32 32, %s11
        %p182 = scmp.lt.s32.totalorder %s181, 63
        %s183 = scalar_select %p182, %s181, 63
        %s184 = smul.addr %s183, 8
        %s185 = scalar_lea.vmem %s0, %s184
        %s186 = smul.u32 32, %s11
      $region36: #{cnn_forward.1} parent=31 // pred_fallthru
        _
    $region32: #{cnn_forward.1} parent=5 // pred_fallthru
      _
    %p187 = scmp.le.s32.totalorder 1, %s11
    %p188 = scmp.lt.s32.totalorder %s11, 3
    %p189 = pnand %p187, %p188
    %p190 = pneg %p189
    // Predicated region
    $region37: #{cnn_forward.1} parent=5 // pred_check
      _
    $region38: #{cnn_forward.1} parent=5 // pred_check_branch
      %192 = sbr.rel (%p189) target = $region40
    $region39: #{cnn_forward.1} parent=5 // pred_region
      %s193 = ssub.s32 %s11, 1
      %s194 = smul.u32 32, %s16
      %p195 = scmp.lt.s32.totalorder %s194, 63
      %s196 = scalar_select %p195, %s194, 63
      %s197 = smul.addr %s196, 8
      %s198 = scalar_lea.vmem %s0, %s197
      %p199 = pneg %p37
      %p200 = pneg %p34
      %p201 = pneg %p58
      %p202 = pneg %p55
      %p203 = pneg %p79
      %p204 = pneg %p76
      %p205 = pneg %p100
      %p206 = pneg %p97
      %p207 = pneg %p121
      %p208 = pneg %p118
      %p209 = pneg %p147
      %p210 = pneg %p144
      %s211 = smul.u32 2, %s16
      %p212 = scmp.lt.s32.totalorder %s211, 3
      %s213 = scalar_select %p212, %s211, 3
      %s214 = smul.addr %s213, 8
      %s215 = scalar_lea.vmem %s5, %s214
      %s216 = smul.u32 32, %s16
      %p217 = scmp.lt.s32.totalorder %s216, 63
      %s218 = scalar_select %p217, %s216, 63
      %s219 = smul.addr %s218, 8
      %s220 = scalar_lea.vmem %s0, %s219
      %s221 = smul.u32 32, %s16
      %s222 = smul.u32 2, %s16
      %p223 = scmp.lt.s32.totalorder %s222, 3
      %s224 = scalar_select %p223, %s222, 3
      %s225 = smul.addr %s224, 8
      %s226 = scalar_lea.vmem %s5, %s225
      %s227 = smul.u32 2, %s16
      %v228 = vld [vmem:[%s220] sm:$0xff]
      %v229 = vld [vmem:[%s220 + $0x8] sm:$0xff]
      %v230 = vld [vmem:[%s220 + $0x10] sm:$0xff]
      %v231 = vld [vmem:[%s220 + $0x18] sm:$0xff]
      %v232 = vld [vmem:[%s220 + $0x20] sm:$0xff]
      %v233 = vld [vmem:[%s220 + $0x28] sm:$0xff]
      %v234 = vld [vmem:[%s220 + $0x30] sm:$0xff]
      %v235 = vld [vmem:[%s220 + $0x38] sm:$0xff]
      %v236 = vld [vmem:[%s220 + $0x40] sm:$0xff]
      %v237 = vld [vmem:[%s220 + $0x48] sm:$0xff]
      %v238 = vld [vmem:[%s220 + $0x50] sm:$0xff]
      %v239 = vld [vmem:[%s220 + $0x58] sm:$0xff]
      %v240 = vld [vmem:[%s220 + $0x60] sm:$0xff]
      %v241 = vld [vmem:[%s220 + $0x68] sm:$0xff]
      %v242 = vld [vmem:[%s220 + $0x70] sm:$0xff]
      %v243 = vld [vmem:[%s220 + $0x78] sm:$0xff]
      %v244 = vld [vmem:[%s220 + $0x80] sm:$0xff]
      %v245 = vld [vmem:[%s220 + $0x88] sm:$0xff]
      %v246 = vld [vmem:[%s220 + $0x90] sm:$0xff]
      %v247 = vld [vmem:[%s220 + $0x98] sm:$0xff]
      %v248 = vld [vmem:[%s220 + $0xa0] sm:$0xff]
      %v249 = vld [vmem:[%s220 + $0xa8] sm:$0xff]
      %v250 = vld [vmem:[%s220 + $0xb0] sm:$0xff]
      %v251 = vld [vmem:[%s220 + $0xb8] sm:$0xff]
      %v252 = vld [vmem:[%s220 + $0xc0] sm:$0xff]
      %v253 = vld [vmem:[%s220 + $0xc8] sm:$0xff]
      %v254 = vld [vmem:[%s220 + $0xd0] sm:$0xff]
      %v255 = vld [vmem:[%s220 + $0xd8] sm:$0xff]
      %v256 = vld [vmem:[%s220 + $0xe0] sm:$0xff]
      %v257 = vld [vmem:[%s220 + $0xe8] sm:$0xff]
      %v258 = vld [vmem:[%s220 + $0xf0] sm:$0xff]
      %v259 = vld [vmem:[%s220 + $0xf8] sm:$0xff]
      %v260 = vlaneseq
      %v261 = vand.u32 %v260, 127
      %262 = vset.pattern.permute.xlu0 0
      %263 = vperm.xlu0 %262, %v228
      %v264 = vpop.permute.xlu0 %263
      %265 = vset.pattern.permute.xlu0 0
      %266 = vperm.xlu0 %265, %v229
      %v267 = vpop.permute.xlu0 %266
      %268 = vset.pattern.permute.xlu0 0
      %269 = vperm.xlu0 %268, %v230
      %v270 = vpop.permute.xlu0 %269
      %271 = vset.pattern.permute.xlu0 0
      %272 = vperm.xlu0 %271, %v231
      %v273 = vpop.permute.xlu0 %272
      %274 = vset.pattern.permute.xlu0 0
      %275 = vperm.xlu0 %274, %v232
      %v276 = vpop.permute.xlu0 %275
      %277 = vset.pattern.permute.xlu0 0
      %278 = vperm.xlu0 %277, %v233
      %v279 = vpop.permute.xlu0 %278
      %280 = vset.pattern.permute.xlu0 0
      %281 = vperm.xlu0 %280, %v234
      %v282 = vpop.permute.xlu0 %281
      %283 = vset.pattern.permute.xlu0 0
      %284 = vperm.xlu0 %283, %v235
      %v285 = vpop.permute.xlu0 %284
      %286 = vset.pattern.permute.xlu0 0
      %287 = vperm.xlu0 %286, %v236
      %v288 = vpop.permute.xlu0 %287
      %289 = vset.pattern.permute.xlu0 0
      %290 = vperm.xlu0 %289, %v237
      %v291 = vpop.permute.xlu0 %290
      %292 = vset.pattern.permute.xlu0 0
      %293 = vperm.xlu0 %292, %v238
      %v294 = vpop.permute.xlu0 %293
      %295 = vset.pattern.permute.xlu0 0
      %296 = vperm.xlu0 %295, %v239
      %v297 = vpop.permute.xlu0 %296
      %298 = vset.pattern.permute.xlu0 0
      %299 = vperm.xlu0 %298, %v240
      %v300 = vpop.permute.xlu0 %299
      %301 = vset.pattern.permute.xlu0 0
      %302 = vperm.xlu0 %301, %v241
      %v303 = vpop.permute.xlu0 %302
      %304 = vset.pattern.permute.xlu0 0
      %305 = vperm.xlu0 %304, %v242
      %v306 = vpop.permute.xlu0 %305
      %307 = vset.pattern.permute.xlu0 0
      %308 = vperm.xlu0 %307, %v243
      %v309 = vpop.permute.xlu0 %308
      %310 = vset.pattern.permute.xlu0 0
      %311 = vperm.xlu0 %310, %v244
      %v312 = vpop.permute.xlu0 %311
      %313 = vset.pattern.permute.xlu0 0
      %314 = vperm.xlu0 %313, %v245
      %v315 = vpop.permute.xlu0 %314
      %316 = vset.pattern.permute.xlu0 0
      %317 = vperm.xlu0 %316, %v246
      %v318 = vpop.permute.xlu0 %317
      %319 = vset.pattern.permute.xlu0 0
      %320 = vperm.xlu0 %319, %v247
      %v321 = vpop.permute.xlu0 %320
      %322 = vset.pattern.permute.xlu0 0
      %323 = vperm.xlu0 %322, %v248
      %v324 = vpop.permute.xlu0 %323
      %325 = vset.pattern.permute.xlu0 0
      %326 = vperm.xlu0 %325, %v249
      %v327 = vpop.permute.xlu0 %326
      %328 = vset.pattern.permute.xlu0 0
      %329 = vperm.xlu0 %328, %v250
      %v330 = vpop.permute.xlu0 %329
      %331 = vset.pattern.permute.xlu0 0
      %332 = vperm.xlu0 %331, %v251
      %v333 = vpop.permute.xlu0 %332
      %334 = vset.pattern.permute.xlu0 0
      %335 = vperm.xlu0 %334, %v252
      %v336 = vpop.permute.xlu0 %335
      %337 = vset.pattern.permute.xlu0 0
      %338 = vperm.xlu0 %337, %v253
      %v339 = vpop.permute.xlu0 %338
      %340 = vset.pattern.permute.xlu0 0
      %341 = vperm.xlu0 %340, %v254
      %v342 = vpop.permute.xlu0 %341
      %343 = vset.pattern.permute.xlu0 0
      %344 = vperm.xlu0 %343, %v255
      %v345 = vpop.permute.xlu0 %344
      %346 = vset.pattern.permute.xlu0 0
      %347 = vperm.xlu0 %346, %v256
      %v348 = vpop.permute.xlu0 %347
      %349 = vset.pattern.permute.xlu0 0
      %350 = vperm.xlu0 %349, %v257
      %v351 = vpop.permute.xlu0 %350
      %352 = vset.pattern.permute.xlu0 0
      %353 = vperm.xlu0 %352, %v258
      %v354 = vpop.permute.xlu0 %353
      %355 = vset.pattern.permute.xlu0 0
      %356 = vperm.xlu0 %355, %v259
      %v357 = vpop.permute.xlu0 %356
      %vm358 = vcmp.eq.s32.totalorder %v264, %v261
      %vm359 = vcmp.eq.s32.totalorder %v267, %v261
      %vm360 = vcmp.eq.s32.totalorder %v270, %v261
      %vm361 = vcmp.eq.s32.totalorder %v273, %v261
      %vm362 = vcmp.eq.s32.totalorder %v276, %v261
      %vm363 = vcmp.eq.s32.totalorder %v279, %v261
      %vm364 = vcmp.eq.s32.totalorder %v282, %v261
      %vm365 = vcmp.eq.s32.totalorder %v285, %v261
      %vm366 = vcmp.eq.s32.totalorder %v288, %v261
      %vm367 = vcmp.eq.s32.totalorder %v291, %v261
      %vm368 = vcmp.eq.s32.totalorder %v294, %v261
      %vm369 = vcmp.eq.s32.totalorder %v297, %v261
      %vm370 = vcmp.eq.s32.totalorder %v300, %v261
      %vm371 = vcmp.eq.s32.totalorder %v303, %v261
      %vm372 = vcmp.eq.s32.totalorder %v306, %v261
      %vm373 = vcmp.eq.s32.totalorder %v309, %v261
      %vm374 = vcmp.eq.s32.totalorder %v312, %v261
      %vm375 = vcmp.eq.s32.totalorder %v315, %v261
      %vm376 = vcmp.eq.s32.totalorder %v318, %v261
      %vm377 = vcmp.eq.s32.totalorder %v321, %v261
      %vm378 = vcmp.eq.s32.totalorder %v324, %v261
      %vm379 = vcmp.eq.s32.totalorder %v327, %v261
      %vm380 = vcmp.eq.s32.totalorder %v330, %v261
      %vm381 = vcmp.eq.s32.totalorder %v333, %v261
      %vm382 = vcmp.eq.s32.totalorder %v336, %v261
      %vm383 = vcmp.eq.s32.totalorder %v339, %v261
      %vm384 = vcmp.eq.s32.totalorder %v342, %v261
      %vm385 = vcmp.eq.s32.totalorder %v345, %v261
      %vm386 = vcmp.eq.s32.totalorder %v348, %v261
      %vm387 = vcmp.eq.s32.totalorder %v351, %v261
      %vm388 = vcmp.eq.s32.totalorder %v354, %v261
      %vm389 = vcmp.eq.s32.totalorder %v357, %v261
      %v390 = vsel %vm358, 1, 0
      %v391 = vsel %vm359, 1, 0
      %v392 = vsel %vm360, 1, 0
      %v393 = vsel %vm361, 1, 0
      %v394 = vsel %vm362, 1, 0
      %v395 = vsel %vm363, 1, 0
      %v396 = vsel %vm364, 1, 0
      %v397 = vsel %vm365, 1, 0
      %v398 = vsel %vm366, 1, 0
      %v399 = vsel %vm367, 1, 0
      %v400 = vsel %vm368, 1, 0
      %v401 = vsel %vm369, 1, 0
      %v402 = vsel %vm370, 1, 0
      %v403 = vsel %vm371, 1, 0
      %v404 = vsel %vm372, 1, 0
      %v405 = vsel %vm373, 1, 0
      %v406 = vsel %vm374, 1, 0
      %v407 = vsel %vm375, 1, 0
      %v408 = vsel %vm376, 1, 0
      %v409 = vsel %vm377, 1, 0
      %v410 = vsel %vm378, 1, 0
      %v411 = vsel %vm379, 1, 0
      %v412 = vsel %vm380, 1, 0
      %v413 = vsel %vm381, 1, 0
      %v414 = vsel %vm382, 1, 0
      %v415 = vsel %vm383, 1, 0
      %v416 = vsel %vm384, 1, 0
      %v417 = vsel %vm385, 1, 0
      %v418 = vsel %vm386, 1, 0
      %v419 = vsel %vm387, 1, 0
      %v420 = vsel %vm388, 1, 0
      %v421 = vsel %vm389, 1, 0
      %v422 = vcvt.s32.f32 %v390
      %v423 = vcvt.s32.f32 %v391
      %v424 = vcvt.s32.f32 %v392
      %v425 = vcvt.s32.f32 %v393
      %v426 = vcvt.s32.f32 %v394
      %v427 = vcvt.s32.f32 %v395
      %v428 = vcvt.s32.f32 %v396
      %v429 = vcvt.s32.f32 %v397
      %v430 = vcvt.s32.f32 %v398
      %v431 = vcvt.s32.f32 %v399
      %v432 = vcvt.s32.f32 %v400
      %v433 = vcvt.s32.f32 %v401
      %v434 = vcvt.s32.f32 %v402
      %v435 = vcvt.s32.f32 %v403
      %v436 = vcvt.s32.f32 %v404
      %v437 = vcvt.s32.f32 %v405
      %v438 = vcvt.s32.f32 %v406
      %v439 = vcvt.s32.f32 %v407
      %v440 = vcvt.s32.f32 %v408
      %v441 = vcvt.s32.f32 %v409
      %v442 = vcvt.s32.f32 %v410
      %v443 = vcvt.s32.f32 %v411
      %v444 = vcvt.s32.f32 %v412
      %v445 = vcvt.s32.f32 %v413
      %v446 = vcvt.s32.f32 %v414
      %v447 = vcvt.s32.f32 %v415
      %v448 = vcvt.s32.f32 %v416
      %v449 = vcvt.s32.f32 %v417
      %v450 = vcvt.s32.f32 %v418
      %v451 = vcvt.s32.f32 %v419
      %v452 = vcvt.s32.f32 %v420
      %v453 = vcvt.s32.f32 %v421
      %v454 = vld [vmem:[%s2] sm:$0xff]
      %v455 = vld [vmem:[%s2 + $0x8] sm:$0xff]
      %v456 = vld [vmem:[%s2 + $0x10] sm:$0xff]
      %v457 = vld [vmem:[%s2 + $0x18] sm:$0xff]
      %v458 = vld [vmem:[%s2 + $0x20] sm:$0xff]
      %v459 = vld [vmem:[%s2 + $0x28] sm:$0xff]
      %v460 = vld [vmem:[%s2 + $0x30] sm:$0xff]
      %v461 = vld [vmem:[%s2 + $0x38] sm:$0xff]
      %v462 = vld [vmem:[%s2 + $0x40] sm:$0xff]
      %v463 = vld [vmem:[%s2 + $0x48] sm:$0xff]
      %v464 = vld [vmem:[%s2 + $0x50] sm:$0xff]
      %v465 = vld [vmem:[%s2 + $0x58] sm:$0xff]
      %v466 = vld [vmem:[%s2 + $0x60] sm:$0xff]
      %v467 = vld [vmem:[%s2 + $0x68] sm:$0xff]
      %v468 = vld [vmem:[%s2 + $0x70] sm:$0xff]
      %v469 = vld [vmem:[%s2 + $0x78] sm:$0xff]
      %v470 = vld [vmem:[%s2 + $0x80] sm:$0xff]
      %v471 = vld [vmem:[%s2 + $0x88] sm:$0xff]
      %v472 = vld [vmem:[%s2 + $0x90] sm:$0xff]
      %v473 = vld [vmem:[%s2 + $0x98] sm:$0xff]
      %v474 = vld [vmem:[%s2 + $0xa0] sm:$0xff]
      %v475 = vld [vmem:[%s2 + $0xa8] sm:$0xff]
      %v476 = vld [vmem:[%s2 + $0xb0] sm:$0xff]
      %v477 = vld [vmem:[%s2 + $0xb8] sm:$0xff]
      %v478 = vld [vmem:[%s2 + $0xc0] sm:$0xff]
      %v479 = vld [vmem:[%s2 + $0xc8] sm:$0xff]
      %v480 = vld [vmem:[%s2 + $0xd0] sm:$0xff]
      %v481 = vld [vmem:[%s2 + $0xd8] sm:$0xff]
      %v482 = vld [vmem:[%s2 + $0xe0] sm:$0xff]
      %v483 = vld [vmem:[%s2 + $0xe8] sm:$0xff]
      %v484 = vld [vmem:[%s2 + $0xf0] sm:$0xff]
      %v485 = vld [vmem:[%s2 + $0xf8] sm:$0xff]
      %v486 = vld [vmem:[%s2 + $0x100] sm:$0xff]
      %v487 = vld [vmem:[%s2 + $0x108] sm:$0xff]
      %v488 = vld [vmem:[%s2 + $0x110] sm:$0xff]
      %v489 = vld [vmem:[%s2 + $0x118] sm:$0xff]
      %v490 = vld [vmem:[%s2 + $0x120] sm:$0xff]
      %v491 = vld [vmem:[%s2 + $0x128] sm:$0xff]
      %v492 = vld [vmem:[%s2 + $0x130] sm:$0xff]
      %v493 = vld [vmem:[%s2 + $0x138] sm:$0xff]
      %v494 = vld [vmem:[%s2 + $0x140] sm:$0xff]
      %v495 = vld [vmem:[%s2 + $0x148] sm:$0xff]
      %v496 = vld [vmem:[%s2 + $0x150] sm:$0xff]
      %v497 = vld [vmem:[%s2 + $0x158] sm:$0xff]
      %v498 = vld [vmem:[%s2 + $0x160] sm:$0xff]
      %v499 = vld [vmem:[%s2 + $0x168] sm:$0xff]
      %v500 = vld [vmem:[%s2 + $0x170] sm:$0xff]
      %v501 = vld [vmem:[%s2 + $0x178] sm:$0xff]
      %v502 = vand.u32 %v499, 4294901760
      %503 = vmatpush.msra.mxu0 %v502
      %v504 = vand.u32 %v496, 4294901760
      %505 = vmatpush.msra.mxu0 %v504
      %v506 = vand.u32 %v493, 4294901760
      %507 = vmatpush.msra.mxu0 %v506
      %v508 = vand.u32 %v490, 4294901760
      %509 = vmatpush.msra.mxu0 %v508
      %v510 = vand.u32 %v487, 4294901760
      %511 = vmatpush.msra.mxu0 %v510
      %v512 = vand.u32 %v484, 4294901760
      %513 = vmatpush.msra.mxu0 %v512
      %v514 = vand.u32 %v481, 4294901760
      %515 = vmatpush.msra.mxu0 %v514
      %v516 = vand.u32 %v478, 4294901760
      %517 = vmatpush.msra.mxu0 %v516
      %v518 = vand.u32 %v475, 4294901760
      %519 = vmatpush.msra.mxu0 %v518
      %v520 = vand.u32 %v472, 4294901760
      %521 = vmatpush.msra.mxu0 %v520
      %v522 = vand.u32 %v469, 4294901760
      %523 = vmatpush.msra.mxu0 %v522
      %v524 = vand.u32 %v466, 4294901760
      %525 = vmatpush.msra.mxu0 %v524
      %v526 = vand.u32 %v463, 4294901760
      %527 = vmatpush.msra.mxu0 %v526
      %v528 = vand.u32 %v460, 4294901760
      %529 = vmatpush.msra.mxu0 %v528
      %v530 = vand.u32 %v457, 4294901760
      %531 = vmatpush.msra.mxu0 %v530
      %v532 = vand.u32 %v454, 4294901760
      %533 = vmatpush.msra.mxu0 %v532
      %v534 = vand.u32 %v422, 4294901760
      %v535 = vsub.f32 %v422, %v534
      %v536 = vand.u32 %v535, 4294901760
      %v537 = vsub.f32 %v535, %v536
      %v538 = vand.u32 %v537, 4294901760
      %539 = vmatmul.f32.gmra.mxu0 %v538
      %v540 = vpop.f32.mrf.mxu0
      %v541 = vadd.f32 0.0, %v540
      %v542 = vand.u32 %v423, 4294901760
      %v543 = vsub.f32 %v423, %v542
      %v544 = vand.u32 %v543, 4294901760
      %v545 = vsub.f32 %v543, %v544
      %v546 = vand.u32 %v545, 4294901760
      %547 = vmatmul.f32.gmra.mxu0 %v546
      %v548 = vpop.f32.mrf.mxu0
      %v549 = vadd.f32 0.0, %v548
      %v550 = vand.u32 %v424, 4294901760
      %v551 = vsub.f32 %v424, %v550
      %v552 = vand.u32 %v551, 4294901760
      %v553 = vsub.f32 %v551, %v552
      %v554 = vand.u32 %v553, 4294901760
      %555 = vmatmul.f32.gmra.mxu0 %v554
      %v556 = vpop.f32.mrf.mxu0
      %v557 = vadd.f32 0.0, %v556
      %v558 = vand.u32 %v425, 4294901760
      %v559 = vsub.f32 %v425, %v558
      %v560 = vand.u32 %v559, 4294901760
      %v561 = vsub.f32 %v559, %v560
      %v562 = vand.u32 %v561, 4294901760
      %563 = vmatmul.f32.gmra.mxu0 %v562
      %v564 = vpop.f32.mrf.mxu0
      %v565 = vadd.f32 0.0, %v564
      %v566 = vand.u32 %v426, 4294901760
      %v567 = vsub.f32 %v426, %v566
      %v568 = vand.u32 %v567, 4294901760
      %v569 = vsub.f32 %v567, %v568
      %v570 = vand.u32 %v569, 4294901760
      %571 = vmatmul.f32.gmra.mxu0 %v570
      %v572 = vpop.f32.mrf.mxu0
      %v573 = vadd.f32 0.0, %v572
      %v574 = vand.u32 %v427, 4294901760
      %v575 = vsub.f32 %v427, %v574
      %v576 = vand.u32 %v575, 4294901760
      %v577 = vsub.f32 %v575, %v576
      %v578 = vand.u32 %v577, 4294901760
      %579 = vmatmul.f32.gmra.mxu0 %v578
      %v580 = vpop.f32.mrf.mxu0
      %v581 = vadd.f32 0.0, %v580
      %v582 = vand.u32 %v428, 4294901760
      %v583 = vsub.f32 %v428, %v582
      %v584 = vand.u32 %v583, 4294901760
      %v585 = vsub.f32 %v583, %v584
      %v586 = vand.u32 %v585, 4294901760
      %587 = vmatmul.f32.gmra.mxu0 %v586
      %v588 = vpop.f32.mrf.mxu0
      %v589 = vadd.f32 0.0, %v588
      %v590 = vand.u32 %v429, 4294901760
      %v591 = vsub.f32 %v429, %v590
      %v592 = vand.u32 %v591, 4294901760
      %v593 = vsub.f32 %v591, %v592
      %v594 = vand.u32 %v593, 4294901760
      %595 = vmatmul.f32.gmra.mxu0 %v594
      %v596 = vpop.f32.mrf.mxu0
      %v597 = vadd.f32 0.0, %v596
      %v598 = vand.u32 %v430, 4294901760
      %v599 = vsub.f32 %v430, %v598
      %v600 = vand.u32 %v599, 4294901760
      %v601 = vsub.f32 %v599, %v600
      %v602 = vand.u32 %v601, 4294901760
      %603 = vmatmul.f32.gmra.mxu0 %v602
      %v604 = vpop.f32.mrf.mxu0
      %v605 = vadd.f32 0.0, %v604
      %v606 = vand.u32 %v431, 4294901760
      %v607 = vsub.f32 %v431, %v606
      %v608 = vand.u32 %v607, 4294901760
      %v609 = vsub.f32 %v607, %v608
      %v610 = vand.u32 %v609, 4294901760
      %611 = vmatmul.f32.gmra.mxu0 %v610
      %v612 = vpop.f32.mrf.mxu0
      %v613 = vadd.f32 0.0, %v612
      %v614 = vand.u32 %v432, 4294901760
      %v615 = vsub.f32 %v432, %v614
      %v616 = vand.u32 %v615, 4294901760
      %v617 = vsub.f32 %v615, %v616
      %v618 = vand.u32 %v617, 4294901760
      %619 = vmatmul.f32.gmra.mxu0 %v618
      %v620 = vpop.f32.mrf.mxu0
      %v621 = vadd.f32 0.0, %v620
      %v622 = vand.u32 %v433, 4294901760
      %v623 = vsub.f32 %v433, %v622
      %v624 = vand.u32 %v623, 4294901760
      %v625 = vsub.f32 %v623, %v624
      %v626 = vand.u32 %v625, 4294901760
      %627 = vmatmul.f32.gmra.mxu0 %v626
      %v628 = vpop.f32.mrf.mxu0
      %v629 = vadd.f32 0.0, %v628
      %v630 = vand.u32 %v434, 4294901760
      %v631 = vsub.f32 %v434, %v630
      %v632 = vand.u32 %v631, 4294901760
      %v633 = vsub.f32 %v631, %v632
      %v634 = vand.u32 %v633, 4294901760
      %635 = vmatmul.f32.gmra.mxu0 %v634
      %v636 = vpop.f32.mrf.mxu0
      %v637 = vadd.f32 0.0, %v636
      %v638 = vand.u32 %v435, 4294901760
      %v639 = vsub.f32 %v435, %v638
      %v640 = vand.u32 %v639, 4294901760
      %v641 = vsub.f32 %v639, %v640
      %v642 = vand.u32 %v641, 4294901760
      %643 = vmatmul.f32.gmra.mxu0 %v642
      %v644 = vpop.f32.mrf.mxu0
      %v645 = vadd.f32 0.0, %v644
      %v646 = vand.u32 %v436, 4294901760
      %v647 = vsub.f32 %v436, %v646
      %v648 = vand.u32 %v647, 4294901760
      %v649 = vsub.f32 %v647, %v648
      %v650 = vand.u32 %v649, 4294901760
      %651 = vmatmul.f32.gmra.mxu0 %v650
      %v652 = vpop.f32.mrf.mxu0
      %v653 = vadd.f32 0.0, %v652
      %v654 = vand.u32 %v437, 4294901760
      %v655 = vsub.f32 %v437, %v654
      %v656 = vand.u32 %v655, 4294901760
      %v657 = vsub.f32 %v655, %v656
      %v658 = vand.u32 %v657, 4294901760
      %659 = vmatmul.f32.gmra.mxu0 %v658
      %v660 = vpop.f32.mrf.mxu0
      %v661 = vadd.f32 0.0, %v660
      %v662 = vand.u32 %v438, 4294901760
      %v663 = vsub.f32 %v438, %v662
      %v664 = vand.u32 %v663, 4294901760
      %v665 = vsub.f32 %v663, %v664
      %v666 = vand.u32 %v665, 4294901760
      %667 = vmatmul.f32.gmra.mxu0 %v666
      %v668 = vpop.f32.mrf.mxu0
      %v669 = vadd.f32 0.0, %v668
      %v670 = vand.u32 %v439, 4294901760
      %v671 = vsub.f32 %v439, %v670
      %v672 = vand.u32 %v671, 4294901760
      %v673 = vsub.f32 %v671, %v672
      %v674 = vand.u32 %v673, 4294901760
      %675 = vmatmul.f32.gmra.mxu0 %v674
      %v676 = vpop.f32.mrf.mxu0
      %v677 = vadd.f32 0.0, %v676
      %v678 = vand.u32 %v440, 4294901760
      %v679 = vsub.f32 %v440, %v678
      %v680 = vand.u32 %v679, 4294901760
      %v681 = vsub.f32 %v679, %v680
      %v682 = vand.u32 %v681, 4294901760
      %683 = vmatmul.f32.gmra.mxu0 %v682
      %v684 = vpop.f32.mrf.mxu0
      %v685 = vadd.f32 0.0, %v684
      %v686 = vand.u32 %v441, 4294901760
      %v687 = vsub.f32 %v441, %v686
      %v688 = vand.u32 %v687, 4294901760
      %v689 = vsub.f32 %v687, %v688
      %v690 = vand.u32 %v689, 4294901760
      %691 = vmatmul.f32.gmra.mxu0 %v690
      %v692 = vpop.f32.mrf.mxu0
      %v693 = vadd.f32 0.0, %v692
      %v694 = vand.u32 %v442, 4294901760
      %v695 = vsub.f32 %v442, %v694
      %v696 = vand.u32 %v695, 4294901760
      %v697 = vsub.f32 %v695, %v696
      %v698 = vand.u32 %v697, 4294901760
      %699 = vmatmul.f32.gmra.mxu0 %v698
      %v700 = vpop.f32.mrf.mxu0
      %v701 = vadd.f32 0.0, %v700
      %v702 = vand.u32 %v443, 4294901760
      %v703 = vsub.f32 %v443, %v702
      %v704 = vand.u32 %v703, 4294901760
      %v705 = vsub.f32 %v703, %v704
      %v706 = vand.u32 %v705, 4294901760
      %707 = vmatmul.f32.gmra.mxu0 %v706
      %v708 = vpop.f32.mrf.mxu0
      %v709 = vadd.f32 0.0, %v708
      %v710 = vand.u32 %v444, 4294901760
      %v711 = vsub.f32 %v444, %v710
      %v712 = vand.u32 %v711, 4294901760
      %v713 = vsub.f32 %v711, %v712
      %v714 = vand.u32 %v713, 4294901760
      %715 = vmatmul.f32.gmra.mxu0 %v714
      %v716 = vpop.f32.mrf.mxu0
      %v717 = vadd.f32 0.0, %v716
      %v718 = vand.u32 %v445, 4294901760
      %v719 = vsub.f32 %v445, %v718
      %v720 = vand.u32 %v719, 4294901760
      %v721 = vsub.f32 %v719, %v720
      %v722 = vand.u32 %v721, 4294901760
      %723 = vmatmul.f32.gmra.mxu0 %v722
      %v724 = vpop.f32.mrf.mxu0
      %v725 = vadd.f32 0.0, %v724
      %v726 = vand.u32 %v446, 4294901760
      %v727 = vsub.f32 %v446, %v726
      %v728 = vand.u32 %v727, 4294901760
      %v729 = vsub.f32 %v727, %v728
      %v730 = vand.u32 %v729, 4294901760
      %731 = vmatmul.f32.gmra.mxu0 %v730
      %v732 = vpop.f32.mrf.mxu0
      %v733 = vadd.f32 0.0, %v732
      %v734 = vand.u32 %v447, 4294901760
      %v735 = vsub.f32 %v447, %v734
      %v736 = vand.u32 %v735, 4294901760
      %v737 = vsub.f32 %v735, %v736
      %v738 = vand.u32 %v737, 4294901760
      %739 = vmatmul.f32.gmra.mxu0 %v738
      %v740 = vpop.f32.mrf.mxu0
      %v741 = vadd.f32 0.0, %v740
      %v742 = vand.u32 %v448, 4294901760
      %v743 = vsub.f32 %v448, %v742
      %v744 = vand.u32 %v743, 4294901760
      %v745 = vsub.f32 %v743, %v744
      %v746 = vand.u32 %v745, 4294901760
      %747 = vmatmul.f32.gmra.mxu0 %v746
      %v748 = vpop.f32.mrf.mxu0
      %v749 = vadd.f32 0.0, %v748
      %v750 = vand.u32 %v449, 4294901760
      %v751 = vsub.f32 %v449, %v750
      %v752 = vand.u32 %v751, 4294901760
      %v753 = vsub.f32 %v751, %v752
      %v754 = vand.u32 %v753, 4294901760
      %755 = vmatmul.f32.gmra.mxu0 %v754
      %v756 = vpop.f32.mrf.mxu0
      %v757 = vadd.f32 0.0, %v756
      %v758 = vand.u32 %v450, 4294901760
      %v759 = vsub.f32 %v450, %v758
      %v760 = vand.u32 %v759, 4294901760
      %v761 = vsub.f32 %v759, %v760
      %v762 = vand.u32 %v761, 4294901760
      %763 = vmatmul.f32.gmra.mxu0 %v762
      %v764 = vpop.f32.mrf.mxu0
      %v765 = vadd.f32 0.0, %v764
      %v766 = vand.u32 %v451, 4294901760
      %v767 = vsub.f32 %v451, %v766
      %v768 = vand.u32 %v767, 4294901760
      %v769 = vsub.f32 %v767, %v768
      %v770 = vand.u32 %v769, 4294901760
      %771 = vmatmul.f32.gmra.mxu0 %v770
      %v772 = vpop.f32.mrf.mxu0
      %v773 = vadd.f32 0.0, %v772
      %v774 = vand.u32 %v452, 4294901760
      %v775 = vsub.f32 %v452, %v774
      %v776 = vand.u32 %v775, 4294901760
      %v777 = vsub.f32 %v775, %v776
      %v778 = vand.u32 %v777, 4294901760
      %779 = vmatmul.f32.gmra.mxu0 %v778
      %v780 = vpop.f32.mrf.mxu0
      %v781 = vadd.f32 0.0, %v780
      %v782 = vand.u32 %v453, 4294901760
      %v783 = vsub.f32 %v453, %v782
      %v784 = vand.u32 %v783, 4294901760
      %v785 = vsub.f32 %v783, %v784
      %v786 = vand.u32 %v785, 4294901760
      %787 = vmatmul.f32.gmra.mxu0 %v786
      %v788 = vpop.f32.mrf.mxu0
      %v789 = vadd.f32 0.0, %v788
      %790 = vdwg.mxu0
      %v791 = vand.u32 %v499, 4294901760
      %v792 = vsub.f32 %v499, %v791
      %v793 = vand.u32 %v792, 4294901760
      %v794 = vsub.f32 %v792, %v793
      %v795 = vand.u32 %v794, 4294901760
      %796 = vmatpush.msra.mxu0 %v795
      %v797 = vand.u32 %v496, 4294901760
      %v798 = vsub.f32 %v496, %v797
      %v799 = vand.u32 %v798, 4294901760
      %v800 = vsub.f32 %v798, %v799
      %v801 = vand.u32 %v800, 4294901760
      %802 = vmatpush.msra.mxu0 %v801
      %v803 = vand.u32 %v493, 4294901760
      %v804 = vsub.f32 %v493, %v803
      %v805 = vand.u32 %v804, 4294901760
      %v806 = vsub.f32 %v804, %v805
      %v807 = vand.u32 %v806, 4294901760
      %808 = vmatpush.msra.mxu0 %v807
      %v809 = vand.u32 %v490, 4294901760
      %v810 = vsub.f32 %v490, %v809
      %v811 = vand.u32 %v810, 4294901760
      %v812 = vsub.f32 %v810, %v811
      %v813 = vand.u32 %v812, 4294901760
      %814 = vmatpush.msra.mxu0 %v813
      %v815 = vand.u32 %v487, 4294901760
      %v816 = vsub.f32 %v487, %v815
      %v817 = vand.u32 %v816, 4294901760
      %v818 = vsub.f32 %v816, %v817
      %v819 = vand.u32 %v818, 4294901760
      %820 = vmatpush.msra.mxu0 %v819
      %v821 = vand.u32 %v484, 4294901760
      %v822 = vsub.f32 %v484, %v821
      %v823 = vand.u32 %v822, 4294901760
      %v824 = vsub.f32 %v822, %v823
      %v825 = vand.u32 %v824, 4294901760
      %826 = vmatpush.msra.mxu0 %v825
      %v827 = vand.u32 %v481, 4294901760
      %v828 = vsub.f32 %v481, %v827
      %v829 = vand.u32 %v828, 4294901760
      %v830 = vsub.f32 %v828, %v829
      %v831 = vand.u32 %v830, 4294901760
      %832 = vmatpush.msra.mxu0 %v831
      %v833 = vand.u32 %v478, 4294901760
      %v834 = vsub.f32 %v478, %v833
      %v835 = vand.u32 %v834, 4294901760
      %v836 = vsub.f32 %v834, %v835
      %v837 = vand.u32 %v836, 4294901760
      %838 = vmatpush.msra.mxu0 %v837
      %v839 = vand.u32 %v475, 4294901760
      %v840 = vsub.f32 %v475, %v839
      %v841 = vand.u32 %v840, 4294901760
      %v842 = vsub.f32 %v840, %v841
      %v843 = vand.u32 %v842, 4294901760
      %844 = vmatpush.msra.mxu0 %v843
      %v845 = vand.u32 %v472, 4294901760
      %v846 = vsub.f32 %v472, %v845
      %v847 = vand.u32 %v846, 4294901760
      %v848 = vsub.f32 %v846, %v847
      %v849 = vand.u32 %v848, 4294901760
      %850 = vmatpush.msra.mxu0 %v849
      %v851 = vand.u32 %v469, 4294901760
      %v852 = vsub.f32 %v469, %v851
      %v853 = vand.u32 %v852, 4294901760
      %v854 = vsub.f32 %v852, %v853
      %v855 = vand.u32 %v854, 4294901760
      %856 = vmatpush.msra.mxu0 %v855
      %v857 = vand.u32 %v466, 4294901760
      %v858 = vsub.f32 %v466, %v857
      %v859 = vand.u32 %v858, 4294901760
      %v860 = vsub.f32 %v858, %v859
      %v861 = vand.u32 %v860, 4294901760
      %862 = vmatpush.msra.mxu0 %v861
      %v863 = vand.u32 %v463, 4294901760
      %v864 = vsub.f32 %v463, %v863
      %v865 = vand.u32 %v864, 4294901760
      %v866 = vsub.f32 %v864, %v865
      %v867 = vand.u32 %v866, 4294901760
      %868 = vmatpush.msra.mxu0 %v867
      %v869 = vand.u32 %v460, 4294901760
      %v870 = vsub.f32 %v460, %v869
      %v871 = vand.u32 %v870, 4294901760
      %v872 = vsub.f32 %v870, %v871
      %v873 = vand.u32 %v872, 4294901760
      %874 = vmatpush.msra.mxu0 %v873
      %v875 = vand.u32 %v457, 4294901760
      %v876 = vsub.f32 %v457, %v875
      %v877 = vand.u32 %v876, 4294901760
      %v878 = vsub.f32 %v876, %v877
      %v879 = vand.u32 %v878, 4294901760
      %880 = vmatpush.msra.mxu0 %v879
      %v881 = vand.u32 %v454, 4294901760
      %v882 = vsub.f32 %v454, %v881
      %v883 = vand.u32 %v882, 4294901760
      %v884 = vsub.f32 %v882, %v883
      %v885 = vand.u32 %v884, 4294901760
      %886 = vmatpush.msra.mxu0 %v885
      %v887 = vand.u32 %v422, 4294901760
      %888 = vmatmul.f32.gmra.mxu0 %v887
      %v889 = vpop.f32.mrf.mxu0
      %v890 = vadd.f32 %v541, %v889
      %v891 = vand.u32 %v423, 4294901760
      %892 = vmatmul.f32.gmra.mxu0 %v891
      %v893 = vpop.f32.mrf.mxu0
      %v894 = vadd.f32 %v549, %v893
      %v895 = vand.u32 %v424, 4294901760
      %896 = vmatmul.f32.gmra.mxu0 %v895
      %v897 = vpop.f32.mrf.mxu0
      %v898 = vadd.f32 %v557, %v897
      %v899 = vand.u32 %v425, 4294901760
      %900 = vmatmul.f32.gmra.mxu0 %v899
      %v901 = vpop.f32.mrf.mxu0
      %v902 = vadd.f32 %v565, %v901
      %v903 = vand.u32 %v426, 4294901760
      %904 = vmatmul.f32.gmra.mxu0 %v903
      %v905 = vpop.f32.mrf.mxu0
      %v906 = vadd.f32 %v573, %v905
      %v907 = vand.u32 %v427, 4294901760
      %908 = vmatmul.f32.gmra.mxu0 %v907
      %v909 = vpop.f32.mrf.mxu0
      %v910 = vadd.f32 %v581, %v909
      %v911 = vand.u32 %v428, 4294901760
      %912 = vmatmul.f32.gmra.mxu0 %v911
      %v913 = vpop.f32.mrf.mxu0
      %v914 = vadd.f32 %v589, %v913
      %v915 = vand.u32 %v429, 4294901760
      %916 = vmatmul.f32.gmra.mxu0 %v915
      %v917 = vpop.f32.mrf.mxu0
      %v918 = vadd.f32 %v597, %v917
      %v919 = vand.u32 %v430, 4294901760
      %920 = vmatmul.f32.gmra.mxu0 %v919
      %v921 = vpop.f32.mrf.mxu0
      %v922 = vadd.f32 %v605, %v921
      %v923 = vand.u32 %v431, 4294901760
      %924 = vmatmul.f32.gmra.mxu0 %v923
      %v925 = vpop.f32.mrf.mxu0
      %v926 = vadd.f32 %v613, %v925
      %v927 = vand.u32 %v432, 4294901760
      %928 = vmatmul.f32.gmra.mxu0 %v927
      %v929 = vpop.f32.mrf.mxu0
      %v930 = vadd.f32 %v621, %v929
      %v931 = vand.u32 %v433, 4294901760
      %932 = vmatmul.f32.gmra.mxu0 %v931
      %v933 = vpop.f32.mrf.mxu0
      %v934 = vadd.f32 %v629, %v933
      %v935 = vand.u32 %v434, 4294901760
      %936 = vmatmul.f32.gmra.mxu0 %v935
      %v937 = vpop.f32.mrf.mxu0
      %v938 = vadd.f32 %v637, %v937
      %v939 = vand.u32 %v435, 4294901760
      %940 = vmatmul.f32.gmra.mxu0 %v939
      %v941 = vpop.f32.mrf.mxu0
      %v942 = vadd.f32 %v645, %v941
      %v943 = vand.u32 %v436, 4294901760
      %944 = vmatmul.f32.gmra.mxu0 %v943
      %v945 = vpop.f32.mrf.mxu0
      %v946 = vadd.f32 %v653, %v945
      %v947 = vand.u32 %v437, 4294901760
      %948 = vmatmul.f32.gmra.mxu0 %v947
      %v949 = vpop.f32.mrf.mxu0
      %v950 = vadd.f32 %v661, %v949
      %v951 = vand.u32 %v438, 4294901760
      %952 = vmatmul.f32.gmra.mxu0 %v951
      %v953 = vpop.f32.mrf.mxu0
      %v954 = vadd.f32 %v669, %v953
      %v955 = vand.u32 %v439, 4294901760
      %956 = vmatmul.f32.gmra.mxu0 %v955
      %v957 = vpop.f32.mrf.mxu0
      %v958 = vadd.f32 %v677, %v957
      %v959 = vand.u32 %v440, 4294901760
      %960 = vmatmul.f32.gmra.mxu0 %v959
      %v961 = vpop.f32.mrf.mxu0
      %v962 = vadd.f32 %v685, %v961
      %v963 = vand.u32 %v441, 4294901760
      %964 = vmatmul.f32.gmra.mxu0 %v963
      %v965 = vpop.f32.mrf.mxu0
      %v966 = vadd.f32 %v693, %v965
      %v967 = vand.u32 %v442, 4294901760
      %968 = vmatmul.f32.gmra.mxu0 %v967
      %v969 = vpop.f32.mrf.mxu0
      %v970 = vadd.f32 %v701, %v969
      %v971 = vand.u32 %v443, 4294901760
      %972 = vmatmul.f32.gmra.mxu0 %v971
      %v973 = vpop.f32.mrf.mxu0
      %v974 = vadd.f32 %v709, %v973
      %v975 = vand.u32 %v444, 4294901760
      %976 = vmatmul.f32.gmra.mxu0 %v975
      %v977 = vpop.f32.mrf.mxu0
      %v978 = vadd.f32 %v717, %v977
      %v979 = vand.u32 %v445, 4294901760
      %980 = vmatmul.f32.gmra.mxu0 %v979
      %v981 = vpop.f32.mrf.mxu0
      %v982 = vadd.f32 %v725, %v981
      %v983 = vand.u32 %v446, 4294901760
      %984 = vmatmul.f32.gmra.mxu0 %v983
      %v985 = vpop.f32.mrf.mxu0
      %v986 = vadd.f32 %v733, %v985
      %v987 = vand.u32 %v447, 4294901760
      %988 = vmatmul.f32.gmra.mxu0 %v987
      %v989 = vpop.f32.mrf.mxu0
      %v990 = vadd.f32 %v741, %v989
      %v991 = vand.u32 %v448, 4294901760
      %992 = vmatmul.f32.gmra.mxu0 %v991
      %v993 = vpop.f32.mrf.mxu0
      %v994 = vadd.f32 %v749, %v993
      %v995 = vand.u32 %v449, 4294901760
      %996 = vmatmul.f32.gmra.mxu0 %v995
      %v997 = vpop.f32.mrf.mxu0
      %v998 = vadd.f32 %v757, %v997
      %v999 = vand.u32 %v450, 4294901760
      %1000 = vmatmul.f32.gmra.mxu0 %v999
      %v1001 = vpop.f32.mrf.mxu0
      %v1002 = vadd.f32 %v765, %v1001
      %v1003 = vand.u32 %v451, 4294901760
      %1004 = vmatmul.f32.gmra.mxu0 %v1003
      %v1005 = vpop.f32.mrf.mxu0
      %v1006 = vadd.f32 %v773, %v1005
      %v1007 = vand.u32 %v452, 4294901760
      %1008 = vmatmul.f32.gmra.mxu0 %v1007
      %v1009 = vpop.f32.mrf.mxu0
      %v1010 = vadd.f32 %v781, %v1009
      %v1011 = vand.u32 %v453, 4294901760
      %1012 = vmatmul.f32.gmra.mxu0 %v1011
      %v1013 = vpop.f32.mrf.mxu0
      %v1014 = vadd.f32 %v789, %v1013
      %1015 = vdwg.mxu0
      %v1016 = vand.u32 %v499, 4294901760
      %v1017 = vsub.f32 %v499, %v1016
      %1018 = vmatpush.msra.mxu0 %v1017
      %v1019 = vand.u32 %v496, 4294901760
      %v1020 = vsub.f32 %v496, %v1019
      %1021 = vmatpush.msra.mxu0 %v1020
      %v1022 = vand.u32 %v493, 4294901760
      %v1023 = vsub.f32 %v493, %v1022
      %1024 = vmatpush.msra.mxu0 %v1023
      %v1025 = vand.u32 %v490, 4294901760
      %v1026 = vsub.f32 %v490, %v1025
      %1027 = vmatpush.msra.mxu0 %v1026
      %v1028 = vand.u32 %v487, 4294901760
      %v1029 = vsub.f32 %v487, %v1028
      %1030 = vmatpush.msra.mxu0 %v1029
      %v1031 = vand.u32 %v484, 4294901760
      %v1032 = vsub.f32 %v484, %v1031
      %1033 = vmatpush.msra.mxu0 %v1032
      %v1034 = vand.u32 %v481, 4294901760
      %v1035 = vsub.f32 %v481, %v1034
      %1036 = vmatpush.msra.mxu0 %v1035
      %v1037 = vand.u32 %v478, 4294901760
      %v1038 = vsub.f32 %v478, %v1037
      %1039 = vmatpush.msra.mxu0 %v1038
      %v1040 = vand.u32 %v475, 4294901760
      %v1041 = vsub.f32 %v475, %v1040
      %1042 = vmatpush.msra.mxu0 %v1041
      %v1043 = vand.u32 %v472, 4294901760
      %v1044 = vsub.f32 %v472, %v1043
      %1045 = vmatpush.msra.mxu0 %v1044
      %v1046 = vand.u32 %v469, 4294901760
      %v1047 = vsub.f32 %v469, %v1046
      %1048 = vmatpush.msra.mxu0 %v1047
      %v1049 = vand.u32 %v466, 4294901760
      %v1050 = vsub.f32 %v466, %v1049
      %1051 = vmatpush.msra.mxu0 %v1050
      %v1052 = vand.u32 %v463, 4294901760
      %v1053 = vsub.f32 %v463, %v1052
      %1054 = vmatpush.msra.mxu0 %v1053
      %v1055 = vand.u32 %v460, 4294901760
      %v1056 = vsub.f32 %v460, %v1055
      %1057 = vmatpush.msra.mxu0 %v1056
      %v1058 = vand.u32 %v457, 4294901760
      %v1059 = vsub.f32 %v457, %v1058
      %1060 = vmatpush.msra.mxu0 %v1059
      %v1061 = vand.u32 %v454, 4294901760
      %v1062 = vsub.f32 %v454, %v1061
      %1063 = vmatpush.msra.mxu0 %v1062
      %v1064 = vand.u32 %v422, 4294901760
      %v1065 = vsub.f32 %v422, %v1064
      %1066 = vmatmul.f32.gmra.mxu0 %v1065
      %v1067 = vpop.f32.mrf.mxu0
      %v1068 = vadd.f32 %v890, %v1067
      %v1069 = vand.u32 %v423, 4294901760
      %v1070 = vsub.f32 %v423, %v1069
      %1071 = vmatmul.f32.gmra.mxu0 %v1070
      %v1072 = vpop.f32.mrf.mxu0
      %v1073 = vadd.f32 %v894, %v1072
      %v1074 = vand.u32 %v424, 4294901760
      %v1075 = vsub.f32 %v424, %v1074
      %1076 = vmatmul.f32.gmra.mxu0 %v1075
      %v1077 = vpop.f32.mrf.mxu0
      %v1078 = vadd.f32 %v898, %v1077
      %v1079 = vand.u32 %v425, 4294901760
      %v1080 = vsub.f32 %v425, %v1079
      %1081 = vmatmul.f32.gmra.mxu0 %v1080
      %v1082 = vpop.f32.mrf.mxu0
      %v1083 = vadd.f32 %v902, %v1082
      %v1084 = vand.u32 %v426, 4294901760
      %v1085 = vsub.f32 %v426, %v1084
      %1086 = vmatmul.f32.gmra.mxu0 %v1085
      %v1087 = vpop.f32.mrf.mxu0
      %v1088 = vadd.f32 %v906, %v1087
      %v1089 = vand.u32 %v427, 4294901760
      %v1090 = vsub.f32 %v427, %v1089
      %1091 = vmatmul.f32.gmra.mxu0 %v1090
      %v1092 = vpop.f32.mrf.mxu0
      %v1093 = vadd.f32 %v910, %v1092
      %v1094 = vand.u32 %v428, 4294901760
      %v1095 = vsub.f32 %v428, %v1094
      %1096 = vmatmul.f32.gmra.mxu0 %v1095
      %v1097 = vpop.f32.mrf.mxu0
      %v1098 = vadd.f32 %v914, %v1097
      %v1099 = vand.u32 %v429, 4294901760
      %v1100 = vsub.f32 %v429, %v1099
      %1101 = vmatmul.f32.gmra.mxu0 %v1100
      %v1102 = vpop.f32.mrf.mxu0
      %v1103 = vadd.f32 %v918, %v1102
      %v1104 = vand.u32 %v430, 4294901760
      %v1105 = vsub.f32 %v430, %v1104
      %1106 = vmatmul.f32.gmra.mxu0 %v1105
      %v1107 = vpop.f32.mrf.mxu0
      %v1108 = vadd.f32 %v922, %v1107
      %v1109 = vand.u32 %v431, 4294901760
      %v1110 = vsub.f32 %v431, %v1109
      %1111 = vmatmul.f32.gmra.mxu0 %v1110
      %v1112 = vpop.f32.mrf.mxu0
      %v1113 = vadd.f32 %v926, %v1112
      %v1114 = vand.u32 %v432, 4294901760
      %v1115 = vsub.f32 %v432, %v1114
      %1116 = vmatmul.f32.gmra.mxu0 %v1115
      %v1117 = vpop.f32.mrf.mxu0
      %v1118 = vadd.f32 %v930, %v1117
      %v1119 = vand.u32 %v433, 4294901760
      %v1120 = vsub.f32 %v433, %v1119
      %1121 = vmatmul.f32.gmra.mxu0 %v1120
      %v1122 = vpop.f32.mrf.mxu0
      %v1123 = vadd.f32 %v934, %v1122
      %v1124 = vand.u32 %v434, 4294901760
      %v1125 = vsub.f32 %v434, %v1124
      %1126 = vmatmul.f32.gmra.mxu0 %v1125
      %v1127 = vpop.f32.mrf.mxu0
      %v1128 = vadd.f32 %v938, %v1127
      %v1129 = vand.u32 %v435, 4294901760
      %v1130 = vsub.f32 %v435, %v1129
      %1131 = vmatmul.f32.gmra.mxu0 %v1130
      %v1132 = vpop.f32.mrf.mxu0
      %v1133 = vadd.f32 %v942, %v1132
      %v1134 = vand.u32 %v436, 4294901760
      %v1135 = vsub.f32 %v436, %v1134
      %1136 = vmatmul.f32.gmra.mxu0 %v1135
      %v1137 = vpop.f32.mrf.mxu0
      %v1138 = vadd.f32 %v946, %v1137
      %v1139 = vand.u32 %v437, 4294901760
      %v1140 = vsub.f32 %v437, %v1139
      %1141 = vmatmul.f32.gmra.mxu0 %v1140
      %v1142 = vpop.f32.mrf.mxu0
      %v1143 = vadd.f32 %v950, %v1142
      %v1144 = vand.u32 %v438, 4294901760
      %v1145 = vsub.f32 %v438, %v1144
      %1146 = vmatmul.f32.gmra.mxu0 %v1145
      %v1147 = vpop.f32.mrf.mxu0
      %v1148 = vadd.f32 %v954, %v1147
      %v1149 = vand.u32 %v439, 4294901760
      %v1150 = vsub.f32 %v439, %v1149
      %1151 = vmatmul.f32.gmra.mxu0 %v1150
      %v1152 = vpop.f32.mrf.mxu0
      %v1153 = vadd.f32 %v958, %v1152
      %v1154 = vand.u32 %v440, 4294901760
      %v1155 = vsub.f32 %v440, %v1154
      %1156 = vmatmul.f32.gmra.mxu0 %v1155
      %v1157 = vpop.f32.mrf.mxu0
      %v1158 = vadd.f32 %v962, %v1157
      %v1159 = vand.u32 %v441, 4294901760
      %v1160 = vsub.f32 %v441, %v1159
      %1161 = vmatmul.f32.gmra.mxu0 %v1160
      %v1162 = vpop.f32.mrf.mxu0
      %v1163 = vadd.f32 %v966, %v1162
      %v1164 = vand.u32 %v442, 4294901760
      %v1165 = vsub.f32 %v442, %v1164
      %1166 = vmatmul.f32.gmra.mxu0 %v1165
      %v1167 = vpop.f32.mrf.mxu0
      %v1168 = vadd.f32 %v970, %v1167
      %v1169 = vand.u32 %v443, 4294901760
      %v1170 = vsub.f32 %v443, %v1169
      %1171 = vmatmul.f32.gmra.mxu0 %v1170
      %v1172 = vpop.f32.mrf.mxu0
      %v1173 = vadd.f32 %v974, %v1172
      %v1174 = vand.u32 %v444, 4294901760
      %v1175 = vsub.f32 %v444, %v1174
      %1176 = vmatmul.f32.gmra.mxu0 %v1175
      %v1177 = vpop.f32.mrf.mxu0
      %v1178 = vadd.f32 %v978, %v1177
      %v1179 = vand.u32 %v445, 4294901760
      %v1180 = vsub.f32 %v445, %v1179
      %1181 = vmatmul.f32.gmra.mxu0 %v1180
      %v1182 = vpop.f32.mrf.mxu0
      %v1183 = vadd.f32 %v982, %v1182
      %v1184 = vand.u32 %v446, 4294901760
      %v1185 = vsub.f32 %v446, %v1184
      %1186 = vmatmul.f32.gmra.mxu0 %v1185
      %v1187 = vpop.f32.mrf.mxu0
      %v1188 = vadd.f32 %v986, %v1187
      %v1189 = vand.u32 %v447, 4294901760
      %v1190 = vsub.f32 %v447, %v1189
      %1191 = vmatmul.f32.gmra.mxu0 %v1190
      %v1192 = vpop.f32.mrf.mxu0
      %v1193 = vadd.f32 %v990, %v1192
      %v1194 = vand.u32 %v448, 4294901760
      %v1195 = vsub.f32 %v448, %v1194
      %1196 = vmatmul.f32.gmra.mxu0 %v1195
      %v1197 = vpop.f32.mrf.mxu0
      %v1198 = vadd.f32 %v994, %v1197
      %v1199 = vand.u32 %v449, 4294901760
      %v1200 = vsub.f32 %v449, %v1199
      %1201 = vmatmul.f32.gmra.mxu0 %v1200
      %v1202 = vpop.f32.mrf.mxu0
      %v1203 = vadd.f32 %v998, %v1202
      %v1204 = vand.u32 %v450, 4294901760
      %v1205 = vsub.f32 %v450, %v1204
      %1206 = vmatmul.f32.gmra.mxu0 %v1205
      %v1207 = vpop.f32.mrf.mxu0
      %v1208 = vadd.f32 %v1002, %v1207
      %v1209 = vand.u32 %v451, 4294901760
      %v1210 = vsub.f32 %v451, %v1209
      %1211 = vmatmul.f32.gmra.mxu0 %v1210
      %v1212 = vpop.f32.mrf.mxu0
      %v1213 = vadd.f32 %v1006, %v1212
      %v1214 = vand.u32 %v452, 4294901760
      %v1215 = vsub.f32 %v452, %v1214
      %1216 = vmatmul.f32.gmra.mxu0 %v1215
      %v1217 = vpop.f32.mrf.mxu0
      %v1218 = vadd.f32 %v1010, %v1217
      %v1219 = vand.u32 %v453, 4294901760
      %v1220 = vsub.f32 %v453, %v1219
      %1221 = vmatmul.f32.gmra.mxu0 %v1220
      %v1222 = vpop.f32.mrf.mxu0
      %v1223 = vadd.f32 %v1014, %v1222
      %1224 = vdwg.mxu0
      %v1225 = vand.u32 %v499, 4294901760
      %1226 = vmatpush.msra.mxu0 %v1225
      %v1227 = vand.u32 %v496, 4294901760
      %1228 = vmatpush.msra.mxu0 %v1227
      %v1229 = vand.u32 %v493, 4294901760
      %1230 = vmatpush.msra.mxu0 %v1229
      %v1231 = vand.u32 %v490, 4294901760
      %1232 = vmatpush.msra.mxu0 %v1231
      %v1233 = vand.u32 %v487, 4294901760
      %1234 = vmatpush.msra.mxu0 %v1233
      %v1235 = vand.u32 %v484, 4294901760
      %1236 = vmatpush.msra.mxu0 %v1235
      %v1237 = vand.u32 %v481, 4294901760
      %1238 = vmatpush.msra.mxu0 %v1237
      %v1239 = vand.u32 %v478, 4294901760
      %1240 = vmatpush.msra.mxu0 %v1239
      %v1241 = vand.u32 %v475, 4294901760
      %1242 = vmatpush.msra.mxu0 %v1241
      %v1243 = vand.u32 %v472, 4294901760
      %1244 = vmatpush.msra.mxu0 %v1243
      %v1245 = vand.u32 %v469, 4294901760
      %1246 = vmatpush.msra.mxu0 %v1245
      %v1247 = vand.u32 %v466, 4294901760
      %1248 = vmatpush.msra.mxu0 %v1247
      %v1249 = vand.u32 %v463, 4294901760
      %1250 = vmatpush.msra.mxu0 %v1249
      %v1251 = vand.u32 %v460, 4294901760
      %1252 = vmatpush.msra.mxu0 %v1251
      %v1253 = vand.u32 %v457, 4294901760
      %1254 = vmatpush.msra.mxu0 %v1253
      %v1255 = vand.u32 %v454, 4294901760
      %1256 = vmatpush.msra.mxu0 %v1255
      %v1257 = vand.u32 %v422, 4294901760
      %v1258 = vsub.f32 %v422, %v1257
      %v1259 = vand.u32 %v1258, 4294901760
      %1260 = vmatmul.f32.gmra.mxu0 %v1259
      %v1261 = vpop.f32.mrf.mxu0
      %v1262 = vadd.f32 %v1068, %v1261
      %v1263 = vand.u32 %v423, 4294901760
      %v1264 = vsub.f32 %v423, %v1263
      %v1265 = vand.u32 %v1264, 4294901760
      %1266 = vmatmul.f32.gmra.mxu0 %v1265
      %v1267 = vpop.f32.mrf.mxu0
      %v1268 = vadd.f32 %v1073, %v1267
      %v1269 = vand.u32 %v424, 4294901760
      %v1270 = vsub.f32 %v424, %v1269
      %v1271 = vand.u32 %v1270, 4294901760
      %1272 = vmatmul.f32.gmra.mxu0 %v1271
      %v1273 = vpop.f32.mrf.mxu0
      %v1274 = vadd.f32 %v1078, %v1273
      %v1275 = vand.u32 %v425, 4294901760
      %v1276 = vsub.f32 %v425, %v1275
      %v1277 = vand.u32 %v1276, 4294901760
      %1278 = vmatmul.f32.gmra.mxu0 %v1277
      %v1279 = vpop.f32.mrf.mxu0
      %v1280 = vadd.f32 %v1083, %v1279
      %v1281 = vand.u32 %v426, 4294901760
      %v1282 = vsub.f32 %v426, %v1281
      %v1283 = vand.u32 %v1282, 4294901760
      %1284 = vmatmul.f32.gmra.mxu0 %v1283
      %v1285 = vpop.f32.mrf.mxu0
      %v1286 = vadd.f32 %v1088, %v1285
      %v1287 = vand.u32 %v427, 4294901760
      %v1288 = vsub.f32 %v427, %v1287
      %v1289 = vand.u32 %v1288, 4294901760
      %1290 = vmatmul.f32.gmra.mxu0 %v1289
      %v1291 = vpop.f32.mrf.mxu0
      %v1292 = vadd.f32 %v1093, %v1291
      %v1293 = vand.u32 %v428, 4294901760
      %v1294 = vsub.f32 %v428, %v1293
      %v1295 = vand.u32 %v1294, 4294901760
      %1296 = vmatmul.f32.gmra.mxu0 %v1295
      %v1297 = vpop.f32.mrf.mxu0
      %v1298 = vadd.f32 %v1098, %v1297
      %v1299 = vand.u32 %v429, 4294901760
      %v1300 = vsub.f32 %v429, %v1299
      %v1301 = vand.u32 %v1300, 4294901760
      %1302 = vmatmul.f32.gmra.mxu0 %v1301
      %v1303 = vpop.f32.mrf.mxu0
      %v1304 = vadd.f32 %v1103, %v1303
      %v1305 = vand.u32 %v430, 4294901760
      %v1306 = vsub.f32 %v430, %v1305
      %v1307 = vand.u32 %v1306, 4294901760
      %1308 = vmatmul.f32.gmra.mxu0 %v1307
      %v1309 = vpop.f32.mrf.mxu0
      %v1310 = vadd.f32 %v1108, %v1309
      %v1311 = vand.u32 %v431, 4294901760
      %v1312 = vsub.f32 %v431, %v1311
      %v1313 = vand.u32 %v1312, 4294901760
      %1314 = vmatmul.f32.gmra.mxu0 %v1313
      %v1315 = vpop.f32.mrf.mxu0
      %v1316 = vadd.f32 %v1113, %v1315
      %v1317 = vand.u32 %v432, 4294901760
      %v1318 = vsub.f32 %v432, %v1317
      %v1319 = vand.u32 %v1318, 4294901760
      %1320 = vmatmul.f32.gmra.mxu0 %v1319
      %v1321 = vpop.f32.mrf.mxu0
      %v1322 = vadd.f32 %v1118, %v1321
      %v1323 = vand.u32 %v433, 4294901760
      %v1324 = vsub.f32 %v433, %v1323
      %v1325 = vand.u32 %v1324, 4294901760
      %1326 = vmatmul.f32.gmra.mxu0 %v1325
      %v1327 = vpop.f32.mrf.mxu0
      %v1328 = vadd.f32 %v1123, %v1327
      %v1329 = vand.u32 %v434, 4294901760
      %v1330 = vsub.f32 %v434, %v1329
      %v1331 = vand.u32 %v1330, 4294901760
      %1332 = vmatmul.f32.gmra.mxu0 %v1331
      %v1333 = vpop.f32.mrf.mxu0
      %v1334 = vadd.f32 %v1128, %v1333
      %v1335 = vand.u32 %v435, 4294901760
      %v1336 = vsub.f32 %v435, %v1335
      %v1337 = vand.u32 %v1336, 4294901760
      %1338 = vmatmul.f32.gmra.mxu0 %v1337
      %v1339 = vpop.f32.mrf.mxu0
      %v1340 = vadd.f32 %v1133, %v1339
      %v1341 = vand.u32 %v436, 4294901760
      %v1342 = vsub.f32 %v436, %v1341
      %v1343 = vand.u32 %v1342, 4294901760
      %1344 = vmatmul.f32.gmra.mxu0 %v1343
      %v1345 = vpop.f32.mrf.mxu0
      %v1346 = vadd.f32 %v1138, %v1345
      %v1347 = vand.u32 %v437, 4294901760
      %v1348 = vsub.f32 %v437, %v1347
      %v1349 = vand.u32 %v1348, 4294901760
      %1350 = vmatmul.f32.gmra.mxu0 %v1349
      %v1351 = vpop.f32.mrf.mxu0
      %v1352 = vadd.f32 %v1143, %v1351
      %v1353 = vand.u32 %v438, 4294901760
      %v1354 = vsub.f32 %v438, %v1353
      %v1355 = vand.u32 %v1354, 4294901760
      %1356 = vmatmul.f32.gmra.mxu0 %v1355
      %v1357 = vpop.f32.mrf.mxu0
      %v1358 = vadd.f32 %v1148, %v1357
      %v1359 = vand.u32 %v439, 4294901760
      %v1360 = vsub.f32 %v439, %v1359
      %v1361 = vand.u32 %v1360, 4294901760
      %1362 = vmatmul.f32.gmra.mxu0 %v1361
      %v1363 = vpop.f32.mrf.mxu0
      %v1364 = vadd.f32 %v1153, %v1363
      %v1365 = vand.u32 %v440, 4294901760
      %v1366 = vsub.f32 %v440, %v1365
      %v1367 = vand.u32 %v1366, 4294901760
      %1368 = vmatmul.f32.gmra.mxu0 %v1367
      %v1369 = vpop.f32.mrf.mxu0
      %v1370 = vadd.f32 %v1158, %v1369
      %v1371 = vand.u32 %v441, 4294901760
      %v1372 = vsub.f32 %v441, %v1371
      %v1373 = vand.u32 %v1372, 4294901760
      %1374 = vmatmul.f32.gmra.mxu0 %v1373
      %v1375 = vpop.f32.mrf.mxu0
      %v1376 = vadd.f32 %v1163, %v1375
      %v1377 = vand.u32 %v442, 4294901760
      %v1378 = vsub.f32 %v442, %v1377
      %v1379 = vand.u32 %v1378, 4294901760
      %1380 = vmatmul.f32.gmra.mxu0 %v1379
      %v1381 = vpop.f32.mrf.mxu0
      %v1382 = vadd.f32 %v1168, %v1381
      %v1383 = vand.u32 %v443, 4294901760
      %v1384 = vsub.f32 %v443, %v1383
      %v1385 = vand.u32 %v1384, 4294901760
      %1386 = vmatmul.f32.gmra.mxu0 %v1385
      %v1387 = vpop.f32.mrf.mxu0
      %v1388 = vadd.f32 %v1173, %v1387
      %v1389 = vand.u32 %v444, 4294901760
      %v1390 = vsub.f32 %v444, %v1389
      %v1391 = vand.u32 %v1390, 4294901760
      %1392 = vmatmul.f32.gmra.mxu0 %v1391
      %v1393 = vpop.f32.mrf.mxu0
      %v1394 = vadd.f32 %v1178, %v1393
      %v1395 = vand.u32 %v445, 4294901760
      %v1396 = vsub.f32 %v445, %v1395
      %v1397 = vand.u32 %v1396, 4294901760
      %1398 = vmatmul.f32.gmra.mxu0 %v1397
      %v1399 = vpop.f32.mrf.mxu0
      %v1400 = vadd.f32 %v1183, %v1399
      %v1401 = vand.u32 %v446, 4294901760
      %v1402 = vsub.f32 %v446, %v1401
      %v1403 = vand.u32 %v1402, 4294901760
      %1404 = vmatmul.f32.gmra.mxu0 %v1403
      %v1405 = vpop.f32.mrf.mxu0
      %v1406 = vadd.f32 %v1188, %v1405
      %v1407 = vand.u32 %v447, 4294901760
      %v1408 = vsub.f32 %v447, %v1407
      %v1409 = vand.u32 %v1408, 4294901760
      %1410 = vmatmul.f32.gmra.mxu0 %v1409
      %v1411 = vpop.f32.mrf.mxu0
      %v1412 = vadd.f32 %v1193, %v1411
      %v1413 = vand.u32 %v448, 4294901760
      %v1414 = vsub.f32 %v448, %v1413
      %v1415 = vand.u32 %v1414, 4294901760
      %1416 = vmatmul.f32.gmra.mxu0 %v1415
      %v1417 = vpop.f32.mrf.mxu0
      %v1418 = vadd.f32 %v1198, %v1417
      %v1419 = vand.u32 %v449, 4294901760
      %v1420 = vsub.f32 %v449, %v1419
      %v1421 = vand.u32 %v1420, 4294901760
      %1422 = vmatmul.f32.gmra.mxu0 %v1421
      %v1423 = vpop.f32.mrf.mxu0
      %v1424 = vadd.f32 %v1203, %v1423
      %v1425 = vand.u32 %v450, 4294901760
      %v1426 = vsub.f32 %v450, %v1425
      %v1427 = vand.u32 %v1426, 4294901760
      %1428 = vmatmul.f32.gmra.mxu0 %v1427
      %v1429 = vpop.f32.mrf.mxu0
      %v1430 = vadd.f32 %v1208, %v1429
      %v1431 = vand.u32 %v451, 4294901760
      %v1432 = vsub.f32 %v451, %v1431
      %v1433 = vand.u32 %v1432, 4294901760
      %1434 = vmatmul.f32.gmra.mxu0 %v1433
      %v1435 = vpop.f32.mrf.mxu0
      %v1436 = vadd.f32 %v1213, %v1435
      %v1437 = vand.u32 %v452, 4294901760
      %v1438 = vsub.f32 %v452, %v1437
      %v1439 = vand.u32 %v1438, 4294901760
      %1440 = vmatmul.f32.gmra.mxu0 %v1439
      %v1441 = vpop.f32.mrf.mxu0
      %v1442 = vadd.f32 %v1218, %v1441
      %v1443 = vand.u32 %v453, 4294901760
      %v1444 = vsub.f32 %v453, %v1443
      %v1445 = vand.u32 %v1444, 4294901760
      %1446 = vmatmul.f32.gmra.mxu0 %v1445
      %v1447 = vpop.f32.mrf.mxu0
      %v1448 = vadd.f32 %v1223, %v1447
      %1449 = vdwg.mxu0
      %v1450 = vand.u32 %v499, 4294901760
      %v1451 = vsub.f32 %v499, %v1450
      %v1452 = vand.u32 %v1451, 4294901760
      %1453 = vmatpush.msra.mxu0 %v1452
      %v1454 = vand.u32 %v496, 4294901760
      %v1455 = vsub.f32 %v496, %v1454
      %v1456 = vand.u32 %v1455, 4294901760
      %1457 = vmatpush.msra.mxu0 %v1456
      %v1458 = vand.u32 %v493, 4294901760
      %v1459 = vsub.f32 %v493, %v1458
      %v1460 = vand.u32 %v1459, 4294901760
      %1461 = vmatpush.msra.mxu0 %v1460
      %v1462 = vand.u32 %v490, 4294901760
      %v1463 = vsub.f32 %v490, %v1462
      %v1464 = vand.u32 %v1463, 4294901760
      %1465 = vmatpush.msra.mxu0 %v1464
      %v1466 = vand.u32 %v487, 4294901760
      %v1467 = vsub.f32 %v487, %v1466
      %v1468 = vand.u32 %v1467, 4294901760
      %1469 = vmatpush.msra.mxu0 %v1468
      %v1470 = vand.u32 %v484, 4294901760
      %v1471 = vsub.f32 %v484, %v1470
      %v1472 = vand.u32 %v1471, 4294901760
      %1473 = vmatpush.msra.mxu0 %v1472
      %v1474 = vand.u32 %v481, 4294901760
      %v1475 = vsub.f32 %v481, %v1474
      %v1476 = vand.u32 %v1475, 4294901760
      %1477 = vmatpush.msra.mxu0 %v1476
      %v1478 = vand.u32 %v478, 4294901760
      %v1479 = vsub.f32 %v478, %v1478
      %v1480 = vand.u32 %v1479, 4294901760
      %1481 = vmatpush.msra.mxu0 %v1480
      %v1482 = vand.u32 %v475, 4294901760
      %v1483 = vsub.f32 %v475, %v1482
      %v1484 = vand.u32 %v1483, 4294901760
      %1485 = vmatpush.msra.mxu0 %v1484
      %v1486 = vand.u32 %v472, 4294901760
      %v1487 = vsub.f32 %v472, %v1486
      %v1488 = vand.u32 %v1487, 4294901760
      %1489 = vmatpush.msra.mxu0 %v1488
      %v1490 = vand.u32 %v469, 4294901760
      %v1491 = vsub.f32 %v469, %v1490
      %v1492 = vand.u32 %v1491, 4294901760
      %1493 = vmatpush.msra.mxu0 %v1492
      %v1494 = vand.u32 %v466, 4294901760
      %v1495 = vsub.f32 %v466, %v1494
      %v1496 = vand.u32 %v1495, 4294901760
      %1497 = vmatpush.msra.mxu0 %v1496
      %v1498 = vand.u32 %v463, 4294901760
      %v1499 = vsub.f32 %v463, %v1498
      %v1500 = vand.u32 %v1499, 4294901760
      %1501 = vmatpush.msra.mxu0 %v1500
      %v1502 = vand.u32 %v460, 4294901760
      %v1503 = vsub.f32 %v460, %v1502
      %v1504 = vand.u32 %v1503, 4294901760
      %1505 = vmatpush.msra.mxu0 %v1504
      %v1506 = vand.u32 %v457, 4294901760
      %v1507 = vsub.f32 %v457, %v1506
      %v1508 = vand.u32 %v1507, 4294901760
      %1509 = vmatpush.msra.mxu0 %v1508
      %v1510 = vand.u32 %v454, 4294901760
      %v1511 = vsub.f32 %v454, %v1510
      %v1512 = vand.u32 %v1511, 4294901760
      %1513 = vmatpush.msra.mxu0 %v1512
      %v1514 = vand.u32 %v422, 4294901760
      %1515 = vmatmul.f32.gmra.mxu0 %v1514
      %v1516 = vpop.f32.mrf.mxu0
      %v1517 = vadd.f32 %v1262, %v1516
      %v1518 = vand.u32 %v423, 4294901760
      %1519 = vmatmul.f32.gmra.mxu0 %v1518
      %v1520 = vpop.f32.mrf.mxu0
      %v1521 = vadd.f32 %v1268, %v1520
      %v1522 = vand.u32 %v424, 4294901760
      %1523 = vmatmul.f32.gmra.mxu0 %v1522
      %v1524 = vpop.f32.mrf.mxu0
      %v1525 = vadd.f32 %v1274, %v1524
      %v1526 = vand.u32 %v425, 4294901760
      %1527 = vmatmul.f32.gmra.mxu0 %v1526
      %v1528 = vpop.f32.mrf.mxu0
      %v1529 = vadd.f32 %v1280, %v1528
      %v1530 = vand.u32 %v426, 4294901760
      %1531 = vmatmul.f32.gmra.mxu0 %v1530
      %v1532 = vpop.f32.mrf.mxu0
      %v1533 = vadd.f32 %v1286, %v1532
      %v1534 = vand.u32 %v427, 4294901760
      %1535 = vmatmul.f32.gmra.mxu0 %v1534
      %v1536 = vpop.f32.mrf.mxu0
      %v1537 = vadd.f32 %v1292, %v1536
      %v1538 = vand.u32 %v428, 4294901760
      %1539 = vmatmul.f32.gmra.mxu0 %v1538
      %v1540 = vpop.f32.mrf.mxu0
      %v1541 = vadd.f32 %v1298, %v1540
      %v1542 = vand.u32 %v429, 4294901760
      %1543 = vmatmul.f32.gmra.mxu0 %v1542
      %v1544 = vpop.f32.mrf.mxu0
      %v1545 = vadd.f32 %v1304, %v1544
      %v1546 = vand.u32 %v430, 4294901760
      %1547 = vmatmul.f32.gmra.mxu0 %v1546
      %v1548 = vpop.f32.mrf.mxu0
      %v1549 = vadd.f32 %v1310, %v1548
      %v1550 = vand.u32 %v431, 4294901760
      %1551 = vmatmul.f32.gmra.mxu0 %v1550
      %v1552 = vpop.f32.mrf.mxu0
      %v1553 = vadd.f32 %v1316, %v1552
      %v1554 = vand.u32 %v432, 4294901760
      %1555 = vmatmul.f32.gmra.mxu0 %v1554
      %v1556 = vpop.f32.mrf.mxu0
      %v1557 = vadd.f32 %v1322, %v1556
      %v1558 = vand.u32 %v433, 4294901760
      %1559 = vmatmul.f32.gmra.mxu0 %v1558
      %v1560 = vpop.f32.mrf.mxu0
      %v1561 = vadd.f32 %v1328, %v1560
      %v1562 = vand.u32 %v434, 4294901760
      %1563 = vmatmul.f32.gmra.mxu0 %v1562
      %v1564 = vpop.f32.mrf.mxu0
      %v1565 = vadd.f32 %v1334, %v1564
      %v1566 = vand.u32 %v435, 4294901760
      %1567 = vmatmul.f32.gmra.mxu0 %v1566
      %v1568 = vpop.f32.mrf.mxu0
      %v1569 = vadd.f32 %v1340, %v1568
      %v1570 = vand.u32 %v436, 4294901760
      %1571 = vmatmul.f32.gmra.mxu0 %v1570
      %v1572 = vpop.f32.mrf.mxu0
      %v1573 = vadd.f32 %v1346, %v1572
      %v1574 = vand.u32 %v437, 4294901760
      %1575 = vmatmul.f32.gmra.mxu0 %v1574
      %v1576 = vpop.f32.mrf.mxu0
      %v1577 = vadd.f32 %v1352, %v1576
      %v1578 = vand.u32 %v438, 4294901760
      %1579 = vmatmul.f32.gmra.mxu0 %v1578
      %v1580 = vpop.f32.mrf.mxu0
      %v1581 = vadd.f32 %v1358, %v1580
      %v1582 = vand.u32 %v439, 4294901760
      %1583 = vmatmul.f32.gmra.mxu0 %v1582
      %v1584 = vpop.f32.mrf.mxu0
      %v1585 = vadd.f32 %v1364, %v1584
      %v1586 = vand.u32 %v440, 4294901760
      %1587 = vmatmul.f32.gmra.mxu0 %v1586
      %v1588 = vpop.f32.mrf.mxu0
      %v1589 = vadd.f32 %v1370, %v1588
      %v1590 = vand.u32 %v441, 4294901760
      %1591 = vmatmul.f32.gmra.mxu0 %v1590
      %v1592 = vpop.f32.mrf.mxu0
      %v1593 = vadd.f32 %v1376, %v1592
      %v1594 = vand.u32 %v442, 4294901760
      %1595 = vmatmul.f32.gmra.mxu0 %v1594
      %v1596 = vpop.f32.mrf.mxu0
      %v1597 = vadd.f32 %v1382, %v1596
      %v1598 = vand.u32 %v443, 4294901760
      %1599 = vmatmul.f32.gmra.mxu0 %v1598
      %v1600 = vpop.f32.mrf.mxu0
      %v1601 = vadd.f32 %v1388, %v1600
      %v1602 = vand.u32 %v444, 4294901760
      %1603 = vmatmul.f32.gmra.mxu0 %v1602
      %v1604 = vpop.f32.mrf.mxu0
      %v1605 = vadd.f32 %v1394, %v1604
      %v1606 = vand.u32 %v445, 4294901760
      %1607 = vmatmul.f32.gmra.mxu0 %v1606
      %v1608 = vpop.f32.mrf.mxu0
      %v1609 = vadd.f32 %v1400, %v1608
      %v1610 = vand.u32 %v446, 4294901760
      %1611 = vmatmul.f32.gmra.mxu0 %v1610
      %v1612 = vpop.f32.mrf.mxu0
      %v1613 = vadd.f32 %v1406, %v1612
      %v1614 = vand.u32 %v447, 4294901760
      %1615 = vmatmul.f32.gmra.mxu0 %v1614
      %v1616 = vpop.f32.mrf.mxu0
      %v1617 = vadd.f32 %v1412, %v1616
      %v1618 = vand.u32 %v448, 4294901760
      %1619 = vmatmul.f32.gmra.mxu0 %v1618
      %v1620 = vpop.f32.mrf.mxu0
      %v1621 = vadd.f32 %v1418, %v1620
      %v1622 = vand.u32 %v449, 4294901760
      %1623 = vmatmul.f32.gmra.mxu0 %v1622
      %v1624 = vpop.f32.mrf.mxu0
      %v1625 = vadd.f32 %v1424, %v1624
      %v1626 = vand.u32 %v450, 4294901760
      %1627 = vmatmul.f32.gmra.mxu0 %v1626
      %v1628 = vpop.f32.mrf.mxu0
      %v1629 = vadd.f32 %v1430, %v1628
      %v1630 = vand.u32 %v451, 4294901760
      %1631 = vmatmul.f32.gmra.mxu0 %v1630
      %v1632 = vpop.f32.mrf.mxu0
      %v1633 = vadd.f32 %v1436, %v1632
      %v1634 = vand.u32 %v452, 4294901760
      %1635 = vmatmul.f32.gmra.mxu0 %v1634
      %v1636 = vpop.f32.mrf.mxu0
      %v1637 = vadd.f32 %v1442, %v1636
      %v1638 = vand.u32 %v453, 4294901760
      %1639 = vmatmul.f32.gmra.mxu0 %v1638
      %v1640 = vpop.f32.mrf.mxu0
      %v1641 = vadd.f32 %v1448, %v1640
      %1642 = vdwg.mxu0
      %v1643 = vand.u32 %v499, 4294901760
      %1644 = vmatpush.msra.mxu0 %v1643
      %v1645 = vand.u32 %v496, 4294901760
      %1646 = vmatpush.msra.mxu0 %v1645
      %v1647 = vand.u32 %v493, 4294901760
      %1648 = vmatpush.msra.mxu0 %v1647
      %v1649 = vand.u32 %v490, 4294901760
      %1650 = vmatpush.msra.mxu0 %v1649
      %v1651 = vand.u32 %v487, 4294901760
      %1652 = vmatpush.msra.mxu0 %v1651
      %v1653 = vand.u32 %v484, 4294901760
      %1654 = vmatpush.msra.mxu0 %v1653
      %v1655 = vand.u32 %v481, 4294901760
      %1656 = vmatpush.msra.mxu0 %v1655
      %v1657 = vand.u32 %v478, 4294901760
      %1658 = vmatpush.msra.mxu0 %v1657
      %v1659 = vand.u32 %v475, 4294901760
      %1660 = vmatpush.msra.mxu0 %v1659
      %v1661 = vand.u32 %v472, 4294901760
      %1662 = vmatpush.msra.mxu0 %v1661
      %v1663 = vand.u32 %v469, 4294901760
      %1664 = vmatpush.msra.mxu0 %v1663
      %v1665 = vand.u32 %v466, 4294901760
      %1666 = vmatpush.msra.mxu0 %v1665
      %v1667 = vand.u32 %v463, 4294901760
      %1668 = vmatpush.msra.mxu0 %v1667
      %v1669 = vand.u32 %v460, 4294901760
      %1670 = vmatpush.msra.mxu0 %v1669
      %v1671 = vand.u32 %v457, 4294901760
      %1672 = vmatpush.msra.mxu0 %v1671
      %v1673 = vand.u32 %v454, 4294901760
      %1674 = vmatpush.msra.mxu0 %v1673
      %v1675 = vand.u32 %v422, 4294901760
      %1676 = vmatmul.f32.gmra.mxu0 %v1675
      %v1677 = vpop.f32.mrf.mxu0
      %v1678 = vadd.f32 %v1517, %v1677
      %v1679 = vand.u32 %v423, 4294901760
      %1680 = vmatmul.f32.gmra.mxu0 %v1679
      %v1681 = vpop.f32.mrf.mxu0
      %v1682 = vadd.f32 %v1521, %v1681
      %v1683 = vand.u32 %v424, 4294901760
      %1684 = vmatmul.f32.gmra.mxu0 %v1683
      %v1685 = vpop.f32.mrf.mxu0
      %v1686 = vadd.f32 %v1525, %v1685
      %v1687 = vand.u32 %v425, 4294901760
      %1688 = vmatmul.f32.gmra.mxu0 %v1687
      %v1689 = vpop.f32.mrf.mxu0
      %v1690 = vadd.f32 %v1529, %v1689
      %v1691 = vand.u32 %v426, 4294901760
      %1692 = vmatmul.f32.gmra.mxu0 %v1691
      %v1693 = vpop.f32.mrf.mxu0
      %v1694 = vadd.f32 %v1533, %v1693
      %v1695 = vand.u32 %v427, 4294901760
      %1696 = vmatmul.f32.gmra.mxu0 %v1695
      %v1697 = vpop.f32.mrf.mxu0
      %v1698 = vadd.f32 %v1537, %v1697
      %v1699 = vand.u32 %v428, 4294901760
      %1700 = vmatmul.f32.gmra.mxu0 %v1699
      %v1701 = vpop.f32.mrf.mxu0
      %v1702 = vadd.f32 %v1541, %v1701
      %v1703 = vand.u32 %v429, 4294901760
      %1704 = vmatmul.f32.gmra.mxu0 %v1703
      %v1705 = vpop.f32.mrf.mxu0
      %v1706 = vadd.f32 %v1545, %v1705
      %v1707 = vand.u32 %v430, 4294901760
      %1708 = vmatmul.f32.gmra.mxu0 %v1707
      %v1709 = vpop.f32.mrf.mxu0
      %v1710 = vadd.f32 %v1549, %v1709
      %v1711 = vand.u32 %v431, 4294901760
      %1712 = vmatmul.f32.gmra.mxu0 %v1711
      %v1713 = vpop.f32.mrf.mxu0
      %v1714 = vadd.f32 %v1553, %v1713
      %v1715 = vand.u32 %v432, 4294901760
      %1716 = vmatmul.f32.gmra.mxu0 %v1715
      %v1717 = vpop.f32.mrf.mxu0
      %v1718 = vadd.f32 %v1557, %v1717
      %v1719 = vand.u32 %v433, 4294901760
      %1720 = vmatmul.f32.gmra.mxu0 %v1719
      %v1721 = vpop.f32.mrf.mxu0
      %v1722 = vadd.f32 %v1561, %v1721
      %v1723 = vand.u32 %v434, 4294901760
      %1724 = vmatmul.f32.gmra.mxu0 %v1723
      %v1725 = vpop.f32.mrf.mxu0
      %v1726 = vadd.f32 %v1565, %v1725
      %v1727 = vand.u32 %v435, 4294901760
      %1728 = vmatmul.f32.gmra.mxu0 %v1727
      %v1729 = vpop.f32.mrf.mxu0
      %v1730 = vadd.f32 %v1569, %v1729
      %v1731 = vand.u32 %v436, 4294901760
      %1732 = vmatmul.f32.gmra.mxu0 %v1731
      %v1733 = vpop.f32.mrf.mxu0
      %v1734 = vadd.f32 %v1573, %v1733
      %v1735 = vand.u32 %v437, 4294901760
      %1736 = vmatmul.f32.gmra.mxu0 %v1735
      %v1737 = vpop.f32.mrf.mxu0
      %v1738 = vadd.f32 %v1577, %v1737
      %v1739 = vand.u32 %v438, 4294901760
      %1740 = vmatmul.f32.gmra.mxu0 %v1739
      %v1741 = vpop.f32.mrf.mxu0
      %v1742 = vadd.f32 %v1581, %v1741
      %v1743 = vand.u32 %v439, 4294901760
      %1744 = vmatmul.f32.gmra.mxu0 %v1743
      %v1745 = vpop.f32.mrf.mxu0
      %v1746 = vadd.f32 %v1585, %v1745
      %v1747 = vand.u32 %v440, 4294901760
      %1748 = vmatmul.f32.gmra.mxu0 %v1747
      %v1749 = vpop.f32.mrf.mxu0
      %v1750 = vadd.f32 %v1589, %v1749
      %v1751 = vand.u32 %v441, 4294901760
      %1752 = vmatmul.f32.gmra.mxu0 %v1751
      %v1753 = vpop.f32.mrf.mxu0
      %v1754 = vadd.f32 %v1593, %v1753
      %v1755 = vand.u32 %v442, 4294901760
      %1756 = vmatmul.f32.gmra.mxu0 %v1755
      %v1757 = vpop.f32.mrf.mxu0
      %v1758 = vadd.f32 %v1597, %v1757
      %v1759 = vand.u32 %v443, 4294901760
      %1760 = vmatmul.f32.gmra.mxu0 %v1759
      %v1761 = vpop.f32.mrf.mxu0
      %v1762 = vadd.f32 %v1601, %v1761
      %v1763 = vand.u32 %v444, 4294901760
      %1764 = vmatmul.f32.gmra.mxu0 %v1763
      %v1765 = vpop.f32.mrf.mxu0
      %v1766 = vadd.f32 %v1605, %v1765
      %v1767 = vand.u32 %v445, 4294901760
      %1768 = vmatmul.f32.gmra.mxu0 %v1767
      %v1769 = vpop.f32.mrf.mxu0
      %v1770 = vadd.f32 %v1609, %v1769
      %v1771 = vand.u32 %v446, 4294901760
      %1772 = vmatmul.f32.gmra.mxu0 %v1771
      %v1773 = vpop.f32.mrf.mxu0
      %v1774 = vadd.f32 %v1613, %v1773
      %v1775 = vand.u32 %v447, 4294901760
      %1776 = vmatmul.f32.gmra.mxu0 %v1775
      %v1777 = vpop.f32.mrf.mxu0
      %v1778 = vadd.f32 %v1617, %v1777
      %v1779 = vand.u32 %v448, 4294901760
      %1780 = vmatmul.f32.gmra.mxu0 %v1779
      %v1781 = vpop.f32.mrf.mxu0
      %v1782 = vadd.f32 %v1621, %v1781
      %v1783 = vand.u32 %v449, 4294901760
      %1784 = vmatmul.f32.gmra.mxu0 %v1783
      %v1785 = vpop.f32.mrf.mxu0
      %v1786 = vadd.f32 %v1625, %v1785
      %v1787 = vand.u32 %v450, 4294901760
      %1788 = vmatmul.f32.gmra.mxu0 %v1787
      %v1789 = vpop.f32.mrf.mxu0
      %v1790 = vadd.f32 %v1629, %v1789
      %v1791 = vand.u32 %v451, 4294901760
      %1792 = vmatmul.f32.gmra.mxu0 %v1791
      %v1793 = vpop.f32.mrf.mxu0
      %v1794 = vadd.f32 %v1633, %v1793
      %v1795 = vand.u32 %v452, 4294901760
      %1796 = vmatmul.f32.gmra.mxu0 %v1795
      %v1797 = vpop.f32.mrf.mxu0
      %v1798 = vadd.f32 %v1637, %v1797
      %v1799 = vand.u32 %v453, 4294901760
      %1800 = vmatmul.f32.gmra.mxu0 %v1799
      %v1801 = vpop.f32.mrf.mxu0
      %v1802 = vadd.f32 %v1641, %v1801
      %1803 = vdwg.mxu0
      %v1804 = vand.u32 %v500, 4294901760
      %1805 = vmatpush.msra.mxu0 %v1804
      %v1806 = vand.u32 %v497, 4294901760
      %1807 = vmatpush.msra.mxu0 %v1806
      %v1808 = vand.u32 %v494, 4294901760
      %1809 = vmatpush.msra.mxu0 %v1808
      %v1810 = vand.u32 %v491, 4294901760
      %1811 = vmatpush.msra.mxu0 %v1810
      %v1812 = vand.u32 %v488, 4294901760
      %1813 = vmatpush.msra.mxu0 %v1812
      %v1814 = vand.u32 %v485, 4294901760
      %1815 = vmatpush.msra.mxu0 %v1814
      %v1816 = vand.u32 %v482, 4294901760
      %1817 = vmatpush.msra.mxu0 %v1816
      %v1818 = vand.u32 %v479, 4294901760
      %1819 = vmatpush.msra.mxu0 %v1818
      %v1820 = vand.u32 %v476, 4294901760
      %1821 = vmatpush.msra.mxu0 %v1820
      %v1822 = vand.u32 %v473, 4294901760
      %1823 = vmatpush.msra.mxu0 %v1822
      %v1824 = vand.u32 %v470, 4294901760
      %1825 = vmatpush.msra.mxu0 %v1824
      %v1826 = vand.u32 %v467, 4294901760
      %1827 = vmatpush.msra.mxu0 %v1826
      %v1828 = vand.u32 %v464, 4294901760
      %1829 = vmatpush.msra.mxu0 %v1828
      %v1830 = vand.u32 %v461, 4294901760
      %1831 = vmatpush.msra.mxu0 %v1830
      %v1832 = vand.u32 %v458, 4294901760
      %1833 = vmatpush.msra.mxu0 %v1832
      %v1834 = vand.u32 %v455, 4294901760
      %1835 = vmatpush.msra.mxu0 %v1834
      %v1836 = vand.u32 %v422, 4294901760
      %v1837 = vsub.f32 %v422, %v1836
      %v1838 = vand.u32 %v1837, 4294901760
      %v1839 = vsub.f32 %v1837, %v1838
      %v1840 = vand.u32 %v1839, 4294901760
      %1841 = vmatmul.f32.gmra.mxu0 %v1840
      %v1842 = vpop.f32.mrf.mxu0
      %v1843 = vadd.f32 0.0, %v1842
      %v1844 = vand.u32 %v423, 4294901760
      %v1845 = vsub.f32 %v423, %v1844
      %v1846 = vand.u32 %v1845, 4294901760
      %v1847 = vsub.f32 %v1845, %v1846
      %v1848 = vand.u32 %v1847, 4294901760
      %1849 = vmatmul.f32.gmra.mxu0 %v1848
      %v1850 = vpop.f32.mrf.mxu0
      %v1851 = vadd.f32 0.0, %v1850
      %v1852 = vand.u32 %v424, 4294901760
      %v1853 = vsub.f32 %v424, %v1852
      %v1854 = vand.u32 %v1853, 4294901760
      %v1855 = vsub.f32 %v1853, %v1854
      %v1856 = vand.u32 %v1855, 4294901760
      %1857 = vmatmul.f32.gmra.mxu0 %v1856
      %v1858 = vpop.f32.mrf.mxu0
      %v1859 = vadd.f32 0.0, %v1858
      %v1860 = vand.u32 %v425, 4294901760
      %v1861 = vsub.f32 %v425, %v1860
      %v1862 = vand.u32 %v1861, 4294901760
      %v1863 = vsub.f32 %v1861, %v1862
      %v1864 = vand.u32 %v1863, 4294901760
      %1865 = vmatmul.f32.gmra.mxu0 %v1864
      %v1866 = vpop.f32.mrf.mxu0
      %v1867 = vadd.f32 0.0, %v1866
      %v1868 = vand.u32 %v426, 4294901760
      %v1869 = vsub.f32 %v426, %v1868
      %v1870 = vand.u32 %v1869, 4294901760
      %v1871 = vsub.f32 %v1869, %v1870
      %v1872 = vand.u32 %v1871, 4294901760
      %1873 = vmatmul.f32.gmra.mxu0 %v1872
      %v1874 = vpop.f32.mrf.mxu0
      %v1875 = vadd.f32 0.0, %v1874
      %v1876 = vand.u32 %v427, 4294901760
      %v1877 = vsub.f32 %v427, %v1876
      %v1878 = vand.u32 %v1877, 4294901760
      %v1879 = vsub.f32 %v1877, %v1878
      %v1880 = vand.u32 %v1879, 4294901760
      %1881 = vmatmul.f32.gmra.mxu0 %v1880
      %v1882 = vpop.f32.mrf.mxu0
      %v1883 = vadd.f32 0.0, %v1882
      %v1884 = vand.u32 %v428, 4294901760
      %v1885 = vsub.f32 %v428, %v1884
      %v1886 = vand.u32 %v1885, 4294901760
      %v1887 = vsub.f32 %v1885, %v1886
      %v1888 = vand.u32 %v1887, 4294901760
      %1889 = vmatmul.f32.gmra.mxu0 %v1888
      %v1890 = vpop.f32.mrf.mxu0
      %v1891 = vadd.f32 0.0, %v1890
      %v1892 = vand.u32 %v429, 4294901760
      %v1893 = vsub.f32 %v429, %v1892
      %v1894 = vand.u32 %v1893, 4294901760
      %v1895 = vsub.f32 %v1893, %v1894
      %v1896 = vand.u32 %v1895, 4294901760
      %1897 = vmatmul.f32.gmra.mxu0 %v1896
      %v1898 = vpop.f32.mrf.mxu0
      %v1899 = vadd.f32 0.0, %v1898
      %v1900 = vand.u32 %v430, 4294901760
      %v1901 = vsub.f32 %v430, %v1900
      %v1902 = vand.u32 %v1901, 4294901760
      %v1903 = vsub.f32 %v1901, %v1902
      %v1904 = vand.u32 %v1903, 4294901760
      %1905 = vmatmul.f32.gmra.mxu0 %v1904
      %v1906 = vpop.f32.mrf.mxu0
      %v1907 = vadd.f32 0.0, %v1906
      %v1908 = vand.u32 %v431, 4294901760
      %v1909 = vsub.f32 %v431, %v1908
      %v1910 = vand.u32 %v1909, 4294901760
      %v1911 = vsub.f32 %v1909, %v1910
      %v1912 = vand.u32 %v1911, 4294901760
      %1913 = vmatmul.f32.gmra.mxu0 %v1912
      %v1914 = vpop.f32.mrf.mxu0
      %v1915 = vadd.f32 0.0, %v1914
      %v1916 = vand.u32 %v432, 4294901760
      %v1917 = vsub.f32 %v432, %v1916
      %v1918 = vand.u32 %v1917, 4294901760
      %v1919 = vsub.f32 %v1917, %v1918
      %v1920 = vand.u32 %v1919, 4294901760
      %1921 = vmatmul.f32.gmra.mxu0 %v1920
      %v1922 = vpop.f32.mrf.mxu0
      %v1923 = vadd.f32 0.0, %v1922
      %v1924 = vand.u32 %v433, 4294901760
      %v1925 = vsub.f32 %v433, %v1924
      %v1926 = vand.u32 %v1925, 4294901760
      %v1927 = vsub.f32 %v1925, %v1926
      %v1928 = vand.u32 %v1927, 4294901760
      %1929 = vmatmul.f32.gmra.mxu0 %v1928
      %v1930 = vpop.f32.mrf.mxu0
      %v1931 = vadd.f32 0.0, %v1930
      %v1932 = vand.u32 %v434, 4294901760
      %v1933 = vsub.f32 %v434, %v1932
      %v1934 = vand.u32 %v1933, 4294901760
      %v1935 = vsub.f32 %v1933, %v1934
      %v1936 = vand.u32 %v1935, 4294901760
      %1937 = vmatmul.f32.gmra.mxu0 %v1936
      %v1938 = vpop.f32.mrf.mxu0
      %v1939 = vadd.f32 0.0, %v1938
      %v1940 = vand.u32 %v435, 4294901760
      %v1941 = vsub.f32 %v435, %v1940
      %v1942 = vand.u32 %v1941, 4294901760
      %v1943 = vsub.f32 %v1941, %v1942
      %v1944 = vand.u32 %v1943, 4294901760
      %1945 = vmatmul.f32.gmra.mxu0 %v1944
      %v1946 = vpop.f32.mrf.mxu0
      %v1947 = vadd.f32 0.0, %v1946
      %v1948 = vand.u32 %v436, 4294901760
      %v1949 = vsub.f32 %v436, %v1948
      %v1950 = vand.u32 %v1949, 4294901760
      %v1951 = vsub.f32 %v1949, %v1950
      %v1952 = vand.u32 %v1951, 4294901760
      %1953 = vmatmul.f32.gmra.mxu0 %v1952
      %v1954 = vpop.f32.mrf.mxu0
      %v1955 = vadd.f32 0.0, %v1954
      %v1956 = vand.u32 %v437, 4294901760
      %v1957 = vsub.f32 %v437, %v1956
      %v1958 = vand.u32 %v1957, 4294901760
      %v1959 = vsub.f32 %v1957, %v1958
      %v1960 = vand.u32 %v1959, 4294901760
      %1961 = vmatmul.f32.gmra.mxu0 %v1960
      %v1962 = vpop.f32.mrf.mxu0
      %v1963 = vadd.f32 0.0, %v1962
      %v1964 = vand.u32 %v438, 4294901760
      %v1965 = vsub.f32 %v438, %v1964
      %v1966 = vand.u32 %v1965, 4294901760
      %v1967 = vsub.f32 %v1965, %v1966
      %v1968 = vand.u32 %v1967, 4294901760
      %1969 = vmatmul.f32.gmra.mxu0 %v1968
      %v1970 = vpop.f32.mrf.mxu0
      %v1971 = vadd.f32 0.0, %v1970
      %v1972 = vand.u32 %v439, 4294901760
      %v1973 = vsub.f32 %v439, %v1972
      %v1974 = vand.u32 %v1973, 4294901760
      %v1975 = vsub.f32 %v1973, %v1974
      %v1976 = vand.u32 %v1975, 4294901760
      %1977 = vmatmul.f32.gmra.mxu0 %v1976
      %v1978 = vpop.f32.mrf.mxu0
      %v1979 = vadd.f32 0.0, %v1978
      %v1980 = vand.u32 %v440, 4294901760
      %v1981 = vsub.f32 %v440, %v1980
      %v1982 = vand.u32 %v1981, 4294901760
      %v1983 = vsub.f32 %v1981, %v1982
      %v1984 = vand.u32 %v1983, 4294901760
      %1985 = vmatmul.f32.gmra.mxu0 %v1984
      %v1986 = vpop.f32.mrf.mxu0
      %v1987 = vadd.f32 0.0, %v1986
      %v1988 = vand.u32 %v441, 4294901760
      %v1989 = vsub.f32 %v441, %v1988
      %v1990 = vand.u32 %v1989, 4294901760
      %v1991 = vsub.f32 %v1989, %v1990
      %v1992 = vand.u32 %v1991, 4294901760
      %1993 = vmatmul.f32.gmra.mxu0 %v1992
      %v1994 = vpop.f32.mrf.mxu0
      %v1995 = vadd.f32 0.0, %v1994
      %v1996 = vand.u32 %v442, 4294901760
      %v1997 = vsub.f32 %v442, %v1996
      %v1998 = vand.u32 %v1997, 4294901760
      %v1999 = vsub.f32 %v1997, %v1998
      %v2000 = vand.u32 %v1999, 4294901760
      %2001 = vmatmul.f32.gmra.mxu0 %v2000
      %v2002 = vpop.f32.mrf.mxu0
      %v2003 = vadd.f32 0.0, %v2002
      %v2004 = vand.u32 %v443, 4294901760
      %v2005 = vsub.f32 %v443, %v2004
      %v2006 = vand.u32 %v2005, 4294901760
      %v2007 = vsub.f32 %v2005, %v2006
      %v2008 = vand.u32 %v2007, 4294901760
      %2009 = vmatmul.f32.gmra.mxu0 %v2008
      %v2010 = vpop.f32.mrf.mxu0
      %v2011 = vadd.f32 0.0, %v2010
      %v2012 = vand.u32 %v444, 4294901760
      %v2013 = vsub.f32 %v444, %v2012
      %v2014 = vand.u32 %v2013, 4294901760
      %v2015 = vsub.f32 %v2013, %v2014
      %v2016 = vand.u32 %v2015, 4294901760
      %2017 = vmatmul.f32.gmra.mxu0 %v2016
      %v2018 = vpop.f32.mrf.mxu0
      %v2019 = vadd.f32 0.0, %v2018
      %v2020 = vand.u32 %v445, 4294901760
      %v2021 = vsub.f32 %v445, %v2020
      %v2022 = vand.u32 %v2021, 4294901760
      %v2023 = vsub.f32 %v2021, %v2022
      %v2024 = vand.u32 %v2023, 4294901760
      %2025 = vmatmul.f32.gmra.mxu0 %v2024
      %v2026 = vpop.f32.mrf.mxu0
      %v2027 = vadd.f32 0.0, %v2026
      %v2028 = vand.u32 %v446, 4294901760
      %v2029 = vsub.f32 %v446, %v2028
      %v2030 = vand.u32 %v2029, 4294901760
      %v2031 = vsub.f32 %v2029, %v2030
      %v2032 = vand.u32 %v2031, 4294901760
      %2033 = vmatmul.f32.gmra.mxu0 %v2032
      %v2034 = vpop.f32.mrf.mxu0
      %v2035 = vadd.f32 0.0, %v2034
      %v2036 = vand.u32 %v447, 4294901760
      %v2037 = vsub.f32 %v447, %v2036
      %v2038 = vand.u32 %v2037, 4294901760
      %v2039 = vsub.f32 %v2037, %v2038
      %v2040 = vand.u32 %v2039, 4294901760
      %2041 = vmatmul.f32.gmra.mxu0 %v2040
      %v2042 = vpop.f32.mrf.mxu0
      %v2043 = vadd.f32 0.0, %v2042
      %v2044 = vand.u32 %v448, 4294901760
      %v2045 = vsub.f32 %v448, %v2044
      %v2046 = vand.u32 %v2045, 4294901760
      %v2047 = vsub.f32 %v2045, %v2046
      %v2048 = vand.u32 %v2047, 4294901760
      %2049 = vmatmul.f32.gmra.mxu0 %v2048
      %v2050 = vpop.f32.mrf.mxu0
      %v2051 = vadd.f32 0.0, %v2050
      %v2052 = vand.u32 %v449, 4294901760
      %v2053 = vsub.f32 %v449, %v2052
      %v2054 = vand.u32 %v2053, 4294901760
      %v2055 = vsub.f32 %v2053, %v2054
      %v2056 = vand.u32 %v2055, 4294901760
      %2057 = vmatmul.f32.gmra.mxu0 %v2056
      %v2058 = vpop.f32.mrf.mxu0
      %v2059 = vadd.f32 0.0, %v2058
      %v2060 = vand.u32 %v450, 4294901760
      %v2061 = vsub.f32 %v450, %v2060
      %v2062 = vand.u32 %v2061, 4294901760
      %v2063 = vsub.f32 %v2061, %v2062
      %v2064 = vand.u32 %v2063, 4294901760
      %2065 = vmatmul.f32.gmra.mxu0 %v2064
      %v2066 = vpop.f32.mrf.mxu0
      %v2067 = vadd.f32 0.0, %v2066
      %v2068 = vand.u32 %v451, 4294901760
      %v2069 = vsub.f32 %v451, %v2068
      %v2070 = vand.u32 %v2069, 4294901760
      %v2071 = vsub.f32 %v2069, %v2070
      %v2072 = vand.u32 %v2071, 4294901760
      %2073 = vmatmul.f32.gmra.mxu0 %v2072
      %v2074 = vpop.f32.mrf.mxu0
      %v2075 = vadd.f32 0.0, %v2074
      %v2076 = vand.u32 %v452, 4294901760
      %v2077 = vsub.f32 %v452, %v2076
      %v2078 = vand.u32 %v2077, 4294901760
      %v2079 = vsub.f32 %v2077, %v2078
      %v2080 = vand.u32 %v2079, 4294901760
      %2081 = vmatmul.f32.gmra.mxu0 %v2080
      %v2082 = vpop.f32.mrf.mxu0
      %v2083 = vadd.f32 0.0, %v2082
      %v2084 = vand.u32 %v453, 4294901760
      %v2085 = vsub.f32 %v453, %v2084
      %v2086 = vand.u32 %v2085, 4294901760
      %v2087 = vsub.f32 %v2085, %v2086
      %v2088 = vand.u32 %v2087, 4294901760
      %2089 = vmatmul.f32.gmra.mxu0 %v2088
      %v2090 = vpop.f32.mrf.mxu0
      %v2091 = vadd.f32 0.0, %v2090
      %2092 = vdwg.mxu0
      %v2093 = vand.u32 %v500, 4294901760
      %v2094 = vsub.f32 %v500, %v2093
      %v2095 = vand.u32 %v2094, 4294901760
      %v2096 = vsub.f32 %v2094, %v2095
      %v2097 = vand.u32 %v2096, 4294901760
      %2098 = vmatpush.msra.mxu0 %v2097
      %v2099 = vand.u32 %v497, 4294901760
      %v2100 = vsub.f32 %v497, %v2099
      %v2101 = vand.u32 %v2100, 4294901760
      %v2102 = vsub.f32 %v2100, %v2101
      %v2103 = vand.u32 %v2102, 4294901760
      %2104 = vmatpush.msra.mxu0 %v2103
      %v2105 = vand.u32 %v494, 4294901760
      %v2106 = vsub.f32 %v494, %v2105
      %v2107 = vand.u32 %v2106, 4294901760
      %v2108 = vsub.f32 %v2106, %v2107
      %v2109 = vand.u32 %v2108, 4294901760
      %2110 = vmatpush.msra.mxu0 %v2109
      %v2111 = vand.u32 %v491, 4294901760
      %v2112 = vsub.f32 %v491, %v2111
      %v2113 = vand.u32 %v2112, 4294901760
      %v2114 = vsub.f32 %v2112, %v2113
      %v2115 = vand.u32 %v2114, 4294901760
      %2116 = vmatpush.msra.mxu0 %v2115
      %v2117 = vand.u32 %v488, 4294901760
      %v2118 = vsub.f32 %v488, %v2117
      %v2119 = vand.u32 %v2118, 4294901760
      %v2120 = vsub.f32 %v2118, %v2119
      %v2121 = vand.u32 %v2120, 4294901760
      %2122 = vmatpush.msra.mxu0 %v2121
      %v2123 = vand.u32 %v485, 4294901760
      %v2124 = vsub.f32 %v485, %v2123
      %v2125 = vand.u32 %v2124, 4294901760
      %v2126 = vsub.f32 %v2124, %v2125
      %v2127 = vand.u32 %v2126, 4294901760
      %2128 = vmatpush.msra.mxu0 %v2127
      %v2129 = vand.u32 %v482, 4294901760
      %v2130 = vsub.f32 %v482, %v2129
      %v2131 = vand.u32 %v2130, 4294901760
      %v2132 = vsub.f32 %v2130, %v2131
      %v2133 = vand.u32 %v2132, 4294901760
      %2134 = vmatpush.msra.mxu0 %v2133
      %v2135 = vand.u32 %v479, 4294901760
      %v2136 = vsub.f32 %v479, %v2135
      %v2137 = vand.u32 %v2136, 4294901760
      %v2138 = vsub.f32 %v2136, %v2137
      %v2139 = vand.u32 %v2138, 4294901760
      %2140 = vmatpush.msra.mxu0 %v2139
      %v2141 = vand.u32 %v476, 4294901760
      %v2142 = vsub.f32 %v476, %v2141
      %v2143 = vand.u32 %v2142, 4294901760
      %v2144 = vsub.f32 %v2142, %v2143
      %v2145 = vand.u32 %v2144, 4294901760
      %2146 = vmatpush.msra.mxu0 %v2145
      %v2147 = vand.u32 %v473, 4294901760
      %v2148 = vsub.f32 %v473, %v2147
      %v2149 = vand.u32 %v2148, 4294901760
      %v2150 = vsub.f32 %v2148, %v2149
      %v2151 = vand.u32 %v2150, 4294901760
      %2152 = vmatpush.msra.mxu0 %v2151
      %v2153 = vand.u32 %v470, 4294901760
      %v2154 = vsub.f32 %v470, %v2153
      %v2155 = vand.u32 %v2154, 4294901760
      %v2156 = vsub.f32 %v2154, %v2155
      %v2157 = vand.u32 %v2156, 4294901760
      %2158 = vmatpush.msra.mxu0 %v2157
      %v2159 = vand.u32 %v467, 4294901760
      %v2160 = vsub.f32 %v467, %v2159
      %v2161 = vand.u32 %v2160, 4294901760
      %v2162 = vsub.f32 %v2160, %v2161
      %v2163 = vand.u32 %v2162, 4294901760
      %2164 = vmatpush.msra.mxu0 %v2163
      %v2165 = vand.u32 %v464, 4294901760
      %v2166 = vsub.f32 %v464, %v2165
      %v2167 = vand.u32 %v2166, 4294901760
      %v2168 = vsub.f32 %v2166, %v2167
      %v2169 = vand.u32 %v2168, 4294901760
      %2170 = vmatpush.msra.mxu0 %v2169
      %v2171 = vand.u32 %v461, 4294901760
      %v2172 = vsub.f32 %v461, %v2171
      %v2173 = vand.u32 %v2172, 4294901760
      %v2174 = vsub.f32 %v2172, %v2173
      %v2175 = vand.u32 %v2174, 4294901760
      %2176 = vmatpush.msra.mxu0 %v2175
      %v2177 = vand.u32 %v458, 4294901760
      %v2178 = vsub.f32 %v458, %v2177
      %v2179 = vand.u32 %v2178, 4294901760
      %v2180 = vsub.f32 %v2178, %v2179
      %v2181 = vand.u32 %v2180, 4294901760
      %2182 = vmatpush.msra.mxu0 %v2181
      %v2183 = vand.u32 %v455, 4294901760
      %v2184 = vsub.f32 %v455, %v2183
      %v2185 = vand.u32 %v2184, 4294901760
      %v2186 = vsub.f32 %v2184, %v2185
      %v2187 = vand.u32 %v2186, 4294901760
      %2188 = vmatpush.msra.mxu0 %v2187
      %v2189 = vand.u32 %v422, 4294901760
      %2190 = vmatmul.f32.gmra.mxu0 %v2189
      %v2191 = vpop.f32.mrf.mxu0
      %v2192 = vadd.f32 %v1843, %v2191
      %v2193 = vand.u32 %v423, 4294901760
      %2194 = vmatmul.f32.gmra.mxu0 %v2193
      %v2195 = vpop.f32.mrf.mxu0
      %v2196 = vadd.f32 %v1851, %v2195
      %v2197 = vand.u32 %v424, 4294901760
      %2198 = vmatmul.f32.gmra.mxu0 %v2197
      %v2199 = vpop.f32.mrf.mxu0
      %v2200 = vadd.f32 %v1859, %v2199
      %v2201 = vand.u32 %v425, 4294901760
      %2202 = vmatmul.f32.gmra.mxu0 %v2201
      %v2203 = vpop.f32.mrf.mxu0
      %v2204 = vadd.f32 %v1867, %v2203
      %v2205 = vand.u32 %v426, 4294901760
      %2206 = vmatmul.f32.gmra.mxu0 %v2205
      %v2207 = vpop.f32.mrf.mxu0
      %v2208 = vadd.f32 %v1875, %v2207
      %v2209 = vand.u32 %v427, 4294901760
      %2210 = vmatmul.f32.gmra.mxu0 %v2209
      %v2211 = vpop.f32.mrf.mxu0
      %v2212 = vadd.f32 %v1883, %v2211
      %v2213 = vand.u32 %v428, 4294901760
      %2214 = vmatmul.f32.gmra.mxu0 %v2213
      %v2215 = vpop.f32.mrf.mxu0
      %v2216 = vadd.f32 %v1891, %v2215
      %v2217 = vand.u32 %v429, 4294901760
      %2218 = vmatmul.f32.gmra.mxu0 %v2217
      %v2219 = vpop.f32.mrf.mxu0
      %v2220 = vadd.f32 %v1899, %v2219
      %v2221 = vand.u32 %v430, 4294901760
      %2222 = vmatmul.f32.gmra.mxu0 %v2221
      %v2223 = vpop.f32.mrf.mxu0
      %v2224 = vadd.f32 %v1907, %v2223
      %v2225 = vand.u32 %v431, 4294901760
      %2226 = vmatmul.f32.gmra.mxu0 %v2225
      %v2227 = vpop.f32.mrf.mxu0
      %v2228 = vadd.f32 %v1915, %v2227
      %v2229 = vand.u32 %v432, 4294901760
      %2230 = vmatmul.f32.gmra.mxu0 %v2229
      %v2231 = vpop.f32.mrf.mxu0
      %v2232 = vadd.f32 %v1923, %v2231
      %v2233 = vand.u32 %v433, 4294901760
      %2234 = vmatmul.f32.gmra.mxu0 %v2233
      %v2235 = vpop.f32.mrf.mxu0
      %v2236 = vadd.f32 %v1931, %v2235
      %v2237 = vand.u32 %v434, 4294901760
      %2238 = vmatmul.f32.gmra.mxu0 %v2237
      %v2239 = vpop.f32.mrf.mxu0
      %v2240 = vadd.f32 %v1939, %v2239
      %v2241 = vand.u32 %v435, 4294901760
      %2242 = vmatmul.f32.gmra.mxu0 %v2241
      %v2243 = vpop.f32.mrf.mxu0
      %v2244 = vadd.f32 %v1947, %v2243
      %v2245 = vand.u32 %v436, 4294901760
      %2246 = vmatmul.f32.gmra.mxu0 %v2245
      %v2247 = vpop.f32.mrf.mxu0
      %v2248 = vadd.f32 %v1955, %v2247
      %v2249 = vand.u32 %v437, 4294901760
      %2250 = vmatmul.f32.gmra.mxu0 %v2249
      %v2251 = vpop.f32.mrf.mxu0
      %v2252 = vadd.f32 %v1963, %v2251
      %v2253 = vand.u32 %v438, 4294901760
      %2254 = vmatmul.f32.gmra.mxu0 %v2253
      %v2255 = vpop.f32.mrf.mxu0
      %v2256 = vadd.f32 %v1971, %v2255
      %v2257 = vand.u32 %v439, 4294901760
      %2258 = vmatmul.f32.gmra.mxu0 %v2257
      %v2259 = vpop.f32.mrf.mxu0
      %v2260 = vadd.f32 %v1979, %v2259
      %v2261 = vand.u32 %v440, 4294901760
      %2262 = vmatmul.f32.gmra.mxu0 %v2261
      %v2263 = vpop.f32.mrf.mxu0
      %v2264 = vadd.f32 %v1987, %v2263
      %v2265 = vand.u32 %v441, 4294901760
      %2266 = vmatmul.f32.gmra.mxu0 %v2265
      %v2267 = vpop.f32.mrf.mxu0
      %v2268 = vadd.f32 %v1995, %v2267
      %v2269 = vand.u32 %v442, 4294901760
      %2270 = vmatmul.f32.gmra.mxu0 %v2269
      %v2271 = vpop.f32.mrf.mxu0
      %v2272 = vadd.f32 %v2003, %v2271
      %v2273 = vand.u32 %v443, 4294901760
      %2274 = vmatmul.f32.gmra.mxu0 %v2273
      %v2275 = vpop.f32.mrf.mxu0
      %v2276 = vadd.f32 %v2011, %v2275
      %v2277 = vand.u32 %v444, 4294901760
      %2278 = vmatmul.f32.gmra.mxu0 %v2277
      %v2279 = vpop.f32.mrf.mxu0
      %v2280 = vadd.f32 %v2019, %v2279
      %v2281 = vand.u32 %v445, 4294901760
      %2282 = vmatmul.f32.gmra.mxu0 %v2281
      %v2283 = vpop.f32.mrf.mxu0
      %v2284 = vadd.f32 %v2027, %v2283
      %v2285 = vand.u32 %v446, 4294901760
      %2286 = vmatmul.f32.gmra.mxu0 %v2285
      %v2287 = vpop.f32.mrf.mxu0
      %v2288 = vadd.f32 %v2035, %v2287
      %v2289 = vand.u32 %v447, 4294901760
      %2290 = vmatmul.f32.gmra.mxu0 %v2289
      %v2291 = vpop.f32.mrf.mxu0
      %v2292 = vadd.f32 %v2043, %v2291
      %v2293 = vand.u32 %v448, 4294901760
      %2294 = vmatmul.f32.gmra.mxu0 %v2293
      %v2295 = vpop.f32.mrf.mxu0
      %v2296 = vadd.f32 %v2051, %v2295
      %v2297 = vand.u32 %v449, 4294901760
      %2298 = vmatmul.f32.gmra.mxu0 %v2297
      %v2299 = vpop.f32.mrf.mxu0
      %v2300 = vadd.f32 %v2059, %v2299
      %v2301 = vand.u32 %v450, 4294901760
      %2302 = vmatmul.f32.gmra.mxu0 %v2301
      %v2303 = vpop.f32.mrf.mxu0
      %v2304 = vadd.f32 %v2067, %v2303
      %v2305 = vand.u32 %v451, 4294901760
      %2306 = vmatmul.f32.gmra.mxu0 %v2305
      %v2307 = vpop.f32.mrf.mxu0
      %v2308 = vadd.f32 %v2075, %v2307
      %v2309 = vand.u32 %v452, 4294901760
      %2310 = vmatmul.f32.gmra.mxu0 %v2309
      %v2311 = vpop.f32.mrf.mxu0
      %v2312 = vadd.f32 %v2083, %v2311
      %v2313 = vand.u32 %v453, 4294901760
      %2314 = vmatmul.f32.gmra.mxu0 %v2313
      %v2315 = vpop.f32.mrf.mxu0
      %v2316 = vadd.f32 %v2091, %v2315
      %2317 = vdwg.mxu0
      %v2318 = vand.u32 %v500, 4294901760
      %v2319 = vsub.f32 %v500, %v2318
      %2320 = vmatpush.msra.mxu0 %v2319
      %v2321 = vand.u32 %v497, 4294901760
      %v2322 = vsub.f32 %v497, %v2321
      %2323 = vmatpush.msra.mxu0 %v2322
      %v2324 = vand.u32 %v494, 4294901760
      %v2325 = vsub.f32 %v494, %v2324
      %2326 = vmatpush.msra.mxu0 %v2325
      %v2327 = vand.u32 %v491, 4294901760
      %v2328 = vsub.f32 %v491, %v2327
      %2329 = vmatpush.msra.mxu0 %v2328
      %v2330 = vand.u32 %v488, 4294901760
      %v2331 = vsub.f32 %v488, %v2330
      %2332 = vmatpush.msra.mxu0 %v2331
      %v2333 = vand.u32 %v485, 4294901760
      %v2334 = vsub.f32 %v485, %v2333
      %2335 = vmatpush.msra.mxu0 %v2334
      %v2336 = vand.u32 %v482, 4294901760
      %v2337 = vsub.f32 %v482, %v2336
      %2338 = vmatpush.msra.mxu0 %v2337
      %v2339 = vand.u32 %v479, 4294901760
      %v2340 = vsub.f32 %v479, %v2339
      %2341 = vmatpush.msra.mxu0 %v2340
      %v2342 = vand.u32 %v476, 4294901760
      %v2343 = vsub.f32 %v476, %v2342
      %2344 = vmatpush.msra.mxu0 %v2343
      %v2345 = vand.u32 %v473, 4294901760
      %v2346 = vsub.f32 %v473, %v2345
      %2347 = vmatpush.msra.mxu0 %v2346
      %v2348 = vand.u32 %v470, 4294901760
      %v2349 = vsub.f32 %v470, %v2348
      %2350 = vmatpush.msra.mxu0 %v2349
      %v2351 = vand.u32 %v467, 4294901760
      %v2352 = vsub.f32 %v467, %v2351
      %2353 = vmatpush.msra.mxu0 %v2352
      %v2354 = vand.u32 %v464, 4294901760
      %v2355 = vsub.f32 %v464, %v2354
      %2356 = vmatpush.msra.mxu0 %v2355
      %v2357 = vand.u32 %v461, 4294901760
      %v2358 = vsub.f32 %v461, %v2357
      %2359 = vmatpush.msra.mxu0 %v2358
      %v2360 = vand.u32 %v458, 4294901760
      %v2361 = vsub.f32 %v458, %v2360
      %2362 = vmatpush.msra.mxu0 %v2361
      %v2363 = vand.u32 %v455, 4294901760
      %v2364 = vsub.f32 %v455, %v2363
      %2365 = vmatpush.msra.mxu0 %v2364
      %v2366 = vand.u32 %v422, 4294901760
      %v2367 = vsub.f32 %v422, %v2366
      %2368 = vmatmul.f32.gmra.mxu0 %v2367
      %v2369 = vpop.f32.mrf.mxu0
      %v2370 = vadd.f32 %v2192, %v2369
      %v2371 = vand.u32 %v423, 4294901760
      %v2372 = vsub.f32 %v423, %v2371
      %2373 = vmatmul.f32.gmra.mxu0 %v2372
      %v2374 = vpop.f32.mrf.mxu0
      %v2375 = vadd.f32 %v2196, %v2374
      %v2376 = vand.u32 %v424, 4294901760
      %v2377 = vsub.f32 %v424, %v2376
      %2378 = vmatmul.f32.gmra.mxu0 %v2377
      %v2379 = vpop.f32.mrf.mxu0
      %v2380 = vadd.f32 %v2200, %v2379
      %v2381 = vand.u32 %v425, 4294901760
      %v2382 = vsub.f32 %v425, %v2381
      %2383 = vmatmul.f32.gmra.mxu0 %v2382
      %v2384 = vpop.f32.mrf.mxu0
      %v2385 = vadd.f32 %v2204, %v2384
      %v2386 = vand.u32 %v426, 4294901760
      %v2387 = vsub.f32 %v426, %v2386
      %2388 = vmatmul.f32.gmra.mxu0 %v2387
      %v2389 = vpop.f32.mrf.mxu0
      %v2390 = vadd.f32 %v2208, %v2389
      %v2391 = vand.u32 %v427, 4294901760
      %v2392 = vsub.f32 %v427, %v2391
      %2393 = vmatmul.f32.gmra.mxu0 %v2392
      %v2394 = vpop.f32.mrf.mxu0
      %v2395 = vadd.f32 %v2212, %v2394
      %v2396 = vand.u32 %v428, 4294901760
      %v2397 = vsub.f32 %v428, %v2396
      %2398 = vmatmul.f32.gmra.mxu0 %v2397
      %v2399 = vpop.f32.mrf.mxu0
      %v2400 = vadd.f32 %v2216, %v2399
      %v2401 = vand.u32 %v429, 4294901760
      %v2402 = vsub.f32 %v429, %v2401
      %2403 = vmatmul.f32.gmra.mxu0 %v2402
      %v2404 = vpop.f32.mrf.mxu0
      %v2405 = vadd.f32 %v2220, %v2404
      %v2406 = vand.u32 %v430, 4294901760
      %v2407 = vsub.f32 %v430, %v2406
      %2408 = vmatmul.f32.gmra.mxu0 %v2407
      %v2409 = vpop.f32.mrf.mxu0
      %v2410 = vadd.f32 %v2224, %v2409
      %v2411 = vand.u32 %v431, 4294901760
      %v2412 = vsub.f32 %v431, %v2411
      %2413 = vmatmul.f32.gmra.mxu0 %v2412
      %v2414 = vpop.f32.mrf.mxu0
      %v2415 = vadd.f32 %v2228, %v2414
      %v2416 = vand.u32 %v432, 4294901760
      %v2417 = vsub.f32 %v432, %v2416
      %2418 = vmatmul.f32.gmra.mxu0 %v2417
      %v2419 = vpop.f32.mrf.mxu0
      %v2420 = vadd.f32 %v2232, %v2419
      %v2421 = vand.u32 %v433, 4294901760
      %v2422 = vsub.f32 %v433, %v2421
      %2423 = vmatmul.f32.gmra.mxu0 %v2422
      %v2424 = vpop.f32.mrf.mxu0
      %v2425 = vadd.f32 %v2236, %v2424
      %v2426 = vand.u32 %v434, 4294901760
      %v2427 = vsub.f32 %v434, %v2426
      %2428 = vmatmul.f32.gmra.mxu0 %v2427
      %v2429 = vpop.f32.mrf.mxu0
      %v2430 = vadd.f32 %v2240, %v2429
      %v2431 = vand.u32 %v435, 4294901760
      %v2432 = vsub.f32 %v435, %v2431
      %2433 = vmatmul.f32.gmra.mxu0 %v2432
      %v2434 = vpop.f32.mrf.mxu0
      %v2435 = vadd.f32 %v2244, %v2434
      %v2436 = vand.u32 %v436, 4294901760
      %v2437 = vsub.f32 %v436, %v2436
      %2438 = vmatmul.f32.gmra.mxu0 %v2437
      %v2439 = vpop.f32.mrf.mxu0
      %v2440 = vadd.f32 %v2248, %v2439
      %v2441 = vand.u32 %v437, 4294901760
      %v2442 = vsub.f32 %v437, %v2441
      %2443 = vmatmul.f32.gmra.mxu0 %v2442
      %v2444 = vpop.f32.mrf.mxu0
      %v2445 = vadd.f32 %v2252, %v2444
      %v2446 = vand.u32 %v438, 4294901760
      %v2447 = vsub.f32 %v438, %v2446
      %2448 = vmatmul.f32.gmra.mxu0 %v2447
      %v2449 = vpop.f32.mrf.mxu0
      %v2450 = vadd.f32 %v2256, %v2449
      %v2451 = vand.u32 %v439, 4294901760
      %v2452 = vsub.f32 %v439, %v2451
      %2453 = vmatmul.f32.gmra.mxu0 %v2452
      %v2454 = vpop.f32.mrf.mxu0
      %v2455 = vadd.f32 %v2260, %v2454
      %v2456 = vand.u32 %v440, 4294901760
      %v2457 = vsub.f32 %v440, %v2456
      %2458 = vmatmul.f32.gmra.mxu0 %v2457
      %v2459 = vpop.f32.mrf.mxu0
      %v2460 = vadd.f32 %v2264, %v2459
      %v2461 = vand.u32 %v441, 4294901760
      %v2462 = vsub.f32 %v441, %v2461
      %2463 = vmatmul.f32.gmra.mxu0 %v2462
      %v2464 = vpop.f32.mrf.mxu0
      %v2465 = vadd.f32 %v2268, %v2464
      %v2466 = vand.u32 %v442, 4294901760
      %v2467 = vsub.f32 %v442, %v2466
      %2468 = vmatmul.f32.gmra.mxu0 %v2467
      %v2469 = vpop.f32.mrf.mxu0
      %v2470 = vadd.f32 %v2272, %v2469
      %v2471 = vand.u32 %v443, 4294901760
      %v2472 = vsub.f32 %v443, %v2471
      %2473 = vmatmul.f32.gmra.mxu0 %v2472
      %v2474 = vpop.f32.mrf.mxu0
      %v2475 = vadd.f32 %v2276, %v2474
      %v2476 = vand.u32 %v444, 4294901760
      %v2477 = vsub.f32 %v444, %v2476
      %2478 = vmatmul.f32.gmra.mxu0 %v2477
      %v2479 = vpop.f32.mrf.mxu0
      %v2480 = vadd.f32 %v2280, %v2479
      %v2481 = vand.u32 %v445, 4294901760
      %v2482 = vsub.f32 %v445, %v2481
      %2483 = vmatmul.f32.gmra.mxu0 %v2482
      %v2484 = vpop.f32.mrf.mxu0
      %v2485 = vadd.f32 %v2284, %v2484
      %v2486 = vand.u32 %v446, 4294901760
      %v2487 = vsub.f32 %v446, %v2486
      %2488 = vmatmul.f32.gmra.mxu0 %v2487
      %v2489 = vpop.f32.mrf.mxu0
      %v2490 = vadd.f32 %v2288, %v2489
      %v2491 = vand.u32 %v447, 4294901760
      %v2492 = vsub.f32 %v447, %v2491
      %2493 = vmatmul.f32.gmra.mxu0 %v2492
      %v2494 = vpop.f32.mrf.mxu0
      %v2495 = vadd.f32 %v2292, %v2494
      %v2496 = vand.u32 %v448, 4294901760
      %v2497 = vsub.f32 %v448, %v2496
      %2498 = vmatmul.f32.gmra.mxu0 %v2497
      %v2499 = vpop.f32.mrf.mxu0
      %v2500 = vadd.f32 %v2296, %v2499
      %v2501 = vand.u32 %v449, 4294901760
      %v2502 = vsub.f32 %v449, %v2501
      %2503 = vmatmul.f32.gmra.mxu0 %v2502
      %v2504 = vpop.f32.mrf.mxu0
      %v2505 = vadd.f32 %v2300, %v2504
      %v2506 = vand.u32 %v450, 4294901760
      %v2507 = vsub.f32 %v450, %v2506
      %2508 = vmatmul.f32.gmra.mxu0 %v2507
      %v2509 = vpop.f32.mrf.mxu0
      %v2510 = vadd.f32 %v2304, %v2509
      %v2511 = vand.u32 %v451, 4294901760
      %v2512 = vsub.f32 %v451, %v2511
      %2513 = vmatmul.f32.gmra.mxu0 %v2512
      %v2514 = vpop.f32.mrf.mxu0
      %v2515 = vadd.f32 %v2308, %v2514
      %v2516 = vand.u32 %v452, 4294901760
      %v2517 = vsub.f32 %v452, %v2516
      %2518 = vmatmul.f32.gmra.mxu0 %v2517
      %v2519 = vpop.f32.mrf.mxu0
      %v2520 = vadd.f32 %v2312, %v2519
      %v2521 = vand.u32 %v453, 4294901760
      %v2522 = vsub.f32 %v453, %v2521
      %2523 = vmatmul.f32.gmra.mxu0 %v2522
      %v2524 = vpop.f32.mrf.mxu0
      %v2525 = vadd.f32 %v2316, %v2524
      %2526 = vdwg.mxu0
      %v2527 = vand.u32 %v500, 4294901760
      %2528 = vmatpush.msra.mxu0 %v2527
      %v2529 = vand.u32 %v497, 4294901760
      %2530 = vmatpush.msra.mxu0 %v2529
      %v2531 = vand.u32 %v494, 4294901760
      %2532 = vmatpush.msra.mxu0 %v2531
      %v2533 = vand.u32 %v491, 4294901760
      %2534 = vmatpush.msra.mxu0 %v2533
      %v2535 = vand.u32 %v488, 4294901760
      %2536 = vmatpush.msra.mxu0 %v2535
      %v2537 = vand.u32 %v485, 4294901760
      %2538 = vmatpush.msra.mxu0 %v2537
      %v2539 = vand.u32 %v482, 4294901760
      %2540 = vmatpush.msra.mxu0 %v2539
      %v2541 = vand.u32 %v479, 4294901760
      %2542 = vmatpush.msra.mxu0 %v2541
      %v2543 = vand.u32 %v476, 4294901760
      %2544 = vmatpush.msra.mxu0 %v2543
      %v2545 = vand.u32 %v473, 4294901760
      %2546 = vmatpush.msra.mxu0 %v2545
      %v2547 = vand.u32 %v470, 4294901760
      %2548 = vmatpush.msra.mxu0 %v2547
      %v2549 = vand.u32 %v467, 4294901760
      %2550 = vmatpush.msra.mxu0 %v2549
      %v2551 = vand.u32 %v464, 4294901760
      %2552 = vmatpush.msra.mxu0 %v2551
      %v2553 = vand.u32 %v461, 4294901760
      %2554 = vmatpush.msra.mxu0 %v2553
      %v2555 = vand.u32 %v458, 4294901760
      %2556 = vmatpush.msra.mxu0 %v2555
      %v2557 = vand.u32 %v455, 4294901760
      %2558 = vmatpush.msra.mxu0 %v2557
      %v2559 = vand.u32 %v422, 4294901760
      %v2560 = vsub.f32 %v422, %v2559
      %v2561 = vand.u32 %v2560, 4294901760
      %2562 = vmatmul.f32.gmra.mxu0 %v2561
      %v2563 = vpop.f32.mrf.mxu0
      %v2564 = vadd.f32 %v2370, %v2563
      %v2565 = vand.u32 %v423, 4294901760
      %v2566 = vsub.f32 %v423, %v2565
      %v2567 = vand.u32 %v2566, 4294901760
      %2568 = vmatmul.f32.gmra.mxu0 %v2567
      %v2569 = vpop.f32.mrf.mxu0
      %v2570 = vadd.f32 %v2375, %v2569
      %v2571 = vand.u32 %v424, 4294901760
      %v2572 = vsub.f32 %v424, %v2571
      %v2573 = vand.u32 %v2572, 4294901760
      %2574 = vmatmul.f32.gmra.mxu0 %v2573
      %v2575 = vpop.f32.mrf.mxu0
      %v2576 = vadd.f32 %v2380, %v2575
      %v2577 = vand.u32 %v425, 4294901760
      %v2578 = vsub.f32 %v425, %v2577
      %v2579 = vand.u32 %v2578, 4294901760
      %2580 = vmatmul.f32.gmra.mxu0 %v2579
      %v2581 = vpop.f32.mrf.mxu0
      %v2582 = vadd.f32 %v2385, %v2581
      %v2583 = vand.u32 %v426, 4294901760
      %v2584 = vsub.f32 %v426, %v2583
      %v2585 = vand.u32 %v2584, 4294901760
      %2586 = vmatmul.f32.gmra.mxu0 %v2585
      %v2587 = vpop.f32.mrf.mxu0
      %v2588 = vadd.f32 %v2390, %v2587
      %v2589 = vand.u32 %v427, 4294901760
      %v2590 = vsub.f32 %v427, %v2589
      %v2591 = vand.u32 %v2590, 4294901760
      %2592 = vmatmul.f32.gmra.mxu0 %v2591
      %v2593 = vpop.f32.mrf.mxu0
      %v2594 = vadd.f32 %v2395, %v2593
      %v2595 = vand.u32 %v428, 4294901760
      %v2596 = vsub.f32 %v428, %v2595
      %v2597 = vand.u32 %v2596, 4294901760
      %2598 = vmatmul.f32.gmra.mxu0 %v2597
      %v2599 = vpop.f32.mrf.mxu0
      %v2600 = vadd.f32 %v2400, %v2599
      %v2601 = vand.u32 %v429, 4294901760
      %v2602 = vsub.f32 %v429, %v2601
      %v2603 = vand.u32 %v2602, 4294901760
      %2604 = vmatmul.f32.gmra.mxu0 %v2603
      %v2605 = vpop.f32.mrf.mxu0
      %v2606 = vadd.f32 %v2405, %v2605
      %v2607 = vand.u32 %v430, 4294901760
      %v2608 = vsub.f32 %v430, %v2607
      %v2609 = vand.u32 %v2608, 4294901760
      %2610 = vmatmul.f32.gmra.mxu0 %v2609
      %v2611 = vpop.f32.mrf.mxu0
      %v2612 = vadd.f32 %v2410, %v2611
      %v2613 = vand.u32 %v431, 4294901760
      %v2614 = vsub.f32 %v431, %v2613
      %v2615 = vand.u32 %v2614, 4294901760
      %2616 = vmatmul.f32.gmra.mxu0 %v2615
      %v2617 = vpop.f32.mrf.mxu0
      %v2618 = vadd.f32 %v2415, %v2617
      %v2619 = vand.u32 %v432, 4294901760
      %v2620 = vsub.f32 %v432, %v2619
      %v2621 = vand.u32 %v2620, 4294901760
      %2622 = vmatmul.f32.gmra.mxu0 %v2621
      %v2623 = vpop.f32.mrf.mxu0
      %v2624 = vadd.f32 %v2420, %v2623
      %v2625 = vand.u32 %v433, 4294901760
      %v2626 = vsub.f32 %v433, %v2625
      %v2627 = vand.u32 %v2626, 4294901760
      %2628 = vmatmul.f32.gmra.mxu0 %v2627
      %v2629 = vpop.f32.mrf.mxu0
      %v2630 = vadd.f32 %v2425, %v2629
      %v2631 = vand.u32 %v434, 4294901760
      %v2632 = vsub.f32 %v434, %v2631
      %v2633 = vand.u32 %v2632, 4294901760
      %2634 = vmatmul.f32.gmra.mxu0 %v2633
      %v2635 = vpop.f32.mrf.mxu0
      %v2636 = vadd.f32 %v2430, %v2635
      %v2637 = vand.u32 %v435, 4294901760
      %v2638 = vsub.f32 %v435, %v2637
      %v2639 = vand.u32 %v2638, 4294901760
      %2640 = vmatmul.f32.gmra.mxu0 %v2639
      %v2641 = vpop.f32.mrf.mxu0
      %v2642 = vadd.f32 %v2435, %v2641
      %v2643 = vand.u32 %v436, 4294901760
      %v2644 = vsub.f32 %v436, %v2643
      %v2645 = vand.u32 %v2644, 4294901760
      %2646 = vmatmul.f32.gmra.mxu0 %v2645
      %v2647 = vpop.f32.mrf.mxu0
      %v2648 = vadd.f32 %v2440, %v2647
      %v2649 = vand.u32 %v437, 4294901760
      %v2650 = vsub.f32 %v437, %v2649
      %v2651 = vand.u32 %v2650, 4294901760
      %2652 = vmatmul.f32.gmra.mxu0 %v2651
      %v2653 = vpop.f32.mrf.mxu0
      %v2654 = vadd.f32 %v2445, %v2653
      %v2655 = vand.u32 %v438, 4294901760
      %v2656 = vsub.f32 %v438, %v2655
      %v2657 = vand.u32 %v2656, 4294901760
      %2658 = vmatmul.f32.gmra.mxu0 %v2657
      %v2659 = vpop.f32.mrf.mxu0
      %v2660 = vadd.f32 %v2450, %v2659
      %v2661 = vand.u32 %v439, 4294901760
      %v2662 = vsub.f32 %v439, %v2661
      %v2663 = vand.u32 %v2662, 4294901760
      %2664 = vmatmul.f32.gmra.mxu0 %v2663
      %v2665 = vpop.f32.mrf.mxu0
      %v2666 = vadd.f32 %v2455, %v2665
      %v2667 = vand.u32 %v440, 4294901760
      %v2668 = vsub.f32 %v440, %v2667
      %v2669 = vand.u32 %v2668, 4294901760
      %2670 = vmatmul.f32.gmra.mxu0 %v2669
      %v2671 = vpop.f32.mrf.mxu0
      %v2672 = vadd.f32 %v2460, %v2671
      %v2673 = vand.u32 %v441, 4294901760
      %v2674 = vsub.f32 %v441, %v2673
      %v2675 = vand.u32 %v2674, 4294901760
      %2676 = vmatmul.f32.gmra.mxu0 %v2675
      %v2677 = vpop.f32.mrf.mxu0
      %v2678 = vadd.f32 %v2465, %v2677
      %v2679 = vand.u32 %v442, 4294901760
      %v2680 = vsub.f32 %v442, %v2679
      %v2681 = vand.u32 %v2680, 4294901760
      %2682 = vmatmul.f32.gmra.mxu0 %v2681
      %v2683 = vpop.f32.mrf.mxu0
      %v2684 = vadd.f32 %v2470, %v2683
      %v2685 = vand.u32 %v443, 4294901760
      %v2686 = vsub.f32 %v443, %v2685
      %v2687 = vand.u32 %v2686, 4294901760
      %2688 = vmatmul.f32.gmra.mxu0 %v2687
      %v2689 = vpop.f32.mrf.mxu0
      %v2690 = vadd.f32 %v2475, %v2689
      %v2691 = vand.u32 %v444, 4294901760
      %v2692 = vsub.f32 %v444, %v2691
      %v2693 = vand.u32 %v2692, 4294901760
      %2694 = vmatmul.f32.gmra.mxu0 %v2693
      %v2695 = vpop.f32.mrf.mxu0
      %v2696 = vadd.f32 %v2480, %v2695
      %v2697 = vand.u32 %v445, 4294901760
      %v2698 = vsub.f32 %v445, %v2697
      %v2699 = vand.u32 %v2698, 4294901760
      %2700 = vmatmul.f32.gmra.mxu0 %v2699
      %v2701 = vpop.f32.mrf.mxu0
      %v2702 = vadd.f32 %v2485, %v2701
      %v2703 = vand.u32 %v446, 4294901760
      %v2704 = vsub.f32 %v446, %v2703
      %v2705 = vand.u32 %v2704, 4294901760
      %2706 = vmatmul.f32.gmra.mxu0 %v2705
      %v2707 = vpop.f32.mrf.mxu0
      %v2708 = vadd.f32 %v2490, %v2707
      %v2709 = vand.u32 %v447, 4294901760
      %v2710 = vsub.f32 %v447, %v2709
      %v2711 = vand.u32 %v2710, 4294901760
      %2712 = vmatmul.f32.gmra.mxu0 %v2711
      %v2713 = vpop.f32.mrf.mxu0
      %v2714 = vadd.f32 %v2495, %v2713
      %v2715 = vand.u32 %v448, 4294901760
      %v2716 = vsub.f32 %v448, %v2715
      %v2717 = vand.u32 %v2716, 4294901760
      %2718 = vmatmul.f32.gmra.mxu0 %v2717
      %v2719 = vpop.f32.mrf.mxu0
      %v2720 = vadd.f32 %v2500, %v2719
      %v2721 = vand.u32 %v449, 4294901760
      %v2722 = vsub.f32 %v449, %v2721
      %v2723 = vand.u32 %v2722, 4294901760
      %2724 = vmatmul.f32.gmra.mxu0 %v2723
      %v2725 = vpop.f32.mrf.mxu0
      %v2726 = vadd.f32 %v2505, %v2725
      %v2727 = vand.u32 %v450, 4294901760
      %v2728 = vsub.f32 %v450, %v2727
      %v2729 = vand.u32 %v2728, 4294901760
      %2730 = vmatmul.f32.gmra.mxu0 %v2729
      %v2731 = vpop.f32.mrf.mxu0
      %v2732 = vadd.f32 %v2510, %v2731
      %v2733 = vand.u32 %v451, 4294901760
      %v2734 = vsub.f32 %v451, %v2733
      %v2735 = vand.u32 %v2734, 4294901760
      %2736 = vmatmul.f32.gmra.mxu0 %v2735
      %v2737 = vpop.f32.mrf.mxu0
      %v2738 = vadd.f32 %v2515, %v2737
      %v2739 = vand.u32 %v452, 4294901760
      %v2740 = vsub.f32 %v452, %v2739
      %v2741 = vand.u32 %v2740, 4294901760
      %2742 = vmatmul.f32.gmra.mxu0 %v2741
      %v2743 = vpop.f32.mrf.mxu0
      %v2744 = vadd.f32 %v2520, %v2743
      %v2745 = vand.u32 %v453, 4294901760
      %v2746 = vsub.f32 %v453, %v2745
      %v2747 = vand.u32 %v2746, 4294901760
      %2748 = vmatmul.f32.gmra.mxu0 %v2747
      %v2749 = vpop.f32.mrf.mxu0
      %v2750 = vadd.f32 %v2525, %v2749
      %2751 = vdwg.mxu0
      %v2752 = vand.u32 %v500, 4294901760
      %v2753 = vsub.f32 %v500, %v2752
      %v2754 = vand.u32 %v2753, 4294901760
      %2755 = vmatpush.msra.mxu0 %v2754
      %v2756 = vand.u32 %v497, 4294901760
      %v2757 = vsub.f32 %v497, %v2756
      %v2758 = vand.u32 %v2757, 4294901760
      %2759 = vmatpush.msra.mxu0 %v2758
      %v2760 = vand.u32 %v494, 4294901760
      %v2761 = vsub.f32 %v494, %v2760
      %v2762 = vand.u32 %v2761, 4294901760
      %2763 = vmatpush.msra.mxu0 %v2762
      %v2764 = vand.u32 %v491, 4294901760
      %v2765 = vsub.f32 %v491, %v2764
      %v2766 = vand.u32 %v2765, 4294901760
      %2767 = vmatpush.msra.mxu0 %v2766
      %v2768 = vand.u32 %v488, 4294901760
      %v2769 = vsub.f32 %v488, %v2768
      %v2770 = vand.u32 %v2769, 4294901760
      %2771 = vmatpush.msra.mxu0 %v2770
      %v2772 = vand.u32 %v485, 4294901760
      %v2773 = vsub.f32 %v485, %v2772
      %v2774 = vand.u32 %v2773, 4294901760
      %2775 = vmatpush.msra.mxu0 %v2774
      %v2776 = vand.u32 %v482, 4294901760
      %v2777 = vsub.f32 %v482, %v2776
      %v2778 = vand.u32 %v2777, 4294901760
      %2779 = vmatpush.msra.mxu0 %v2778
      %v2780 = vand.u32 %v479, 4294901760
      %v2781 = vsub.f32 %v479, %v2780
      %v2782 = vand.u32 %v2781, 4294901760
      %2783 = vmatpush.msra.mxu0 %v2782
      %v2784 = vand.u32 %v476, 4294901760
      %v2785 = vsub.f32 %v476, %v2784
      %v2786 = vand.u32 %v2785, 4294901760
      %2787 = vmatpush.msra.mxu0 %v2786
      %v2788 = vand.u32 %v473, 4294901760
      %v2789 = vsub.f32 %v473, %v2788
      %v2790 = vand.u32 %v2789, 4294901760
      %2791 = vmatpush.msra.mxu0 %v2790
      %v2792 = vand.u32 %v470, 4294901760
      %v2793 = vsub.f32 %v470, %v2792
      %v2794 = vand.u32 %v2793, 4294901760
      %2795 = vmatpush.msra.mxu0 %v2794
      %v2796 = vand.u32 %v467, 4294901760
      %v2797 = vsub.f32 %v467, %v2796
      %v2798 = vand.u32 %v2797, 4294901760
      %2799 = vmatpush.msra.mxu0 %v2798
      %v2800 = vand.u32 %v464, 4294901760
      %v2801 = vsub.f32 %v464, %v2800
      %v2802 = vand.u32 %v2801, 4294901760
      %2803 = vmatpush.msra.mxu0 %v2802
      %v2804 = vand.u32 %v461, 4294901760
      %v2805 = vsub.f32 %v461, %v2804
      %v2806 = vand.u32 %v2805, 4294901760
      %2807 = vmatpush.msra.mxu0 %v2806
      %v2808 = vand.u32 %v458, 4294901760
      %v2809 = vsub.f32 %v458, %v2808
      %v2810 = vand.u32 %v2809, 4294901760
      %2811 = vmatpush.msra.mxu0 %v2810
      %v2812 = vand.u32 %v455, 4294901760
      %v2813 = vsub.f32 %v455, %v2812
      %v2814 = vand.u32 %v2813, 4294901760
      %2815 = vmatpush.msra.mxu0 %v2814
      %v2816 = vand.u32 %v422, 4294901760
      %2817 = vmatmul.f32.gmra.mxu0 %v2816
      %v2818 = vpop.f32.mrf.mxu0
      %v2819 = vadd.f32 %v2564, %v2818
      %v2820 = vand.u32 %v423, 4294901760
      %2821 = vmatmul.f32.gmra.mxu0 %v2820
      %v2822 = vpop.f32.mrf.mxu0
      %v2823 = vadd.f32 %v2570, %v2822
      %v2824 = vand.u32 %v424, 4294901760
      %2825 = vmatmul.f32.gmra.mxu0 %v2824
      %v2826 = vpop.f32.mrf.mxu0
      %v2827 = vadd.f32 %v2576, %v2826
      %v2828 = vand.u32 %v425, 4294901760
      %2829 = vmatmul.f32.gmra.mxu0 %v2828
      %v2830 = vpop.f32.mrf.mxu0
      %v2831 = vadd.f32 %v2582, %v2830
      %v2832 = vand.u32 %v426, 4294901760
      %2833 = vmatmul.f32.gmra.mxu0 %v2832
      %v2834 = vpop.f32.mrf.mxu0
      %v2835 = vadd.f32 %v2588, %v2834
      %v2836 = vand.u32 %v427, 4294901760
      %2837 = vmatmul.f32.gmra.mxu0 %v2836
      %v2838 = vpop.f32.mrf.mxu0
      %v2839 = vadd.f32 %v2594, %v2838
      %v2840 = vand.u32 %v428, 4294901760
      %2841 = vmatmul.f32.gmra.mxu0 %v2840
      %v2842 = vpop.f32.mrf.mxu0
      %v2843 = vadd.f32 %v2600, %v2842
      %v2844 = vand.u32 %v429, 4294901760
      %2845 = vmatmul.f32.gmra.mxu0 %v2844
      %v2846 = vpop.f32.mrf.mxu0
      %v2847 = vadd.f32 %v2606, %v2846
      %v2848 = vand.u32 %v430, 4294901760
      %2849 = vmatmul.f32.gmra.mxu0 %v2848
      %v2850 = vpop.f32.mrf.mxu0
      %v2851 = vadd.f32 %v2612, %v2850
      %v2852 = vand.u32 %v431, 4294901760
      %2853 = vmatmul.f32.gmra.mxu0 %v2852
      %v2854 = vpop.f32.mrf.mxu0
      %v2855 = vadd.f32 %v2618, %v2854
      %v2856 = vand.u32 %v432, 4294901760
      %2857 = vmatmul.f32.gmra.mxu0 %v2856
      %v2858 = vpop.f32.mrf.mxu0
      %v2859 = vadd.f32 %v2624, %v2858
      %v2860 = vand.u32 %v433, 4294901760
      %2861 = vmatmul.f32.gmra.mxu0 %v2860
      %v2862 = vpop.f32.mrf.mxu0
      %v2863 = vadd.f32 %v2630, %v2862
      %v2864 = vand.u32 %v434, 4294901760
      %2865 = vmatmul.f32.gmra.mxu0 %v2864
      %v2866 = vpop.f32.mrf.mxu0
      %v2867 = vadd.f32 %v2636, %v2866
      %v2868 = vand.u32 %v435, 4294901760
      %2869 = vmatmul.f32.gmra.mxu0 %v2868
      %v2870 = vpop.f32.mrf.mxu0
      %v2871 = vadd.f32 %v2642, %v2870
      %v2872 = vand.u32 %v436, 4294901760
      %2873 = vmatmul.f32.gmra.mxu0 %v2872
      %v2874 = vpop.f32.mrf.mxu0
      %v2875 = vadd.f32 %v2648, %v2874
      %v2876 = vand.u32 %v437, 4294901760
      %2877 = vmatmul.f32.gmra.mxu0 %v2876
      %v2878 = vpop.f32.mrf.mxu0
      %v2879 = vadd.f32 %v2654, %v2878
      %v2880 = vand.u32 %v438, 4294901760
      %2881 = vmatmul.f32.gmra.mxu0 %v2880
      %v2882 = vpop.f32.mrf.mxu0
      %v2883 = vadd.f32 %v2660, %v2882
      %v2884 = vand.u32 %v439, 4294901760
      %2885 = vmatmul.f32.gmra.mxu0 %v2884
      %v2886 = vpop.f32.mrf.mxu0
      %v2887 = vadd.f32 %v2666, %v2886
      %v2888 = vand.u32 %v440, 4294901760
      %2889 = vmatmul.f32.gmra.mxu0 %v2888
      %v2890 = vpop.f32.mrf.mxu0
      %v2891 = vadd.f32 %v2672, %v2890
      %v2892 = vand.u32 %v441, 4294901760
      %2893 = vmatmul.f32.gmra.mxu0 %v2892
      %v2894 = vpop.f32.mrf.mxu0
      %v2895 = vadd.f32 %v2678, %v2894
      %v2896 = vand.u32 %v442, 4294901760
      %2897 = vmatmul.f32.gmra.mxu0 %v2896
      %v2898 = vpop.f32.mrf.mxu0
      %v2899 = vadd.f32 %v2684, %v2898
      %v2900 = vand.u32 %v443, 4294901760
      %2901 = vmatmul.f32.gmra.mxu0 %v2900
      %v2902 = vpop.f32.mrf.mxu0
      %v2903 = vadd.f32 %v2690, %v2902
      %v2904 = vand.u32 %v444, 4294901760
      %2905 = vmatmul.f32.gmra.mxu0 %v2904
      %v2906 = vpop.f32.mrf.mxu0
      %v2907 = vadd.f32 %v2696, %v2906
      %v2908 = vand.u32 %v445, 4294901760
      %2909 = vmatmul.f32.gmra.mxu0 %v2908
      %v2910 = vpop.f32.mrf.mxu0
      %v2911 = vadd.f32 %v2702, %v2910
      %v2912 = vand.u32 %v446, 4294901760
      %2913 = vmatmul.f32.gmra.mxu0 %v2912
      %v2914 = vpop.f32.mrf.mxu0
      %v2915 = vadd.f32 %v2708, %v2914
      %v2916 = vand.u32 %v447, 4294901760
      %2917 = vmatmul.f32.gmra.mxu0 %v2916
      %v2918 = vpop.f32.mrf.mxu0
      %v2919 = vadd.f32 %v2714, %v2918
      %v2920 = vand.u32 %v448, 4294901760
      %2921 = vmatmul.f32.gmra.mxu0 %v2920
      %v2922 = vpop.f32.mrf.mxu0
      %v2923 = vadd.f32 %v2720, %v2922
      %v2924 = vand.u32 %v449, 4294901760
      %2925 = vmatmul.f32.gmra.mxu0 %v2924
      %v2926 = vpop.f32.mrf.mxu0
      %v2927 = vadd.f32 %v2726, %v2926
      %v2928 = vand.u32 %v450, 4294901760
      %2929 = vmatmul.f32.gmra.mxu0 %v2928
      %v2930 = vpop.f32.mrf.mxu0
      %v2931 = vadd.f32 %v2732, %v2930
      %v2932 = vand.u32 %v451, 4294901760
      %2933 = vmatmul.f32.gmra.mxu0 %v2932
      %v2934 = vpop.f32.mrf.mxu0
      %v2935 = vadd.f32 %v2738, %v2934
      %v2936 = vand.u32 %v452, 4294901760
      %2937 = vmatmul.f32.gmra.mxu0 %v2936
      %v2938 = vpop.f32.mrf.mxu0
      %v2939 = vadd.f32 %v2744, %v2938
      %v2940 = vand.u32 %v453, 4294901760
      %2941 = vmatmul.f32.gmra.mxu0 %v2940
      %v2942 = vpop.f32.mrf.mxu0
      %v2943 = vadd.f32 %v2750, %v2942
      %2944 = vdwg.mxu0
      %v2945 = vand.u32 %v500, 4294901760
      %2946 = vmatpush.msra.mxu0 %v2945
      %v2947 = vand.u32 %v497, 4294901760
      %2948 = vmatpush.msra.mxu0 %v2947
      %v2949 = vand.u32 %v494, 4294901760
      %2950 = vmatpush.msra.mxu0 %v2949
      %v2951 = vand.u32 %v491, 4294901760
      %2952 = vmatpush.msra.mxu0 %v2951
      %v2953 = vand.u32 %v488, 4294901760
      %2954 = vmatpush.msra.mxu0 %v2953
      %v2955 = vand.u32 %v485, 4294901760
      %2956 = vmatpush.msra.mxu0 %v2955
      %v2957 = vand.u32 %v482, 4294901760
      %2958 = vmatpush.msra.mxu0 %v2957
      %v2959 = vand.u32 %v479, 4294901760
      %2960 = vmatpush.msra.mxu0 %v2959
      %v2961 = vand.u32 %v476, 4294901760
      %2962 = vmatpush.msra.mxu0 %v2961
      %v2963 = vand.u32 %v473, 4294901760
      %2964 = vmatpush.msra.mxu0 %v2963
      %v2965 = vand.u32 %v470, 4294901760
      %2966 = vmatpush.msra.mxu0 %v2965
      %v2967 = vand.u32 %v467, 4294901760
      %2968 = vmatpush.msra.mxu0 %v2967
      %v2969 = vand.u32 %v464, 4294901760
      %2970 = vmatpush.msra.mxu0 %v2969
      %v2971 = vand.u32 %v461, 4294901760
      %2972 = vmatpush.msra.mxu0 %v2971
      %v2973 = vand.u32 %v458, 4294901760
      %2974 = vmatpush.msra.mxu0 %v2973
      %v2975 = vand.u32 %v455, 4294901760
      %2976 = vmatpush.msra.mxu0 %v2975
      %v2977 = vand.u32 %v422, 4294901760
      %2978 = vmatmul.f32.gmra.mxu0 %v2977
      %v2979 = vpop.f32.mrf.mxu0
      %v2980 = vadd.f32 %v2819, %v2979
      %v2981 = vand.u32 %v423, 4294901760
      %2982 = vmatmul.f32.gmra.mxu0 %v2981
      %v2983 = vpop.f32.mrf.mxu0
      %v2984 = vadd.f32 %v2823, %v2983
      %v2985 = vand.u32 %v424, 4294901760
      %2986 = vmatmul.f32.gmra.mxu0 %v2985
      %v2987 = vpop.f32.mrf.mxu0
      %v2988 = vadd.f32 %v2827, %v2987
      %v2989 = vand.u32 %v425, 4294901760
      %2990 = vmatmul.f32.gmra.mxu0 %v2989
      %v2991 = vpop.f32.mrf.mxu0
      %v2992 = vadd.f32 %v2831, %v2991
      %v2993 = vand.u32 %v426, 4294901760
      %2994 = vmatmul.f32.gmra.mxu0 %v2993
      %v2995 = vpop.f32.mrf.mxu0
      %v2996 = vadd.f32 %v2835, %v2995
      %v2997 = vand.u32 %v427, 4294901760
      %2998 = vmatmul.f32.gmra.mxu0 %v2997
      %v2999 = vpop.f32.mrf.mxu0
      %v3000 = vadd.f32 %v2839, %v2999
      %v3001 = vand.u32 %v428, 4294901760
      %3002 = vmatmul.f32.gmra.mxu0 %v3001
      %v3003 = vpop.f32.mrf.mxu0
      %v3004 = vadd.f32 %v2843, %v3003
      %v3005 = vand.u32 %v429, 4294901760
      %3006 = vmatmul.f32.gmra.mxu0 %v3005
      %v3007 = vpop.f32.mrf.mxu0
      %v3008 = vadd.f32 %v2847, %v3007
      %v3009 = vand.u32 %v430, 4294901760
      %3010 = vmatmul.f32.gmra.mxu0 %v3009
      %v3011 = vpop.f32.mrf.mxu0
      %v3012 = vadd.f32 %v2851, %v3011
      %v3013 = vand.u32 %v431, 4294901760
      %3014 = vmatmul.f32.gmra.mxu0 %v3013
      %v3015 = vpop.f32.mrf.mxu0
      %v3016 = vadd.f32 %v2855, %v3015
      %v3017 = vand.u32 %v432, 4294901760
      %3018 = vmatmul.f32.gmra.mxu0 %v3017
      %v3019 = vpop.f32.mrf.mxu0
      %v3020 = vadd.f32 %v2859, %v3019
      %v3021 = vand.u32 %v433, 4294901760
      %3022 = vmatmul.f32.gmra.mxu0 %v3021
      %v3023 = vpop.f32.mrf.mxu0
      %v3024 = vadd.f32 %v2863, %v3023
      %v3025 = vand.u32 %v434, 4294901760
      %3026 = vmatmul.f32.gmra.mxu0 %v3025
      %v3027 = vpop.f32.mrf.mxu0
      %v3028 = vadd.f32 %v2867, %v3027
      %v3029 = vand.u32 %v435, 4294901760
      %3030 = vmatmul.f32.gmra.mxu0 %v3029
      %v3031 = vpop.f32.mrf.mxu0
      %v3032 = vadd.f32 %v2871, %v3031
      %v3033 = vand.u32 %v436, 4294901760
      %3034 = vmatmul.f32.gmra.mxu0 %v3033
      %v3035 = vpop.f32.mrf.mxu0
      %v3036 = vadd.f32 %v2875, %v3035
      %v3037 = vand.u32 %v437, 4294901760
      %3038 = vmatmul.f32.gmra.mxu0 %v3037
      %v3039 = vpop.f32.mrf.mxu0
      %v3040 = vadd.f32 %v2879, %v3039
      %v3041 = vand.u32 %v438, 4294901760
      %3042 = vmatmul.f32.gmra.mxu0 %v3041
      %v3043 = vpop.f32.mrf.mxu0
      %v3044 = vadd.f32 %v2883, %v3043
      %v3045 = vand.u32 %v439, 4294901760
      %3046 = vmatmul.f32.gmra.mxu0 %v3045
      %v3047 = vpop.f32.mrf.mxu0
      %v3048 = vadd.f32 %v2887, %v3047
      %v3049 = vand.u32 %v440, 4294901760
      %3050 = vmatmul.f32.gmra.mxu0 %v3049
      %v3051 = vpop.f32.mrf.mxu0
      %v3052 = vadd.f32 %v2891, %v3051
      %v3053 = vand.u32 %v441, 4294901760
      %3054 = vmatmul.f32.gmra.mxu0 %v3053
      %v3055 = vpop.f32.mrf.mxu0
      %v3056 = vadd.f32 %v2895, %v3055
      %v3057 = vand.u32 %v442, 4294901760
      %3058 = vmatmul.f32.gmra.mxu0 %v3057
      %v3059 = vpop.f32.mrf.mxu0
      %v3060 = vadd.f32 %v2899, %v3059
      %v3061 = vand.u32 %v443, 4294901760
      %3062 = vmatmul.f32.gmra.mxu0 %v3061
      %v3063 = vpop.f32.mrf.mxu0
      %v3064 = vadd.f32 %v2903, %v3063
      %v3065 = vand.u32 %v444, 4294901760
      %3066 = vmatmul.f32.gmra.mxu0 %v3065
      %v3067 = vpop.f32.mrf.mxu0
      %v3068 = vadd.f32 %v2907, %v3067
      %v3069 = vand.u32 %v445, 4294901760
      %3070 = vmatmul.f32.gmra.mxu0 %v3069
      %v3071 = vpop.f32.mrf.mxu0
      %v3072 = vadd.f32 %v2911, %v3071
      %v3073 = vand.u32 %v446, 4294901760
      %3074 = vmatmul.f32.gmra.mxu0 %v3073
      %v3075 = vpop.f32.mrf.mxu0
      %v3076 = vadd.f32 %v2915, %v3075
      %v3077 = vand.u32 %v447, 4294901760
      %3078 = vmatmul.f32.gmra.mxu0 %v3077
      %v3079 = vpop.f32.mrf.mxu0
      %v3080 = vadd.f32 %v2919, %v3079
      %v3081 = vand.u32 %v448, 4294901760
      %3082 = vmatmul.f32.gmra.mxu0 %v3081
      %v3083 = vpop.f32.mrf.mxu0
      %v3084 = vadd.f32 %v2923, %v3083
      %v3085 = vand.u32 %v449, 4294901760
      %3086 = vmatmul.f32.gmra.mxu0 %v3085
      %v3087 = vpop.f32.mrf.mxu0
      %v3088 = vadd.f32 %v2927, %v3087
      %v3089 = vand.u32 %v450, 4294901760
      %3090 = vmatmul.f32.gmra.mxu0 %v3089
      %v3091 = vpop.f32.mrf.mxu0
      %v3092 = vadd.f32 %v2931, %v3091
      %v3093 = vand.u32 %v451, 4294901760
      %3094 = vmatmul.f32.gmra.mxu0 %v3093
      %v3095 = vpop.f32.mrf.mxu0
      %v3096 = vadd.f32 %v2935, %v3095
      %v3097 = vand.u32 %v452, 4294901760
      %3098 = vmatmul.f32.gmra.mxu0 %v3097
      %v3099 = vpop.f32.mrf.mxu0
      %v3100 = vadd.f32 %v2939, %v3099
      %v3101 = vand.u32 %v453, 4294901760
      %3102 = vmatmul.f32.gmra.mxu0 %v3101
      %v3103 = vpop.f32.mrf.mxu0
      %v3104 = vadd.f32 %v2943, %v3103
      %3105 = vdwg.mxu0
      %v3106 = vand.u32 %v501, 4294901760
      %3107 = vmatpush.msra.mxu0 %v3106
      %v3108 = vand.u32 %v498, 4294901760
      %3109 = vmatpush.msra.mxu0 %v3108
      %v3110 = vand.u32 %v495, 4294901760
      %3111 = vmatpush.msra.mxu0 %v3110
      %v3112 = vand.u32 %v492, 4294901760
      %3113 = vmatpush.msra.mxu0 %v3112
      %v3114 = vand.u32 %v489, 4294901760
      %3115 = vmatpush.msra.mxu0 %v3114
      %v3116 = vand.u32 %v486, 4294901760
      %3117 = vmatpush.msra.mxu0 %v3116
      %v3118 = vand.u32 %v483, 4294901760
      %3119 = vmatpush.msra.mxu0 %v3118
      %v3120 = vand.u32 %v480, 4294901760
      %3121 = vmatpush.msra.mxu0 %v3120
      %v3122 = vand.u32 %v477, 4294901760
      %3123 = vmatpush.msra.mxu0 %v3122
      %v3124 = vand.u32 %v474, 4294901760
      %3125 = vmatpush.msra.mxu0 %v3124
      %v3126 = vand.u32 %v471, 4294901760
      %3127 = vmatpush.msra.mxu0 %v3126
      %v3128 = vand.u32 %v468, 4294901760
      %3129 = vmatpush.msra.mxu0 %v3128
      %v3130 = vand.u32 %v465, 4294901760
      %3131 = vmatpush.msra.mxu0 %v3130
      %v3132 = vand.u32 %v462, 4294901760
      %3133 = vmatpush.msra.mxu0 %v3132
      %v3134 = vand.u32 %v459, 4294901760
      %3135 = vmatpush.msra.mxu0 %v3134
      %v3136 = vand.u32 %v456, 4294901760
      %3137 = vmatpush.msra.mxu0 %v3136
      %v3138 = vand.u32 %v422, 4294901760
      %v3139 = vsub.f32 %v422, %v3138
      %v3140 = vand.u32 %v3139, 4294901760
      %v3141 = vsub.f32 %v3139, %v3140
      %v3142 = vand.u32 %v3141, 4294901760
      %3143 = vmatmul.f32.gmra.mxu0 %v3142
      %v3144 = vpop.f32.mrf.mxu0
      %v3145 = vadd.f32 0.0, %v3144
      %v3146 = vand.u32 %v423, 4294901760
      %v3147 = vsub.f32 %v423, %v3146
      %v3148 = vand.u32 %v3147, 4294901760
      %v3149 = vsub.f32 %v3147, %v3148
      %v3150 = vand.u32 %v3149, 4294901760
      %3151 = vmatmul.f32.gmra.mxu0 %v3150
      %v3152 = vpop.f32.mrf.mxu0
      %v3153 = vadd.f32 0.0, %v3152
      %v3154 = vand.u32 %v424, 4294901760
      %v3155 = vsub.f32 %v424, %v3154
      %v3156 = vand.u32 %v3155, 4294901760
      %v3157 = vsub.f32 %v3155, %v3156
      %v3158 = vand.u32 %v3157, 4294901760
      %3159 = vmatmul.f32.gmra.mxu0 %v3158
      %v3160 = vpop.f32.mrf.mxu0
      %v3161 = vadd.f32 0.0, %v3160
      %v3162 = vand.u32 %v425, 4294901760
      %v3163 = vsub.f32 %v425, %v3162
      %v3164 = vand.u32 %v3163, 4294901760
      %v3165 = vsub.f32 %v3163, %v3164
      %v3166 = vand.u32 %v3165, 4294901760
      %3167 = vmatmul.f32.gmra.mxu0 %v3166
      %v3168 = vpop.f32.mrf.mxu0
      %v3169 = vadd.f32 0.0, %v3168
      %v3170 = vand.u32 %v426, 4294901760
      %v3171 = vsub.f32 %v426, %v3170
      %v3172 = vand.u32 %v3171, 4294901760
      %v3173 = vsub.f32 %v3171, %v3172
      %v3174 = vand.u32 %v3173, 4294901760
      %3175 = vmatmul.f32.gmra.mxu0 %v3174
      %v3176 = vpop.f32.mrf.mxu0
      %v3177 = vadd.f32 0.0, %v3176
      %v3178 = vand.u32 %v427, 4294901760
      %v3179 = vsub.f32 %v427, %v3178
      %v3180 = vand.u32 %v3179, 4294901760
      %v3181 = vsub.f32 %v3179, %v3180
      %v3182 = vand.u32 %v3181, 4294901760
      %3183 = vmatmul.f32.gmra.mxu0 %v3182
      %v3184 = vpop.f32.mrf.mxu0
      %v3185 = vadd.f32 0.0, %v3184
      %v3186 = vand.u32 %v428, 4294901760
      %v3187 = vsub.f32 %v428, %v3186
      %v3188 = vand.u32 %v3187, 4294901760
      %v3189 = vsub.f32 %v3187, %v3188
      %v3190 = vand.u32 %v3189, 4294901760
      %3191 = vmatmul.f32.gmra.mxu0 %v3190
      %v3192 = vpop.f32.mrf.mxu0
      %v3193 = vadd.f32 0.0, %v3192
      %v3194 = vand.u32 %v429, 4294901760
      %v3195 = vsub.f32 %v429, %v3194
      %v3196 = vand.u32 %v3195, 4294901760
      %v3197 = vsub.f32 %v3195, %v3196
      %v3198 = vand.u32 %v3197, 4294901760
      %3199 = vmatmul.f32.gmra.mxu0 %v3198
      %v3200 = vpop.f32.mrf.mxu0
      %v3201 = vadd.f32 0.0, %v3200
      %v3202 = vand.u32 %v430, 4294901760
      %v3203 = vsub.f32 %v430, %v3202
      %v3204 = vand.u32 %v3203, 4294901760
      %v3205 = vsub.f32 %v3203, %v3204
      %v3206 = vand.u32 %v3205, 4294901760
      %3207 = vmatmul.f32.gmra.mxu0 %v3206
      %v3208 = vpop.f32.mrf.mxu0
      %v3209 = vadd.f32 0.0, %v3208
      %v3210 = vand.u32 %v431, 4294901760
      %v3211 = vsub.f32 %v431, %v3210
      %v3212 = vand.u32 %v3211, 4294901760
      %v3213 = vsub.f32 %v3211, %v3212
      %v3214 = vand.u32 %v3213, 4294901760
      %3215 = vmatmul.f32.gmra.mxu0 %v3214
      %v3216 = vpop.f32.mrf.mxu0
      %v3217 = vadd.f32 0.0, %v3216
      %v3218 = vand.u32 %v432, 4294901760
      %v3219 = vsub.f32 %v432, %v3218
      %v3220 = vand.u32 %v3219, 4294901760
      %v3221 = vsub.f32 %v3219, %v3220
      %v3222 = vand.u32 %v3221, 4294901760
      %3223 = vmatmul.f32.gmra.mxu0 %v3222
      %v3224 = vpop.f32.mrf.mxu0
      %v3225 = vadd.f32 0.0, %v3224
      %v3226 = vand.u32 %v433, 4294901760
      %v3227 = vsub.f32 %v433, %v3226
      %v3228 = vand.u32 %v3227, 4294901760
      %v3229 = vsub.f32 %v3227, %v3228
      %v3230 = vand.u32 %v3229, 4294901760
      %3231 = vmatmul.f32.gmra.mxu0 %v3230
      %v3232 = vpop.f32.mrf.mxu0
      %v3233 = vadd.f32 0.0, %v3232
      %v3234 = vand.u32 %v434, 4294901760
      %v3235 = vsub.f32 %v434, %v3234
      %v3236 = vand.u32 %v3235, 4294901760
      %v3237 = vsub.f32 %v3235, %v3236
      %v3238 = vand.u32 %v3237, 4294901760
      %3239 = vmatmul.f32.gmra.mxu0 %v3238
      %v3240 = vpop.f32.mrf.mxu0
      %v3241 = vadd.f32 0.0, %v3240
      %v3242 = vand.u32 %v435, 4294901760
      %v3243 = vsub.f32 %v435, %v3242
      %v3244 = vand.u32 %v3243, 4294901760
      %v3245 = vsub.f32 %v3243, %v3244
      %v3246 = vand.u32 %v3245, 4294901760
      %3247 = vmatmul.f32.gmra.mxu0 %v3246
      %v3248 = vpop.f32.mrf.mxu0
      %v3249 = vadd.f32 0.0, %v3248
      %v3250 = vand.u32 %v436, 4294901760
      %v3251 = vsub.f32 %v436, %v3250
      %v3252 = vand.u32 %v3251, 4294901760
      %v3253 = vsub.f32 %v3251, %v3252
      %v3254 = vand.u32 %v3253, 4294901760
      %3255 = vmatmul.f32.gmra.mxu0 %v3254
      %v3256 = vpop.f32.mrf.mxu0
      %v3257 = vadd.f32 0.0, %v3256
      %v3258 = vand.u32 %v437, 4294901760
      %v3259 = vsub.f32 %v437, %v3258
      %v3260 = vand.u32 %v3259, 4294901760
      %v3261 = vsub.f32 %v3259, %v3260
      %v3262 = vand.u32 %v3261, 4294901760
      %3263 = vmatmul.f32.gmra.mxu0 %v3262
      %v3264 = vpop.f32.mrf.mxu0
      %v3265 = vadd.f32 0.0, %v3264
      %v3266 = vand.u32 %v438, 4294901760
      %v3267 = vsub.f32 %v438, %v3266
      %v3268 = vand.u32 %v3267, 4294901760
      %v3269 = vsub.f32 %v3267, %v3268
      %v3270 = vand.u32 %v3269, 4294901760
      %3271 = vmatmul.f32.gmra.mxu0 %v3270
      %v3272 = vpop.f32.mrf.mxu0
      %v3273 = vadd.f32 0.0, %v3272
      %v3274 = vand.u32 %v439, 4294901760
      %v3275 = vsub.f32 %v439, %v3274
      %v3276 = vand.u32 %v3275, 4294901760
      %v3277 = vsub.f32 %v3275, %v3276
      %v3278 = vand.u32 %v3277, 4294901760
      %3279 = vmatmul.f32.gmra.mxu0 %v3278
      %v3280 = vpop.f32.mrf.mxu0
      %v3281 = vadd.f32 0.0, %v3280
      %v3282 = vand.u32 %v440, 4294901760
      %v3283 = vsub.f32 %v440, %v3282
      %v3284 = vand.u32 %v3283, 4294901760
      %v3285 = vsub.f32 %v3283, %v3284
      %v3286 = vand.u32 %v3285, 4294901760
      %3287 = vmatmul.f32.gmra.mxu0 %v3286
      %v3288 = vpop.f32.mrf.mxu0
      %v3289 = vadd.f32 0.0, %v3288
      %v3290 = vand.u32 %v441, 4294901760
      %v3291 = vsub.f32 %v441, %v3290
      %v3292 = vand.u32 %v3291, 4294901760
      %v3293 = vsub.f32 %v3291, %v3292
      %v3294 = vand.u32 %v3293, 4294901760
      %3295 = vmatmul.f32.gmra.mxu0 %v3294
      %v3296 = vpop.f32.mrf.mxu0
      %v3297 = vadd.f32 0.0, %v3296
      %v3298 = vand.u32 %v442, 4294901760
      %v3299 = vsub.f32 %v442, %v3298
      %v3300 = vand.u32 %v3299, 4294901760
      %v3301 = vsub.f32 %v3299, %v3300
      %v3302 = vand.u32 %v3301, 4294901760
      %3303 = vmatmul.f32.gmra.mxu0 %v3302
      %v3304 = vpop.f32.mrf.mxu0
      %v3305 = vadd.f32 0.0, %v3304
      %v3306 = vand.u32 %v443, 4294901760
      %v3307 = vsub.f32 %v443, %v3306
      %v3308 = vand.u32 %v3307, 4294901760
      %v3309 = vsub.f32 %v3307, %v3308
      %v3310 = vand.u32 %v3309, 4294901760
      %3311 = vmatmul.f32.gmra.mxu0 %v3310
      %v3312 = vpop.f32.mrf.mxu0
      %v3313 = vadd.f32 0.0, %v3312
      %v3314 = vand.u32 %v444, 4294901760
      %v3315 = vsub.f32 %v444, %v3314
      %v3316 = vand.u32 %v3315, 4294901760
      %v3317 = vsub.f32 %v3315, %v3316
      %v3318 = vand.u32 %v3317, 4294901760
      %3319 = vmatmul.f32.gmra.mxu0 %v3318
      %v3320 = vpop.f32.mrf.mxu0
      %v3321 = vadd.f32 0.0, %v3320
      %v3322 = vand.u32 %v445, 4294901760
      %v3323 = vsub.f32 %v445, %v3322
      %v3324 = vand.u32 %v3323, 4294901760
      %v3325 = vsub.f32 %v3323, %v3324
      %v3326 = vand.u32 %v3325, 4294901760
      %3327 = vmatmul.f32.gmra.mxu0 %v3326
      %v3328 = vpop.f32.mrf.mxu0
      %v3329 = vadd.f32 0.0, %v3328
      %v3330 = vand.u32 %v446, 4294901760
      %v3331 = vsub.f32 %v446, %v3330
      %v3332 = vand.u32 %v3331, 4294901760
      %v3333 = vsub.f32 %v3331, %v3332
      %v3334 = vand.u32 %v3333, 4294901760
      %3335 = vmatmul.f32.gmra.mxu0 %v3334
      %v3336 = vpop.f32.mrf.mxu0
      %v3337 = vadd.f32 0.0, %v3336
      %v3338 = vand.u32 %v447, 4294901760
      %v3339 = vsub.f32 %v447, %v3338
      %v3340 = vand.u32 %v3339, 4294901760
      %v3341 = vsub.f32 %v3339, %v3340
      %v3342 = vand.u32 %v3341, 4294901760
      %3343 = vmatmul.f32.gmra.mxu0 %v3342
      %v3344 = vpop.f32.mrf.mxu0
      %v3345 = vadd.f32 0.0, %v3344
      %v3346 = vand.u32 %v448, 4294901760
      %v3347 = vsub.f32 %v448, %v3346
      %v3348 = vand.u32 %v3347, 4294901760
      %v3349 = vsub.f32 %v3347, %v3348
      %v3350 = vand.u32 %v3349, 4294901760
      %3351 = vmatmul.f32.gmra.mxu0 %v3350
      %v3352 = vpop.f32.mrf.mxu0
      %v3353 = vadd.f32 0.0, %v3352
      %v3354 = vand.u32 %v449, 4294901760
      %v3355 = vsub.f32 %v449, %v3354
      %v3356 = vand.u32 %v3355, 4294901760
      %v3357 = vsub.f32 %v3355, %v3356
      %v3358 = vand.u32 %v3357, 4294901760
      %3359 = vmatmul.f32.gmra.mxu0 %v3358
      %v3360 = vpop.f32.mrf.mxu0
      %v3361 = vadd.f32 0.0, %v3360
      %v3362 = vand.u32 %v450, 4294901760
      %v3363 = vsub.f32 %v450, %v3362
      %v3364 = vand.u32 %v3363, 4294901760
      %v3365 = vsub.f32 %v3363, %v3364
      %v3366 = vand.u32 %v3365, 4294901760
      %3367 = vmatmul.f32.gmra.mxu0 %v3366
      %v3368 = vpop.f32.mrf.mxu0
      %v3369 = vadd.f32 0.0, %v3368
      %v3370 = vand.u32 %v451, 4294901760
      %v3371 = vsub.f32 %v451, %v3370
      %v3372 = vand.u32 %v3371, 4294901760
      %v3373 = vsub.f32 %v3371, %v3372
      %v3374 = vand.u32 %v3373, 4294901760
      %3375 = vmatmul.f32.gmra.mxu0 %v3374
      %v3376 = vpop.f32.mrf.mxu0
      %v3377 = vadd.f32 0.0, %v3376
      %v3378 = vand.u32 %v452, 4294901760
      %v3379 = vsub.f32 %v452, %v3378
      %v3380 = vand.u32 %v3379, 4294901760
      %v3381 = vsub.f32 %v3379, %v3380
      %v3382 = vand.u32 %v3381, 4294901760
      %3383 = vmatmul.f32.gmra.mxu0 %v3382
      %v3384 = vpop.f32.mrf.mxu0
      %v3385 = vadd.f32 0.0, %v3384
      %v3386 = vand.u32 %v453, 4294901760
      %v3387 = vsub.f32 %v453, %v3386
      %v3388 = vand.u32 %v3387, 4294901760
      %v3389 = vsub.f32 %v3387, %v3388
      %v3390 = vand.u32 %v3389, 4294901760
      %3391 = vmatmul.f32.gmra.mxu0 %v3390
      %v3392 = vpop.f32.mrf.mxu0
      %v3393 = vadd.f32 0.0, %v3392
      %3394 = vdwg.mxu0
      %v3395 = vand.u32 %v501, 4294901760
      %v3396 = vsub.f32 %v501, %v3395
      %v3397 = vand.u32 %v3396, 4294901760
      %v3398 = vsub.f32 %v3396, %v3397
      %v3399 = vand.u32 %v3398, 4294901760
      %3400 = vmatpush.msra.mxu0 %v3399
      %v3401 = vand.u32 %v498, 4294901760
      %v3402 = vsub.f32 %v498, %v3401
      %v3403 = vand.u32 %v3402, 4294901760
      %v3404 = vsub.f32 %v3402, %v3403
      %v3405 = vand.u32 %v3404, 4294901760
      %3406 = vmatpush.msra.mxu0 %v3405
      %v3407 = vand.u32 %v495, 4294901760
      %v3408 = vsub.f32 %v495, %v3407
      %v3409 = vand.u32 %v3408, 4294901760
      %v3410 = vsub.f32 %v3408, %v3409
      %v3411 = vand.u32 %v3410, 4294901760
      %3412 = vmatpush.msra.mxu0 %v3411
      %v3413 = vand.u32 %v492, 4294901760
      %v3414 = vsub.f32 %v492, %v3413
      %v3415 = vand.u32 %v3414, 4294901760
      %v3416 = vsub.f32 %v3414, %v3415
      %v3417 = vand.u32 %v3416, 4294901760
      %3418 = vmatpush.msra.mxu0 %v3417
      %v3419 = vand.u32 %v489, 4294901760
      %v3420 = vsub.f32 %v489, %v3419
      %v3421 = vand.u32 %v3420, 4294901760
      %v3422 = vsub.f32 %v3420, %v3421
      %v3423 = vand.u32 %v3422, 4294901760
      %3424 = vmatpush.msra.mxu0 %v3423
      %v3425 = vand.u32 %v486, 4294901760
      %v3426 = vsub.f32 %v486, %v3425
      %v3427 = vand.u32 %v3426, 4294901760
      %v3428 = vsub.f32 %v3426, %v3427
      %v3429 = vand.u32 %v3428, 4294901760
      %3430 = vmatpush.msra.mxu0 %v3429
      %v3431 = vand.u32 %v483, 4294901760
      %v3432 = vsub.f32 %v483, %v3431
      %v3433 = vand.u32 %v3432, 4294901760
      %v3434 = vsub.f32 %v3432, %v3433
      %v3435 = vand.u32 %v3434, 4294901760
      %3436 = vmatpush.msra.mxu0 %v3435
      %v3437 = vand.u32 %v480, 4294901760
      %v3438 = vsub.f32 %v480, %v3437
      %v3439 = vand.u32 %v3438, 4294901760
      %v3440 = vsub.f32 %v3438, %v3439
      %v3441 = vand.u32 %v3440, 4294901760
      %3442 = vmatpush.msra.mxu0 %v3441
      %v3443 = vand.u32 %v477, 4294901760
      %v3444 = vsub.f32 %v477, %v3443
      %v3445 = vand.u32 %v3444, 4294901760
      %v3446 = vsub.f32 %v3444, %v3445
      %v3447 = vand.u32 %v3446, 4294901760
      %3448 = vmatpush.msra.mxu0 %v3447
      %v3449 = vand.u32 %v474, 4294901760
      %v3450 = vsub.f32 %v474, %v3449
      %v3451 = vand.u32 %v3450, 4294901760
      %v3452 = vsub.f32 %v3450, %v3451
      %v3453 = vand.u32 %v3452, 4294901760
      %3454 = vmatpush.msra.mxu0 %v3453
      %v3455 = vand.u32 %v471, 4294901760
      %v3456 = vsub.f32 %v471, %v3455
      %v3457 = vand.u32 %v3456, 4294901760
      %v3458 = vsub.f32 %v3456, %v3457
      %v3459 = vand.u32 %v3458, 4294901760
      %3460 = vmatpush.msra.mxu0 %v3459
      %v3461 = vand.u32 %v468, 4294901760
      %v3462 = vsub.f32 %v468, %v3461
      %v3463 = vand.u32 %v3462, 4294901760
      %v3464 = vsub.f32 %v3462, %v3463
      %v3465 = vand.u32 %v3464, 4294901760
      %3466 = vmatpush.msra.mxu0 %v3465
      %v3467 = vand.u32 %v465, 4294901760
      %v3468 = vsub.f32 %v465, %v3467
      %v3469 = vand.u32 %v3468, 4294901760
      %v3470 = vsub.f32 %v3468, %v3469
      %v3471 = vand.u32 %v3470, 4294901760
      %3472 = vmatpush.msra.mxu0 %v3471
      %v3473 = vand.u32 %v462, 4294901760
      %v3474 = vsub.f32 %v462, %v3473
      %v3475 = vand.u32 %v3474, 4294901760
      %v3476 = vsub.f32 %v3474, %v3475
      %v3477 = vand.u32 %v3476, 4294901760
      %3478 = vmatpush.msra.mxu0 %v3477
      %v3479 = vand.u32 %v459, 4294901760
      %v3480 = vsub.f32 %v459, %v3479
      %v3481 = vand.u32 %v3480, 4294901760
      %v3482 = vsub.f32 %v3480, %v3481
      %v3483 = vand.u32 %v3482, 4294901760
      %3484 = vmatpush.msra.mxu0 %v3483
      %v3485 = vand.u32 %v456, 4294901760
      %v3486 = vsub.f32 %v456, %v3485
      %v3487 = vand.u32 %v3486, 4294901760
      %v3488 = vsub.f32 %v3486, %v3487
      %v3489 = vand.u32 %v3488, 4294901760
      %3490 = vmatpush.msra.mxu0 %v3489
      %v3491 = vand.u32 %v422, 4294901760
      %3492 = vmatmul.f32.gmra.mxu0 %v3491
      %v3493 = vpop.f32.mrf.mxu0
      %v3494 = vadd.f32 %v3145, %v3493
      %v3495 = vand.u32 %v423, 4294901760
      %3496 = vmatmul.f32.gmra.mxu0 %v3495
      %v3497 = vpop.f32.mrf.mxu0
      %v3498 = vadd.f32 %v3153, %v3497
      %v3499 = vand.u32 %v424, 4294901760
      %3500 = vmatmul.f32.gmra.mxu0 %v3499
      %v3501 = vpop.f32.mrf.mxu0
      %v3502 = vadd.f32 %v3161, %v3501
      %v3503 = vand.u32 %v425, 4294901760
      %3504 = vmatmul.f32.gmra.mxu0 %v3503
      %v3505 = vpop.f32.mrf.mxu0
      %v3506 = vadd.f32 %v3169, %v3505
      %v3507 = vand.u32 %v426, 4294901760
      %3508 = vmatmul.f32.gmra.mxu0 %v3507
      %v3509 = vpop.f32.mrf.mxu0
      %v3510 = vadd.f32 %v3177, %v3509
      %v3511 = vand.u32 %v427, 4294901760
      %3512 = vmatmul.f32.gmra.mxu0 %v3511
      %v3513 = vpop.f32.mrf.mxu0
      %v3514 = vadd.f32 %v3185, %v3513
      %v3515 = vand.u32 %v428, 4294901760
      %3516 = vmatmul.f32.gmra.mxu0 %v3515
      %v3517 = vpop.f32.mrf.mxu0
      %v3518 = vadd.f32 %v3193, %v3517
      %v3519 = vand.u32 %v429, 4294901760
      %3520 = vmatmul.f32.gmra.mxu0 %v3519
      %v3521 = vpop.f32.mrf.mxu0
      %v3522 = vadd.f32 %v3201, %v3521
      %v3523 = vand.u32 %v430, 4294901760
      %3524 = vmatmul.f32.gmra.mxu0 %v3523
      %v3525 = vpop.f32.mrf.mxu0
      %v3526 = vadd.f32 %v3209, %v3525
      %v3527 = vand.u32 %v431, 4294901760
      %3528 = vmatmul.f32.gmra.mxu0 %v3527
      %v3529 = vpop.f32.mrf.mxu0
      %v3530 = vadd.f32 %v3217, %v3529
      %v3531 = vand.u32 %v432, 4294901760
      %3532 = vmatmul.f32.gmra.mxu0 %v3531
      %v3533 = vpop.f32.mrf.mxu0
      %v3534 = vadd.f32 %v3225, %v3533
      %v3535 = vand.u32 %v433, 4294901760
      %3536 = vmatmul.f32.gmra.mxu0 %v3535
      %v3537 = vpop.f32.mrf.mxu0
      %v3538 = vadd.f32 %v3233, %v3537
      %v3539 = vand.u32 %v434, 4294901760
      %3540 = vmatmul.f32.gmra.mxu0 %v3539
      %v3541 = vpop.f32.mrf.mxu0
      %v3542 = vadd.f32 %v3241, %v3541
      %v3543 = vand.u32 %v435, 4294901760
      %3544 = vmatmul.f32.gmra.mxu0 %v3543
      %v3545 = vpop.f32.mrf.mxu0
      %v3546 = vadd.f32 %v3249, %v3545
      %v3547 = vand.u32 %v436, 4294901760
      %3548 = vmatmul.f32.gmra.mxu0 %v3547
      %v3549 = vpop.f32.mrf.mxu0
      %v3550 = vadd.f32 %v3257, %v3549
      %v3551 = vand.u32 %v437, 4294901760
      %3552 = vmatmul.f32.gmra.mxu0 %v3551
      %v3553 = vpop.f32.mrf.mxu0
      %v3554 = vadd.f32 %v3265, %v3553
      %v3555 = vand.u32 %v438, 4294901760
      %3556 = vmatmul.f32.gmra.mxu0 %v3555
      %v3557 = vpop.f32.mrf.mxu0
      %v3558 = vadd.f32 %v3273, %v3557
      %v3559 = vand.u32 %v439, 4294901760
      %3560 = vmatmul.f32.gmra.mxu0 %v3559
      %v3561 = vpop.f32.mrf.mxu0
      %v3562 = vadd.f32 %v3281, %v3561
      %v3563 = vand.u32 %v440, 4294901760
      %3564 = vmatmul.f32.gmra.mxu0 %v3563
      %v3565 = vpop.f32.mrf.mxu0
      %v3566 = vadd.f32 %v3289, %v3565
      %v3567 = vand.u32 %v441, 4294901760
      %3568 = vmatmul.f32.gmra.mxu0 %v3567
      %v3569 = vpop.f32.mrf.mxu0
      %v3570 = vadd.f32 %v3297, %v3569
      %v3571 = vand.u32 %v442, 4294901760
      %3572 = vmatmul.f32.gmra.mxu0 %v3571
      %v3573 = vpop.f32.mrf.mxu0
      %v3574 = vadd.f32 %v3305, %v3573
      %v3575 = vand.u32 %v443, 4294901760
      %3576 = vmatmul.f32.gmra.mxu0 %v3575
      %v3577 = vpop.f32.mrf.mxu0
      %v3578 = vadd.f32 %v3313, %v3577
      %v3579 = vand.u32 %v444, 4294901760
      %3580 = vmatmul.f32.gmra.mxu0 %v3579
      %v3581 = vpop.f32.mrf.mxu0
      %v3582 = vadd.f32 %v3321, %v3581
      %v3583 = vand.u32 %v445, 4294901760
      %3584 = vmatmul.f32.gmra.mxu0 %v3583
      %v3585 = vpop.f32.mrf.mxu0
      %v3586 = vadd.f32 %v3329, %v3585
      %v3587 = vand.u32 %v446, 4294901760
      %3588 = vmatmul.f32.gmra.mxu0 %v3587
      %v3589 = vpop.f32.mrf.mxu0
      %v3590 = vadd.f32 %v3337, %v3589
      %v3591 = vand.u32 %v447, 4294901760
      %3592 = vmatmul.f32.gmra.mxu0 %v3591
      %v3593 = vpop.f32.mrf.mxu0
      %v3594 = vadd.f32 %v3345, %v3593
      %v3595 = vand.u32 %v448, 4294901760
      %3596 = vmatmul.f32.gmra.mxu0 %v3595
      %v3597 = vpop.f32.mrf.mxu0
      %v3598 = vadd.f32 %v3353, %v3597
      %v3599 = vand.u32 %v449, 4294901760
      %3600 = vmatmul.f32.gmra.mxu0 %v3599
      %v3601 = vpop.f32.mrf.mxu0
      %v3602 = vadd.f32 %v3361, %v3601
      %v3603 = vand.u32 %v450, 4294901760
      %3604 = vmatmul.f32.gmra.mxu0 %v3603
      %v3605 = vpop.f32.mrf.mxu0
      %v3606 = vadd.f32 %v3369, %v3605
      %v3607 = vand.u32 %v451, 4294901760
      %3608 = vmatmul.f32.gmra.mxu0 %v3607
      %v3609 = vpop.f32.mrf.mxu0
      %v3610 = vadd.f32 %v3377, %v3609
      %v3611 = vand.u32 %v452, 4294901760
      %3612 = vmatmul.f32.gmra.mxu0 %v3611
      %v3613 = vpop.f32.mrf.mxu0
      %v3614 = vadd.f32 %v3385, %v3613
      %v3615 = vand.u32 %v453, 4294901760
      %3616 = vmatmul.f32.gmra.mxu0 %v3615
      %v3617 = vpop.f32.mrf.mxu0
      %v3618 = vadd.f32 %v3393, %v3617
      %3619 = vdwg.mxu0
      %v3620 = vand.u32 %v501, 4294901760
      %v3621 = vsub.f32 %v501, %v3620
      %3622 = vmatpush.msra.mxu0 %v3621
      %v3623 = vand.u32 %v498, 4294901760
      %v3624 = vsub.f32 %v498, %v3623
      %3625 = vmatpush.msra.mxu0 %v3624
      %v3626 = vand.u32 %v495, 4294901760
      %v3627 = vsub.f32 %v495, %v3626
      %3628 = vmatpush.msra.mxu0 %v3627
      %v3629 = vand.u32 %v492, 4294901760
      %v3630 = vsub.f32 %v492, %v3629
      %3631 = vmatpush.msra.mxu0 %v3630
      %v3632 = vand.u32 %v489, 4294901760
      %v3633 = vsub.f32 %v489, %v3632
      %3634 = vmatpush.msra.mxu0 %v3633
      %v3635 = vand.u32 %v486, 4294901760
      %v3636 = vsub.f32 %v486, %v3635
      %3637 = vmatpush.msra.mxu0 %v3636
      %v3638 = vand.u32 %v483, 4294901760
      %v3639 = vsub.f32 %v483, %v3638
      %3640 = vmatpush.msra.mxu0 %v3639
      %v3641 = vand.u32 %v480, 4294901760
      %v3642 = vsub.f32 %v480, %v3641
      %3643 = vmatpush.msra.mxu0 %v3642
      %v3644 = vand.u32 %v477, 4294901760
      %v3645 = vsub.f32 %v477, %v3644
      %3646 = vmatpush.msra.mxu0 %v3645
      %v3647 = vand.u32 %v474, 4294901760
      %v3648 = vsub.f32 %v474, %v3647
      %3649 = vmatpush.msra.mxu0 %v3648
      %v3650 = vand.u32 %v471, 4294901760
      %v3651 = vsub.f32 %v471, %v3650
      %3652 = vmatpush.msra.mxu0 %v3651
      %v3653 = vand.u32 %v468, 4294901760
      %v3654 = vsub.f32 %v468, %v3653
      %3655 = vmatpush.msra.mxu0 %v3654
      %v3656 = vand.u32 %v465, 4294901760
      %v3657 = vsub.f32 %v465, %v3656
      %3658 = vmatpush.msra.mxu0 %v3657
      %v3659 = vand.u32 %v462, 4294901760
      %v3660 = vsub.f32 %v462, %v3659
      %3661 = vmatpush.msra.mxu0 %v3660
      %v3662 = vand.u32 %v459, 4294901760
      %v3663 = vsub.f32 %v459, %v3662
      %3664 = vmatpush.msra.mxu0 %v3663
      %v3665 = vand.u32 %v456, 4294901760
      %v3666 = vsub.f32 %v456, %v3665
      %3667 = vmatpush.msra.mxu0 %v3666
      %v3668 = vand.u32 %v422, 4294901760
      %v3669 = vsub.f32 %v422, %v3668
      %3670 = vmatmul.f32.gmra.mxu0 %v3669
      %v3671 = vpop.f32.mrf.mxu0
      %v3672 = vadd.f32 %v3494, %v3671
      %v3673 = vand.u32 %v423, 4294901760
      %v3674 = vsub.f32 %v423, %v3673
      %3675 = vmatmul.f32.gmra.mxu0 %v3674
      %v3676 = vpop.f32.mrf.mxu0
      %v3677 = vadd.f32 %v3498, %v3676
      %v3678 = vand.u32 %v424, 4294901760
      %v3679 = vsub.f32 %v424, %v3678
      %3680 = vmatmul.f32.gmra.mxu0 %v3679
      %v3681 = vpop.f32.mrf.mxu0
      %v3682 = vadd.f32 %v3502, %v3681
      %v3683 = vand.u32 %v425, 4294901760
      %v3684 = vsub.f32 %v425, %v3683
      %3685 = vmatmul.f32.gmra.mxu0 %v3684
      %v3686 = vpop.f32.mrf.mxu0
      %v3687 = vadd.f32 %v3506, %v3686
      %v3688 = vand.u32 %v426, 4294901760
      %v3689 = vsub.f32 %v426, %v3688
      %3690 = vmatmul.f32.gmra.mxu0 %v3689
      %v3691 = vpop.f32.mrf.mxu0
      %v3692 = vadd.f32 %v3510, %v3691
      %v3693 = vand.u32 %v427, 4294901760
      %v3694 = vsub.f32 %v427, %v3693
      %3695 = vmatmul.f32.gmra.mxu0 %v3694
      %v3696 = vpop.f32.mrf.mxu0
      %v3697 = vadd.f32 %v3514, %v3696
      %v3698 = vand.u32 %v428, 4294901760
      %v3699 = vsub.f32 %v428, %v3698
      %3700 = vmatmul.f32.gmra.mxu0 %v3699
      %v3701 = vpop.f32.mrf.mxu0
      %v3702 = vadd.f32 %v3518, %v3701
      %v3703 = vand.u32 %v429, 4294901760
      %v3704 = vsub.f32 %v429, %v3703
      %3705 = vmatmul.f32.gmra.mxu0 %v3704
      %v3706 = vpop.f32.mrf.mxu0
      %v3707 = vadd.f32 %v3522, %v3706
      %v3708 = vand.u32 %v430, 4294901760
      %v3709 = vsub.f32 %v430, %v3708
      %3710 = vmatmul.f32.gmra.mxu0 %v3709
      %v3711 = vpop.f32.mrf.mxu0
      %v3712 = vadd.f32 %v3526, %v3711
      %v3713 = vand.u32 %v431, 4294901760
      %v3714 = vsub.f32 %v431, %v3713
      %3715 = vmatmul.f32.gmra.mxu0 %v3714
      %v3716 = vpop.f32.mrf.mxu0
      %v3717 = vadd.f32 %v3530, %v3716
      %v3718 = vand.u32 %v432, 4294901760
      %v3719 = vsub.f32 %v432, %v3718
      %3720 = vmatmul.f32.gmra.mxu0 %v3719
      %v3721 = vpop.f32.mrf.mxu0
      %v3722 = vadd.f32 %v3534, %v3721
      %v3723 = vand.u32 %v433, 4294901760
      %v3724 = vsub.f32 %v433, %v3723
      %3725 = vmatmul.f32.gmra.mxu0 %v3724
      %v3726 = vpop.f32.mrf.mxu0
      %v3727 = vadd.f32 %v3538, %v3726
      %v3728 = vand.u32 %v434, 4294901760
      %v3729 = vsub.f32 %v434, %v3728
      %3730 = vmatmul.f32.gmra.mxu0 %v3729
      %v3731 = vpop.f32.mrf.mxu0
      %v3732 = vadd.f32 %v3542, %v3731
      %v3733 = vand.u32 %v435, 4294901760
      %v3734 = vsub.f32 %v435, %v3733
      %3735 = vmatmul.f32.gmra.mxu0 %v3734
      %v3736 = vpop.f32.mrf.mxu0
      %v3737 = vadd.f32 %v3546, %v3736
      %v3738 = vand.u32 %v436, 4294901760
      %v3739 = vsub.f32 %v436, %v3738
      %3740 = vmatmul.f32.gmra.mxu0 %v3739
      %v3741 = vpop.f32.mrf.mxu0
      %v3742 = vadd.f32 %v3550, %v3741
      %v3743 = vand.u32 %v437, 4294901760
      %v3744 = vsub.f32 %v437, %v3743
      %3745 = vmatmul.f32.gmra.mxu0 %v3744
      %v3746 = vpop.f32.mrf.mxu0
      %v3747 = vadd.f32 %v3554, %v3746
      %v3748 = vand.u32 %v438, 4294901760
      %v3749 = vsub.f32 %v438, %v3748
      %3750 = vmatmul.f32.gmra.mxu0 %v3749
      %v3751 = vpop.f32.mrf.mxu0
      %v3752 = vadd.f32 %v3558, %v3751
      %v3753 = vand.u32 %v439, 4294901760
      %v3754 = vsub.f32 %v439, %v3753
      %3755 = vmatmul.f32.gmra.mxu0 %v3754
      %v3756 = vpop.f32.mrf.mxu0
      %v3757 = vadd.f32 %v3562, %v3756
      %v3758 = vand.u32 %v440, 4294901760
      %v3759 = vsub.f32 %v440, %v3758
      %3760 = vmatmul.f32.gmra.mxu0 %v3759
      %v3761 = vpop.f32.mrf.mxu0
      %v3762 = vadd.f32 %v3566, %v3761
      %v3763 = vand.u32 %v441, 4294901760
      %v3764 = vsub.f32 %v441, %v3763
      %3765 = vmatmul.f32.gmra.mxu0 %v3764
      %v3766 = vpop.f32.mrf.mxu0
      %v3767 = vadd.f32 %v3570, %v3766
      %v3768 = vand.u32 %v442, 4294901760
      %v3769 = vsub.f32 %v442, %v3768
      %3770 = vmatmul.f32.gmra.mxu0 %v3769
      %v3771 = vpop.f32.mrf.mxu0
      %v3772 = vadd.f32 %v3574, %v3771
      %v3773 = vand.u32 %v443, 4294901760
      %v3774 = vsub.f32 %v443, %v3773
      %3775 = vmatmul.f32.gmra.mxu0 %v3774
      %v3776 = vpop.f32.mrf.mxu0
      %v3777 = vadd.f32 %v3578, %v3776
      %v3778 = vand.u32 %v444, 4294901760
      %v3779 = vsub.f32 %v444, %v3778
      %3780 = vmatmul.f32.gmra.mxu0 %v3779
      %v3781 = vpop.f32.mrf.mxu0
      %v3782 = vadd.f32 %v3582, %v3781
      %v3783 = vand.u32 %v445, 4294901760
      %v3784 = vsub.f32 %v445, %v3783
      %3785 = vmatmul.f32.gmra.mxu0 %v3784
      %v3786 = vpop.f32.mrf.mxu0
      %v3787 = vadd.f32 %v3586, %v3786
      %v3788 = vand.u32 %v446, 4294901760
      %v3789 = vsub.f32 %v446, %v3788
      %3790 = vmatmul.f32.gmra.mxu0 %v3789
      %v3791 = vpop.f32.mrf.mxu0
      %v3792 = vadd.f32 %v3590, %v3791
      %v3793 = vand.u32 %v447, 4294901760
      %v3794 = vsub.f32 %v447, %v3793
      %3795 = vmatmul.f32.gmra.mxu0 %v3794
      %v3796 = vpop.f32.mrf.mxu0
      %v3797 = vadd.f32 %v3594, %v3796
      %v3798 = vand.u32 %v448, 4294901760
      %v3799 = vsub.f32 %v448, %v3798
      %3800 = vmatmul.f32.gmra.mxu0 %v3799
      %v3801 = vpop.f32.mrf.mxu0
      %v3802 = vadd.f32 %v3598, %v3801
      %v3803 = vand.u32 %v449, 4294901760
      %v3804 = vsub.f32 %v449, %v3803
      %3805 = vmatmul.f32.gmra.mxu0 %v3804
      %v3806 = vpop.f32.mrf.mxu0
      %v3807 = vadd.f32 %v3602, %v3806
      %v3808 = vand.u32 %v450, 4294901760
      %v3809 = vsub.f32 %v450, %v3808
      %3810 = vmatmul.f32.gmra.mxu0 %v3809
      %v3811 = vpop.f32.mrf.mxu0
      %v3812 = vadd.f32 %v3606, %v3811
      %v3813 = vand.u32 %v451, 4294901760
      %v3814 = vsub.f32 %v451, %v3813
      %3815 = vmatmul.f32.gmra.mxu0 %v3814
      %v3816 = vpop.f32.mrf.mxu0
      %v3817 = vadd.f32 %v3610, %v3816
      %v3818 = vand.u32 %v452, 4294901760
      %v3819 = vsub.f32 %v452, %v3818
      %3820 = vmatmul.f32.gmra.mxu0 %v3819
      %v3821 = vpop.f32.mrf.mxu0
      %v3822 = vadd.f32 %v3614, %v3821
      %v3823 = vand.u32 %v453, 4294901760
      %v3824 = vsub.f32 %v453, %v3823
      %3825 = vmatmul.f32.gmra.mxu0 %v3824
      %v3826 = vpop.f32.mrf.mxu0
      %v3827 = vadd.f32 %v3618, %v3826
      %3828 = vdwg.mxu0
      %v3829 = vand.u32 %v501, 4294901760
      %3830 = vmatpush.msra.mxu0 %v3829
      %v3831 = vand.u32 %v498, 4294901760
      %3832 = vmatpush.msra.mxu0 %v3831
      %v3833 = vand.u32 %v495, 4294901760
      %3834 = vmatpush.msra.mxu0 %v3833
      %v3835 = vand.u32 %v492, 4294901760
      %3836 = vmatpush.msra.mxu0 %v3835
      %v3837 = vand.u32 %v489, 4294901760
      %3838 = vmatpush.msra.mxu0 %v3837
      %v3839 = vand.u32 %v486, 4294901760
      %3840 = vmatpush.msra.mxu0 %v3839
      %v3841 = vand.u32 %v483, 4294901760
      %3842 = vmatpush.msra.mxu0 %v3841
      %v3843 = vand.u32 %v480, 4294901760
      %3844 = vmatpush.msra.mxu0 %v3843
      %v3845 = vand.u32 %v477, 4294901760
      %3846 = vmatpush.msra.mxu0 %v3845
      %v3847 = vand.u32 %v474, 4294901760
      %3848 = vmatpush.msra.mxu0 %v3847
      %v3849 = vand.u32 %v471, 4294901760
      %3850 = vmatpush.msra.mxu0 %v3849
      %v3851 = vand.u32 %v468, 4294901760
      %3852 = vmatpush.msra.mxu0 %v3851
      %v3853 = vand.u32 %v465, 4294901760
      %3854 = vmatpush.msra.mxu0 %v3853
      %v3855 = vand.u32 %v462, 4294901760
      %3856 = vmatpush.msra.mxu0 %v3855
      %v3857 = vand.u32 %v459, 4294901760
      %3858 = vmatpush.msra.mxu0 %v3857
      %v3859 = vand.u32 %v456, 4294901760
      %3860 = vmatpush.msra.mxu0 %v3859
      %v3861 = vand.u32 %v422, 4294901760
      %v3862 = vsub.f32 %v422, %v3861
      %v3863 = vand.u32 %v3862, 4294901760
      %3864 = vmatmul.f32.gmra.mxu0 %v3863
      %v3865 = vpop.f32.mrf.mxu0
      %v3866 = vadd.f32 %v3672, %v3865
      %v3867 = vand.u32 %v423, 4294901760
      %v3868 = vsub.f32 %v423, %v3867
      %v3869 = vand.u32 %v3868, 4294901760
      %3870 = vmatmul.f32.gmra.mxu0 %v3869
      %v3871 = vpop.f32.mrf.mxu0
      %v3872 = vadd.f32 %v3677, %v3871
      %v3873 = vand.u32 %v424, 4294901760
      %v3874 = vsub.f32 %v424, %v3873
      %v3875 = vand.u32 %v3874, 4294901760
      %3876 = vmatmul.f32.gmra.mxu0 %v3875
      %v3877 = vpop.f32.mrf.mxu0
      %v3878 = vadd.f32 %v3682, %v3877
      %v3879 = vand.u32 %v425, 4294901760
      %v3880 = vsub.f32 %v425, %v3879
      %v3881 = vand.u32 %v3880, 4294901760
      %3882 = vmatmul.f32.gmra.mxu0 %v3881
      %v3883 = vpop.f32.mrf.mxu0
      %v3884 = vadd.f32 %v3687, %v3883
      %v3885 = vand.u32 %v426, 4294901760
      %v3886 = vsub.f32 %v426, %v3885
      %v3887 = vand.u32 %v3886, 4294901760
      %3888 = vmatmul.f32.gmra.mxu0 %v3887
      %v3889 = vpop.f32.mrf.mxu0
      %v3890 = vadd.f32 %v3692, %v3889
      %v3891 = vand.u32 %v427, 4294901760
      %v3892 = vsub.f32 %v427, %v3891
      %v3893 = vand.u32 %v3892, 4294901760
      %3894 = vmatmul.f32.gmra.mxu0 %v3893
      %v3895 = vpop.f32.mrf.mxu0
      %v3896 = vadd.f32 %v3697, %v3895
      %v3897 = vand.u32 %v428, 4294901760
      %v3898 = vsub.f32 %v428, %v3897
      %v3899 = vand.u32 %v3898, 4294901760
      %3900 = vmatmul.f32.gmra.mxu0 %v3899
      %v3901 = vpop.f32.mrf.mxu0
      %v3902 = vadd.f32 %v3702, %v3901
      %v3903 = vand.u32 %v429, 4294901760
      %v3904 = vsub.f32 %v429, %v3903
      %v3905 = vand.u32 %v3904, 4294901760
      %3906 = vmatmul.f32.gmra.mxu0 %v3905
      %v3907 = vpop.f32.mrf.mxu0
      %v3908 = vadd.f32 %v3707, %v3907
      %v3909 = vand.u32 %v430, 4294901760
      %v3910 = vsub.f32 %v430, %v3909
      %v3911 = vand.u32 %v3910, 4294901760
      %3912 = vmatmul.f32.gmra.mxu0 %v3911
      %v3913 = vpop.f32.mrf.mxu0
      %v3914 = vadd.f32 %v3712, %v3913
      %v3915 = vand.u32 %v431, 4294901760
      %v3916 = vsub.f32 %v431, %v3915
      %v3917 = vand.u32 %v3916, 4294901760
      %3918 = vmatmul.f32.gmra.mxu0 %v3917
      %v3919 = vpop.f32.mrf.mxu0
      %v3920 = vadd.f32 %v3717, %v3919
      %v3921 = vand.u32 %v432, 4294901760
      %v3922 = vsub.f32 %v432, %v3921
      %v3923 = vand.u32 %v3922, 4294901760
      %3924 = vmatmul.f32.gmra.mxu0 %v3923
      %v3925 = vpop.f32.mrf.mxu0
      %v3926 = vadd.f32 %v3722, %v3925
      %v3927 = vand.u32 %v433, 4294901760
      %v3928 = vsub.f32 %v433, %v3927
      %v3929 = vand.u32 %v3928, 4294901760
      %3930 = vmatmul.f32.gmra.mxu0 %v3929
      %v3931 = vpop.f32.mrf.mxu0
      %v3932 = vadd.f32 %v3727, %v3931
      %v3933 = vand.u32 %v434, 4294901760
      %v3934 = vsub.f32 %v434, %v3933
      %v3935 = vand.u32 %v3934, 4294901760
      %3936 = vmatmul.f32.gmra.mxu0 %v3935
      %v3937 = vpop.f32.mrf.mxu0
      %v3938 = vadd.f32 %v3732, %v3937
      %v3939 = vand.u32 %v435, 4294901760
      %v3940 = vsub.f32 %v435, %v3939
      %v3941 = vand.u32 %v3940, 4294901760
      %3942 = vmatmul.f32.gmra.mxu0 %v3941
      %v3943 = vpop.f32.mrf.mxu0
      %v3944 = vadd.f32 %v3737, %v3943
      %v3945 = vand.u32 %v436, 4294901760
      %v3946 = vsub.f32 %v436, %v3945
      %v3947 = vand.u32 %v3946, 4294901760
      %3948 = vmatmul.f32.gmra.mxu0 %v3947
      %v3949 = vpop.f32.mrf.mxu0
      %v3950 = vadd.f32 %v3742, %v3949
      %v3951 = vand.u32 %v437, 4294901760
      %v3952 = vsub.f32 %v437, %v3951
      %v3953 = vand.u32 %v3952, 4294901760
      %3954 = vmatmul.f32.gmra.mxu0 %v3953
      %v3955 = vpop.f32.mrf.mxu0
      %v3956 = vadd.f32 %v3747, %v3955
      %v3957 = vand.u32 %v438, 4294901760
      %v3958 = vsub.f32 %v438, %v3957
      %v3959 = vand.u32 %v3958, 4294901760
      %3960 = vmatmul.f32.gmra.mxu0 %v3959
      %v3961 = vpop.f32.mrf.mxu0
      %v3962 = vadd.f32 %v3752, %v3961
      %v3963 = vand.u32 %v439, 4294901760
      %v3964 = vsub.f32 %v439, %v3963
      %v3965 = vand.u32 %v3964, 4294901760
      %3966 = vmatmul.f32.gmra.mxu0 %v3965
      %v3967 = vpop.f32.mrf.mxu0
      %v3968 = vadd.f32 %v3757, %v3967
      %v3969 = vand.u32 %v440, 4294901760
      %v3970 = vsub.f32 %v440, %v3969
      %v3971 = vand.u32 %v3970, 4294901760
      %3972 = vmatmul.f32.gmra.mxu0 %v3971
      %v3973 = vpop.f32.mrf.mxu0
      %v3974 = vadd.f32 %v3762, %v3973
      %v3975 = vand.u32 %v441, 4294901760
      %v3976 = vsub.f32 %v441, %v3975
      %v3977 = vand.u32 %v3976, 4294901760
      %3978 = vmatmul.f32.gmra.mxu0 %v3977
      %v3979 = vpop.f32.mrf.mxu0
      %v3980 = vadd.f32 %v3767, %v3979
      %v3981 = vand.u32 %v442, 4294901760
      %v3982 = vsub.f32 %v442, %v3981
      %v3983 = vand.u32 %v3982, 4294901760
      %3984 = vmatmul.f32.gmra.mxu0 %v3983
      %v3985 = vpop.f32.mrf.mxu0
      %v3986 = vadd.f32 %v3772, %v3985
      %v3987 = vand.u32 %v443, 4294901760
      %v3988 = vsub.f32 %v443, %v3987
      %v3989 = vand.u32 %v3988, 4294901760
      %3990 = vmatmul.f32.gmra.mxu0 %v3989
      %v3991 = vpop.f32.mrf.mxu0
      %v3992 = vadd.f32 %v3777, %v3991
      %v3993 = vand.u32 %v444, 4294901760
      %v3994 = vsub.f32 %v444, %v3993
      %v3995 = vand.u32 %v3994, 4294901760
      %3996 = vmatmul.f32.gmra.mxu0 %v3995
      %v3997 = vpop.f32.mrf.mxu0
      %v3998 = vadd.f32 %v3782, %v3997
      %v3999 = vand.u32 %v445, 4294901760
      %v4000 = vsub.f32 %v445, %v3999
      %v4001 = vand.u32 %v4000, 4294901760
      %4002 = vmatmul.f32.gmra.mxu0 %v4001
      %v4003 = vpop.f32.mrf.mxu0
      %v4004 = vadd.f32 %v3787, %v4003
      %v4005 = vand.u32 %v446, 4294901760
      %v4006 = vsub.f32 %v446, %v4005
      %v4007 = vand.u32 %v4006, 4294901760
      %4008 = vmatmul.f32.gmra.mxu0 %v4007
      %v4009 = vpop.f32.mrf.mxu0
      %v4010 = vadd.f32 %v3792, %v4009
      %v4011 = vand.u32 %v447, 4294901760
      %v4012 = vsub.f32 %v447, %v4011
      %v4013 = vand.u32 %v4012, 4294901760
      %4014 = vmatmul.f32.gmra.mxu0 %v4013
      %v4015 = vpop.f32.mrf.mxu0
      %v4016 = vadd.f32 %v3797, %v4015
      %v4017 = vand.u32 %v448, 4294901760
      %v4018 = vsub.f32 %v448, %v4017
      %v4019 = vand.u32 %v4018, 4294901760
      %4020 = vmatmul.f32.gmra.mxu0 %v4019
      %v4021 = vpop.f32.mrf.mxu0
      %v4022 = vadd.f32 %v3802, %v4021
      %v4023 = vand.u32 %v449, 4294901760
      %v4024 = vsub.f32 %v449, %v4023
      %v4025 = vand.u32 %v4024, 4294901760
      %4026 = vmatmul.f32.gmra.mxu0 %v4025
      %v4027 = vpop.f32.mrf.mxu0
      %v4028 = vadd.f32 %v3807, %v4027
      %v4029 = vand.u32 %v450, 4294901760
      %v4030 = vsub.f32 %v450, %v4029
      %v4031 = vand.u32 %v4030, 4294901760
      %4032 = vmatmul.f32.gmra.mxu0 %v4031
      %v4033 = vpop.f32.mrf.mxu0
      %v4034 = vadd.f32 %v3812, %v4033
      %v4035 = vand.u32 %v451, 4294901760
      %v4036 = vsub.f32 %v451, %v4035
      %v4037 = vand.u32 %v4036, 4294901760
      %4038 = vmatmul.f32.gmra.mxu0 %v4037
      %v4039 = vpop.f32.mrf.mxu0
      %v4040 = vadd.f32 %v3817, %v4039
      %v4041 = vand.u32 %v452, 4294901760
      %v4042 = vsub.f32 %v452, %v4041
      %v4043 = vand.u32 %v4042, 4294901760
      %4044 = vmatmul.f32.gmra.mxu0 %v4043
      %v4045 = vpop.f32.mrf.mxu0
      %v4046 = vadd.f32 %v3822, %v4045
      %v4047 = vand.u32 %v453, 4294901760
      %v4048 = vsub.f32 %v453, %v4047
      %v4049 = vand.u32 %v4048, 4294901760
      %4050 = vmatmul.f32.gmra.mxu0 %v4049
      %v4051 = vpop.f32.mrf.mxu0
      %v4052 = vadd.f32 %v3827, %v4051
      %4053 = vdwg.mxu0
      %v4054 = vand.u32 %v501, 4294901760
      %v4055 = vsub.f32 %v501, %v4054
      %v4056 = vand.u32 %v4055, 4294901760
      %4057 = vmatpush.msra.mxu0 %v4056
      %v4058 = vand.u32 %v498, 4294901760
      %v4059 = vsub.f32 %v498, %v4058
      %v4060 = vand.u32 %v4059, 4294901760
      %4061 = vmatpush.msra.mxu0 %v4060
      %v4062 = vand.u32 %v495, 4294901760
      %v4063 = vsub.f32 %v495, %v4062
      %v4064 = vand.u32 %v4063, 4294901760
      %4065 = vmatpush.msra.mxu0 %v4064
      %v4066 = vand.u32 %v492, 4294901760
      %v4067 = vsub.f32 %v492, %v4066
      %v4068 = vand.u32 %v4067, 4294901760
      %4069 = vmatpush.msra.mxu0 %v4068
      %v4070 = vand.u32 %v489, 4294901760
      %v4071 = vsub.f32 %v489, %v4070
      %v4072 = vand.u32 %v4071, 4294901760
      %4073 = vmatpush.msra.mxu0 %v4072
      %v4074 = vand.u32 %v486, 4294901760
      %v4075 = vsub.f32 %v486, %v4074
      %v4076 = vand.u32 %v4075, 4294901760
      %4077 = vmatpush.msra.mxu0 %v4076
      %v4078 = vand.u32 %v483, 4294901760
      %v4079 = vsub.f32 %v483, %v4078
      %v4080 = vand.u32 %v4079, 4294901760
      %4081 = vmatpush.msra.mxu0 %v4080
      %v4082 = vand.u32 %v480, 4294901760
      %v4083 = vsub.f32 %v480, %v4082
      %v4084 = vand.u32 %v4083, 4294901760
      %4085 = vmatpush.msra.mxu0 %v4084
      %v4086 = vand.u32 %v477, 4294901760
      %v4087 = vsub.f32 %v477, %v4086
      %v4088 = vand.u32 %v4087, 4294901760
      %4089 = vmatpush.msra.mxu0 %v4088
      %v4090 = vand.u32 %v474, 4294901760
      %v4091 = vsub.f32 %v474, %v4090
      %v4092 = vand.u32 %v4091, 4294901760
      %4093 = vmatpush.msra.mxu0 %v4092
      %v4094 = vand.u32 %v471, 4294901760
      %v4095 = vsub.f32 %v471, %v4094
      %v4096 = vand.u32 %v4095, 4294901760
      %4097 = vmatpush.msra.mxu0 %v4096
      %v4098 = vand.u32 %v468, 4294901760
      %v4099 = vsub.f32 %v468, %v4098
      %v4100 = vand.u32 %v4099, 4294901760
      %4101 = vmatpush.msra.mxu0 %v4100
      %v4102 = vand.u32 %v465, 4294901760
      %v4103 = vsub.f32 %v465, %v4102
      %v4104 = vand.u32 %v4103, 4294901760
      %4105 = vmatpush.msra.mxu0 %v4104
      %v4106 = vand.u32 %v462, 4294901760
      %v4107 = vsub.f32 %v462, %v4106
      %v4108 = vand.u32 %v4107, 4294901760
      %4109 = vmatpush.msra.mxu0 %v4108
      %v4110 = vand.u32 %v459, 4294901760
      %v4111 = vsub.f32 %v459, %v4110
      %v4112 = vand.u32 %v4111, 4294901760
      %4113 = vmatpush.msra.mxu0 %v4112
      %v4114 = vand.u32 %v456, 4294901760
      %v4115 = vsub.f32 %v456, %v4114
      %v4116 = vand.u32 %v4115, 4294901760
      %4117 = vmatpush.msra.mxu0 %v4116
      %v4118 = vand.u32 %v422, 4294901760
      %4119 = vmatmul.f32.gmra.mxu0 %v4118
      %v4120 = vpop.f32.mrf.mxu0
      %v4121 = vadd.f32 %v3866, %v4120
      %v4122 = vand.u32 %v423, 4294901760
      %4123 = vmatmul.f32.gmra.mxu0 %v4122
      %v4124 = vpop.f32.mrf.mxu0
      %v4125 = vadd.f32 %v3872, %v4124
      %v4126 = vand.u32 %v424, 4294901760
      %4127 = vmatmul.f32.gmra.mxu0 %v4126
      %v4128 = vpop.f32.mrf.mxu0
      %v4129 = vadd.f32 %v3878, %v4128
      %v4130 = vand.u32 %v425, 4294901760
      %4131 = vmatmul.f32.gmra.mxu0 %v4130
      %v4132 = vpop.f32.mrf.mxu0
      %v4133 = vadd.f32 %v3884, %v4132
      %v4134 = vand.u32 %v426, 4294901760
      %4135 = vmatmul.f32.gmra.mxu0 %v4134
      %v4136 = vpop.f32.mrf.mxu0
      %v4137 = vadd.f32 %v3890, %v4136
      %v4138 = vand.u32 %v427, 4294901760
      %4139 = vmatmul.f32.gmra.mxu0 %v4138
      %v4140 = vpop.f32.mrf.mxu0
      %v4141 = vadd.f32 %v3896, %v4140
      %v4142 = vand.u32 %v428, 4294901760
      %4143 = vmatmul.f32.gmra.mxu0 %v4142
      %v4144 = vpop.f32.mrf.mxu0
      %v4145 = vadd.f32 %v3902, %v4144
      %v4146 = vand.u32 %v429, 4294901760
      %4147 = vmatmul.f32.gmra.mxu0 %v4146
      %v4148 = vpop.f32.mrf.mxu0
      %v4149 = vadd.f32 %v3908, %v4148
      %v4150 = vand.u32 %v430, 4294901760
      %4151 = vmatmul.f32.gmra.mxu0 %v4150
      %v4152 = vpop.f32.mrf.mxu0
      %v4153 = vadd.f32 %v3914, %v4152
      %v4154 = vand.u32 %v431, 4294901760
      %4155 = vmatmul.f32.gmra.mxu0 %v4154
      %v4156 = vpop.f32.mrf.mxu0
      %v4157 = vadd.f32 %v3920, %v4156
      %v4158 = vand.u32 %v432, 4294901760
      %4159 = vmatmul.f32.gmra.mxu0 %v4158
      %v4160 = vpop.f32.mrf.mxu0
      %v4161 = vadd.f32 %v3926, %v4160
      %v4162 = vand.u32 %v433, 4294901760
      %4163 = vmatmul.f32.gmra.mxu0 %v4162
      %v4164 = vpop.f32.mrf.mxu0
      %v4165 = vadd.f32 %v3932, %v4164
      %v4166 = vand.u32 %v434, 4294901760
      %4167 = vmatmul.f32.gmra.mxu0 %v4166
      %v4168 = vpop.f32.mrf.mxu0
      %v4169 = vadd.f32 %v3938, %v4168
      %v4170 = vand.u32 %v435, 4294901760
      %4171 = vmatmul.f32.gmra.mxu0 %v4170
      %v4172 = vpop.f32.mrf.mxu0
      %v4173 = vadd.f32 %v3944, %v4172
      %v4174 = vand.u32 %v436, 4294901760
      %4175 = vmatmul.f32.gmra.mxu0 %v4174
      %v4176 = vpop.f32.mrf.mxu0
      %v4177 = vadd.f32 %v3950, %v4176
      %v4178 = vand.u32 %v437, 4294901760
      %4179 = vmatmul.f32.gmra.mxu0 %v4178
      %v4180 = vpop.f32.mrf.mxu0
      %v4181 = vadd.f32 %v3956, %v4180
      %v4182 = vand.u32 %v438, 4294901760
      %4183 = vmatmul.f32.gmra.mxu0 %v4182
      %v4184 = vpop.f32.mrf.mxu0
      %v4185 = vadd.f32 %v3962, %v4184
      %v4186 = vand.u32 %v439, 4294901760
      %4187 = vmatmul.f32.gmra.mxu0 %v4186
      %v4188 = vpop.f32.mrf.mxu0
      %v4189 = vadd.f32 %v3968, %v4188
      %v4190 = vand.u32 %v440, 4294901760
      %4191 = vmatmul.f32.gmra.mxu0 %v4190
      %v4192 = vpop.f32.mrf.mxu0
      %v4193 = vadd.f32 %v3974, %v4192
      %v4194 = vand.u32 %v441, 4294901760
      %4195 = vmatmul.f32.gmra.mxu0 %v4194
      %v4196 = vpop.f32.mrf.mxu0
      %v4197 = vadd.f32 %v3980, %v4196
      %v4198 = vand.u32 %v442, 4294901760
      %4199 = vmatmul.f32.gmra.mxu0 %v4198
      %v4200 = vpop.f32.mrf.mxu0
      %v4201 = vadd.f32 %v3986, %v4200
      %v4202 = vand.u32 %v443, 4294901760
      %4203 = vmatmul.f32.gmra.mxu0 %v4202
      %v4204 = vpop.f32.mrf.mxu0
      %v4205 = vadd.f32 %v3992, %v4204
      %v4206 = vand.u32 %v444, 4294901760
      %4207 = vmatmul.f32.gmra.mxu0 %v4206
      %v4208 = vpop.f32.mrf.mxu0
      %v4209 = vadd.f32 %v3998, %v4208
      %v4210 = vand.u32 %v445, 4294901760
      %4211 = vmatmul.f32.gmra.mxu0 %v4210
      %v4212 = vpop.f32.mrf.mxu0
      %v4213 = vadd.f32 %v4004, %v4212
      %v4214 = vand.u32 %v446, 4294901760
      %4215 = vmatmul.f32.gmra.mxu0 %v4214
      %v4216 = vpop.f32.mrf.mxu0
      %v4217 = vadd.f32 %v4010, %v4216
      %v4218 = vand.u32 %v447, 4294901760
      %4219 = vmatmul.f32.gmra.mxu0 %v4218
      %v4220 = vpop.f32.mrf.mxu0
      %v4221 = vadd.f32 %v4016, %v4220
      %v4222 = vand.u32 %v448, 4294901760
      %4223 = vmatmul.f32.gmra.mxu0 %v4222
      %v4224 = vpop.f32.mrf.mxu0
      %v4225 = vadd.f32 %v4022, %v4224
      %v4226 = vand.u32 %v449, 4294901760
      %4227 = vmatmul.f32.gmra.mxu0 %v4226
      %v4228 = vpop.f32.mrf.mxu0
      %v4229 = vadd.f32 %v4028, %v4228
      %v4230 = vand.u32 %v450, 4294901760
      %4231 = vmatmul.f32.gmra.mxu0 %v4230
      %v4232 = vpop.f32.mrf.mxu0
      %v4233 = vadd.f32 %v4034, %v4232
      %v4234 = vand.u32 %v451, 4294901760
      %4235 = vmatmul.f32.gmra.mxu0 %v4234
      %v4236 = vpop.f32.mrf.mxu0
      %v4237 = vadd.f32 %v4040, %v4236
      %v4238 = vand.u32 %v452, 4294901760
      %4239 = vmatmul.f32.gmra.mxu0 %v4238
      %v4240 = vpop.f32.mrf.mxu0
      %v4241 = vadd.f32 %v4046, %v4240
      %v4242 = vand.u32 %v453, 4294901760
      %4243 = vmatmul.f32.gmra.mxu0 %v4242
      %v4244 = vpop.f32.mrf.mxu0
      %v4245 = vadd.f32 %v4052, %v4244
      %4246 = vdwg.mxu0
      %v4247 = vand.u32 %v501, 4294901760
      %4248 = vmatpush.msra.mxu0 %v4247
      %v4249 = vand.u32 %v498, 4294901760
      %4250 = vmatpush.msra.mxu0 %v4249
      %v4251 = vand.u32 %v495, 4294901760
      %4252 = vmatpush.msra.mxu0 %v4251
      %v4253 = vand.u32 %v492, 4294901760
      %4254 = vmatpush.msra.mxu0 %v4253
      %v4255 = vand.u32 %v489, 4294901760
      %4256 = vmatpush.msra.mxu0 %v4255
      %v4257 = vand.u32 %v486, 4294901760
      %4258 = vmatpush.msra.mxu0 %v4257
      %v4259 = vand.u32 %v483, 4294901760
      %4260 = vmatpush.msra.mxu0 %v4259
      %v4261 = vand.u32 %v480, 4294901760
      %4262 = vmatpush.msra.mxu0 %v4261
      %v4263 = vand.u32 %v477, 4294901760
      %4264 = vmatpush.msra.mxu0 %v4263
      %v4265 = vand.u32 %v474, 4294901760
      %4266 = vmatpush.msra.mxu0 %v4265
      %v4267 = vand.u32 %v471, 4294901760
      %4268 = vmatpush.msra.mxu0 %v4267
      %v4269 = vand.u32 %v468, 4294901760
      %4270 = vmatpush.msra.mxu0 %v4269
      %v4271 = vand.u32 %v465, 4294901760
      %4272 = vmatpush.msra.mxu0 %v4271
      %v4273 = vand.u32 %v462, 4294901760
      %4274 = vmatpush.msra.mxu0 %v4273
      %v4275 = vand.u32 %v459, 4294901760
      %4276 = vmatpush.msra.mxu0 %v4275
      %v4277 = vand.u32 %v456, 4294901760
      %4278 = vmatpush.msra.mxu0 %v4277
      %v4279 = vand.u32 %v422, 4294901760
      %4280 = vmatmul.f32.gmra.mxu0 %v4279
      %v4281 = vpop.f32.mrf.mxu0
      %v4282 = vadd.f32 %v4121, %v4281
      %v4283 = vand.u32 %v423, 4294901760
      %4284 = vmatmul.f32.gmra.mxu0 %v4283
      %v4285 = vpop.f32.mrf.mxu0
      %v4286 = vadd.f32 %v4125, %v4285
      %v4287 = vand.u32 %v424, 4294901760
      %4288 = vmatmul.f32.gmra.mxu0 %v4287
      %v4289 = vpop.f32.mrf.mxu0
      %v4290 = vadd.f32 %v4129, %v4289
      %v4291 = vand.u32 %v425, 4294901760
      %4292 = vmatmul.f32.gmra.mxu0 %v4291
      %v4293 = vpop.f32.mrf.mxu0
      %v4294 = vadd.f32 %v4133, %v4293
      %v4295 = vand.u32 %v426, 4294901760
      %4296 = vmatmul.f32.gmra.mxu0 %v4295
      %v4297 = vpop.f32.mrf.mxu0
      %v4298 = vadd.f32 %v4137, %v4297
      %v4299 = vand.u32 %v427, 4294901760
      %4300 = vmatmul.f32.gmra.mxu0 %v4299
      %v4301 = vpop.f32.mrf.mxu0
      %v4302 = vadd.f32 %v4141, %v4301
      %v4303 = vand.u32 %v428, 4294901760
      %4304 = vmatmul.f32.gmra.mxu0 %v4303
      %v4305 = vpop.f32.mrf.mxu0
      %v4306 = vadd.f32 %v4145, %v4305
      %v4307 = vand.u32 %v429, 4294901760
      %4308 = vmatmul.f32.gmra.mxu0 %v4307
      %v4309 = vpop.f32.mrf.mxu0
      %v4310 = vadd.f32 %v4149, %v4309
      %v4311 = vand.u32 %v430, 4294901760
      %4312 = vmatmul.f32.gmra.mxu0 %v4311
      %v4313 = vpop.f32.mrf.mxu0
      %v4314 = vadd.f32 %v4153, %v4313
      %v4315 = vand.u32 %v431, 4294901760
      %4316 = vmatmul.f32.gmra.mxu0 %v4315
      %v4317 = vpop.f32.mrf.mxu0
      %v4318 = vadd.f32 %v4157, %v4317
      %v4319 = vand.u32 %v432, 4294901760
      %4320 = vmatmul.f32.gmra.mxu0 %v4319
      %v4321 = vpop.f32.mrf.mxu0
      %v4322 = vadd.f32 %v4161, %v4321
      %v4323 = vand.u32 %v433, 4294901760
      %4324 = vmatmul.f32.gmra.mxu0 %v4323
      %v4325 = vpop.f32.mrf.mxu0
      %v4326 = vadd.f32 %v4165, %v4325
      %v4327 = vand.u32 %v434, 4294901760
      %4328 = vmatmul.f32.gmra.mxu0 %v4327
      %v4329 = vpop.f32.mrf.mxu0
      %v4330 = vadd.f32 %v4169, %v4329
      %v4331 = vand.u32 %v435, 4294901760
      %4332 = vmatmul.f32.gmra.mxu0 %v4331
      %v4333 = vpop.f32.mrf.mxu0
      %v4334 = vadd.f32 %v4173, %v4333
      %v4335 = vand.u32 %v436, 4294901760
      %4336 = vmatmul.f32.gmra.mxu0 %v4335
      %v4337 = vpop.f32.mrf.mxu0
      %v4338 = vadd.f32 %v4177, %v4337
      %v4339 = vand.u32 %v437, 4294901760
      %4340 = vmatmul.f32.gmra.mxu0 %v4339
      %v4341 = vpop.f32.mrf.mxu0
      %v4342 = vadd.f32 %v4181, %v4341
      %v4343 = vand.u32 %v438, 4294901760
      %4344 = vmatmul.f32.gmra.mxu0 %v4343
      %v4345 = vpop.f32.mrf.mxu0
      %v4346 = vadd.f32 %v4185, %v4345
      %v4347 = vand.u32 %v439, 4294901760
      %4348 = vmatmul.f32.gmra.mxu0 %v4347
      %v4349 = vpop.f32.mrf.mxu0
      %v4350 = vadd.f32 %v4189, %v4349
      %v4351 = vand.u32 %v440, 4294901760
      %4352 = vmatmul.f32.gmra.mxu0 %v4351
      %v4353 = vpop.f32.mrf.mxu0
      %v4354 = vadd.f32 %v4193, %v4353
      %v4355 = vand.u32 %v441, 4294901760
      %4356 = vmatmul.f32.gmra.mxu0 %v4355
      %v4357 = vpop.f32.mrf.mxu0
      %v4358 = vadd.f32 %v4197, %v4357
      %v4359 = vand.u32 %v442, 4294901760
      %4360 = vmatmul.f32.gmra.mxu0 %v4359
      %v4361 = vpop.f32.mrf.mxu0
      %v4362 = vadd.f32 %v4201, %v4361
      %v4363 = vand.u32 %v443, 4294901760
      %4364 = vmatmul.f32.gmra.mxu0 %v4363
      %v4365 = vpop.f32.mrf.mxu0
      %v4366 = vadd.f32 %v4205, %v4365
      %v4367 = vand.u32 %v444, 4294901760
      %4368 = vmatmul.f32.gmra.mxu0 %v4367
      %v4369 = vpop.f32.mrf.mxu0
      %v4370 = vadd.f32 %v4209, %v4369
      %v4371 = vand.u32 %v445, 4294901760
      %4372 = vmatmul.f32.gmra.mxu0 %v4371
      %v4373 = vpop.f32.mrf.mxu0
      %v4374 = vadd.f32 %v4213, %v4373
      %v4375 = vand.u32 %v446, 4294901760
      %4376 = vmatmul.f32.gmra.mxu0 %v4375
      %v4377 = vpop.f32.mrf.mxu0
      %v4378 = vadd.f32 %v4217, %v4377
      %v4379 = vand.u32 %v447, 4294901760
      %4380 = vmatmul.f32.gmra.mxu0 %v4379
      %v4381 = vpop.f32.mrf.mxu0
      %v4382 = vadd.f32 %v4221, %v4381
      %v4383 = vand.u32 %v448, 4294901760
      %4384 = vmatmul.f32.gmra.mxu0 %v4383
      %v4385 = vpop.f32.mrf.mxu0
      %v4386 = vadd.f32 %v4225, %v4385
      %v4387 = vand.u32 %v449, 4294901760
      %4388 = vmatmul.f32.gmra.mxu0 %v4387
      %v4389 = vpop.f32.mrf.mxu0
      %v4390 = vadd.f32 %v4229, %v4389
      %v4391 = vand.u32 %v450, 4294901760
      %4392 = vmatmul.f32.gmra.mxu0 %v4391
      %v4393 = vpop.f32.mrf.mxu0
      %v4394 = vadd.f32 %v4233, %v4393
      %v4395 = vand.u32 %v451, 4294901760
      %4396 = vmatmul.f32.gmra.mxu0 %v4395
      %v4397 = vpop.f32.mrf.mxu0
      %v4398 = vadd.f32 %v4237, %v4397
      %v4399 = vand.u32 %v452, 4294901760
      %4400 = vmatmul.f32.gmra.mxu0 %v4399
      %v4401 = vpop.f32.mrf.mxu0
      %v4402 = vadd.f32 %v4241, %v4401
      %v4403 = vand.u32 %v453, 4294901760
      %4404 = vmatmul.f32.gmra.mxu0 %v4403
      %v4405 = vpop.f32.mrf.mxu0
      %v4406 = vadd.f32 %v4245, %v4405
      %4407 = vdwg.mxu0
      %v4408 = vld [vmem:[%s1] sm:$0xff]
      %v4409 = vld [vmem:[%s1 + $0x8] sm:$0xff]
      %v4410 = vld [vmem:[%s1 + $0x10] sm:$0xff]
      %v4411 = vld [vmem:[%s1 + $0x18] sm:$0xff]
      %v4412 = vld [vmem:[%s1 + $0x20] sm:$0xff]
      %v4413 = vld [vmem:[%s1 + $0x28] sm:$0xff]
      %v4414 = vld [vmem:[%s1 + $0x30] sm:$0xff]
      %v4415 = vld [vmem:[%s1 + $0x38] sm:$0xff]
      %v4416 = vld [vmem:[%s1 + $0x40] sm:$0xff]
      %v4417 = vld [vmem:[%s1 + $0x48] sm:$0xff]
      %v4418 = vld [vmem:[%s1 + $0x50] sm:$0xff]
      %v4419 = vld [vmem:[%s1 + $0x58] sm:$0xff]
      %v4420 = vld [vmem:[%s1 + $0x60] sm:$0xff]
      %v4421 = vld [vmem:[%s1 + $0x68] sm:$0xff]
      %v4422 = vld [vmem:[%s1 + $0x70] sm:$0xff]
      %v4423 = vld [vmem:[%s1 + $0x78] sm:$0xff]
      %v4424 = vld [vmem:[%s1 + $0x80] sm:$0xff]
      %v4425 = vld [vmem:[%s1 + $0x88] sm:$0xff]
      %v4426 = vld [vmem:[%s1 + $0x90] sm:$0xff]
      %v4427 = vld [vmem:[%s1 + $0x98] sm:$0xff]
      %v4428 = vld [vmem:[%s1 + $0xa0] sm:$0xff]
      %v4429 = vld [vmem:[%s1 + $0xa8] sm:$0xff]
      %v4430 = vld [vmem:[%s1 + $0xb0] sm:$0xff]
      %v4431 = vld [vmem:[%s1 + $0xb8] sm:$0xff]
      %v4432 = vld [vmem:[%s1 + $0xc0] sm:$0xff]
      %v4433 = vld [vmem:[%s1 + $0xc8] sm:$0xff]
      %v4434 = vld [vmem:[%s1 + $0xd0] sm:$0xff]
      %v4435 = vld [vmem:[%s1 + $0xd8] sm:$0xff]
      %v4436 = vld [vmem:[%s1 + $0xe0] sm:$0xff]
      %v4437 = vld [vmem:[%s1 + $0xe8] sm:$0xff]
      %v4438 = vld [vmem:[%s1 + $0xf0] sm:$0xff]
      %v4439 = vld [vmem:[%s1 + $0xf8] sm:$0xff]
      %v4440 = vrot.slane %v1678, 7
      %v4441 = vrot.slane %v1682, 7
      %v4442 = vrot.slane %v1686, 7
      %v4443 = vrot.slane %v1690, 7
      %v4444 = vrot.slane %v1694, 7
      %v4445 = vrot.slane %v1698, 7
      %v4446 = vrot.slane %v1702, 7
      %v4447 = vrot.slane %v1706, 7
      %v4448 = vrot.slane %v1710, 7
      %v4449 = vrot.slane %v1714, 7
      %v4450 = vrot.slane %v1718, 7
      %v4451 = vrot.slane %v1722, 7
      %v4452 = vrot.slane %v1726, 7
      %v4453 = vrot.slane %v1730, 7
      %v4454 = vrot.slane %v1734, 7
      %v4455 = vrot.slane %v1738, 7
      %v4456 = vrot.slane %v1742, 7
      %v4457 = vrot.slane %v1746, 7
      %v4458 = vrot.slane %v1750, 7
      %v4459 = vrot.slane %v1754, 7
      %v4460 = vrot.slane %v1758, 7
      %v4461 = vrot.slane %v1762, 7
      %v4462 = vrot.slane %v1766, 7
      %v4463 = vrot.slane %v1770, 7
      %v4464 = vrot.slane %v1774, 7
      %v4465 = vrot.slane %v1778, 7
      %v4466 = vrot.slane %v1782, 7
      %v4467 = vrot.slane %v1786, 7
      %v4468 = vrot.slane %v1790, 7
      %v4469 = vrot.slane %v1794, 7
      %v4470 = vrot.slane %v1798, 7
      %v4471 = vrot.slane %v1802, 7
      %v4472 = vlaneseq
      %v4473 = vshrl.u32 %v4472, 7
      %vm4474 = vcmp.lt.s32.totalorder %v4473, 1
      %v4475 = vsel %vm4474, %v4470, %v4471
      %v4476 = vsel %vm4474, %v4469, %v4470
      %v4477 = vsel %vm4474, %v4468, %v4469
      %v4478 = vsel %vm4474, %v4467, %v4468
      %v4479 = vsel %vm4474, %v4466, %v4467
      %v4480 = vsel %vm4474, %v4465, %v4466
      %v4481 = vsel %vm4474, %v4464, %v4465
      %v4482 = vsel %vm4474, %v4463, %v4464
      %v4483 = vsel %vm4474, %v4462, %v4463
      %v4484 = vsel %vm4474, %v4461, %v4462
      %v4485 = vsel %vm4474, %v4460, %v4461
      %v4486 = vsel %vm4474, %v4459, %v4460
      %v4487 = vsel %vm4474, %v4458, %v4459
      %v4488 = vsel %vm4474, %v4457, %v4458
      %v4489 = vsel %vm4474, %v4456, %v4457
      %v4490 = vsel %vm4474, %v4455, %v4456
      %v4491 = vsel %vm4474, %v4454, %v4455
      %v4492 = vsel %vm4474, %v4453, %v4454
      %v4493 = vsel %vm4474, %v4452, %v4453
      %v4494 = vsel %vm4474, %v4451, %v4452
      %v4495 = vsel %vm4474, %v4450, %v4451
      %v4496 = vsel %vm4474, %v4449, %v4450
      %v4497 = vsel %vm4474, %v4448, %v4449
      %v4498 = vsel %vm4474, %v4447, %v4448
      %v4499 = vsel %vm4474, %v4446, %v4447
      %v4500 = vsel %vm4474, %v4445, %v4446
      %v4501 = vsel %vm4474, %v4444, %v4445
      %v4502 = vsel %vm4474, %v4443, %v4444
      %v4503 = vsel %vm4474, %v4442, %v4443
      %v4504 = vsel %vm4474, %v4441, %v4442
      %v4505 = vsel %vm4474, %v4440, %v4441
      %v4506 = vsel %vm4474, %v4471, %v4440
      %vm4507 = vcmp.ge.s32.totalorder %v4408, 1
      %vm4508 = vcmp.ge.s32.totalorder %v4409, 1
      %vm4509 = vcmp.ge.s32.totalorder %v4410, 1
      %vm4510 = vcmp.ge.s32.totalorder %v4411, 1
      %vm4511 = vcmp.ge.s32.totalorder %v4412, 1
      %vm4512 = vcmp.ge.s32.totalorder %v4413, 1
      %vm4513 = vcmp.ge.s32.totalorder %v4414, 1
      %vm4514 = vcmp.ge.s32.totalorder %v4415, 1
      %vm4515 = vcmp.ge.s32.totalorder %v4416, 1
      %vm4516 = vcmp.ge.s32.totalorder %v4417, 1
      %vm4517 = vcmp.ge.s32.totalorder %v4418, 1
      %vm4518 = vcmp.ge.s32.totalorder %v4419, 1
      %vm4519 = vcmp.ge.s32.totalorder %v4420, 1
      %vm4520 = vcmp.ge.s32.totalorder %v4421, 1
      %vm4521 = vcmp.ge.s32.totalorder %v4422, 1
      %vm4522 = vcmp.ge.s32.totalorder %v4423, 1
      %vm4523 = vcmp.ge.s32.totalorder %v4424, 1
      %vm4524 = vcmp.ge.s32.totalorder %v4425, 1
      %vm4525 = vcmp.ge.s32.totalorder %v4426, 1
      %vm4526 = vcmp.ge.s32.totalorder %v4427, 1
      %vm4527 = vcmp.ge.s32.totalorder %v4428, 1
      %vm4528 = vcmp.ge.s32.totalorder %v4429, 1
      %vm4529 = vcmp.ge.s32.totalorder %v4430, 1
      %vm4530 = vcmp.ge.s32.totalorder %v4431, 1
      %vm4531 = vcmp.ge.s32.totalorder %v4432, 1
      %vm4532 = vcmp.ge.s32.totalorder %v4433, 1
      %vm4533 = vcmp.ge.s32.totalorder %v4434, 1
      %vm4534 = vcmp.ge.s32.totalorder %v4435, 1
      %vm4535 = vcmp.ge.s32.totalorder %v4436, 1
      %vm4536 = vcmp.ge.s32.totalorder %v4437, 1
      %vm4537 = vcmp.ge.s32.totalorder %v4438, 1
      %vm4538 = vcmp.ge.s32.totalorder %v4439, 1
      %v4539 = vsel %vm4507, 1, 0
      %v4540 = vsel %vm4508, 1, 0
      %v4541 = vsel %vm4509, 1, 0
      %v4542 = vsel %vm4510, 1, 0
      %v4543 = vsel %vm4511, 1, 0
      %v4544 = vsel %vm4512, 1, 0
      %v4545 = vsel %vm4513, 1, 0
      %v4546 = vsel %vm4514, 1, 0
      %v4547 = vsel %vm4515, 1, 0
      %v4548 = vsel %vm4516, 1, 0
      %v4549 = vsel %vm4517, 1, 0
      %v4550 = vsel %vm4518, 1, 0
      %v4551 = vsel %vm4519, 1, 0
      %v4552 = vsel %vm4520, 1, 0
      %v4553 = vsel %vm4521, 1, 0
      %v4554 = vsel %vm4522, 1, 0
      %v4555 = vsel %vm4523, 1, 0
      %v4556 = vsel %vm4524, 1, 0
      %v4557 = vsel %vm4525, 1, 0
      %v4558 = vsel %vm4526, 1, 0
      %v4559 = vsel %vm4527, 1, 0
      %v4560 = vsel %vm4528, 1, 0
      %v4561 = vsel %vm4529, 1, 0
      %v4562 = vsel %vm4530, 1, 0
      %v4563 = vsel %vm4531, 1, 0
      %v4564 = vsel %vm4532, 1, 0
      %v4565 = vsel %vm4533, 1, 0
      %v4566 = vsel %vm4534, 1, 0
      %v4567 = vsel %vm4535, 1, 0
      %v4568 = vsel %vm4536, 1, 0
      %v4569 = vsel %vm4537, 1, 0
      %v4570 = vsel %vm4538, 1, 0
      %v4571 = vcvt.s32.f32 %v4539
      %v4572 = vcvt.s32.f32 %v4540
      %v4573 = vcvt.s32.f32 %v4541
      %v4574 = vcvt.s32.f32 %v4542
      %v4575 = vcvt.s32.f32 %v4543
      %v4576 = vcvt.s32.f32 %v4544
      %v4577 = vcvt.s32.f32 %v4545
      %v4578 = vcvt.s32.f32 %v4546
      %v4579 = vcvt.s32.f32 %v4547
      %v4580 = vcvt.s32.f32 %v4548
      %v4581 = vcvt.s32.f32 %v4549
      %v4582 = vcvt.s32.f32 %v4550
      %v4583 = vcvt.s32.f32 %v4551
      %v4584 = vcvt.s32.f32 %v4552
      %v4585 = vcvt.s32.f32 %v4553
      %v4586 = vcvt.s32.f32 %v4554
      %v4587 = vcvt.s32.f32 %v4555
      %v4588 = vcvt.s32.f32 %v4556
      %v4589 = vcvt.s32.f32 %v4557
      %v4590 = vcvt.s32.f32 %v4558
      %v4591 = vcvt.s32.f32 %v4559
      %v4592 = vcvt.s32.f32 %v4560
      %v4593 = vcvt.s32.f32 %v4561
      %v4594 = vcvt.s32.f32 %v4562
      %v4595 = vcvt.s32.f32 %v4563
      %v4596 = vcvt.s32.f32 %v4564
      %v4597 = vcvt.s32.f32 %v4565
      %v4598 = vcvt.s32.f32 %v4566
      %v4599 = vcvt.s32.f32 %v4567
      %v4600 = vcvt.s32.f32 %v4568
      %v4601 = vcvt.s32.f32 %v4569
      %v4602 = vcvt.s32.f32 %v4570
      %4604 = vset.pattern.permute.xlu0 0
      %4605 = vperm.xlu0 %4604, %v4571
      %v4606 = vpop.permute.xlu0 %4605
      %4609 = vset.pattern.permute.xlu0 0
      %4610 = vperm.xlu0 %4609, %v4572
      %v4611 = vpop.permute.xlu0 %4610
      %4614 = vset.pattern.permute.xlu0 0
      %4615 = vperm.xlu0 %4614, %v4573
      %v4616 = vpop.permute.xlu0 %4615
      %4619 = vset.pattern.permute.xlu0 0
      %4620 = vperm.xlu0 %4619, %v4574
      %v4621 = vpop.permute.xlu0 %4620
      %4624 = vset.pattern.permute.xlu0 0
      %4625 = vperm.xlu0 %4624, %v4575
      %v4626 = vpop.permute.xlu0 %4625
      %4629 = vset.pattern.permute.xlu0 0
      %4630 = vperm.xlu0 %4629, %v4576
      %v4631 = vpop.permute.xlu0 %4630
      %4634 = vset.pattern.permute.xlu0 0
      %4635 = vperm.xlu0 %4634, %v4577
      %v4636 = vpop.permute.xlu0 %4635
      %4639 = vset.pattern.permute.xlu0 0
      %4640 = vperm.xlu0 %4639, %v4578
      %v4641 = vpop.permute.xlu0 %4640
      %4644 = vset.pattern.permute.xlu0 0
      %4645 = vperm.xlu0 %4644, %v4579
      %v4646 = vpop.permute.xlu0 %4645
      %4649 = vset.pattern.permute.xlu0 0
      %4650 = vperm.xlu0 %4649, %v4580
      %v4651 = vpop.permute.xlu0 %4650
      %4654 = vset.pattern.permute.xlu0 0
      %4655 = vperm.xlu0 %4654, %v4581
      %v4656 = vpop.permute.xlu0 %4655
      %4659 = vset.pattern.permute.xlu0 0
      %4660 = vperm.xlu0 %4659, %v4582
      %v4661 = vpop.permute.xlu0 %4660
      %4664 = vset.pattern.permute.xlu0 0
      %4665 = vperm.xlu0 %4664, %v4583
      %v4666 = vpop.permute.xlu0 %4665
      %4669 = vset.pattern.permute.xlu0 0
      %4670 = vperm.xlu0 %4669, %v4584
      %v4671 = vpop.permute.xlu0 %4670
      %4674 = vset.pattern.permute.xlu0 0
      %4675 = vperm.xlu0 %4674, %v4585
      %v4676 = vpop.permute.xlu0 %4675
      %4679 = vset.pattern.permute.xlu0 0
      %4680 = vperm.xlu0 %4679, %v4586
      %v4681 = vpop.permute.xlu0 %4680
      %4684 = vset.pattern.permute.xlu0 0
      %4685 = vperm.xlu0 %4684, %v4587
      %v4686 = vpop.permute.xlu0 %4685
      %4689 = vset.pattern.permute.xlu0 0
      %4690 = vperm.xlu0 %4689, %v4588
      %v4691 = vpop.permute.xlu0 %4690
      %4694 = vset.pattern.permute.xlu0 0
      %4695 = vperm.xlu0 %4694, %v4589
      %v4696 = vpop.permute.xlu0 %4695
      %4699 = vset.pattern.permute.xlu0 0
      %4700 = vperm.xlu0 %4699, %v4590
      %v4701 = vpop.permute.xlu0 %4700
      %4704 = vset.pattern.permute.xlu0 0
      %4705 = vperm.xlu0 %4704, %v4591
      %v4706 = vpop.permute.xlu0 %4705
      %4709 = vset.pattern.permute.xlu0 0
      %4710 = vperm.xlu0 %4709, %v4592
      %v4711 = vpop.permute.xlu0 %4710
      %4714 = vset.pattern.permute.xlu0 0
      %4715 = vperm.xlu0 %4714, %v4593
      %v4716 = vpop.permute.xlu0 %4715
      %4719 = vset.pattern.permute.xlu0 0
      %4720 = vperm.xlu0 %4719, %v4594
      %v4721 = vpop.permute.xlu0 %4720
      %4724 = vset.pattern.permute.xlu0 0
      %4725 = vperm.xlu0 %4724, %v4595
      %v4726 = vpop.permute.xlu0 %4725
      %4729 = vset.pattern.permute.xlu0 0
      %4730 = vperm.xlu0 %4729, %v4596
      %v4731 = vpop.permute.xlu0 %4730
      %4734 = vset.pattern.permute.xlu0 0
      %4735 = vperm.xlu0 %4734, %v4597
      %v4736 = vpop.permute.xlu0 %4735
      %4739 = vset.pattern.permute.xlu0 0
      %4740 = vperm.xlu0 %4739, %v4598
      %v4741 = vpop.permute.xlu0 %4740
      %4744 = vset.pattern.permute.xlu0 0
      %4745 = vperm.xlu0 %4744, %v4599
      %v4746 = vpop.permute.xlu0 %4745
      %4749 = vset.pattern.permute.xlu0 0
      %4750 = vperm.xlu0 %4749, %v4600
      %v4751 = vpop.permute.xlu0 %4750
      %4754 = vset.pattern.permute.xlu0 0
      %4755 = vperm.xlu0 %4754, %v4601
      %v4756 = vpop.permute.xlu0 %4755
      %4759 = vset.pattern.permute.xlu0 0
      %4760 = vperm.xlu0 %4759, %v4602
      %v4761 = vpop.permute.xlu0 %4760
      %v4763 = vmul.f32 %v4506, %v4606
      %v4764 = vmul.f32 %v4505, %v4611
      %v4765 = vmul.f32 %v4504, %v4616
      %v4766 = vmul.f32 %v4503, %v4621
      %v4767 = vmul.f32 %v4502, %v4626
      %v4768 = vmul.f32 %v4501, %v4631
      %v4769 = vmul.f32 %v4500, %v4636
      %v4770 = vmul.f32 %v4499, %v4641
      %v4771 = vmul.f32 %v4498, %v4646
      %v4772 = vmul.f32 %v4497, %v4651
      %v4773 = vmul.f32 %v4496, %v4656
      %v4774 = vmul.f32 %v4495, %v4661
      %v4775 = vmul.f32 %v4494, %v4666
      %v4776 = vmul.f32 %v4493, %v4671
      %v4777 = vmul.f32 %v4492, %v4676
      %v4778 = vmul.f32 %v4491, %v4681
      %v4779 = vmul.f32 %v4490, %v4686
      %v4780 = vmul.f32 %v4489, %v4691
      %v4781 = vmul.f32 %v4488, %v4696
      %v4782 = vmul.f32 %v4487, %v4701
      %v4783 = vmul.f32 %v4486, %v4706
      %v4784 = vmul.f32 %v4485, %v4711
      %v4785 = vmul.f32 %v4484, %v4716
      %v4786 = vmul.f32 %v4483, %v4721
      %v4787 = vmul.f32 %v4482, %v4726
      %v4788 = vmul.f32 %v4481, %v4731
      %v4789 = vmul.f32 %v4480, %v4736
      %v4790 = vmul.f32 %v4479, %v4741
      %v4791 = vmul.f32 %v4478, %v4746
      %v4792 = vmul.f32 %v4477, %v4751
      %v4793 = vmul.f32 %v4476, %v4756
      %v4794 = vmul.f32 %v4475, %v4761
      %v4795 = vadd.f32 %v2980, %v4763
      %v4796 = vadd.f32 %v2984, %v4764
      %v4797 = vadd.f32 %v2988, %v4765
      %v4798 = vadd.f32 %v2992, %v4766
      %v4799 = vadd.f32 %v2996, %v4767
      %v4800 = vadd.f32 %v3000, %v4768
      %v4801 = vadd.f32 %v3004, %v4769
      %v4802 = vadd.f32 %v3008, %v4770
      %v4803 = vadd.f32 %v3012, %v4771
      %v4804 = vadd.f32 %v3016, %v4772
      %v4805 = vadd.f32 %v3020, %v4773
      %v4806 = vadd.f32 %v3024, %v4774
      %v4807 = vadd.f32 %v3028, %v4775
      %v4808 = vadd.f32 %v3032, %v4776
      %v4809 = vadd.f32 %v3036, %v4777
      %v4810 = vadd.f32 %v3040, %v4778
      %v4811 = vadd.f32 %v3044, %v4779
      %v4812 = vadd.f32 %v3048, %v4780
      %v4813 = vadd.f32 %v3052, %v4781
      %v4814 = vadd.f32 %v3056, %v4782
      %v4815 = vadd.f32 %v3060, %v4783
      %v4816 = vadd.f32 %v3064, %v4784
      %v4817 = vadd.f32 %v3068, %v4785
      %v4818 = vadd.f32 %v3072, %v4786
      %v4819 = vadd.f32 %v3076, %v4787
      %v4820 = vadd.f32 %v3080, %v4788
      %v4821 = vadd.f32 %v3084, %v4789
      %v4822 = vadd.f32 %v3088, %v4790
      %v4823 = vadd.f32 %v3092, %v4791
      %v4824 = vadd.f32 %v3096, %v4792
      %v4825 = vadd.f32 %v3100, %v4793
      %v4826 = vadd.f32 %v3104, %v4794
      %v4827 = vrot.slane %v4282, 1
      %v4828 = vrot.slane %v4286, 1
      %v4829 = vrot.slane %v4290, 1
      %v4830 = vrot.slane %v4294, 1
      %v4831 = vrot.slane %v4298, 1
      %v4832 = vrot.slane %v4302, 1
      %v4833 = vrot.slane %v4306, 1
      %v4834 = vrot.slane %v4310, 1
      %v4835 = vrot.slane %v4314, 1
      %v4836 = vrot.slane %v4318, 1
      %v4837 = vrot.slane %v4322, 1
      %v4838 = vrot.slane %v4326, 1
      %v4839 = vrot.slane %v4330, 1
      %v4840 = vrot.slane %v4334, 1
      %v4841 = vrot.slane %v4338, 1
      %v4842 = vrot.slane %v4342, 1
      %v4843 = vrot.slane %v4346, 1
      %v4844 = vrot.slane %v4350, 1
      %v4845 = vrot.slane %v4354, 1
      %v4846 = vrot.slane %v4358, 1
      %v4847 = vrot.slane %v4362, 1
      %v4848 = vrot.slane %v4366, 1
      %v4849 = vrot.slane %v4370, 1
      %v4850 = vrot.slane %v4374, 1
      %v4851 = vrot.slane %v4378, 1
      %v4852 = vrot.slane %v4382, 1
      %v4853 = vrot.slane %v4386, 1
      %v4854 = vrot.slane %v4390, 1
      %v4855 = vrot.slane %v4394, 1
      %v4856 = vrot.slane %v4398, 1
      %v4857 = vrot.slane %v4402, 1
      %v4858 = vrot.slane %v4406, 1
      %vm4859 = vcmp.lt.s32.totalorder %v4473, 7
      %v4860 = vsel %vm4859, %v4857, %v4858
      %v4861 = vsel %vm4859, %v4856, %v4857
      %v4862 = vsel %vm4859, %v4855, %v4856
      %v4863 = vsel %vm4859, %v4854, %v4855
      %v4864 = vsel %vm4859, %v4853, %v4854
      %v4865 = vsel %vm4859, %v4852, %v4853
      %v4866 = vsel %vm4859, %v4851, %v4852
      %v4867 = vsel %vm4859, %v4850, %v4851
      %v4868 = vsel %vm4859, %v4849, %v4850
      %v4869 = vsel %vm4859, %v4848, %v4849
      %v4870 = vsel %vm4859, %v4847, %v4848
      %v4871 = vsel %vm4859, %v4846, %v4847
      %v4872 = vsel %vm4859, %v4845, %v4846
      %v4873 = vsel %vm4859, %v4844, %v4845
      %v4874 = vsel %vm4859, %v4843, %v4844
      %v4875 = vsel %vm4859, %v4842, %v4843
      %v4876 = vsel %vm4859, %v4841, %v4842
      %v4877 = vsel %vm4859, %v4840, %v4841
      %v4878 = vsel %vm4859, %v4839, %v4840
      %v4879 = vsel %vm4859, %v4838, %v4839
      %v4880 = vsel %vm4859, %v4837, %v4838
      %v4881 = vsel %vm4859, %v4836, %v4837
      %v4882 = vsel %vm4859, %v4835, %v4836
      %v4883 = vsel %vm4859, %v4834, %v4835
      %v4884 = vsel %vm4859, %v4833, %v4834
      %v4885 = vsel %vm4859, %v4832, %v4833
      %v4886 = vsel %vm4859, %v4831, %v4832
      %v4887 = vsel %vm4859, %v4830, %v4831
      %v4888 = vsel %vm4859, %v4829, %v4830
      %v4889 = vsel %vm4859, %v4828, %v4829
      %v4890 = vsel %vm4859, %v4827, %v4828
      %v4891 = vsel %vm4859, %v4858, %v4827
      %vm4892 = vcmp.lt.s32.totalorder %v4408, 15
      %vm4893 = vcmp.lt.s32.totalorder %v4409, 15
      %vm4894 = vcmp.lt.s32.totalorder %v4410, 15
      %vm4895 = vcmp.lt.s32.totalorder %v4411, 15
      %vm4896 = vcmp.lt.s32.totalorder %v4412, 15
      %vm4897 = vcmp.lt.s32.totalorder %v4413, 15
      %vm4898 = vcmp.lt.s32.totalorder %v4414, 15
      %vm4899 = vcmp.lt.s32.totalorder %v4415, 15
      %vm4900 = vcmp.lt.s32.totalorder %v4416, 15
      %vm4901 = vcmp.lt.s32.totalorder %v4417, 15
      %vm4902 = vcmp.lt.s32.totalorder %v4418, 15
      %vm4903 = vcmp.lt.s32.totalorder %v4419, 15
      %vm4904 = vcmp.lt.s32.totalorder %v4420, 15
      %vm4905 = vcmp.lt.s32.totalorder %v4421, 15
      %vm4906 = vcmp.lt.s32.totalorder %v4422, 15
      %vm4907 = vcmp.lt.s32.totalorder %v4423, 15
      %vm4908 = vcmp.lt.s32.totalorder %v4424, 15
      %vm4909 = vcmp.lt.s32.totalorder %v4425, 15
      %vm4910 = vcmp.lt.s32.totalorder %v4426, 15
      %vm4911 = vcmp.lt.s32.totalorder %v4427, 15
      %vm4912 = vcmp.lt.s32.totalorder %v4428, 15
      %vm4913 = vcmp.lt.s32.totalorder %v4429, 15
      %vm4914 = vcmp.lt.s32.totalorder %v4430, 15
      %vm4915 = vcmp.lt.s32.totalorder %v4431, 15
      %vm4916 = vcmp.lt.s32.totalorder %v4432, 15
      %vm4917 = vcmp.lt.s32.totalorder %v4433, 15
      %vm4918 = vcmp.lt.s32.totalorder %v4434, 15
      %vm4919 = vcmp.lt.s32.totalorder %v4435, 15
      %vm4920 = vcmp.lt.s32.totalorder %v4436, 15
      %vm4921 = vcmp.lt.s32.totalorder %v4437, 15
      %vm4922 = vcmp.lt.s32.totalorder %v4438, 15
      %vm4923 = vcmp.lt.s32.totalorder %v4439, 15
      %v4924 = vsel %vm4892, 1, 0
      %v4925 = vsel %vm4893, 1, 0
      %v4926 = vsel %vm4894, 1, 0
      %v4927 = vsel %vm4895, 1, 0
      %v4928 = vsel %vm4896, 1, 0
      %v4929 = vsel %vm4897, 1, 0
      %v4930 = vsel %vm4898, 1, 0
      %v4931 = vsel %vm4899, 1, 0
      %v4932 = vsel %vm4900, 1, 0
      %v4933 = vsel %vm4901, 1, 0
      %v4934 = vsel %vm4902, 1, 0
      %v4935 = vsel %vm4903, 1, 0
      %v4936 = vsel %vm4904, 1, 0
      %v4937 = vsel %vm4905, 1, 0
      %v4938 = vsel %vm4906, 1, 0
      %v4939 = vsel %vm4907, 1, 0
      %v4940 = vsel %vm4908, 1, 0
      %v4941 = vsel %vm4909, 1, 0
      %v4942 = vsel %vm4910, 1, 0
      %v4943 = vsel %vm4911, 1, 0
      %v4944 = vsel %vm4912, 1, 0
      %v4945 = vsel %vm4913, 1, 0
      %v4946 = vsel %vm4914, 1, 0
      %v4947 = vsel %vm4915, 1, 0
      %v4948 = vsel %vm4916, 1, 0
      %v4949 = vsel %vm4917, 1, 0
      %v4950 = vsel %vm4918, 1, 0
      %v4951 = vsel %vm4919, 1, 0
      %v4952 = vsel %vm4920, 1, 0
      %v4953 = vsel %vm4921, 1, 0
      %v4954 = vsel %vm4922, 1, 0
      %v4955 = vsel %vm4923, 1, 0
      %v4956 = vcvt.s32.f32 %v4924
      %v4957 = vcvt.s32.f32 %v4925
      %v4958 = vcvt.s32.f32 %v4926
      %v4959 = vcvt.s32.f32 %v4927
      %v4960 = vcvt.s32.f32 %v4928
      %v4961 = vcvt.s32.f32 %v4929
      %v4962 = vcvt.s32.f32 %v4930
      %v4963 = vcvt.s32.f32 %v4931
      %v4964 = vcvt.s32.f32 %v4932
      %v4965 = vcvt.s32.f32 %v4933
      %v4966 = vcvt.s32.f32 %v4934
      %v4967 = vcvt.s32.f32 %v4935
      %v4968 = vcvt.s32.f32 %v4936
      %v4969 = vcvt.s32.f32 %v4937
      %v4970 = vcvt.s32.f32 %v4938
      %v4971 = vcvt.s32.f32 %v4939
      %v4972 = vcvt.s32.f32 %v4940
      %v4973 = vcvt.s32.f32 %v4941
      %v4974 = vcvt.s32.f32 %v4942
      %v4975 = vcvt.s32.f32 %v4943
      %v4976 = vcvt.s32.f32 %v4944
      %v4977 = vcvt.s32.f32 %v4945
      %v4978 = vcvt.s32.f32 %v4946
      %v4979 = vcvt.s32.f32 %v4947
      %v4980 = vcvt.s32.f32 %v4948
      %v4981 = vcvt.s32.f32 %v4949
      %v4982 = vcvt.s32.f32 %v4950
      %v4983 = vcvt.s32.f32 %v4951
      %v4984 = vcvt.s32.f32 %v4952
      %v4985 = vcvt.s32.f32 %v4953
      %v4986 = vcvt.s32.f32 %v4954
      %v4987 = vcvt.s32.f32 %v4955
      %4989 = vset.pattern.permute.xlu0 0
      %4990 = vperm.xlu0 %4989, %v4956
      %v4991 = vpop.permute.xlu0 %4990
      %4994 = vset.pattern.permute.xlu0 0
      %4995 = vperm.xlu0 %4994, %v4957
      %v4996 = vpop.permute.xlu0 %4995
      %4999 = vset.pattern.permute.xlu0 0
      %5000 = vperm.xlu0 %4999, %v4958
      %v5001 = vpop.permute.xlu0 %5000
      %5004 = vset.pattern.permute.xlu0 0
      %5005 = vperm.xlu0 %5004, %v4959
      %v5006 = vpop.permute.xlu0 %5005
      %5009 = vset.pattern.permute.xlu0 0
      %5010 = vperm.xlu0 %5009, %v4960
      %v5011 = vpop.permute.xlu0 %5010
      %5014 = vset.pattern.permute.xlu0 0
      %5015 = vperm.xlu0 %5014, %v4961
      %v5016 = vpop.permute.xlu0 %5015
      %5019 = vset.pattern.permute.xlu0 0
      %5020 = vperm.xlu0 %5019, %v4962
      %v5021 = vpop.permute.xlu0 %5020
      %5024 = vset.pattern.permute.xlu0 0
      %5025 = vperm.xlu0 %5024, %v4963
      %v5026 = vpop.permute.xlu0 %5025
      %5029 = vset.pattern.permute.xlu0 0
      %5030 = vperm.xlu0 %5029, %v4964
      %v5031 = vpop.permute.xlu0 %5030
      %5034 = vset.pattern.permute.xlu0 0
      %5035 = vperm.xlu0 %5034, %v4965
      %v5036 = vpop.permute.xlu0 %5035
      %5039 = vset.pattern.permute.xlu0 0
      %5040 = vperm.xlu0 %5039, %v4966
      %v5041 = vpop.permute.xlu0 %5040
      %5044 = vset.pattern.permute.xlu0 0
      %5045 = vperm.xlu0 %5044, %v4967
      %v5046 = vpop.permute.xlu0 %5045
      %5049 = vset.pattern.permute.xlu0 0
      %5050 = vperm.xlu0 %5049, %v4968
      %v5051 = vpop.permute.xlu0 %5050
      %5054 = vset.pattern.permute.xlu0 0
      %5055 = vperm.xlu0 %5054, %v4969
      %v5056 = vpop.permute.xlu0 %5055
      %5059 = vset.pattern.permute.xlu0 0
      %5060 = vperm.xlu0 %5059, %v4970
      %v5061 = vpop.permute.xlu0 %5060
      %5064 = vset.pattern.permute.xlu0 0
      %5065 = vperm.xlu0 %5064, %v4971
      %v5066 = vpop.permute.xlu0 %5065
      %5069 = vset.pattern.permute.xlu0 0
      %5070 = vperm.xlu0 %5069, %v4972
      %v5071 = vpop.permute.xlu0 %5070
      %5074 = vset.pattern.permute.xlu0 0
      %5075 = vperm.xlu0 %5074, %v4973
      %v5076 = vpop.permute.xlu0 %5075
      %5079 = vset.pattern.permute.xlu0 0
      %5080 = vperm.xlu0 %5079, %v4974
      %v5081 = vpop.permute.xlu0 %5080
      %5084 = vset.pattern.permute.xlu0 0
      %5085 = vperm.xlu0 %5084, %v4975
      %v5086 = vpop.permute.xlu0 %5085
      %5089 = vset.pattern.permute.xlu0 0
      %5090 = vperm.xlu0 %5089, %v4976
      %v5091 = vpop.permute.xlu0 %5090
      %5094 = vset.pattern.permute.xlu0 0
      %5095 = vperm.xlu0 %5094, %v4977
      %v5096 = vpop.permute.xlu0 %5095
      %5099 = vset.pattern.permute.xlu0 0
      %5100 = vperm.xlu0 %5099, %v4978
      %v5101 = vpop.permute.xlu0 %5100
      %5104 = vset.pattern.permute.xlu0 0
      %5105 = vperm.xlu0 %5104, %v4979
      %v5106 = vpop.permute.xlu0 %5105
      %5109 = vset.pattern.permute.xlu0 0
      %5110 = vperm.xlu0 %5109, %v4980
      %v5111 = vpop.permute.xlu0 %5110
      %5114 = vset.pattern.permute.xlu0 0
      %5115 = vperm.xlu0 %5114, %v4981
      %v5116 = vpop.permute.xlu0 %5115
      %5119 = vset.pattern.permute.xlu0 0
      %5120 = vperm.xlu0 %5119, %v4982
      %v5121 = vpop.permute.xlu0 %5120
      %5124 = vset.pattern.permute.xlu0 0
      %5125 = vperm.xlu0 %5124, %v4983
      %v5126 = vpop.permute.xlu0 %5125
      %5129 = vset.pattern.permute.xlu0 0
      %5130 = vperm.xlu0 %5129, %v4984
      %v5131 = vpop.permute.xlu0 %5130
      %5134 = vset.pattern.permute.xlu0 0
      %5135 = vperm.xlu0 %5134, %v4985
      %v5136 = vpop.permute.xlu0 %5135
      %5139 = vset.pattern.permute.xlu0 0
      %5140 = vperm.xlu0 %5139, %v4986
      %v5141 = vpop.permute.xlu0 %5140
      %5144 = vset.pattern.permute.xlu0 0
      %5145 = vperm.xlu0 %5144, %v4987
      %v5146 = vpop.permute.xlu0 %5145
      %v5148 = vmul.f32 %v4890, %v4991
      %v5149 = vmul.f32 %v4889, %v4996
      %v5150 = vmul.f32 %v4888, %v5001
      %v5151 = vmul.f32 %v4887, %v5006
      %v5152 = vmul.f32 %v4886, %v5011
      %v5153 = vmul.f32 %v4885, %v5016
      %v5154 = vmul.f32 %v4884, %v5021
      %v5155 = vmul.f32 %v4883, %v5026
      %v5156 = vmul.f32 %v4882, %v5031
      %v5157 = vmul.f32 %v4881, %v5036
      %v5158 = vmul.f32 %v4880, %v5041
      %v5159 = vmul.f32 %v4879, %v5046
      %v5160 = vmul.f32 %v4878, %v5051
      %v5161 = vmul.f32 %v4877, %v5056
      %v5162 = vmul.f32 %v4876, %v5061
      %v5163 = vmul.f32 %v4875, %v5066
      %v5164 = vmul.f32 %v4874, %v5071
      %v5165 = vmul.f32 %v4873, %v5076
      %v5166 = vmul.f32 %v4872, %v5081
      %v5167 = vmul.f32 %v4871, %v5086
      %v5168 = vmul.f32 %v4870, %v5091
      %v5169 = vmul.f32 %v4869, %v5096
      %v5170 = vmul.f32 %v4868, %v5101
      %v5171 = vmul.f32 %v4867, %v5106
      %v5172 = vmul.f32 %v4866, %v5111
      %v5173 = vmul.f32 %v4865, %v5116
      %v5174 = vmul.f32 %v4864, %v5121
      %v5175 = vmul.f32 %v4863, %v5126
      %v5176 = vmul.f32 %v4862, %v5131
      %v5177 = vmul.f32 %v4861, %v5136
      %v5178 = vmul.f32 %v4860, %v5141
      %v5179 = vmul.f32 %v4891, %v5146
      %v5180 = vadd.f32 %v4795, %v5148
      %v5181 = vadd.f32 %v4796, %v5149
      %v5182 = vadd.f32 %v4797, %v5150
      %v5183 = vadd.f32 %v4798, %v5151
      %v5184 = vadd.f32 %v4799, %v5152
      %v5185 = vadd.f32 %v4800, %v5153
      %v5186 = vadd.f32 %v4801, %v5154
      %v5187 = vadd.f32 %v4802, %v5155
      %v5188 = vadd.f32 %v4803, %v5156
      %v5189 = vadd.f32 %v4804, %v5157
      %v5190 = vadd.f32 %v4805, %v5158
      %v5191 = vadd.f32 %v4806, %v5159
      %v5192 = vadd.f32 %v4807, %v5160
      %v5193 = vadd.f32 %v4808, %v5161
      %v5194 = vadd.f32 %v4809, %v5162
      %v5195 = vadd.f32 %v4810, %v5163
      %v5196 = vadd.f32 %v4811, %v5164
      %v5197 = vadd.f32 %v4812, %v5165
      %v5198 = vadd.f32 %v4813, %v5166
      %v5199 = vadd.f32 %v4814, %v5167
      %v5200 = vadd.f32 %v4815, %v5168
      %v5201 = vadd.f32 %v4816, %v5169
      %v5202 = vadd.f32 %v4817, %v5170
      %v5203 = vadd.f32 %v4818, %v5171
      %v5204 = vadd.f32 %v4819, %v5172
      %v5205 = vadd.f32 %v4820, %v5173
      %v5206 = vadd.f32 %v4821, %v5174
      %v5207 = vadd.f32 %v4822, %v5175
      %v5208 = vadd.f32 %v4823, %v5176
      %v5209 = vadd.f32 %v4824, %v5177
      %v5210 = vadd.f32 %v4825, %v5178
      %v5211 = vadd.f32 %v4826, %v5179
      %v5212 = vmax.f32 %v5180, 0.0
      %v5213 = vmax.f32 %v5181, 0.0
      %v5214 = vmax.f32 %v5182, 0.0
      %v5215 = vmax.f32 %v5183, 0.0
      %v5216 = vmax.f32 %v5184, 0.0
      %v5217 = vmax.f32 %v5185, 0.0
      %v5218 = vmax.f32 %v5186, 0.0
      %v5219 = vmax.f32 %v5187, 0.0
      %v5220 = vmax.f32 %v5188, 0.0
      %v5221 = vmax.f32 %v5189, 0.0
      %v5222 = vmax.f32 %v5190, 0.0
      %v5223 = vmax.f32 %v5191, 0.0
      %v5224 = vmax.f32 %v5192, 0.0
      %v5225 = vmax.f32 %v5193, 0.0
      %v5226 = vmax.f32 %v5194, 0.0
      %v5227 = vmax.f32 %v5195, 0.0
      %v5228 = vmax.f32 %v5196, 0.0
      %v5229 = vmax.f32 %v5197, 0.0
      %v5230 = vmax.f32 %v5198, 0.0
      %v5231 = vmax.f32 %v5199, 0.0
      %v5232 = vmax.f32 %v5200, 0.0
      %v5233 = vmax.f32 %v5201, 0.0
      %v5234 = vmax.f32 %v5202, 0.0
      %v5235 = vmax.f32 %v5203, 0.0
      %v5236 = vmax.f32 %v5204, 0.0
      %v5237 = vmax.f32 %v5205, 0.0
      %v5238 = vmax.f32 %v5206, 0.0
      %v5239 = vmax.f32 %v5207, 0.0
      %v5240 = vmax.f32 %v5208, 0.0
      %v5241 = vmax.f32 %v5209, 0.0
      %v5242 = vmax.f32 %v5210, 0.0
      %v5243 = vmax.f32 %v5211, 0.0
      %v5244 = vmax.f32 %v5212, %v5213
      %v5245 = vmax.f32 %v5214, %v5215
      %v5246 = vmax.f32 %v5216, %v5217
      %v5247 = vmax.f32 %v5218, %v5219
      %v5248 = vmax.f32 %v5220, %v5221
      %v5249 = vmax.f32 %v5222, %v5223
      %v5250 = vmax.f32 %v5224, %v5225
      %v5251 = vmax.f32 %v5226, %v5227
      %v5252 = vmax.f32 %v5228, %v5229
      %v5253 = vmax.f32 %v5230, %v5231
      %v5254 = vmax.f32 %v5232, %v5233
      %v5255 = vmax.f32 %v5234, %v5235
      %v5256 = vmax.f32 %v5236, %v5237
      %v5257 = vmax.f32 %v5238, %v5239
      %v5258 = vmax.f32 %v5240, %v5241
      %v5259 = vmax.f32 %v5242, %v5243
      %v5260 = vrot.slane %v5244, 4
      %v5261 = vmax.f32 %v5244, %v5260
      %v5262 = vrot.slane %v5261, 2
      %v5263 = vmax.f32 %v5261, %v5262
      %v5264 = vrot.slane %v5263, 1
      %v5265 = vmax.f32 %v5263, %v5264
      %v5266 = vrot.slane %v5245, 4
      %v5267 = vmax.f32 %v5245, %v5266
      %v5268 = vrot.slane %v5267, 2
      %v5269 = vmax.f32 %v5267, %v5268
      %v5270 = vrot.slane %v5269, 1
      %v5271 = vmax.f32 %v5269, %v5270
      %v5272 = vrot.slane %v5246, 4
      %v5273 = vmax.f32 %v5246, %v5272
      %v5274 = vrot.slane %v5273, 2
      %v5275 = vmax.f32 %v5273, %v5274
      %v5276 = vrot.slane %v5275, 1
      %v5277 = vmax.f32 %v5275, %v5276
      %v5278 = vrot.slane %v5247, 4
      %v5279 = vmax.f32 %v5247, %v5278
      %v5280 = vrot.slane %v5279, 2
      %v5281 = vmax.f32 %v5279, %v5280
      %v5282 = vrot.slane %v5281, 1
      %v5283 = vmax.f32 %v5281, %v5282
      %v5284 = vrot.slane %v5248, 4
      %v5285 = vmax.f32 %v5248, %v5284
      %v5286 = vrot.slane %v5285, 2
      %v5287 = vmax.f32 %v5285, %v5286
      %v5288 = vrot.slane %v5287, 1
      %v5289 = vmax.f32 %v5287, %v5288
      %v5290 = vrot.slane %v5249, 4
      %v5291 = vmax.f32 %v5249, %v5290
      %v5292 = vrot.slane %v5291, 2
      %v5293 = vmax.f32 %v5291, %v5292
      %v5294 = vrot.slane %v5293, 1
      %v5295 = vmax.f32 %v5293, %v5294
      %v5296 = vrot.slane %v5250, 4
      %v5297 = vmax.f32 %v5250, %v5296
      %v5298 = vrot.slane %v5297, 2
      %v5299 = vmax.f32 %v5297, %v5298
      %v5300 = vrot.slane %v5299, 1
      %v5301 = vmax.f32 %v5299, %v5300
      %v5302 = vrot.slane %v5251, 4
      %v5303 = vmax.f32 %v5251, %v5302
      %v5304 = vrot.slane %v5303, 2
      %v5305 = vmax.f32 %v5303, %v5304
      %v5306 = vrot.slane %v5305, 1
      %v5307 = vmax.f32 %v5305, %v5306
      %v5308 = vrot.slane %v5252, 4
      %v5309 = vmax.f32 %v5252, %v5308
      %v5310 = vrot.slane %v5309, 2
      %v5311 = vmax.f32 %v5309, %v5310
      %v5312 = vrot.slane %v5311, 1
      %v5313 = vmax.f32 %v5311, %v5312
      %v5314 = vrot.slane %v5253, 4
      %v5315 = vmax.f32 %v5253, %v5314
      %v5316 = vrot.slane %v5315, 2
      %v5317 = vmax.f32 %v5315, %v5316
      %v5318 = vrot.slane %v5317, 1
      %v5319 = vmax.f32 %v5317, %v5318
      %v5320 = vrot.slane %v5254, 4
      %v5321 = vmax.f32 %v5254, %v5320
      %v5322 = vrot.slane %v5321, 2
      %v5323 = vmax.f32 %v5321, %v5322
      %v5324 = vrot.slane %v5323, 1
      %v5325 = vmax.f32 %v5323, %v5324
      %v5326 = vrot.slane %v5255, 4
      %v5327 = vmax.f32 %v5255, %v5326
      %v5328 = vrot.slane %v5327, 2
      %v5329 = vmax.f32 %v5327, %v5328
      %v5330 = vrot.slane %v5329, 1
      %v5331 = vmax.f32 %v5329, %v5330
      %v5332 = vrot.slane %v5256, 4
      %v5333 = vmax.f32 %v5256, %v5332
      %v5334 = vrot.slane %v5333, 2
      %v5335 = vmax.f32 %v5333, %v5334
      %v5336 = vrot.slane %v5335, 1
      %v5337 = vmax.f32 %v5335, %v5336
      %v5338 = vrot.slane %v5257, 4
      %v5339 = vmax.f32 %v5257, %v5338
      %v5340 = vrot.slane %v5339, 2
      %v5341 = vmax.f32 %v5339, %v5340
      %v5342 = vrot.slane %v5341, 1
      %v5343 = vmax.f32 %v5341, %v5342
      %v5344 = vrot.slane %v5258, 4
      %v5345 = vmax.f32 %v5258, %v5344
      %v5346 = vrot.slane %v5345, 2
      %v5347 = vmax.f32 %v5345, %v5346
      %v5348 = vrot.slane %v5347, 1
      %v5349 = vmax.f32 %v5347, %v5348
      %v5350 = vrot.slane %v5259, 4
      %v5351 = vmax.f32 %v5259, %v5350
      %v5352 = vrot.slane %v5351, 2
      %v5353 = vmax.f32 %v5351, %v5352
      %v5354 = vrot.slane %v5353, 1
      %v5355 = vmax.f32 %v5353, %v5354
      %v5356 = vld [vmem:[%s3] sm:$0xff]
      %v5357 = vld [vmem:[%s3 + $0x8] sm:$0xff]
      %v5358 = vld [vmem:[%s3 + $0x10] sm:$0xff]
      %v5359 = vld [vmem:[%s3 + $0x18] sm:$0xff]
      %v5360 = vld [vmem:[%s3 + $0x20] sm:$0xff]
      %v5361 = vld [vmem:[%s3 + $0x28] sm:$0xff]
      %v5362 = vld [vmem:[%s3 + $0x30] sm:$0xff]
      %v5363 = vld [vmem:[%s3 + $0x38] sm:$0xff]
      %v5364 = vld [vmem:[%s3 + $0x40] sm:$0xff]
      %v5365 = vld [vmem:[%s3 + $0x48] sm:$0xff]
      %v5366 = vld [vmem:[%s3 + $0x50] sm:$0xff]
      %v5367 = vld [vmem:[%s3 + $0x58] sm:$0xff]
      %v5368 = vld [vmem:[%s3 + $0x60] sm:$0xff]
      %v5369 = vld [vmem:[%s3 + $0x68] sm:$0xff]
      %v5370 = vld [vmem:[%s3 + $0x70] sm:$0xff]
      %v5371 = vld [vmem:[%s3 + $0x78] sm:$0xff]
      %vm5388 = vcmask 1041409
      %v5389 = vsel %vm5388, %v5271, %v5265
      %vm5390 = vcmask 1042434
      %v5391 = vsel %vm5390, %v5277, %v5389
      %vm5392 = vcmask 1043459
      %v5393 = vsel %vm5392, %v5283, %v5391
      %vm5394 = vcmask 1044484
      %v5395 = vsel %vm5394, %v5289, %v5393
      %vm5396 = vcmask 1045509
      %v5397 = vsel %vm5396, %v5295, %v5395
      %vm5398 = vcmask 1046534
      %v5399 = vsel %vm5398, %v5301, %v5397
      %vm5400 = vcmask 1047559
      %v5401 = vsel %vm5400, %v5307, %v5399
      %v5402 = vsel %vm5388, %v5319, %v5313
      %v5403 = vsel %vm5390, %v5325, %v5402
      %v5404 = vsel %vm5392, %v5331, %v5403
      %v5405 = vsel %vm5394, %v5337, %v5404
      %v5406 = vsel %vm5396, %v5343, %v5405
      %v5407 = vsel %vm5398, %v5349, %v5406
      %v5408 = vsel %vm5400, %v5355, %v5407
      %v5411 = vand.u32 %v5371, 4294901760
      %5412 = vmatpush.msra.mxu0 %v5411
      %v5413 = vand.u32 %v5370, 4294901760
      %5414 = vmatpush.msra.mxu0 %v5413
      %v5415 = vand.u32 %v5369, 4294901760
      %5416 = vmatpush.msra.mxu0 %v5415
      %v5417 = vand.u32 %v5368, 4294901760
      %5418 = vmatpush.msra.mxu0 %v5417
      %v5419 = vand.u32 %v5367, 4294901760
      %5420 = vmatpush.msra.mxu0 %v5419
      %v5421 = vand.u32 %v5366, 4294901760
      %5422 = vmatpush.msra.mxu0 %v5421
      %v5423 = vand.u32 %v5365, 4294901760
      %5424 = vmatpush.msra.mxu0 %v5423
      %v5425 = vand.u32 %v5364, 4294901760
      %5426 = vmatpush.msra.mxu0 %v5425
      %v5427 = vand.u32 %v5363, 4294901760
      %5428 = vmatpush.msra.mxu0 %v5427
      %v5429 = vand.u32 %v5362, 4294901760
      %5430 = vmatpush.msra.mxu0 %v5429
      %v5431 = vand.u32 %v5361, 4294901760
      %5432 = vmatpush.msra.mxu0 %v5431
      %v5433 = vand.u32 %v5360, 4294901760
      %5434 = vmatpush.msra.mxu0 %v5433
      %v5435 = vand.u32 %v5359, 4294901760
      %5436 = vmatpush.msra.mxu0 %v5435
      %v5437 = vand.u32 %v5358, 4294901760
      %5438 = vmatpush.msra.mxu0 %v5437
      %v5439 = vand.u32 %v5357, 4294901760
      %5440 = vmatpush.msra.mxu0 %v5439
      %v5441 = vand.u32 %v5356, 4294901760
      %5442 = vmatpush.msra.mxu0 %v5441
      %v5443 = vand.u32 %v5401, 4294901760
      %v5444 = vsub.f32 %v5401, %v5443
      %v5445 = vand.u32 %v5444, 4294901760
      %v5446 = vsub.f32 %v5444, %v5445
      %v5447 = vand.u32 %v5446, 4294901760
      %5448 = vmatmul.f32.gmra.mxu0 %v5447
      %v5449 = vpop.f32.mrf.mxu0
      %v5450 = vadd.f32 0.0, %v5449
      %v5451 = vand.u32 %v5408, 4294901760
      %v5452 = vsub.f32 %v5408, %v5451
      %v5453 = vand.u32 %v5452, 4294901760
      %v5454 = vsub.f32 %v5452, %v5453
      %v5455 = vand.u32 %v5454, 4294901760
      %5456 = vmatmul.f32.gmra.mxu0 %v5455
      %v5457 = vpop.f32.mrf.mxu0
      %v5458 = vadd.f32 0.0, %v5457
      %5459 = vdwg.mxu0
      %v5460 = vand.u32 %v5371, 4294901760
      %v5461 = vsub.f32 %v5371, %v5460
      %v5462 = vand.u32 %v5461, 4294901760
      %v5463 = vsub.f32 %v5461, %v5462
      %v5464 = vand.u32 %v5463, 4294901760
      %5465 = vmatpush.msra.mxu0 %v5464
      %v5466 = vand.u32 %v5370, 4294901760
      %v5467 = vsub.f32 %v5370, %v5466
      %v5468 = vand.u32 %v5467, 4294901760
      %v5469 = vsub.f32 %v5467, %v5468
      %v5470 = vand.u32 %v5469, 4294901760
      %5471 = vmatpush.msra.mxu0 %v5470
      %v5472 = vand.u32 %v5369, 4294901760
      %v5473 = vsub.f32 %v5369, %v5472
      %v5474 = vand.u32 %v5473, 4294901760
      %v5475 = vsub.f32 %v5473, %v5474
      %v5476 = vand.u32 %v5475, 4294901760
      %5477 = vmatpush.msra.mxu0 %v5476
      %v5478 = vand.u32 %v5368, 4294901760
      %v5479 = vsub.f32 %v5368, %v5478
      %v5480 = vand.u32 %v5479, 4294901760
      %v5481 = vsub.f32 %v5479, %v5480
      %v5482 = vand.u32 %v5481, 4294901760
      %5483 = vmatpush.msra.mxu0 %v5482
      %v5484 = vand.u32 %v5367, 4294901760
      %v5485 = vsub.f32 %v5367, %v5484
      %v5486 = vand.u32 %v5485, 4294901760
      %v5487 = vsub.f32 %v5485, %v5486
      %v5488 = vand.u32 %v5487, 4294901760
      %5489 = vmatpush.msra.mxu0 %v5488
      %v5490 = vand.u32 %v5366, 4294901760
      %v5491 = vsub.f32 %v5366, %v5490
      %v5492 = vand.u32 %v5491, 4294901760
      %v5493 = vsub.f32 %v5491, %v5492
      %v5494 = vand.u32 %v5493, 4294901760
      %5495 = vmatpush.msra.mxu0 %v5494
      %v5496 = vand.u32 %v5365, 4294901760
      %v5497 = vsub.f32 %v5365, %v5496
      %v5498 = vand.u32 %v5497, 4294901760
      %v5499 = vsub.f32 %v5497, %v5498
      %v5500 = vand.u32 %v5499, 4294901760
      %5501 = vmatpush.msra.mxu0 %v5500
      %v5502 = vand.u32 %v5364, 4294901760
      %v5503 = vsub.f32 %v5364, %v5502
      %v5504 = vand.u32 %v5503, 4294901760
      %v5505 = vsub.f32 %v5503, %v5504
      %v5506 = vand.u32 %v5505, 4294901760
      %5507 = vmatpush.msra.mxu0 %v5506
      %v5508 = vand.u32 %v5363, 4294901760
      %v5509 = vsub.f32 %v5363, %v5508
      %v5510 = vand.u32 %v5509, 4294901760
      %v5511 = vsub.f32 %v5509, %v5510
      %v5512 = vand.u32 %v5511, 4294901760
      %5513 = vmatpush.msra.mxu0 %v5512
      %v5514 = vand.u32 %v5362, 4294901760
      %v5515 = vsub.f32 %v5362, %v5514
      %v5516 = vand.u32 %v5515, 4294901760
      %v5517 = vsub.f32 %v5515, %v5516
      %v5518 = vand.u32 %v5517, 4294901760
      %5519 = vmatpush.msra.mxu0 %v5518
      %v5520 = vand.u32 %v5361, 4294901760
      %v5521 = vsub.f32 %v5361, %v5520
      %v5522 = vand.u32 %v5521, 4294901760
      %v5523 = vsub.f32 %v5521, %v5522
      %v5524 = vand.u32 %v5523, 4294901760
      %5525 = vmatpush.msra.mxu0 %v5524
      %v5526 = vand.u32 %v5360, 4294901760
      %v5527 = vsub.f32 %v5360, %v5526
      %v5528 = vand.u32 %v5527, 4294901760
      %v5529 = vsub.f32 %v5527, %v5528
      %v5530 = vand.u32 %v5529, 4294901760
      %5531 = vmatpush.msra.mxu0 %v5530
      %v5532 = vand.u32 %v5359, 4294901760
      %v5533 = vsub.f32 %v5359, %v5532
      %v5534 = vand.u32 %v5533, 4294901760
      %v5535 = vsub.f32 %v5533, %v5534
      %v5536 = vand.u32 %v5535, 4294901760
      %5537 = vmatpush.msra.mxu0 %v5536
      %v5538 = vand.u32 %v5358, 4294901760
      %v5539 = vsub.f32 %v5358, %v5538
      %v5540 = vand.u32 %v5539, 4294901760
      %v5541 = vsub.f32 %v5539, %v5540
      %v5542 = vand.u32 %v5541, 4294901760
      %5543 = vmatpush.msra.mxu0 %v5542
      %v5544 = vand.u32 %v5357, 4294901760
      %v5545 = vsub.f32 %v5357, %v5544
      %v5546 = vand.u32 %v5545, 4294901760
      %v5547 = vsub.f32 %v5545, %v5546
      %v5548 = vand.u32 %v5547, 4294901760
      %5549 = vmatpush.msra.mxu0 %v5548
      %v5550 = vand.u32 %v5356, 4294901760
      %v5551 = vsub.f32 %v5356, %v5550
      %v5552 = vand.u32 %v5551, 4294901760
      %v5553 = vsub.f32 %v5551, %v5552
      %v5554 = vand.u32 %v5553, 4294901760
      %5555 = vmatpush.msra.mxu0 %v5554
      %v5556 = vand.u32 %v5401, 4294901760
      %5557 = vmatmul.f32.gmra.mxu0 %v5556
      %v5558 = vpop.f32.mrf.mxu0
      %v5559 = vadd.f32 %v5450, %v5558
      %v5560 = vand.u32 %v5408, 4294901760
      %5561 = vmatmul.f32.gmra.mxu0 %v5560
      %v5562 = vpop.f32.mrf.mxu0
      %v5563 = vadd.f32 %v5458, %v5562
      %5564 = vdwg.mxu0
      %v5565 = vand.u32 %v5371, 4294901760
      %v5566 = vsub.f32 %v5371, %v5565
      %5567 = vmatpush.msra.mxu0 %v5566
      %v5568 = vand.u32 %v5370, 4294901760
      %v5569 = vsub.f32 %v5370, %v5568
      %5570 = vmatpush.msra.mxu0 %v5569
      %v5571 = vand.u32 %v5369, 4294901760
      %v5572 = vsub.f32 %v5369, %v5571
      %5573 = vmatpush.msra.mxu0 %v5572
      %v5574 = vand.u32 %v5368, 4294901760
      %v5575 = vsub.f32 %v5368, %v5574
      %5576 = vmatpush.msra.mxu0 %v5575
      %v5577 = vand.u32 %v5367, 4294901760
      %v5578 = vsub.f32 %v5367, %v5577
      %5579 = vmatpush.msra.mxu0 %v5578
      %v5580 = vand.u32 %v5366, 4294901760
      %v5581 = vsub.f32 %v5366, %v5580
      %5582 = vmatpush.msra.mxu0 %v5581
      %v5583 = vand.u32 %v5365, 4294901760
      %v5584 = vsub.f32 %v5365, %v5583
      %5585 = vmatpush.msra.mxu0 %v5584
      %v5586 = vand.u32 %v5364, 4294901760
      %v5587 = vsub.f32 %v5364, %v5586
      %5588 = vmatpush.msra.mxu0 %v5587
      %v5589 = vand.u32 %v5363, 4294901760
      %v5590 = vsub.f32 %v5363, %v5589
      %5591 = vmatpush.msra.mxu0 %v5590
      %v5592 = vand.u32 %v5362, 4294901760
      %v5593 = vsub.f32 %v5362, %v5592
      %5594 = vmatpush.msra.mxu0 %v5593
      %v5595 = vand.u32 %v5361, 4294901760
      %v5596 = vsub.f32 %v5361, %v5595
      %5597 = vmatpush.msra.mxu0 %v5596
      %v5598 = vand.u32 %v5360, 4294901760
      %v5599 = vsub.f32 %v5360, %v5598
      %5600 = vmatpush.msra.mxu0 %v5599
      %v5601 = vand.u32 %v5359, 4294901760
      %v5602 = vsub.f32 %v5359, %v5601
      %5603 = vmatpush.msra.mxu0 %v5602
      %v5604 = vand.u32 %v5358, 4294901760
      %v5605 = vsub.f32 %v5358, %v5604
      %5606 = vmatpush.msra.mxu0 %v5605
      %v5607 = vand.u32 %v5357, 4294901760
      %v5608 = vsub.f32 %v5357, %v5607
      %5609 = vmatpush.msra.mxu0 %v5608
      %v5610 = vand.u32 %v5356, 4294901760
      %v5611 = vsub.f32 %v5356, %v5610
      %5612 = vmatpush.msra.mxu0 %v5611
      %v5613 = vand.u32 %v5401, 4294901760
      %v5614 = vsub.f32 %v5401, %v5613
      %5615 = vmatmul.f32.gmra.mxu0 %v5614
      %v5616 = vpop.f32.mrf.mxu0
      %v5617 = vadd.f32 %v5559, %v5616
      %v5618 = vand.u32 %v5408, 4294901760
      %v5619 = vsub.f32 %v5408, %v5618
      %5620 = vmatmul.f32.gmra.mxu0 %v5619
      %v5621 = vpop.f32.mrf.mxu0
      %v5622 = vadd.f32 %v5563, %v5621
      %5623 = vdwg.mxu0
      %v5624 = vand.u32 %v5371, 4294901760
      %5625 = vmatpush.msra.mxu0 %v5624
      %v5626 = vand.u32 %v5370, 4294901760
      %5627 = vmatpush.msra.mxu0 %v5626
      %v5628 = vand.u32 %v5369, 4294901760
      %5629 = vmatpush.msra.mxu0 %v5628
      %v5630 = vand.u32 %v5368, 4294901760
      %5631 = vmatpush.msra.mxu0 %v5630
      %v5632 = vand.u32 %v5367, 4294901760
      %5633 = vmatpush.msra.mxu0 %v5632
      %v5634 = vand.u32 %v5366, 4294901760
      %5635 = vmatpush.msra.mxu0 %v5634
      %v5636 = vand.u32 %v5365, 4294901760
      %5637 = vmatpush.msra.mxu0 %v5636
      %v5638 = vand.u32 %v5364, 4294901760
      %5639 = vmatpush.msra.mxu0 %v5638
      %v5640 = vand.u32 %v5363, 4294901760
      %5641 = vmatpush.msra.mxu0 %v5640
      %v5642 = vand.u32 %v5362, 4294901760
      %5643 = vmatpush.msra.mxu0 %v5642
      %v5644 = vand.u32 %v5361, 4294901760
      %5645 = vmatpush.msra.mxu0 %v5644
      %v5646 = vand.u32 %v5360, 4294901760
      %5647 = vmatpush.msra.mxu0 %v5646
      %v5648 = vand.u32 %v5359, 4294901760
      %5649 = vmatpush.msra.mxu0 %v5648
      %v5650 = vand.u32 %v5358, 4294901760
      %5651 = vmatpush.msra.mxu0 %v5650
      %v5652 = vand.u32 %v5357, 4294901760
      %5653 = vmatpush.msra.mxu0 %v5652
      %v5654 = vand.u32 %v5356, 4294901760
      %5655 = vmatpush.msra.mxu0 %v5654
      %v5656 = vand.u32 %v5401, 4294901760
      %v5657 = vsub.f32 %v5401, %v5656
      %v5658 = vand.u32 %v5657, 4294901760
      %5659 = vmatmul.f32.gmra.mxu0 %v5658
      %v5660 = vpop.f32.mrf.mxu0
      %v5661 = vadd.f32 %v5617, %v5660
      %v5662 = vand.u32 %v5408, 4294901760
      %v5663 = vsub.f32 %v5408, %v5662
      %v5664 = vand.u32 %v5663, 4294901760
      %5665 = vmatmul.f32.gmra.mxu0 %v5664
      %v5666 = vpop.f32.mrf.mxu0
      %v5667 = vadd.f32 %v5622, %v5666
      %5668 = vdwg.mxu0
      %v5669 = vand.u32 %v5371, 4294901760
      %v5670 = vsub.f32 %v5371, %v5669
      %v5671 = vand.u32 %v5670, 4294901760
      %5672 = vmatpush.msra.mxu0 %v5671
      %v5673 = vand.u32 %v5370, 4294901760
      %v5674 = vsub.f32 %v5370, %v5673
      %v5675 = vand.u32 %v5674, 4294901760
      %5676 = vmatpush.msra.mxu0 %v5675
      %v5677 = vand.u32 %v5369, 4294901760
      %v5678 = vsub.f32 %v5369, %v5677
      %v5679 = vand.u32 %v5678, 4294901760
      %5680 = vmatpush.msra.mxu0 %v5679
      %v5681 = vand.u32 %v5368, 4294901760
      %v5682 = vsub.f32 %v5368, %v5681
      %v5683 = vand.u32 %v5682, 4294901760
      %5684 = vmatpush.msra.mxu0 %v5683
      %v5685 = vand.u32 %v5367, 4294901760
      %v5686 = vsub.f32 %v5367, %v5685
      %v5687 = vand.u32 %v5686, 4294901760
      %5688 = vmatpush.msra.mxu0 %v5687
      %v5689 = vand.u32 %v5366, 4294901760
      %v5690 = vsub.f32 %v5366, %v5689
      %v5691 = vand.u32 %v5690, 4294901760
      %5692 = vmatpush.msra.mxu0 %v5691
      %v5693 = vand.u32 %v5365, 4294901760
      %v5694 = vsub.f32 %v5365, %v5693
      %v5695 = vand.u32 %v5694, 4294901760
      %5696 = vmatpush.msra.mxu0 %v5695
      %v5697 = vand.u32 %v5364, 4294901760
      %v5698 = vsub.f32 %v5364, %v5697
      %v5699 = vand.u32 %v5698, 4294901760
      %5700 = vmatpush.msra.mxu0 %v5699
      %v5701 = vand.u32 %v5363, 4294901760
      %v5702 = vsub.f32 %v5363, %v5701
      %v5703 = vand.u32 %v5702, 4294901760
      %5704 = vmatpush.msra.mxu0 %v5703
      %v5705 = vand.u32 %v5362, 4294901760
      %v5706 = vsub.f32 %v5362, %v5705
      %v5707 = vand.u32 %v5706, 4294901760
      %5708 = vmatpush.msra.mxu0 %v5707
      %v5709 = vand.u32 %v5361, 4294901760
      %v5710 = vsub.f32 %v5361, %v5709
      %v5711 = vand.u32 %v5710, 4294901760
      %5712 = vmatpush.msra.mxu0 %v5711
      %v5713 = vand.u32 %v5360, 4294901760
      %v5714 = vsub.f32 %v5360, %v5713
      %v5715 = vand.u32 %v5714, 4294901760
      %5716 = vmatpush.msra.mxu0 %v5715
      %v5717 = vand.u32 %v5359, 4294901760
      %v5718 = vsub.f32 %v5359, %v5717
      %v5719 = vand.u32 %v5718, 4294901760
      %5720 = vmatpush.msra.mxu0 %v5719
      %v5721 = vand.u32 %v5358, 4294901760
      %v5722 = vsub.f32 %v5358, %v5721
      %v5723 = vand.u32 %v5722, 4294901760
      %5724 = vmatpush.msra.mxu0 %v5723
      %v5725 = vand.u32 %v5357, 4294901760
      %v5726 = vsub.f32 %v5357, %v5725
      %v5727 = vand.u32 %v5726, 4294901760
      %5728 = vmatpush.msra.mxu0 %v5727
      %v5729 = vand.u32 %v5356, 4294901760
      %v5730 = vsub.f32 %v5356, %v5729
      %v5731 = vand.u32 %v5730, 4294901760
      %5732 = vmatpush.msra.mxu0 %v5731
      %v5733 = vand.u32 %v5401, 4294901760
      %5734 = vmatmul.f32.gmra.mxu0 %v5733
      %v5735 = vpop.f32.mrf.mxu0
      %v5736 = vadd.f32 %v5661, %v5735
      %v5737 = vand.u32 %v5408, 4294901760
      %5738 = vmatmul.f32.gmra.mxu0 %v5737
      %v5739 = vpop.f32.mrf.mxu0
      %v5740 = vadd.f32 %v5667, %v5739
      %5741 = vdwg.mxu0
      %v5742 = vand.u32 %v5371, 4294901760
      %5743 = vmatpush.msra.mxu0 %v5742
      %v5744 = vand.u32 %v5370, 4294901760
      %5745 = vmatpush.msra.mxu0 %v5744
      %v5746 = vand.u32 %v5369, 4294901760
      %5747 = vmatpush.msra.mxu0 %v5746
      %v5748 = vand.u32 %v5368, 4294901760
      %5749 = vmatpush.msra.mxu0 %v5748
      %v5750 = vand.u32 %v5367, 4294901760
      %5751 = vmatpush.msra.mxu0 %v5750
      %v5752 = vand.u32 %v5366, 4294901760
      %5753 = vmatpush.msra.mxu0 %v5752
      %v5754 = vand.u32 %v5365, 4294901760
      %5755 = vmatpush.msra.mxu0 %v5754
      %v5756 = vand.u32 %v5364, 4294901760
      %5757 = vmatpush.msra.mxu0 %v5756
      %v5758 = vand.u32 %v5363, 4294901760
      %5759 = vmatpush.msra.mxu0 %v5758
      %v5760 = vand.u32 %v5362, 4294901760
      %5761 = vmatpush.msra.mxu0 %v5760
      %v5762 = vand.u32 %v5361, 4294901760
      %5763 = vmatpush.msra.mxu0 %v5762
      %v5764 = vand.u32 %v5360, 4294901760
      %5765 = vmatpush.msra.mxu0 %v5764
      %v5766 = vand.u32 %v5359, 4294901760
      %5767 = vmatpush.msra.mxu0 %v5766
      %v5768 = vand.u32 %v5358, 4294901760
      %5769 = vmatpush.msra.mxu0 %v5768
      %v5770 = vand.u32 %v5357, 4294901760
      %5771 = vmatpush.msra.mxu0 %v5770
      %v5772 = vand.u32 %v5356, 4294901760
      %5773 = vmatpush.msra.mxu0 %v5772
      %v5774 = vand.u32 %v5401, 4294901760
      %5775 = vmatmul.f32.gmra.mxu0 %v5774
      %v5776 = vpop.f32.mrf.mxu0
      %v5777 = vadd.f32 %v5736, %v5776
      %v5778 = vand.u32 %v5408, 4294901760
      %5779 = vmatmul.f32.gmra.mxu0 %v5778
      %v5780 = vpop.f32.mrf.mxu0
      %v5781 = vadd.f32 %v5740, %v5780
      %5782 = vdwg.mxu0
      %v5783 = vmax.f32 %v5777, 0.0
      %v5784 = vmax.f32 %v5781, 0.0
      %v5785 = vld [vmem:[%s4] sm:$0xff]
      %v5786 = vld [vmem:[%s4 + $0x8] sm:$0xff]
      %v5787 = vld [vmem:[%s4 + $0x10] sm:$0xff]
      %v5788 = vld [vmem:[%s4 + $0x18] sm:$0xff]
      %v5789 = vld [vmem:[%s4 + $0x20] sm:$0xff]
      %v5790 = vld [vmem:[%s4 + $0x28] sm:$0xff]
      %v5791 = vld [vmem:[%s4 + $0x30] sm:$0xff]
      %v5792 = vld [vmem:[%s4 + $0x38] sm:$0xff]
      %v5793 = vld [vmem:[%s4 + $0x40] sm:$0xff]
      %v5794 = vld [vmem:[%s4 + $0x48] sm:$0xff]
      %v5795 = vld [vmem:[%s4 + $0x50] sm:$0xff]
      %v5796 = vld [vmem:[%s4 + $0x58] sm:$0xff]
      %v5797 = vld [vmem:[%s4 + $0x60] sm:$0xff]
      %v5798 = vld [vmem:[%s4 + $0x68] sm:$0xff]
      %v5799 = vld [vmem:[%s4 + $0x70] sm:$0xff]
      %v5800 = vld [vmem:[%s4 + $0x78] sm:$0xff]
      %v5801 = vand.u32 %v5800, 4294901760
      %5802 = vmatpush.msra.mxu0 %v5801
      %v5803 = vand.u32 %v5799, 4294901760
      %5804 = vmatpush.msra.mxu0 %v5803
      %v5805 = vand.u32 %v5798, 4294901760
      %5806 = vmatpush.msra.mxu0 %v5805
      %v5807 = vand.u32 %v5797, 4294901760
      %5808 = vmatpush.msra.mxu0 %v5807
      %v5809 = vand.u32 %v5796, 4294901760
      %5810 = vmatpush.msra.mxu0 %v5809
      %v5811 = vand.u32 %v5795, 4294901760
      %5812 = vmatpush.msra.mxu0 %v5811
      %v5813 = vand.u32 %v5794, 4294901760
      %5814 = vmatpush.msra.mxu0 %v5813
      %v5815 = vand.u32 %v5793, 4294901760
      %5816 = vmatpush.msra.mxu0 %v5815
      %v5817 = vand.u32 %v5792, 4294901760
      %5818 = vmatpush.msra.mxu0 %v5817
      %v5819 = vand.u32 %v5791, 4294901760
      %5820 = vmatpush.msra.mxu0 %v5819
      %v5821 = vand.u32 %v5790, 4294901760
      %5822 = vmatpush.msra.mxu0 %v5821
      %v5823 = vand.u32 %v5789, 4294901760
      %5824 = vmatpush.msra.mxu0 %v5823
      %v5825 = vand.u32 %v5788, 4294901760
      %5826 = vmatpush.msra.mxu0 %v5825
      %v5827 = vand.u32 %v5787, 4294901760
      %5828 = vmatpush.msra.mxu0 %v5827
      %v5829 = vand.u32 %v5786, 4294901760
      %5830 = vmatpush.msra.mxu0 %v5829
      %v5831 = vand.u32 %v5785, 4294901760
      %5832 = vmatpush.msra.mxu0 %v5831
      %v5833 = vand.u32 %v5783, 4294901760
      %v5834 = vsub.f32 %v5783, %v5833
      %v5835 = vand.u32 %v5834, 4294901760
      %v5836 = vsub.f32 %v5834, %v5835
      %v5837 = vand.u32 %v5836, 4294901760
      %5838 = vmatmul.f32.gmra.mxu0 %v5837
      %v5839 = vpop.f32.mrf.mxu0
      %v5840 = vadd.f32 0.0, %v5839
      %v5841 = vand.u32 %v5784, 4294901760
      %v5842 = vsub.f32 %v5784, %v5841
      %v5843 = vand.u32 %v5842, 4294901760
      %v5844 = vsub.f32 %v5842, %v5843
      %v5845 = vand.u32 %v5844, 4294901760
      %5846 = vmatmul.f32.gmra.mxu0 %v5845
      %v5847 = vpop.f32.mrf.mxu0
      %v5848 = vadd.f32 0.0, %v5847
      %5849 = vdwg.mxu0
      %v5850 = vand.u32 %v5800, 4294901760
      %v5851 = vsub.f32 %v5800, %v5850
      %v5852 = vand.u32 %v5851, 4294901760
      %v5853 = vsub.f32 %v5851, %v5852
      %v5854 = vand.u32 %v5853, 4294901760
      %5855 = vmatpush.msra.mxu0 %v5854
      %v5856 = vand.u32 %v5799, 4294901760
      %v5857 = vsub.f32 %v5799, %v5856
      %v5858 = vand.u32 %v5857, 4294901760
      %v5859 = vsub.f32 %v5857, %v5858
      %v5860 = vand.u32 %v5859, 4294901760
      %5861 = vmatpush.msra.mxu0 %v5860
      %v5862 = vand.u32 %v5798, 4294901760
      %v5863 = vsub.f32 %v5798, %v5862
      %v5864 = vand.u32 %v5863, 4294901760
      %v5865 = vsub.f32 %v5863, %v5864
      %v5866 = vand.u32 %v5865, 4294901760
      %5867 = vmatpush.msra.mxu0 %v5866
      %v5868 = vand.u32 %v5797, 4294901760
      %v5869 = vsub.f32 %v5797, %v5868
      %v5870 = vand.u32 %v5869, 4294901760
      %v5871 = vsub.f32 %v5869, %v5870
      %v5872 = vand.u32 %v5871, 4294901760
      %5873 = vmatpush.msra.mxu0 %v5872
      %v5874 = vand.u32 %v5796, 4294901760
      %v5875 = vsub.f32 %v5796, %v5874
      %v5876 = vand.u32 %v5875, 4294901760
      %v5877 = vsub.f32 %v5875, %v5876
      %v5878 = vand.u32 %v5877, 4294901760
      %5879 = vmatpush.msra.mxu0 %v5878
      %v5880 = vand.u32 %v5795, 4294901760
      %v5881 = vsub.f32 %v5795, %v5880
      %v5882 = vand.u32 %v5881, 4294901760
      %v5883 = vsub.f32 %v5881, %v5882
      %v5884 = vand.u32 %v5883, 4294901760
      %5885 = vmatpush.msra.mxu0 %v5884
      %v5886 = vand.u32 %v5794, 4294901760
      %v5887 = vsub.f32 %v5794, %v5886
      %v5888 = vand.u32 %v5887, 4294901760
      %v5889 = vsub.f32 %v5887, %v5888
      %v5890 = vand.u32 %v5889, 4294901760
      %5891 = vmatpush.msra.mxu0 %v5890
      %v5892 = vand.u32 %v5793, 4294901760
      %v5893 = vsub.f32 %v5793, %v5892
      %v5894 = vand.u32 %v5893, 4294901760
      %v5895 = vsub.f32 %v5893, %v5894
      %v5896 = vand.u32 %v5895, 4294901760
      %5897 = vmatpush.msra.mxu0 %v5896
      %v5898 = vand.u32 %v5792, 4294901760
      %v5899 = vsub.f32 %v5792, %v5898
      %v5900 = vand.u32 %v5899, 4294901760
      %v5901 = vsub.f32 %v5899, %v5900
      %v5902 = vand.u32 %v5901, 4294901760
      %5903 = vmatpush.msra.mxu0 %v5902
      %v5904 = vand.u32 %v5791, 4294901760
      %v5905 = vsub.f32 %v5791, %v5904
      %v5906 = vand.u32 %v5905, 4294901760
      %v5907 = vsub.f32 %v5905, %v5906
      %v5908 = vand.u32 %v5907, 4294901760
      %5909 = vmatpush.msra.mxu0 %v5908
      %v5910 = vand.u32 %v5790, 4294901760
      %v5911 = vsub.f32 %v5790, %v5910
      %v5912 = vand.u32 %v5911, 4294901760
      %v5913 = vsub.f32 %v5911, %v5912
      %v5914 = vand.u32 %v5913, 4294901760
      %5915 = vmatpush.msra.mxu0 %v5914
      %v5916 = vand.u32 %v5789, 4294901760
      %v5917 = vsub.f32 %v5789, %v5916
      %v5918 = vand.u32 %v5917, 4294901760
      %v5919 = vsub.f32 %v5917, %v5918
      %v5920 = vand.u32 %v5919, 4294901760
      %5921 = vmatpush.msra.mxu0 %v5920
      %v5922 = vand.u32 %v5788, 4294901760
      %v5923 = vsub.f32 %v5788, %v5922
      %v5924 = vand.u32 %v5923, 4294901760
      %v5925 = vsub.f32 %v5923, %v5924
      %v5926 = vand.u32 %v5925, 4294901760
      %5927 = vmatpush.msra.mxu0 %v5926
      %v5928 = vand.u32 %v5787, 4294901760
      %v5929 = vsub.f32 %v5787, %v5928
      %v5930 = vand.u32 %v5929, 4294901760
      %v5931 = vsub.f32 %v5929, %v5930
      %v5932 = vand.u32 %v5931, 4294901760
      %5933 = vmatpush.msra.mxu0 %v5932
      %v5934 = vand.u32 %v5786, 4294901760
      %v5935 = vsub.f32 %v5786, %v5934
      %v5936 = vand.u32 %v5935, 4294901760
      %v5937 = vsub.f32 %v5935, %v5936
      %v5938 = vand.u32 %v5937, 4294901760
      %5939 = vmatpush.msra.mxu0 %v5938
      %v5940 = vand.u32 %v5785, 4294901760
      %v5941 = vsub.f32 %v5785, %v5940
      %v5942 = vand.u32 %v5941, 4294901760
      %v5943 = vsub.f32 %v5941, %v5942
      %v5944 = vand.u32 %v5943, 4294901760
      %5945 = vmatpush.msra.mxu0 %v5944
      %v5946 = vand.u32 %v5783, 4294901760
      %5947 = vmatmul.f32.gmra.mxu0 %v5946
      %v5948 = vpop.f32.mrf.mxu0
      %v5949 = vadd.f32 %v5840, %v5948
      %v5950 = vand.u32 %v5784, 4294901760
      %5951 = vmatmul.f32.gmra.mxu0 %v5950
      %v5952 = vpop.f32.mrf.mxu0
      %v5953 = vadd.f32 %v5848, %v5952
      %5954 = vdwg.mxu0
      %v5955 = vand.u32 %v5800, 4294901760
      %v5956 = vsub.f32 %v5800, %v5955
      %5957 = vmatpush.msra.mxu0 %v5956
      %v5958 = vand.u32 %v5799, 4294901760
      %v5959 = vsub.f32 %v5799, %v5958
      %5960 = vmatpush.msra.mxu0 %v5959
      %v5961 = vand.u32 %v5798, 4294901760
      %v5962 = vsub.f32 %v5798, %v5961
      %5963 = vmatpush.msra.mxu0 %v5962
      %v5964 = vand.u32 %v5797, 4294901760
      %v5965 = vsub.f32 %v5797, %v5964
      %5966 = vmatpush.msra.mxu0 %v5965
      %v5967 = vand.u32 %v5796, 4294901760
      %v5968 = vsub.f32 %v5796, %v5967
      %5969 = vmatpush.msra.mxu0 %v5968
      %v5970 = vand.u32 %v5795, 4294901760
      %v5971 = vsub.f32 %v5795, %v5970
      %5972 = vmatpush.msra.mxu0 %v5971
      %v5973 = vand.u32 %v5794, 4294901760
      %v5974 = vsub.f32 %v5794, %v5973
      %5975 = vmatpush.msra.mxu0 %v5974
      %v5976 = vand.u32 %v5793, 4294901760
      %v5977 = vsub.f32 %v5793, %v5976
      %5978 = vmatpush.msra.mxu0 %v5977
      %v5979 = vand.u32 %v5792, 4294901760
      %v5980 = vsub.f32 %v5792, %v5979
      %5981 = vmatpush.msra.mxu0 %v5980
      %v5982 = vand.u32 %v5791, 4294901760
      %v5983 = vsub.f32 %v5791, %v5982
      %5984 = vmatpush.msra.mxu0 %v5983
      %v5985 = vand.u32 %v5790, 4294901760
      %v5986 = vsub.f32 %v5790, %v5985
      %5987 = vmatpush.msra.mxu0 %v5986
      %v5988 = vand.u32 %v5789, 4294901760
      %v5989 = vsub.f32 %v5789, %v5988
      %5990 = vmatpush.msra.mxu0 %v5989
      %v5991 = vand.u32 %v5788, 4294901760
      %v5992 = vsub.f32 %v5788, %v5991
      %5993 = vmatpush.msra.mxu0 %v5992
      %v5994 = vand.u32 %v5787, 4294901760
      %v5995 = vsub.f32 %v5787, %v5994
      %5996 = vmatpush.msra.mxu0 %v5995
      %v5997 = vand.u32 %v5786, 4294901760
      %v5998 = vsub.f32 %v5786, %v5997
      %5999 = vmatpush.msra.mxu0 %v5998
      %v6000 = vand.u32 %v5785, 4294901760
      %v6001 = vsub.f32 %v5785, %v6000
      %6002 = vmatpush.msra.mxu0 %v6001
      %v6003 = vand.u32 %v5783, 4294901760
      %v6004 = vsub.f32 %v5783, %v6003
      %6005 = vmatmul.f32.gmra.mxu0 %v6004
      %v6006 = vpop.f32.mrf.mxu0
      %v6007 = vadd.f32 %v5949, %v6006
      %v6008 = vand.u32 %v5784, 4294901760
      %v6009 = vsub.f32 %v5784, %v6008
      %6010 = vmatmul.f32.gmra.mxu0 %v6009
      %v6011 = vpop.f32.mrf.mxu0
      %v6012 = vadd.f32 %v5953, %v6011
      %6013 = vdwg.mxu0
      %v6014 = vand.u32 %v5800, 4294901760
      %6015 = vmatpush.msra.mxu0 %v6014
      %v6016 = vand.u32 %v5799, 4294901760
      %6017 = vmatpush.msra.mxu0 %v6016
      %v6018 = vand.u32 %v5798, 4294901760
      %6019 = vmatpush.msra.mxu0 %v6018
      %v6020 = vand.u32 %v5797, 4294901760
      %6021 = vmatpush.msra.mxu0 %v6020
      %v6022 = vand.u32 %v5796, 4294901760
      %6023 = vmatpush.msra.mxu0 %v6022
      %v6024 = vand.u32 %v5795, 4294901760
      %6025 = vmatpush.msra.mxu0 %v6024
      %v6026 = vand.u32 %v5794, 4294901760
      %6027 = vmatpush.msra.mxu0 %v6026
      %v6028 = vand.u32 %v5793, 4294901760
      %6029 = vmatpush.msra.mxu0 %v6028
      %v6030 = vand.u32 %v5792, 4294901760
      %6031 = vmatpush.msra.mxu0 %v6030
      %v6032 = vand.u32 %v5791, 4294901760
      %6033 = vmatpush.msra.mxu0 %v6032
      %v6034 = vand.u32 %v5790, 4294901760
      %6035 = vmatpush.msra.mxu0 %v6034
      %v6036 = vand.u32 %v5789, 4294901760
      %6037 = vmatpush.msra.mxu0 %v6036
      %v6038 = vand.u32 %v5788, 4294901760
      %6039 = vmatpush.msra.mxu0 %v6038
      %v6040 = vand.u32 %v5787, 4294901760
      %6041 = vmatpush.msra.mxu0 %v6040
      %v6042 = vand.u32 %v5786, 4294901760
      %6043 = vmatpush.msra.mxu0 %v6042
      %v6044 = vand.u32 %v5785, 4294901760
      %6045 = vmatpush.msra.mxu0 %v6044
      %v6046 = vand.u32 %v5783, 4294901760
      %v6047 = vsub.f32 %v5783, %v6046
      %v6048 = vand.u32 %v6047, 4294901760
      %6049 = vmatmul.f32.gmra.mxu0 %v6048
      %v6050 = vpop.f32.mrf.mxu0
      %v6051 = vadd.f32 %v6007, %v6050
      %v6052 = vand.u32 %v5784, 4294901760
      %v6053 = vsub.f32 %v5784, %v6052
      %v6054 = vand.u32 %v6053, 4294901760
      %6055 = vmatmul.f32.gmra.mxu0 %v6054
      %v6056 = vpop.f32.mrf.mxu0
      %v6057 = vadd.f32 %v6012, %v6056
      %6058 = vdwg.mxu0
      %v6059 = vand.u32 %v5800, 4294901760
      %v6060 = vsub.f32 %v5800, %v6059
      %v6061 = vand.u32 %v6060, 4294901760
      %6062 = vmatpush.msra.mxu0 %v6061
      %v6063 = vand.u32 %v5799, 4294901760
      %v6064 = vsub.f32 %v5799, %v6063
      %v6065 = vand.u32 %v6064, 4294901760
      %6066 = vmatpush.msra.mxu0 %v6065
      %v6067 = vand.u32 %v5798, 4294901760
      %v6068 = vsub.f32 %v5798, %v6067
      %v6069 = vand.u32 %v6068, 4294901760
      %6070 = vmatpush.msra.mxu0 %v6069
      %v6071 = vand.u32 %v5797, 4294901760
      %v6072 = vsub.f32 %v5797, %v6071
      %v6073 = vand.u32 %v6072, 4294901760
      %6074 = vmatpush.msra.mxu0 %v6073
      %v6075 = vand.u32 %v5796, 4294901760
      %v6076 = vsub.f32 %v5796, %v6075
      %v6077 = vand.u32 %v6076, 4294901760
      %6078 = vmatpush.msra.mxu0 %v6077
      %v6079 = vand.u32 %v5795, 4294901760
      %v6080 = vsub.f32 %v5795, %v6079
      %v6081 = vand.u32 %v6080, 4294901760
      %6082 = vmatpush.msra.mxu0 %v6081
      %v6083 = vand.u32 %v5794, 4294901760
      %v6084 = vsub.f32 %v5794, %v6083
      %v6085 = vand.u32 %v6084, 4294901760
      %6086 = vmatpush.msra.mxu0 %v6085
      %v6087 = vand.u32 %v5793, 4294901760
      %v6088 = vsub.f32 %v5793, %v6087
      %v6089 = vand.u32 %v6088, 4294901760
      %6090 = vmatpush.msra.mxu0 %v6089
      %v6091 = vand.u32 %v5792, 4294901760
      %v6092 = vsub.f32 %v5792, %v6091
      %v6093 = vand.u32 %v6092, 4294901760
      %6094 = vmatpush.msra.mxu0 %v6093
      %v6095 = vand.u32 %v5791, 4294901760
      %v6096 = vsub.f32 %v5791, %v6095
      %v6097 = vand.u32 %v6096, 4294901760
      %6098 = vmatpush.msra.mxu0 %v6097
      %v6099 = vand.u32 %v5790, 4294901760
      %v6100 = vsub.f32 %v5790, %v6099
      %v6101 = vand.u32 %v6100, 4294901760
      %6102 = vmatpush.msra.mxu0 %v6101
      %v6103 = vand.u32 %v5789, 4294901760
      %v6104 = vsub.f32 %v5789, %v6103
      %v6105 = vand.u32 %v6104, 4294901760
      %6106 = vmatpush.msra.mxu0 %v6105
      %v6107 = vand.u32 %v5788, 4294901760
      %v6108 = vsub.f32 %v5788, %v6107
      %v6109 = vand.u32 %v6108, 4294901760
      %6110 = vmatpush.msra.mxu0 %v6109
      %v6111 = vand.u32 %v5787, 4294901760
      %v6112 = vsub.f32 %v5787, %v6111
      %v6113 = vand.u32 %v6112, 4294901760
      %6114 = vmatpush.msra.mxu0 %v6113
      %v6115 = vand.u32 %v5786, 4294901760
      %v6116 = vsub.f32 %v5786, %v6115
      %v6117 = vand.u32 %v6116, 4294901760
      %6118 = vmatpush.msra.mxu0 %v6117
      %v6119 = vand.u32 %v5785, 4294901760
      %v6120 = vsub.f32 %v5785, %v6119
      %v6121 = vand.u32 %v6120, 4294901760
      %6122 = vmatpush.msra.mxu0 %v6121
      %v6123 = vand.u32 %v5783, 4294901760
      %6124 = vmatmul.f32.gmra.mxu0 %v6123
      %v6125 = vpop.f32.mrf.mxu0
      %v6126 = vadd.f32 %v6051, %v6125
      %v6127 = vand.u32 %v5784, 4294901760
      %6128 = vmatmul.f32.gmra.mxu0 %v6127
      %v6129 = vpop.f32.mrf.mxu0
      %v6130 = vadd.f32 %v6057, %v6129
      %6131 = vdwg.mxu0
      %v6132 = vand.u32 %v5800, 4294901760
      %6133 = vmatpush.msra.mxu0 %v6132
      %v6134 = vand.u32 %v5799, 4294901760
      %6135 = vmatpush.msra.mxu0 %v6134
      %v6136 = vand.u32 %v5798, 4294901760
      %6137 = vmatpush.msra.mxu0 %v6136
      %v6138 = vand.u32 %v5797, 4294901760
      %6139 = vmatpush.msra.mxu0 %v6138
      %v6140 = vand.u32 %v5796, 4294901760
      %6141 = vmatpush.msra.mxu0 %v6140
      %v6142 = vand.u32 %v5795, 4294901760
      %6143 = vmatpush.msra.mxu0 %v6142
      %v6144 = vand.u32 %v5794, 4294901760
      %6145 = vmatpush.msra.mxu0 %v6144
      %v6146 = vand.u32 %v5793, 4294901760
      %6147 = vmatpush.msra.mxu0 %v6146
      %v6148 = vand.u32 %v5792, 4294901760
      %6149 = vmatpush.msra.mxu0 %v6148
      %v6150 = vand.u32 %v5791, 4294901760
      %6151 = vmatpush.msra.mxu0 %v6150
      %v6152 = vand.u32 %v5790, 4294901760
      %6153 = vmatpush.msra.mxu0 %v6152
      %v6154 = vand.u32 %v5789, 4294901760
      %6155 = vmatpush.msra.mxu0 %v6154
      %v6156 = vand.u32 %v5788, 4294901760
      %6157 = vmatpush.msra.mxu0 %v6156
      %v6158 = vand.u32 %v5787, 4294901760
      %6159 = vmatpush.msra.mxu0 %v6158
      %v6160 = vand.u32 %v5786, 4294901760
      %6161 = vmatpush.msra.mxu0 %v6160
      %v6162 = vand.u32 %v5785, 4294901760
      %6163 = vmatpush.msra.mxu0 %v6162
      %v6164 = vand.u32 %v5783, 4294901760
      %6165 = vmatmul.f32.gmra.mxu0 %v6164
      %v6166 = vpop.f32.mrf.mxu0
      %v6167 = vadd.f32 %v6126, %v6166
      %v6168 = vand.u32 %v5784, 4294901760
      %6169 = vmatmul.f32.gmra.mxu0 %v6168
      %v6170 = vpop.f32.mrf.mxu0
      %v6171 = vadd.f32 %v6130, %v6170
      %6172 = vdwg.mxu0
      %vm6173 = vcmp.lt.s32.totalorder %v261, 7
      %v6174 = vsel %vm6173, 1, 0
      %vm6175 = vcmp.eq.s32.totalorder %v6174, 1
      %v6176 = vsel %vm6175, %v6167, -1e+30
      %v6177 = vsel %vm6175, %v6171, -1e+30
      %6178 = vmax.xlane.f32.xlu0 %v6176
      %v6179 = vpop.xlane.xlu0 %6178
      %6180 = vmax.xlane.f32.xlu0 %v6177
      %v6181 = vpop.xlane.xlu0 %6180
      %v6182 = vsub.f32 %v6176, %v6179
      %v6183 = vsub.f32 %v6177, %v6181
      %v6184 = vmul.f32 %v6182, 1.442695
      %v6185 = vpow.pop %v6184
      %v6186 = vmul.f32 %v6183, 1.442695
      %v6187 = vpow.pop %v6186
      %6188 = vadd.xlane.f32.xlu0 %v6185
      %v6189 = vpop.xlane.xlu0 %6188
      %6190 = vadd.xlane.f32.xlu0 %v6187
      %v6191 = vpop.xlane.xlu0 %6190
      %v6192 = vrcp.pop %v6189
      %v6193 = vmul.f32 %v6189, %v6192
      %v6194 = vsub.f32 1.0, %v6193
      %v6195 = vmul.f32 %v6192, %v6194
      %v6196 = vadd.f32 %v6192, %v6195
      %vm6197 = vweird.f32 %v6189
      %vm6198 = vweird.f32 %v6192
      %vm6199 = vmor %vm6197, %vm6198
      %v6200 = vsel %vm6199, %v6192, %v6196
      %v6201 = vand.u32 2147483647, %v6189
      %vm6202 = vcmp.eq.f32.partialorder %v6201, 8.507059e+37
      %v6203 = vand.u32 %v6189, 2147483648
      %v6204 = vor.u32 1.1754944e-38, %v6203
      %v6205 = vsel %vm6202, %v6204, %v6200
      %v6206 = vmul.f32 %v6185, %v6205
      %v6207 = vrcp.pop %v6191
      %v6208 = vmul.f32 %v6191, %v6207
      %v6209 = vsub.f32 1.0, %v6208
      %v6210 = vmul.f32 %v6207, %v6209
      %v6211 = vadd.f32 %v6207, %v6210
      %vm6212 = vweird.f32 %v6191
      %vm6213 = vweird.f32 %v6207
      %vm6214 = vmor %vm6212, %vm6213
      %v6215 = vsel %vm6214, %v6207, %v6211
      %v6216 = vand.u32 2147483647, %v6191
      %vm6217 = vcmp.eq.f32.partialorder %v6216, 8.507059e+37
      %v6218 = vand.u32 %v6191, 2147483648
      %v6219 = vor.u32 1.1754944e-38, %v6218
      %v6220 = vsel %vm6217, %v6219, %v6215
      %v6221 = vmul.f32 %v6187, %v6220
      %6222 = vst [vmem:[%s226] sm:$0xff] %v6206
      %6223 = vst [vmem:[%s226 + $0x8] sm:$0xff] %v6221
      %s6224 = smul.u32 2, %s16
      %p6225 = scmp.lt.s32.totalorder %s6224, 3
      %s6226 = scalar_select %p6225, %s6224, 3
      %s6227 = smul.addr %s6226, 8
      %s6228 = scalar_lea.vmem %s5, %s6227
      // Predicated region
      $region41: #{cnn_forward.1} parent=39 // pred_check
        %p6229 = pneg %p144
      $region42: #{cnn_forward.1} parent=39 // pred_check_branch
        %6231 = sbr.rel (%p6229) target = $region44
      $region43: #{cnn_forward.1} parent=39 // pred_region
        %s6232 = smul.u32 2, %s16
      $region44: #{cnn_forward.1} parent=39 // pred_fallthru
        _
    $region40: #{cnn_forward.1} parent=5 // pred_fallthru
      _
    %p6233 = scmp.le.s32.totalorder 2, %s11
    // Predicated region
    $region45: #{cnn_forward.1} parent=5 // pred_check
      %p6234 = pneg %p6233
    $region46: #{cnn_forward.1} parent=5 // pred_check_branch
      %6236 = sbr.rel (%p6234) target = $region48
    $region47: #{cnn_forward.1} parent=5 // pred_region
      %s6237 = ssub.s32 %s11, 2
      // Predicated region
      $region49: #{cnn_forward.1} parent=47 // pred_check
        %p6238 = pneg %p150
      $region50: #{cnn_forward.1} parent=47 // pred_check_branch
        %6240 = sbr.rel (%p6238) target = $region52
      $region51: #{cnn_forward.1} parent=47 // pred_region
        %s6241 = smul.u32 2, %s17
        %p6242 = scmp.lt.s32.totalorder %s6241, 3
        %s6243 = scalar_select %p6242, %s6241, 3
        %s6244 = smul.addr %s6243, 8
        %s6245 = scalar_lea.vmem %s5, %s6244
      $region52: #{cnn_forward.1} parent=47 // pred_fallthru
        _
    $region48: #{cnn_forward.1} parent=5 // pred_fallthru
      _
  $region6: #{cnn_forward.1} parent=0 // loop_footer
    %s15 = sadd.s32 1, %s11
  $region7: #{cnn_forward.1} parent=0 // loop_footer_branch
    %10 = sbr.rel target = $region3
  $region8: #{cnn_forward.1} parent=0 // loop_exit
    _

</llo_original>
